<compile_context>
chip_gen: v7x
topology: tpu7x:2x2x1
jax: 0.10.0
libtpu: 0.0.40
codegen_flags: <defaults>
</compile_context>

<pallas_src>
import functools

import numpy as np
import jax
import jax.numpy as jnp
from jax import lax
from jax.experimental import pallas as pl
from jax.experimental.pallas import tpu as pltpu

EPS = 1e-5


def _resnet_dis_kernel(x_ref, w1_ref, b1_ref, w2_ref, b2_ref, wb_ref, bb_ref,
                       o_ref, pad_ref, pool_ref, *, N, H, W, Cin, Cout):
    """Whole forward pass for one (small) batch, resident in VMEM."""
    NP = N * H * W
    Ho, Wo = H // 2, W // 2
    Q = N * Ho * Wo
    Cmax = max(Cin, Cout)

    def batchnorm(t):
        # train-mode batch statistics over all rows, affine = identity, f32.
        m = jnp.mean(t, axis=0, keepdims=True)
        v = jnp.mean(t * t, axis=0, keepdims=True) - m * m    # one-pass variance
        return (t - m) * lax.rsqrt(v + EPS)

    def conv3x3(act_flat, C, w_ref, b_ref):
        # act_flat: (NP, C) f32, already normalized.
        # Write the interior of the shared padded scratch (halo already zero),
        # gather the 9 taps into a single (NP, 9*C) im2col slab and do ONE
        # bf16 MXU matmul with f32 accumulation.
        pad_ref[:, 1:H + 1, 1:W + 1, :C] = act_flat.reshape(N, H, W, C)
        taps = [pad_ref[:, dy:dy + H, dx:dx + W, :C].reshape(NP, C)
                for dy in range(3) for dx in range(3)]
        patches = jnp.concatenate(taps, axis=-1).astype(jnp.bfloat16)   # (NP, 9C)
        out = jnp.dot(patches, w_ref[...], preferred_element_type=jnp.float32)
        return out + b_ref[...]                                          # (NP, Cout)

    def avgpool2(flat, C):
        # flat: (NP, C) f32, rows ordered (n, h, w) with w fastest.
        # W-pairs are adjacent rows -> stride-2 row reads from the pooling
        # scratch; H-pairs become a leading-dim split + add (no relayout).
        pool_ref[:, :C] = flat
        even = pool_ref[pl.ds(0, NP // 2, stride=2), :]
        odd = pool_ref[pl.ds(1, NP // 2, stride=2), :]
        wsum = (even + odd)[:, :C]                              # (N*H*Wo, C)
        w4 = wsum.reshape(N * Ho, 2, Wo, C)
        return ((w4[:, 0] + w4[:, 1]) * 0.25).reshape(Q, C)     # (Q, C)

    # ---- zero only the 1-pixel halo of the shared padded scratch (not the
    # whole buffer: the interior is fully overwritten by each conv pass) ----
    zrow = jnp.zeros((N, 1, W + 2, Cmax), jnp.float32)
    zcol = jnp.zeros((N, H + 2, 1, Cmax), jnp.float32)
    pad_ref[:, 0:1, :, :] = zrow
    pad_ref[:, H + 1:H + 2, :, :] = zrow
    pad_ref[:, :, 0:1, :] = zcol
    pad_ref[:, :, W + 1:W + 2, :] = zcol

    # ---------------- main path ----------------
    xf = x_ref[...].reshape(NP, Cin)                      # (pixels, Cin) f32
    h1 = conv3x3(batchnorm(xf), Cin, w1_ref, b1_ref)      # bn1 -> conv1
    h1 = jnp.maximum(h1, 0.0)                             # ReLU
    h2 = conv3x3(batchnorm(h1), Cout, w2_ref, b2_ref)     # bn2 -> conv2
    main = avgpool2(h2, Cout)                             # AvgPool2d(2), (Q, Cout)

    # ---------------- bypass ----------------
    xp = avgpool2(xf, Cin)                                # AvgPool2d(2) of x
    xpbn = batchnorm(xp).astype(jnp.bfloat16)             # bn3
    byp = jnp.dot(xpbn, wb_ref[...],
                  preferred_element_type=jnp.float32) + bb_ref[...]

    res = main + byp                                      # (Q, Cout) f32

    # ---- lane-dense store: (Cout, Q) via a tiny MXU transpose (I @ res^T) ----
    ident = (lax.broadcasted_iota(jnp.int32, (Cout, Cout), 0) ==
             lax.broadcasted_iota(jnp.int32, (Cout, Cout), 1)).astype(jnp.float32)
    o_ref[...] = lax.dot_general(ident, res, (((1,), (1,)), ((), ())),
                                 preferred_element_type=jnp.float32)


def first_resnet_dis(x_nchw, params):
    """NCHW in, NCHW out — same contract as the PyTorch module."""
    N, Cin, H, W = x_nchw.shape
    Cout = params["w1"].shape[-1]
    assert H % 2 == 0 and W % 16 == 0, "kernel assumes even H and lane-tile friendly W"
    Ho, Wo = H // 2, W // 2
    Q = N * Ho * Wo
    Cmax = max(Cin, Cout)

    x_nhwc = jnp.transpose(x_nchw, (0, 2, 3, 1)).astype(jnp.float32)
    # conv weights: tap-major (9, Ci, Co) -> (9*Ci, Co), bf16 MXU operands.
    w1 = params["w1"].reshape(9 * Cin, Cout).astype(jnp.bfloat16)
    w2 = params["w2"].reshape(9 * Cout, Cout).astype(jnp.bfloat16)
    wb = params["wb"].astype(jnp.bfloat16)

    kernel = functools.partial(_resnet_dis_kernel,
                               N=N, H=H, W=W, Cin=Cin, Cout=Cout)

    def full(shape):
        n = len(shape)
        return pl.BlockSpec(shape, lambda i, n=n: (0,) * n)

    # TODO(synk): for large N*H*W (and to use both v7x TensorCores) tile the pixel
    # dimension with a real grid and compute BN batch statistics in a cheap first
    # pass; at this size a single VMEM-resident shot is the right shape.
    out_t = pl.pallas_call(
        kernel,
        out_shape=jax.ShapeDtypeStruct((Cout, Q), jnp.float32),
        grid_spec=pltpu.PrefetchScalarGridSpec(
            num_scalar_prefetch=0,
            grid=(1,),
            in_specs=[
                full((N, H, W, Cin)),       # x (NHWC, f32)
                full((9 * Cin, Cout)),      # conv1 weights (bf16)
                full((1, Cout)),            # conv1 bias (f32)
                full((9 * Cout, Cout)),     # conv2 weights (bf16)
                full((1, Cout)),            # conv2 bias (f32)
                full((Cin, Cout)),          # bypass 1x1 weights (bf16)
                full((1, Cout)),            # bypass bias (f32)
            ],
            out_specs=full((Cout, Q)),
            scratch_shapes=[
                # shared zero-padded activation buffer (conv1 then conv2)
                pltpu.VMEM((N, H + 2, W + 2, Cmax), jnp.float32),
                # shared pooling buffer (main path then bypass)
                pltpu.VMEM((N * H * W, Cmax), jnp.float32),
            ],
        ),
        compiler_params=pltpu.CompilerParams(
            dimension_semantics=("arbitrary",),
            vmem_limit_bytes=32 * 1024 * 1024,   # explicit headroom vs. scoped default
        ),
    )(x_nhwc, w1, params["b1"], w2, params["b2"], wb, params["bb"])

    # lane-dense (Cout, N*Ho*Wo) slab -> NCHW: pure layout plumbing in XLA.
    return jnp.transpose(out_t.reshape(Cout, N, Ho, Wo), (1, 0, 2, 3))


def init_params(key, Cin, Cout):
    """Deterministic stand-in for the module's __init__ (xavier_uniform + default bias)."""
    ks = jax.random.split(key, 6)

    def xavier(k, shape, fan_in, fan_out, gain):
        bound = gain * np.sqrt(6.0 / (fan_in + fan_out))
        return jax.random.uniform(k, shape, jnp.float32, -bound, bound)

    def bias(k, shape, fan_in):
        bound = 1.0 / np.sqrt(fan_in)
        return jax.random.uniform(k, shape, jnp.float32, -bound, bound)

    # conv weights stored as (tap = ky*3+kx, Cin, Cout).
    w1 = xavier(ks[0], (9, Cin, Cout), Cin * 9, Cout * 9, 1.0)      # conv1, gain 1.0
    w2 = xavier(ks[1], (9, Cout, Cout), Cout * 9, Cout * 9, 1.0)    # conv2, gain 1.0
    wb = xavier(ks[2], (Cin, Cout), Cin, Cout, 1.4142)              # bypass, gain sqrt(2)
    b1 = bias(ks[3], (1, Cout), Cin * 9)
    b2 = bias(ks[4], (1, Cout), Cout * 9)
    bb = bias(ks[5], (1, Cout), Cin)
    return dict(w1=w1, b1=b1, w2=w2, b2=b2, wb=wb, bb=bb)


def reference(x_nchw, params):
    """Pure-JAX reference of the PyTorch forward (train-mode BN).

    Conv operands are cast to bf16 with f32 accumulation to mirror the MXU
    operand precision used by the kernel; BN / bias / pooling stay f32.
    """
    x = jnp.transpose(x_nchw, (0, 2, 3, 1)).astype(jnp.float32)     # NHWC

    def bn(t):
        m = jnp.mean(t, axis=(0, 1, 2), keepdims=True)
        v = jnp.mean((t - m) ** 2, axis=(0, 1, 2), keepdims=True)
        return (t - m) * lax.rsqrt(v + EPS)

    def conv3x3(t, w_taps, b):
        w = w_taps.reshape(3, 3, w_taps.shape[1], w_taps.shape[2])  # HWIO
        y = lax.conv_general_dilated(t.astype(jnp.bfloat16), w.astype(jnp.bfloat16),
                                     (1, 1), "SAME",
                                     dimension_numbers=("NHWC", "HWIO", "NHWC"),
                                     preferred_element_type=jnp.float32)
        return y + b.reshape(1, 1, 1, -1)

    def avgpool2(t):
        n, h, w, c = t.shape
        return t.reshape(n, h // 2, 2, w // 2, 2, c).mean(axis=(2, 4))

    h = bn(x)
    h = conv3x3(h, params["w1"], params["b1"])
    h = jnp.maximum(h, 0.0)
    h = bn(h)
    h = conv3x3(h, params["w2"], params["b2"])
    main = avgpool2(h)

    byp = avgpool2(x)
    byp = bn(byp)
    byp = (jnp.dot(byp.astype(jnp.bfloat16), params["wb"].astype(jnp.bfloat16),
                   preferred_element_type=jnp.float32)
           + params["bb"].reshape(1, 1, 1, -1))

    out = main + byp
    return jnp.transpose(out, (0, 3, 1, 2))


if __name__ == "__main__":
    key = jax.random.PRNGKey(0)
    kx, kp = jax.random.split(key)

    N, Cin, Cout, H, W = 2, 4, 8, 16, 16
    x = jax.random.normal(kx, (N, Cin, H, W), jnp.float32)          # NCHW like PyTorch
    params = init_params(kp, Cin, Cout)

    out = first_resnet_dis(x, params)
    out = jax.block_until_ready(out)

    ref = reference(x, params)
    np.testing.assert_allclose(np.asarray(out), np.asarray(ref), rtol=5e-3, atol=5e-3)

    print("KERNEL_OK")
</pallas_src>

<mosaic_0001>
module attributes {stable_mosaic.version = 11 : i64} {
  func.func @_resnet_dis_kernel(%arg0: i32, %arg1: memref<2x16x16x4xf32, #tpu.memory_space<vmem>>, %arg2: memref<36x8xbf16, #tpu.memory_space<vmem>>, %arg3: memref<1x8xf32, #tpu.memory_space<vmem>>, %arg4: memref<72x8xbf16, #tpu.memory_space<vmem>>, %arg5: memref<1x8xf32, #tpu.memory_space<vmem>>, %arg6: memref<4x8xbf16, #tpu.memory_space<vmem>>, %arg7: memref<1x8xf32, #tpu.memory_space<vmem>>, %arg8: memref<8x128xf32, #tpu.memory_space<vmem>>, %arg9: memref<2x18x18x8xf32, #tpu.memory_space<vmem>>, %arg10: memref<512x8xf32, #tpu.memory_space<vmem>>) attributes {dimension_semantics = [#tpu.dimension_semantics<arbitrary>], iteration_bounds = array<i64: 1>, scalar_prefetch = 0 : i64, scratch_operands = 2 : i64, tpu.core_type = #tpu.core_type<tc>, window_params = [{pipeline_mode = #tpu.pipeline_mode<synchronous>, transform_indices = @transform_0, window_bounds = array<i64: 2, 16, 16, 4>}, {pipeline_mode = #tpu.pipeline_mode<synchronous>, transform_indices = @transform_1, window_bounds = array<i64: 36, 8>}, {pipeline_mode = #tpu.pipeline_mode<synchronous>, transform_indices = @transform_2, window_bounds = array<i64: 1, 8>}, {pipeline_mode = #tpu.pipeline_mode<synchronous>, transform_indices = @transform_3, window_bounds = array<i64: 72, 8>}, {pipeline_mode = #tpu.pipeline_mode<synchronous>, transform_indices = @transform_4, window_bounds = array<i64: 1, 8>}, {pipeline_mode = #tpu.pipeline_mode<synchronous>, transform_indices = @transform_5, window_bounds = array<i64: 4, 8>}, {pipeline_mode = #tpu.pipeline_mode<synchronous>, transform_indices = @transform_6, window_bounds = array<i64: 1, 8>}, {pipeline_mode = #tpu.pipeline_mode<synchronous>, transform_indices = @transform_7, window_bounds = array<i64: 8, 128>}]} {
    %cst = arith.constant 0.000000e+00 : f32
    %0 = vector.broadcast %cst : f32 to vector<2x1x18x8xf32>
    %cst_0 = arith.constant 0.000000e+00 : f32
    %1 = vector.broadcast %cst_0 : f32 to vector<2x18x1x8xf32>
    %c0 = arith.constant 0 : index
    %c0_1 = arith.constant 0 : index
    %c0_2 = arith.constant 0 : index
    %c0_3 = arith.constant 0 : index
    %2 = vector.load %arg9[%c0, %c0_1, %c0_2, %c0_3] : memref<2x18x18x8xf32, #tpu.memory_space<vmem>>, vector<2x1x18x8xf32>
    tpu.vector_store %arg9[%c0, %c0_1, %c0_2, %c0_3], %0 {strides = array<i32>} : memref<2x18x18x8xf32, #tpu.memory_space<vmem>>, vector<2x1x18x8xf32>,
    %c0_4 = arith.constant 0 : index
    %c17 = arith.constant 17 : index
    %c0_5 = arith.constant 0 : index
    %c0_6 = arith.constant 0 : index
    %3 = vector.load %arg9[%c0_4, %c17, %c0_5, %c0_6] : memref<2x18x18x8xf32, #tpu.memory_space<vmem>>, vector<2x1x18x8xf32>
    tpu.vector_store %arg9[%c0_4, %c17, %c0_5, %c0_6], %0 {strides = array<i32>} : memref<2x18x18x8xf32, #tpu.memory_space<vmem>>, vector<2x1x18x8xf32>,
    %c0_7 = arith.constant 0 : index
    %c0_8 = arith.constant 0 : index
    %c0_9 = arith.constant 0 : index
    %c0_10 = arith.constant 0 : index
    %4 = vector.load %arg9[%c0_7, %c0_8, %c0_9, %c0_10] : memref<2x18x18x8xf32, #tpu.memory_space<vmem>>, vector<2x18x1x8xf32>
    tpu.vector_store %arg9[%c0_7, %c0_8, %c0_9, %c0_10], %1 {strides = array<i32>} : memref<2x18x18x8xf32, #tpu.memory_space<vmem>>, vector<2x18x1x8xf32>,
    %c0_11 = arith.constant 0 : index
    %c0_12 = arith.constant 0 : index
    %c17_13 = arith.constant 17 : index
    %c0_14 = arith.constant 0 : index
    %5 = vector.load %arg9[%c0_11, %c0_12, %c17_13, %c0_14] : memref<2x18x18x8xf32, #tpu.memory_space<vmem>>, vector<2x18x1x8xf32>
    tpu.vector_store %arg9[%c0_11, %c0_12, %c17_13, %c0_14], %1 {strides = array<i32>} : memref<2x18x18x8xf32, #tpu.memory_space<vmem>>, vector<2x18x1x8xf32>,
    %c0_15 = arith.constant 0 : index
    %c0_16 = arith.constant 0 : index
    %c0_17 = arith.constant 0 : index
    %c0_18 = arith.constant 0 : index
    %6 = vector.load %arg1[%c0_15, %c0_16, %c0_17, %c0_18] : memref<2x16x16x4xf32, #tpu.memory_space<vmem>>, vector<2x16x16x4xf32>
    %7 = vector.shape_cast %6 : vector<2x16x16x4xf32> to vector<512x4xf32>
    %cst_19 = arith.constant dense<0.000000e+00> : vector<4xf32>
    %8 = vector.multi_reduction <add>, %7, %cst_19 [0] : vector<512x4xf32> to vector<4xf32>
    %9 = vector.shape_cast %8 : vector<4xf32> to vector<1x4xf32>
    %cst_20 = arith.constant 5.120000e+02 : f32
    %10 = vector.broadcast %cst_20 : f32 to vector<1x4xf32>
    %11 = arith.divf %9, %10 : vector<1x4xf32>
    %12 = arith.mulf %7, %7 : vector<512x4xf32>
    %cst_21 = arith.constant dense<0.000000e+00> : vector<4xf32>
    %13 = vector.multi_reduction <add>, %12, %cst_21 [0] : vector<512x4xf32> to vector<4xf32>
    %14 = vector.shape_cast %13 : vector<4xf32> to vector<1x4xf32>
    %cst_22 = arith.constant 5.120000e+02 : f32
    %15 = vector.broadcast %cst_22 : f32 to vector<1x4xf32>
    %16 = arith.divf %14, %15 : vector<1x4xf32>
    %17 = arith.mulf %11, %11 : vector<1x4xf32>
    %18 = arith.subf %16, %17 : vector<1x4xf32>
    %19 = vector.broadcast %11 : vector<1x4xf32> to vector<512x4xf32>
    %20 = arith.subf %7, %19 : vector<512x4xf32>
    %cst_23 = arith.constant 9.99999974E-6 : f32
    %21 = vector.broadcast %cst_23 : f32 to vector<1x4xf32>
    %22 = arith.addf %18, %21 : vector<1x4xf32>
    %23 = math.rsqrt %22 : vector<1x4xf32>
    %24 = vector.broadcast %23 : vector<1x4xf32> to vector<512x4xf32>
    %25 = arith.mulf %20, %24 : vector<512x4xf32>
    %26 = vector.shape_cast %25 : vector<512x4xf32> to vector<2x16x16x4xf32>
    %c0_24 = arith.constant 0 : index
    %c1 = arith.constant 1 : index
    %c1_25 = arith.constant 1 : index
    %c0_26 = arith.constant 0 : index
    %27 = vector.load %arg9[%c0_24, %c1, %c1_25, %c0_26] : memref<2x18x18x8xf32, #tpu.memory_space<vmem>>, vector<2x16x16x4xf32>
    tpu.vector_store %arg9[%c0_24, %c1, %c1_25, %c0_26], %26 {strides = array<i32>} : memref<2x18x18x8xf32, #tpu.memory_space<vmem>>, vector<2x16x16x4xf32>,
    %c0_27 = arith.constant 0 : index
    %c0_28 = arith.constant 0 : index
    %c0_29 = arith.constant 0 : index
    %c0_30 = arith.constant 0 : index
    %28 = vector.load %arg9[%c0_27, %c0_28, %c0_29, %c0_30] : memref<2x18x18x8xf32, #tpu.memory_space<vmem>>, vector<2x16x16x4xf32>
    %29 = vector.shape_cast %28 : vector<2x16x16x4xf32> to vector<512x4xf32>
    %c0_31 = arith.constant 0 : index
    %c0_32 = arith.constant 0 : index
    %c1_33 = arith.constant 1 : index
    %c0_34 = arith.constant 0 : index
    %30 = vector.load %arg9[%c0_31, %c0_32, %c1_33, %c0_34] : memref<2x18x18x8xf32, #tpu.memory_space<vmem>>, vector<2x16x16x4xf32>
    %31 = vector.shape_cast %30 : vector<2x16x16x4xf32> to vector<512x4xf32>
    %c0_35 = arith.constant 0 : index
    %c0_36 = arith.constant 0 : index
    %c2 = arith.constant 2 : index
    %c0_37 = arith.constant 0 : index
    %32 = vector.load %arg9[%c0_35, %c0_36, %c2, %c0_37] : memref<2x18x18x8xf32, #tpu.memory_space<vmem>>, vector<2x16x16x4xf32>
    %33 = vector.shape_cast %32 : vector<2x16x16x4xf32> to vector<512x4xf32>
    %c0_38 = arith.constant 0 : index
    %c1_39 = arith.constant 1 : index
    %c0_40 = arith.constant 0 : index
    %c0_41 = arith.constant 0 : index
    %34 = vector.load %arg9[%c0_38, %c1_39, %c0_40, %c0_41] : memref<2x18x18x8xf32, #tpu.memory_space<vmem>>, vector<2x16x16x4xf32>
    %35 = vector.shape_cast %34 : vector<2x16x16x4xf32> to vector<512x4xf32>
    %c0_42 = arith.constant 0 : index
    %c1_43 = arith.constant 1 : index
    %c1_44 = arith.constant 1 : index
    %c0_45 = arith.constant 0 : index
    %36 = vector.load %arg9[%c0_42, %c1_43, %c1_44, %c0_45] : memref<2x18x18x8xf32, #tpu.memory_space<vmem>>, vector<2x16x16x4xf32>
    %37 = vector.shape_cast %36 : vector<2x16x16x4xf32> to vector<512x4xf32>
    %c0_46 = arith.constant 0 : index
    %c1_47 = arith.constant 1 : index
    %c2_48 = arith.constant 2 : index
    %c0_49 = arith.constant 0 : index
    %38 = vector.load %arg9[%c0_46, %c1_47, %c2_48, %c0_49] : memref<2x18x18x8xf32, #tpu.memory_space<vmem>>, vector<2x16x16x4xf32>
    %39 = vector.shape_cast %38 : vector<2x16x16x4xf32> to vector<512x4xf32>
    %c0_50 = arith.constant 0 : index
    %c2_51 = arith.constant 2 : index
    %c0_52 = arith.constant 0 : index
    %c0_53 = arith.constant 0 : index
    %40 = vector.load %arg9[%c0_50, %c2_51, %c0_52, %c0_53] : memref<2x18x18x8xf32, #tpu.memory_space<vmem>>, vector<2x16x16x4xf32>
    %41 = vector.shape_cast %40 : vector<2x16x16x4xf32> to vector<512x4xf32>
    %c0_54 = arith.constant 0 : index
    %c2_55 = arith.constant 2 : index
    %c1_56 = arith.constant 1 : index
    %c0_57 = arith.constant 0 : index
    %42 = vector.load %arg9[%c0_54, %c2_55, %c1_56, %c0_57] : memref<2x18x18x8xf32, #tpu.memory_space<vmem>>, vector<2x16x16x4xf32>
    %43 = vector.shape_cast %42 : vector<2x16x16x4xf32> to vector<512x4xf32>
    %c0_58 = arith.constant 0 : index
    %c2_59 = arith.constant 2 : index
    %c2_60 = arith.constant 2 : index
    %c0_61 = arith.constant 0 : index
    %44 = vector.load %arg9[%c0_58, %c2_59, %c2_60, %c0_61] : memref<2x18x18x8xf32, #tpu.memory_space<vmem>>, vector<2x16x16x4xf32>
    %45 = vector.shape_cast %44 : vector<2x16x16x4xf32> to vector<512x4xf32>
    %46 = tpu.concatenate %29, %31, %33, %35, %37, %39, %41, %43, %45 in 1 : vector<512x4xf32>, vector<512x4xf32>, vector<512x4xf32>, vector<512x4xf32>, vector<512x4xf32>, vector<512x4xf32>, vector<512x4xf32>, vector<512x4xf32>, vector<512x4xf32> -> vector<512x36xf32>
    %47 = arith.truncf %46 : vector<512x36xf32> to vector<512x36xbf16>
    %c0_62 = arith.constant 0 : index
    %c0_63 = arith.constant 0 : index
    %48 = vector.load %arg2[%c0_62, %c0_63] : memref<36x8xbf16, #tpu.memory_space<vmem>>, vector<36x8xbf16>
    %cst_64 = arith.constant dense<0.000000e+00> : vector<512x8xf32>
    %49 = tpu.matmul %47, %48, %cst_64 {dimension_numbers = #tpu.dot_dimension_numbers<[1], [0], [0], [1], [0, 0, 1, 1], [], []>} : vector<512x36xbf16>, vector<36x8xbf16>, vector<512x8xf32> -> vector<512x8xf32>
    %c0_65 = arith.constant 0 : index
    %c0_66 = arith.constant 0 : index
    %50 = vector.load %arg3[%c0_65, %c0_66] : memref<1x8xf32, #tpu.memory_space<vmem>>, vector<1x8xf32>
    %51 = vector.broadcast %50 : vector<1x8xf32> to vector<512x8xf32>
    %52 = arith.addf %49, %51 : vector<512x8xf32>
    %cst_67 = arith.constant 0.000000e+00 : f32
    %53 = vector.broadcast %cst_67 : f32 to vector<512x8xf32>
    %54 = arith.maximumf %52, %53 : vector<512x8xf32>
    %cst_68 = arith.constant dense<0.000000e+00> : vector<8xf32>
    %55 = vector.multi_reduction <add>, %54, %cst_68 [0] : vector<512x8xf32> to vector<8xf32>
    %56 = vector.shape_cast %55 : vector<8xf32> to vector<1x8xf32>
    %cst_69 = arith.constant 5.120000e+02 : f32
    %57 = vector.broadcast %cst_69 : f32 to vector<1x8xf32>
    %58 = arith.divf %56, %57 : vector<1x8xf32>
    %59 = arith.mulf %54, %54 : vector<512x8xf32>
    %cst_70 = arith.constant dense<0.000000e+00> : vector<8xf32>
    %60 = vector.multi_reduction <add>, %59, %cst_70 [0] : vector<512x8xf32> to vector<8xf32>
    %61 = vector.shape_cast %60 : vector<8xf32> to vector<1x8xf32>
    %cst_71 = arith.constant 5.120000e+02 : f32
    %62 = vector.broadcast %cst_71 : f32 to vector<1x8xf32>
    %63 = arith.divf %61, %62 : vector<1x8xf32>
    %64 = arith.mulf %58, %58 : vector<1x8xf32>
    %65 = arith.subf %63, %64 : vector<1x8xf32>
    %66 = vector.broadcast %58 : vector<1x8xf32> to vector<512x8xf32>
    %67 = arith.subf %54, %66 : vector<512x8xf32>
    %cst_72 = arith.constant 9.99999974E-6 : f32
    %68 = vector.broadcast %cst_72 : f32 to vector<1x8xf32>
    %69 = arith.addf %65, %68 : vector<1x8xf32>
    %70 = math.rsqrt %69 : vector<1x8xf32>
    %71 = vector.broadcast %70 : vector<1x8xf32> to vector<512x8xf32>
    %72 = arith.mulf %67, %71 : vector<512x8xf32>
    %73 = vector.shape_cast %72 : vector<512x8xf32> to vector<2x16x16x8xf32>
    %c0_73 = arith.constant 0 : index
    %c1_74 = arith.constant 1 : index
    %c1_75 = arith.constant 1 : index
    %c0_76 = arith.constant 0 : index
    %74 = vector.load %arg9[%c0_73, %c1_74, %c1_75, %c0_76] : memref<2x18x18x8xf32, #tpu.memory_space<vmem>>, vector<2x16x16x8xf32>
    tpu.vector_store %arg9[%c0_73, %c1_74, %c1_75, %c0_76], %73 {strides = array<i32>} : memref<2x18x18x8xf32, #tpu.memory_space<vmem>>, vector<2x16x16x8xf32>,
    %c0_77 = arith.constant 0 : index
    %c0_78 = arith.constant 0 : index
    %c0_79 = arith.constant 0 : index
    %c0_80 = arith.constant 0 : index
    %75 = vector.load %arg9[%c0_77, %c0_78, %c0_79, %c0_80] : memref<2x18x18x8xf32, #tpu.memory_space<vmem>>, vector<2x16x16x8xf32>
    %76 = vector.shape_cast %75 : vector<2x16x16x8xf32> to vector<512x8xf32>
    %c0_81 = arith.constant 0 : index
    %c0_82 = arith.constant 0 : index
    %c1_83 = arith.constant 1 : index
    %c0_84 = arith.constant 0 : index
    %77 = vector.load %arg9[%c0_81, %c0_82, %c1_83, %c0_84] : memref<2x18x18x8xf32, #tpu.memory_space<vmem>>, vector<2x16x16x8xf32>
    %78 = vector.shape_cast %77 : vector<2x16x16x8xf32> to vector<512x8xf32>
    %c0_85 = arith.constant 0 : index
    %c0_86 = arith.constant 0 : index
    %c2_87 = arith.constant 2 : index
    %c0_88 = arith.constant 0 : index
    %79 = vector.load %arg9[%c0_85, %c0_86, %c2_87, %c0_88] : memref<2x18x18x8xf32, #tpu.memory_space<vmem>>, vector<2x16x16x8xf32>
    %80 = vector.shape_cast %79 : vector<2x16x16x8xf32> to vector<512x8xf32>
    %c0_89 = arith.constant 0 : index
    %c1_90 = arith.constant 1 : index
    %c0_91 = arith.constant 0 : index
    %c0_92 = arith.constant 0 : index
    %81 = vector.load %arg9[%c0_89, %c1_90, %c0_91, %c0_92] : memref<2x18x18x8xf32, #tpu.memory_space<vmem>>, vector<2x16x16x8xf32>
    %82 = vector.shape_cast %81 : vector<2x16x16x8xf32> to vector<512x8xf32>
    %c0_93 = arith.constant 0 : index
    %c1_94 = arith.constant 1 : index
    %c1_95 = arith.constant 1 : index
    %c0_96 = arith.constant 0 : index
    %83 = vector.load %arg9[%c0_93, %c1_94, %c1_95, %c0_96] : memref<2x18x18x8xf32, #tpu.memory_space<vmem>>, vector<2x16x16x8xf32>
    %84 = vector.shape_cast %83 : vector<2x16x16x8xf32> to vector<512x8xf32>
    %c0_97 = arith.constant 0 : index
    %c1_98 = arith.constant 1 : index
    %c2_99 = arith.constant 2 : index
    %c0_100 = arith.constant 0 : index
    %85 = vector.load %arg9[%c0_97, %c1_98, %c2_99, %c0_100] : memref<2x18x18x8xf32, #tpu.memory_space<vmem>>, vector<2x16x16x8xf32>
    %86 = vector.shape_cast %85 : vector<2x16x16x8xf32> to vector<512x8xf32>
    %c0_101 = arith.constant 0 : index
    %c2_102 = arith.constant 2 : index
    %c0_103 = arith.constant 0 : index
    %c0_104 = arith.constant 0 : index
    %87 = vector.load %arg9[%c0_101, %c2_102, %c0_103, %c0_104] : memref<2x18x18x8xf32, #tpu.memory_space<vmem>>, vector<2x16x16x8xf32>
    %88 = vector.shape_cast %87 : vector<2x16x16x8xf32> to vector<512x8xf32>
    %c0_105 = arith.constant 0 : index
    %c2_106 = arith.constant 2 : index
    %c1_107 = arith.constant 1 : index
    %c0_108 = arith.constant 0 : index
    %89 = vector.load %arg9[%c0_105, %c2_106, %c1_107, %c0_108] : memref<2x18x18x8xf32, #tpu.memory_space<vmem>>, vector<2x16x16x8xf32>
    %90 = vector.shape_cast %89 : vector<2x16x16x8xf32> to vector<512x8xf32>
    %c0_109 = arith.constant 0 : index
    %c2_110 = arith.constant 2 : index
    %c2_111 = arith.constant 2 : index
    %c0_112 = arith.constant 0 : index
    %91 = vector.load %arg9[%c0_109, %c2_110, %c2_111, %c0_112] : memref<2x18x18x8xf32, #tpu.memory_space<vmem>>, vector<2x16x16x8xf32>
    %92 = vector.shape_cast %91 : vector<2x16x16x8xf32> to vector<512x8xf32>
    %93 = tpu.concatenate %76, %78, %80, %82, %84, %86, %88, %90, %92 in 1 : vector<512x8xf32>, vector<512x8xf32>, vector<512x8xf32>, vector<512x8xf32>, vector<512x8xf32>, vector<512x8xf32>, vector<512x8xf32>, vector<512x8xf32>, vector<512x8xf32> -> vector<512x72xf32>
    %94 = arith.truncf %93 : vector<512x72xf32> to vector<512x72xbf16>
    %c0_113 = arith.constant 0 : index
    %c0_114 = arith.constant 0 : index
    %95 = vector.load %arg4[%c0_113, %c0_114] : memref<72x8xbf16, #tpu.memory_space<vmem>>, vector<72x8xbf16>
    %cst_115 = arith.constant dense<0.000000e+00> : vector<512x8xf32>
    %96 = tpu.matmul %94, %95, %cst_115 {dimension_numbers = #tpu.dot_dimension_numbers<[1], [0], [0], [1], [0, 0, 1, 1], [], []>} : vector<512x72xbf16>, vector<72x8xbf16>, vector<512x8xf32> -> vector<512x8xf32>
    %c0_116 = arith.constant 0 : index
    %c0_117 = arith.constant 0 : index
    %97 = vector.load %arg5[%c0_116, %c0_117] : memref<1x8xf32, #tpu.memory_space<vmem>>, vector<1x8xf32>
    %98 = vector.broadcast %97 : vector<1x8xf32> to vector<512x8xf32>
    %99 = arith.addf %96, %98 : vector<512x8xf32>
    %c0_118 = arith.constant 0 : index
    %c0_119 = arith.constant 0 : index
    %100 = vector.load %arg10[%c0_118, %c0_119] : memref<512x8xf32, #tpu.memory_space<vmem>>, vector<512x8xf32>
    tpu.vector_store %arg10[%c0_118, %c0_119], %99 {strides = array<i32>} : memref<512x8xf32, #tpu.memory_space<vmem>>, vector<512x8xf32>,
    %c0_120 = arith.constant 0 : index
    %c0_121 = arith.constant 0 : index
    %101 = tpu.strided_load %arg10[%c0_120, %c0_121] {strides = array<i32: 2, 1>} : memref<512x8xf32, #tpu.memory_space<vmem>>, vector<256x8xf32>
    %c1_122 = arith.constant 1 : index
    %c0_123 = arith.constant 0 : index
    %102 = tpu.strided_load %arg10[%c1_122, %c0_123] {strides = array<i32: 2, 1>} : memref<512x8xf32, #tpu.memory_space<vmem>>, vector<256x8xf32>
    %103 = arith.addf %101, %102 : vector<256x8xf32>
    %104 = vector.shape_cast %103 : vector<256x8xf32> to vector<16x2x8x8xf32>
    %105 = vector.extract_strided_slice %104 {offsets = [0, 0, 0, 0], sizes = [16, 1, 8, 8], strides = [1, 1, 1, 1]} : vector<16x2x8x8xf32> to vector<16x1x8x8xf32>
    %106 = vector.shape_cast %105 : vector<16x1x8x8xf32> to vector<16x8x8xf32>
    %107 = vector.extract_strided_slice %104 {offsets = [0, 1, 0, 0], sizes = [16, 1, 8, 8], strides = [1, 1, 1, 1]} : vector<16x2x8x8xf32> to vector<16x1x8x8xf32>
    %108 = vector.shape_cast %107 : vector<16x1x8x8xf32> to vector<16x8x8xf32>
    %109 = arith.addf %106, %108 : vector<16x8x8xf32>
    %cst_124 = arith.constant 2.500000e-01 : f32
    %110 = vector.broadcast %cst_124 : f32 to vector<16x8x8xf32>
    %111 = arith.mulf %109, %110 : vector<16x8x8xf32>
    %112 = vector.shape_cast %111 : vector<16x8x8xf32> to vector<128x8xf32>
    %c0_125 = arith.constant 0 : index
    %c0_126 = arith.constant 0 : index
    %113 = vector.load %arg10[%c0_125, %c0_126] : memref<512x8xf32, #tpu.memory_space<vmem>>, vector<512x4xf32>
    tpu.vector_store %arg10[%c0_125, %c0_126], %7 {strides = array<i32>} : memref<512x8xf32, #tpu.memory_space<vmem>>, vector<512x4xf32>,
    %c0_127 = arith.constant 0 : index
    %c0_128 = arith.constant 0 : index
    %114 = tpu.strided_load %arg10[%c0_127, %c0_128] {strides = array<i32: 2, 1>} : memref<512x8xf32, #tpu.memory_space<vmem>>, vector<256x8xf32>
    %c1_129 = arith.constant 1 : index
    %c0_130 = arith.constant 0 : index
    %115 = tpu.strided_load %arg10[%c1_129, %c0_130] {strides = array<i32: 2, 1>} : memref<512x8xf32, #tpu.memory_space<vmem>>, vector<256x8xf32>
    %116 = arith.addf %114, %115 : vector<256x8xf32>
    %117 = vector.extract_strided_slice %116 {offsets = [0, 0], sizes = [256, 4], strides = [1, 1]} : vector<256x8xf32> to vector<256x4xf32>
    %118 = vector.shape_cast %117 : vector<256x4xf32> to vector<16x2x8x4xf32>
    %119 = vector.extract_strided_slice %118 {offsets = [0, 0, 0, 0], sizes = [16, 1, 8, 4], strides = [1, 1, 1, 1]} : vector<16x2x8x4xf32> to vector<16x1x8x4xf32>
    %120 = vector.shape_cast %119 : vector<16x1x8x4xf32> to vector<16x8x4xf32>
    %121 = vector.extract_strided_slice %118 {offsets = [0, 1, 0, 0], sizes = [16, 1, 8, 4], strides = [1, 1, 1, 1]} : vector<16x2x8x4xf32> to vector<16x1x8x4xf32>
    %122 = vector.shape_cast %121 : vector<16x1x8x4xf32> to vector<16x8x4xf32>
    %123 = arith.addf %120, %122 : vector<16x8x4xf32>
    %cst_131 = arith.constant 2.500000e-01 : f32
    %124 = vector.broadcast %cst_131 : f32 to vector<16x8x4xf32>
    %125 = arith.mulf %123, %124 : vector<16x8x4xf32>
    %126 = vector.shape_cast %125 : vector<16x8x4xf32> to vector<128x4xf32>
    %cst_132 = arith.constant dense<0.000000e+00> : vector<4xf32>
    %127 = vector.multi_reduction <add>, %126, %cst_132 [0] : vector<128x4xf32> to vector<4xf32>
    %128 = vector.shape_cast %127 : vector<4xf32> to vector<1x4xf32>
    %cst_133 = arith.constant 1.280000e+02 : f32
    %129 = vector.broadcast %cst_133 : f32 to vector<1x4xf32>
    %130 = arith.divf %128, %129 : vector<1x4xf32>
    %131 = arith.mulf %126, %126 : vector<128x4xf32>
    %cst_134 = arith.constant dense<0.000000e+00> : vector<4xf32>
    %132 = vector.multi_reduction <add>, %131, %cst_134 [0] : vector<128x4xf32> to vector<4xf32>
    %133 = vector.shape_cast %132 : vector<4xf32> to vector<1x4xf32>
    %cst_135 = arith.constant 1.280000e+02 : f32
    %134 = vector.broadcast %cst_135 : f32 to vector<1x4xf32>
    %135 = arith.divf %133, %134 : vector<1x4xf32>
    %136 = arith.mulf %130, %130 : vector<1x4xf32>
    %137 = arith.subf %135, %136 : vector<1x4xf32>
    %138 = vector.broadcast %130 : vector<1x4xf32> to vector<128x4xf32>
    %139 = arith.subf %126, %138 : vector<128x4xf32>
    %cst_136 = arith.constant 9.99999974E-6 : f32
    %140 = vector.broadcast %cst_136 : f32 to vector<1x4xf32>
    %141 = arith.addf %137, %140 : vector<1x4xf32>
    %142 = math.rsqrt %141 : vector<1x4xf32>
    %143 = vector.broadcast %142 : vector<1x4xf32> to vector<128x4xf32>
    %144 = arith.mulf %139, %143 : vector<128x4xf32>
    %145 = arith.truncf %144 : vector<128x4xf32> to vector<128x4xbf16>
    %c0_137 = arith.constant 0 : index
    %c0_138 = arith.constant 0 : index
    %146 = vector.load %arg6[%c0_137, %c0_138] : memref<4x8xbf16, #tpu.memory_space<vmem>>, vector<4x8xbf16>
    %cst_139 = arith.constant dense<0.000000e+00> : vector<128x8xf32>
    %147 = tpu.matmul %145, %146, %cst_139 {dimension_numbers = #tpu.dot_dimension_numbers<[1], [0], [0], [1], [0, 0, 1, 1], [], []>} : vector<128x4xbf16>, vector<4x8xbf16>, vector<128x8xf32> -> vector<128x8xf32>
    %c0_140 = arith.constant 0 : index
    %c0_141 = arith.constant 0 : index
    %148 = vector.load %arg7[%c0_140, %c0_141] : memref<1x8xf32, #tpu.memory_space<vmem>>, vector<1x8xf32>
    %149 = vector.broadcast %148 : vector<1x8xf32> to vector<128x8xf32>
    %150 = arith.addf %147, %149 : vector<128x8xf32>
    %151 = arith.addf %112, %150 : vector<128x8xf32>
    %152 = tpu.iota {dimensions = array<i32: 0>} : vector<8x8xi32>
    %153 = tpu.iota {dimensions = array<i32: 1>} : vector<8x8xi32>
    %154 = arith.cmpi eq, %152, %153 : vector<8x8xi32>
    %155 = arith.extui %154 : vector<8x8xi1> to vector<8x8xi32>
    %156 = arith.sitofp %155 : vector<8x8xi32> to vector<8x8xf32>
    %cst_142 = arith.constant dense<0.000000e+00> : vector<8x128xf32>
    %157 = tpu.matmul %156, %151, %cst_142 {dimension_numbers = #tpu.dot_dimension_numbers<[1], [1], [0], [0], [0, 0, 1, 0], [], []>} : vector<8x8xf32>, vector<128x8xf32>, vector<8x128xf32> -> vector<8x128xf32>
    %c0_143 = arith.constant 0 : index
    %c0_144 = arith.constant 0 : index
    %158 = vector.load %arg8[%c0_143, %c0_144] : memref<8x128xf32, #tpu.memory_space<vmem>>, vector<8x128xf32>
    tpu.vector_store %arg8[%c0_143, %c0_144], %157 {strides = array<i32>} : memref<8x128xf32, #tpu.memory_space<vmem>>, vector<8x128xf32>,
    return
  }
  func.func @transform_0(%arg0: i32) -> (i32, i32, i32, i32) {
    %c0_i32 = arith.constant 0 : i32
    %c0_i32_0 = arith.constant 0 : i32
    %c0_i32_1 = arith.constant 0 : i32
    %c0_i32_2 = arith.constant 0 : i32
    %c0_i32_3 = arith.constant 0 : i32
    return %c0_i32, %c0_i32_0, %c0_i32_1, %c0_i32_2 : i32, i32, i32, i32
  }
  func.func @transform_1(%arg0: i32) -> (i32, i32) {
    %c0_i32 = arith.constant 0 : i32
    %c0_i32_0 = arith.constant 0 : i32
    %c0_i32_1 = arith.constant 0 : i32
    return %c0_i32, %c0_i32_0 : i32, i32
  }
  func.func @transform_2(%arg0: i32) -> (i32, i32) {
    %c0_i32 = arith.constant 0 : i32
    %c0_i32_0 = arith.constant 0 : i32
    %c0_i32_1 = arith.constant 0 : i32
    return %c0_i32, %c0_i32_0 : i32, i32
  }
  func.func @transform_3(%arg0: i32) -> (i32, i32) {
    %c0_i32 = arith.constant 0 : i32
    %c0_i32_0 = arith.constant 0 : i32
    %c0_i32_1 = arith.constant 0 : i32
    return %c0_i32, %c0_i32_0 : i32, i32
  }
  func.func @transform_4(%arg0: i32) -> (i32, i32) {
    %c0_i32 = arith.constant 0 : i32
    %c0_i32_0 = arith.constant 0 : i32
    %c0_i32_1 = arith.constant 0 : i32
    return %c0_i32, %c0_i32_0 : i32, i32
  }
  func.func @transform_5(%arg0: i32) -> (i32, i32) {
    %c0_i32 = arith.constant 0 : i32
    %c0_i32_0 = arith.constant 0 : i32
    %c0_i32_1 = arith.constant 0 : i32
    return %c0_i32, %c0_i32_0 : i32, i32
  }
  func.func @transform_6(%arg0: i32) -> (i32, i32) {
    %c0_i32 = arith.constant 0 : i32
    %c0_i32_0 = arith.constant 0 : i32
    %c0_i32_1 = arith.constant 0 : i32
    return %c0_i32, %c0_i32_0 : i32, i32
  }
  func.func @transform_7(%arg0: i32) -> (i32, i32) {
    %c0_i32 = arith.constant 0 : i32
    %c0_i32_0 = arith.constant 0 : i32
    %c0_i32_1 = arith.constant 0 : i32
    return %c0_i32, %c0_i32_0 : i32, i32
  }
}

</mosaic_0001>

<llo_original>
// kernel: tpu_custom_call.1
$region0: #{tpu_custom_call.1}
  #allocation0 [shape = 'u32[]', space=smem, size = 0x4, offset = 0x4, fixed_abs, tag = 'smem constant byte address 0x4 - core index']
  #allocation1 [shape = 'u32[144,128]{1,0:T(1,128)}', space=vmem, size = 0x12000, scoped, tag = 'internal scratch']
  #allocation2 [shape = 'f32[2,18,18,8]{3,2,1,0:T(8,128)}', space=vmem, size = 0x6c000, scoped, tag = 'scratch operand']
  #allocation3 [shape = 'f32[512,8]{1,0:T(8,128)}', space=vmem, size = 0x40000, scoped, tag = 'scratch operand']
  %s0 = inlined_call_operand.vmem [shape: f32[2,16,16,4], index: 0, kind: input, shape index: {}]
  %s1 = inlined_call_operand.vmem [shape: bf16[36,8], index: 1, kind: input, shape index: {}]
  %s2 = inlined_call_operand.vmem [shape: f32[1,8], index: 2, kind: input, shape index: {}]
  %s3 = inlined_call_operand.vmem [shape: bf16[72,8], index: 3, kind: input, shape index: {}]
  %s4 = inlined_call_operand.vmem [shape: f32[1,8], index: 4, kind: input, shape index: {}]
  %s5 = inlined_call_operand.vmem [shape: bf16[4,8], index: 5, kind: input, shape index: {}]
  %s6 = inlined_call_operand.vmem [shape: f32[1,8], index: 6, kind: input, shape index: {}]
  %s7 = inlined_call_operand.hbm [shape: f32[8,128], index: 7, kind: output, shape index: {}]
  %s8 = sld [smem:[#allocation0]]
  $region38: #{tpu_custom_call.1} parent=0
    _
  %s10 = ssub.s32 1, %s8
  %s11 = scalar_select 0, %s10, %s8
  $region1: #{tpu_custom_call.1} parent=0
    #allocation4 [shape = 'u8[4096]{0}', space=vmem, size = 0x1000, scoped, tag = 'output window, operand 0, single buffered']
    #allocation5 [shape = 's32[1]{0}', space=sflag, size = 0x4, scoped, tag = 'scoped memory for tpu_custom_call.1']
    %12 = vsyncpa [#allocation5], 0
    // Predicated region
    $region2: #{tpu_custom_call.1} parent=1 // pred_check
      _
    $region3: #{tpu_custom_call.1} parent=1 // pred_check_branch
      %14 = sbr.rel (0) target = $region5
    $region4: #{tpu_custom_call.1} parent=1 // pred_region
      _
    $region5: #{tpu_custom_call.1} parent=1 // pred_fallthru
      _
    // Predicated region
    $region6: #{tpu_custom_call.1} parent=1 // pred_check
      _
    $region7: #{tpu_custom_call.1} parent=1 // pred_check_branch
      %16 = sbr.rel (0) target = $region9
    $region8: #{tpu_custom_call.1} parent=1 // pred_region
      _
    $region9: #{tpu_custom_call.1} parent=1 // pred_fallthru
      _
    // Predicated region
    $region10: #{tpu_custom_call.1} parent=1 // pred_check
      _
    $region11: #{tpu_custom_call.1} parent=1 // pred_check_branch
      %18 = sbr.rel (0) target = $region13
    $region12: #{tpu_custom_call.1} parent=1 // pred_region
      _
    $region13: #{tpu_custom_call.1} parent=1 // pred_fallthru
      _
    // Predicated region
    $region14: #{tpu_custom_call.1} parent=1 // pred_check
      _
    $region15: #{tpu_custom_call.1} parent=1 // pred_check_branch
      %20 = sbr.rel (0) target = $region17
    $region16: #{tpu_custom_call.1} parent=1 // pred_region
      _
    $region17: #{tpu_custom_call.1} parent=1 // pred_fallthru
      _
    // Predicated region
    $region18: #{tpu_custom_call.1} parent=1 // pred_check
      _
    $region19: #{tpu_custom_call.1} parent=1 // pred_check_branch
      %22 = sbr.rel (0) target = $region21
    $region20: #{tpu_custom_call.1} parent=1 // pred_region
      _
    $region21: #{tpu_custom_call.1} parent=1 // pred_fallthru
      _
    // Predicated region
    $region22: #{tpu_custom_call.1} parent=1 // pred_check
      _
    $region23: #{tpu_custom_call.1} parent=1 // pred_check_branch
      %24 = sbr.rel (0) target = $region25
    $region24: #{tpu_custom_call.1} parent=1 // pred_region
      _
    $region25: #{tpu_custom_call.1} parent=1 // pred_fallthru
      _
    // Predicated region
    $region26: #{tpu_custom_call.1} parent=1 // pred_check
      _
    $region27: #{tpu_custom_call.1} parent=1 // pred_check_branch
      %26 = sbr.rel (0) target = $region29
    $region28: #{tpu_custom_call.1} parent=1 // pred_region
      _
    $region29: #{tpu_custom_call.1} parent=1 // pred_fallthru
      _
    %vm28 = vcmask 64512
    %29 = vst.msk [vmem:[#allocation2] sm:$0xff] %vm28, 0.0
    %30 = vst.msk [vmem:[#allocation2 + $0x8] sm:$0xff] %vm28, 0.0
    %vm31 = vcmask 58368
    %32 = vst.msk [vmem:[#allocation2 + $0x10] sm:$0x3] %vm31, 0.0
    %33 = vst.msk [vmem:[#allocation2 + $0x1b0] sm:$0xff] %vm28, 0.0
    %34 = vst.msk [vmem:[#allocation2 + $0x1b8] sm:$0xff] %vm28, 0.0
    %35 = vst.msk [vmem:[#allocation2 + $0x1c0] sm:$0x3] %vm31, 0.0
    %s36 = scalar_lea.vmem [#allocation2], 408
    %37 = vst.msk [vmem:[%s36] sm:$0xff] %vm28, 0.0
    %38 = vst.msk [vmem:[%s36 + $0x8] sm:$0xff] %vm28, 0.0
    %39 = vst.msk [vmem:[%s36 + $0x10] sm:$0x3] %vm31, 0.0
    %40 = vst.msk [vmem:[%s36 + $0x1b0] sm:$0xff] %vm28, 0.0
    %41 = vst.msk [vmem:[%s36 + $0x1b8] sm:$0xff] %vm28, 0.0
    %42 = vst.msk [vmem:[%s36 + $0x1c0] sm:$0x3] %vm31, 0.0
    %vm43 = vcmask 57344
    %44 = vst.msk [vmem:[#allocation2] sm:$0x1] %vm43, 0.0
    %45 = vst.msk [vmem:[#allocation2 + $0x18] sm:$0x1] %vm43, 0.0
    %46 = vst.msk [vmem:[#allocation2 + $0x30] sm:$0x1] %vm43, 0.0
    %47 = vst.msk [vmem:[#allocation2 + $0x48] sm:$0x1] %vm43, 0.0
    %48 = vst.msk [vmem:[#allocation2 + $0x60] sm:$0x1] %vm43, 0.0
    %49 = vst.msk [vmem:[#allocation2 + $0x78] sm:$0x1] %vm43, 0.0
    %50 = vst.msk [vmem:[#allocation2 + $0x90] sm:$0x1] %vm43, 0.0
    %51 = vst.msk [vmem:[#allocation2 + $0xa8] sm:$0x1] %vm43, 0.0
    %52 = vst.msk [vmem:[#allocation2 + $0xc0] sm:$0x1] %vm43, 0.0
    %53 = vst.msk [vmem:[#allocation2 + $0xd8] sm:$0x1] %vm43, 0.0
    %54 = vst.msk [vmem:[#allocation2 + $0xf0] sm:$0x1] %vm43, 0.0
    %55 = vst.msk [vmem:[#allocation2 + $0x108] sm:$0x1] %vm43, 0.0
    %56 = vst.msk [vmem:[#allocation2 + $0x120] sm:$0x1] %vm43, 0.0
    %57 = vst.msk [vmem:[#allocation2 + $0x138] sm:$0x1] %vm43, 0.0
    %58 = vst.msk [vmem:[#allocation2 + $0x150] sm:$0x1] %vm43, 0.0
    %59 = vst.msk [vmem:[#allocation2 + $0x168] sm:$0x1] %vm43, 0.0
    %60 = vst.msk [vmem:[#allocation2 + $0x180] sm:$0x1] %vm43, 0.0
    %61 = vst.msk [vmem:[#allocation2 + $0x198] sm:$0x1] %vm43, 0.0
    %62 = vst.msk [vmem:[#allocation2 + $0x1b0] sm:$0x1] %vm43, 0.0
    %63 = vst.msk [vmem:[#allocation2 + $0x1c8] sm:$0x1] %vm43, 0.0
    %64 = vst.msk [vmem:[#allocation2 + $0x1e0] sm:$0x1] %vm43, 0.0
    %65 = vst.msk [vmem:[#allocation2 + $0x1f8] sm:$0x1] %vm43, 0.0
    %66 = vst.msk [vmem:[#allocation2 + $0x210] sm:$0x1] %vm43, 0.0
    %67 = vst.msk [vmem:[#allocation2 + $0x228] sm:$0x1] %vm43, 0.0
    %68 = vst.msk [vmem:[#allocation2 + $0x240] sm:$0x1] %vm43, 0.0
    %69 = vst.msk [vmem:[#allocation2 + $0x258] sm:$0x1] %vm43, 0.0
    %70 = vst.msk [vmem:[#allocation2 + $0x270] sm:$0x1] %vm43, 0.0
    %71 = vst.msk [vmem:[#allocation2 + $0x288] sm:$0x1] %vm43, 0.0
    %72 = vst.msk [vmem:[#allocation2 + $0x2a0] sm:$0x1] %vm43, 0.0
    %73 = vst.msk [vmem:[#allocation2 + $0x2b8] sm:$0x1] %vm43, 0.0
    %74 = vst.msk [vmem:[#allocation2 + $0x2d0] sm:$0x1] %vm43, 0.0
    %75 = vst.msk [vmem:[#allocation2 + $0x2e8] sm:$0x1] %vm43, 0.0
    %76 = vst.msk [vmem:[#allocation2 + $0x300] sm:$0x1] %vm43, 0.0
    %77 = vst.msk [vmem:[#allocation2 + $0x318] sm:$0x1] %vm43, 0.0
    %78 = vst.msk [vmem:[#allocation2 + $0x330] sm:$0x1] %vm43, 0.0
    %79 = vst.msk [vmem:[#allocation2 + $0x348] sm:$0x1] %vm43, 0.0
    %80 = vst.msk [vmem:[#allocation2 + $0x11] sm:$0x1] %vm43, 0.0
    %81 = vst.msk [vmem:[#allocation2 + $0x29] sm:$0x1] %vm43, 0.0
    %82 = vst.msk [vmem:[#allocation2 + $0x41] sm:$0x1] %vm43, 0.0
    %83 = vst.msk [vmem:[#allocation2 + $0x59] sm:$0x1] %vm43, 0.0
    %84 = vst.msk [vmem:[#allocation2 + $0x71] sm:$0x1] %vm43, 0.0
    %85 = vst.msk [vmem:[#allocation2 + $0x89] sm:$0x1] %vm43, 0.0
    %86 = vst.msk [vmem:[#allocation2 + $0xa1] sm:$0x1] %vm43, 0.0
    %87 = vst.msk [vmem:[#allocation2 + $0xb9] sm:$0x1] %vm43, 0.0
    %88 = vst.msk [vmem:[#allocation2 + $0xd1] sm:$0x1] %vm43, 0.0
    %89 = vst.msk [vmem:[#allocation2 + $0xe9] sm:$0x1] %vm43, 0.0
    %90 = vst.msk [vmem:[#allocation2 + $0x101] sm:$0x1] %vm43, 0.0
    %91 = vst.msk [vmem:[#allocation2 + $0x119] sm:$0x1] %vm43, 0.0
    %92 = vst.msk [vmem:[#allocation2 + $0x131] sm:$0x1] %vm43, 0.0
    %93 = vst.msk [vmem:[#allocation2 + $0x149] sm:$0x1] %vm43, 0.0
    %94 = vst.msk [vmem:[#allocation2 + $0x161] sm:$0x1] %vm43, 0.0
    %95 = vst.msk [vmem:[#allocation2 + $0x179] sm:$0x1] %vm43, 0.0
    %96 = vst.msk [vmem:[#allocation2 + $0x191] sm:$0x1] %vm43, 0.0
    %97 = vst.msk [vmem:[#allocation2 + $0x1a9] sm:$0x1] %vm43, 0.0
    %98 = vst.msk [vmem:[#allocation2 + $0x1c1] sm:$0x1] %vm43, 0.0
    %99 = vst.msk [vmem:[#allocation2 + $0x1d9] sm:$0x1] %vm43, 0.0
    %100 = vst.msk [vmem:[#allocation2 + $0x1f1] sm:$0x1] %vm43, 0.0
    %101 = vst.msk [vmem:[#allocation2 + $0x209] sm:$0x1] %vm43, 0.0
    %102 = vst.msk [vmem:[#allocation2 + $0x221] sm:$0x1] %vm43, 0.0
    %103 = vst.msk [vmem:[#allocation2 + $0x239] sm:$0x1] %vm43, 0.0
    %104 = vst.msk [vmem:[#allocation2 + $0x251] sm:$0x1] %vm43, 0.0
    %105 = vst.msk [vmem:[#allocation2 + $0x269] sm:$0x1] %vm43, 0.0
    %106 = vst.msk [vmem:[#allocation2 + $0x281] sm:$0x1] %vm43, 0.0
    %107 = vst.msk [vmem:[#allocation2 + $0x299] sm:$0x1] %vm43, 0.0
    %108 = vst.msk [vmem:[#allocation2 + $0x2b1] sm:$0x1] %vm43, 0.0
    %109 = vst.msk [vmem:[#allocation2 + $0x2c9] sm:$0x1] %vm43, 0.0
    %110 = vst.msk [vmem:[#allocation2 + $0x2e1] sm:$0x1] %vm43, 0.0
    %111 = vst.msk [vmem:[#allocation2 + $0x2f9] sm:$0x1] %vm43, 0.0
    %112 = vst.msk [vmem:[#allocation2 + $0x311] sm:$0x1] %vm43, 0.0
    %113 = vst.msk [vmem:[#allocation2 + $0x329] sm:$0x1] %vm43, 0.0
    %114 = vst.msk [vmem:[#allocation2 + $0x341] sm:$0x1] %vm43, 0.0
    %115 = vst.msk [vmem:[#allocation2 + $0x359] sm:$0x1] %vm43, 0.0
    %v116 = vld [vmem:[%s0] sm:$0xff]
    %v117 = vld [vmem:[%s0 + $0x8] sm:$0xff]
    %v118 = vld [vmem:[%s0 + $0x10] sm:$0xff]
    %v119 = vld [vmem:[%s0 + $0x18] sm:$0xff]
    %v120 = vld [vmem:[%s0 + $0x20] sm:$0xff]
    %v121 = vld [vmem:[%s0 + $0x28] sm:$0xff]
    %v122 = vld [vmem:[%s0 + $0x30] sm:$0xff]
    %v123 = vld [vmem:[%s0 + $0x38] sm:$0xff]
    %v124 = vld [vmem:[%s0 + $0x40] sm:$0xff]
    %v125 = vld [vmem:[%s0 + $0x48] sm:$0xff]
    %v126 = vld [vmem:[%s0 + $0x50] sm:$0xff]
    %v127 = vld [vmem:[%s0 + $0x58] sm:$0xff]
    %v128 = vld [vmem:[%s0 + $0x60] sm:$0xff]
    %v129 = vld [vmem:[%s0 + $0x68] sm:$0xff]
    %v130 = vld [vmem:[%s0 + $0x70] sm:$0xff]
    %v131 = vld [vmem:[%s0 + $0x78] sm:$0xff]
    %v132 = vld [vmem:[%s0 + $0x80] sm:$0xff]
    %v133 = vld [vmem:[%s0 + $0x88] sm:$0xff]
    %v134 = vld [vmem:[%s0 + $0x90] sm:$0xff]
    %v135 = vld [vmem:[%s0 + $0x98] sm:$0xff]
    %v136 = vld [vmem:[%s0 + $0xa0] sm:$0xff]
    %v137 = vld [vmem:[%s0 + $0xa8] sm:$0xff]
    %v138 = vld [vmem:[%s0 + $0xb0] sm:$0xff]
    %v139 = vld [vmem:[%s0 + $0xb8] sm:$0xff]
    %v140 = vld [vmem:[%s0 + $0xc0] sm:$0xff]
    %v141 = vld [vmem:[%s0 + $0xc8] sm:$0xff]
    %v142 = vld [vmem:[%s0 + $0xd0] sm:$0xff]
    %v143 = vld [vmem:[%s0 + $0xd8] sm:$0xff]
    %v144 = vld [vmem:[%s0 + $0xe0] sm:$0xff]
    %v145 = vld [vmem:[%s0 + $0xe8] sm:$0xff]
    %v146 = vld [vmem:[%s0 + $0xf0] sm:$0xff]
    %v147 = vld [vmem:[%s0 + $0xf8] sm:$0xff]
    %v148 = vld [vmem:[%s0 + $0x100] sm:$0xff]
    %v149 = vld [vmem:[%s0 + $0x108] sm:$0xff]
    %v150 = vld [vmem:[%s0 + $0x110] sm:$0xff]
    %v151 = vld [vmem:[%s0 + $0x118] sm:$0xff]
    %v152 = vld [vmem:[%s0 + $0x120] sm:$0xff]
    %v153 = vld [vmem:[%s0 + $0x128] sm:$0xff]
    %v154 = vld [vmem:[%s0 + $0x130] sm:$0xff]
    %v155 = vld [vmem:[%s0 + $0x138] sm:$0xff]
    %v156 = vld [vmem:[%s0 + $0x140] sm:$0xff]
    %v157 = vld [vmem:[%s0 + $0x148] sm:$0xff]
    %v158 = vld [vmem:[%s0 + $0x150] sm:$0xff]
    %v159 = vld [vmem:[%s0 + $0x158] sm:$0xff]
    %v160 = vld [vmem:[%s0 + $0x160] sm:$0xff]
    %v161 = vld [vmem:[%s0 + $0x168] sm:$0xff]
    %v162 = vld [vmem:[%s0 + $0x170] sm:$0xff]
    %v163 = vld [vmem:[%s0 + $0x178] sm:$0xff]
    %v164 = vld [vmem:[%s0 + $0x180] sm:$0xff]
    %v165 = vld [vmem:[%s0 + $0x188] sm:$0xff]
    %v166 = vld [vmem:[%s0 + $0x190] sm:$0xff]
    %v167 = vld [vmem:[%s0 + $0x198] sm:$0xff]
    %v168 = vld [vmem:[%s0 + $0x1a0] sm:$0xff]
    %v169 = vld [vmem:[%s0 + $0x1a8] sm:$0xff]
    %v170 = vld [vmem:[%s0 + $0x1b0] sm:$0xff]
    %v171 = vld [vmem:[%s0 + $0x1b8] sm:$0xff]
    %v172 = vld [vmem:[%s0 + $0x1c0] sm:$0xff]
    %v173 = vld [vmem:[%s0 + $0x1c8] sm:$0xff]
    %v174 = vld [vmem:[%s0 + $0x1d0] sm:$0xff]
    %v175 = vld [vmem:[%s0 + $0x1d8] sm:$0xff]
    %v176 = vld [vmem:[%s0 + $0x1e0] sm:$0xff]
    %v177 = vld [vmem:[%s0 + $0x1e8] sm:$0xff]
    %v178 = vld [vmem:[%s0 + $0x1f0] sm:$0xff]
    %v179 = vld [vmem:[%s0 + $0x1f8] sm:$0xff]
    %vm180 = vcmask 31744
    %v181 = vsel %vm180, %v116, 0.0
    %v182 = vsel %vm180, %v117, 0.0
    %v183 = vadd.f32 %v181, %v182
    %v184 = vsel %vm180, %v118, 0.0
    %v185 = vadd.f32 %v183, %v184
    %v186 = vsel %vm180, %v119, 0.0
    %v187 = vadd.f32 %v185, %v186
    %v188 = vsel %vm180, %v120, 0.0
    %v189 = vadd.f32 %v187, %v188
    %v190 = vsel %vm180, %v121, 0.0
    %v191 = vadd.f32 %v189, %v190
    %v192 = vsel %vm180, %v122, 0.0
    %v193 = vadd.f32 %v191, %v192
    %v194 = vsel %vm180, %v123, 0.0
    %v195 = vadd.f32 %v193, %v194
    %v196 = vsel %vm180, %v124, 0.0
    %v197 = vadd.f32 %v195, %v196
    %v198 = vsel %vm180, %v125, 0.0
    %v199 = vadd.f32 %v197, %v198
    %v200 = vsel %vm180, %v126, 0.0
    %v201 = vadd.f32 %v199, %v200
    %v202 = vsel %vm180, %v127, 0.0
    %v203 = vadd.f32 %v201, %v202
    %v204 = vsel %vm180, %v128, 0.0
    %v205 = vadd.f32 %v203, %v204
    %v206 = vsel %vm180, %v129, 0.0
    %v207 = vadd.f32 %v205, %v206
    %v208 = vsel %vm180, %v130, 0.0
    %v209 = vadd.f32 %v207, %v208
    %v210 = vsel %vm180, %v131, 0.0
    %v211 = vadd.f32 %v209, %v210
    %v212 = vsel %vm180, %v132, 0.0
    %v213 = vadd.f32 %v211, %v212
    %v214 = vsel %vm180, %v133, 0.0
    %v215 = vadd.f32 %v213, %v214
    %v216 = vsel %vm180, %v134, 0.0
    %v217 = vadd.f32 %v215, %v216
    %v218 = vsel %vm180, %v135, 0.0
    %v219 = vadd.f32 %v217, %v218
    %v220 = vsel %vm180, %v136, 0.0
    %v221 = vadd.f32 %v219, %v220
    %v222 = vsel %vm180, %v137, 0.0
    %v223 = vadd.f32 %v221, %v222
    %v224 = vsel %vm180, %v138, 0.0
    %v225 = vadd.f32 %v223, %v224
    %v226 = vsel %vm180, %v139, 0.0
    %v227 = vadd.f32 %v225, %v226
    %v228 = vsel %vm180, %v140, 0.0
    %v229 = vadd.f32 %v227, %v228
    %v230 = vsel %vm180, %v141, 0.0
    %v231 = vadd.f32 %v229, %v230
    %v232 = vsel %vm180, %v142, 0.0
    %v233 = vadd.f32 %v231, %v232
    %v234 = vsel %vm180, %v143, 0.0
    %v235 = vadd.f32 %v233, %v234
    %v236 = vsel %vm180, %v144, 0.0
    %v237 = vadd.f32 %v235, %v236
    %v238 = vsel %vm180, %v145, 0.0
    %v239 = vadd.f32 %v237, %v238
    %v240 = vsel %vm180, %v146, 0.0
    %v241 = vadd.f32 %v239, %v240
    %v242 = vsel %vm180, %v147, 0.0
    %v243 = vadd.f32 %v241, %v242
    %v244 = vsel %vm180, %v148, 0.0
    %v245 = vadd.f32 %v243, %v244
    %v246 = vsel %vm180, %v149, 0.0
    %v247 = vadd.f32 %v245, %v246
    %v248 = vsel %vm180, %v150, 0.0
    %v249 = vadd.f32 %v247, %v248
    %v250 = vsel %vm180, %v151, 0.0
    %v251 = vadd.f32 %v249, %v250
    %v252 = vsel %vm180, %v152, 0.0
    %v253 = vadd.f32 %v251, %v252
    %v254 = vsel %vm180, %v153, 0.0
    %v255 = vadd.f32 %v253, %v254
    %v256 = vsel %vm180, %v154, 0.0
    %v257 = vadd.f32 %v255, %v256
    %v258 = vsel %vm180, %v155, 0.0
    %v259 = vadd.f32 %v257, %v258
    %v260 = vsel %vm180, %v156, 0.0
    %v261 = vadd.f32 %v259, %v260
    %v262 = vsel %vm180, %v157, 0.0
    %v263 = vadd.f32 %v261, %v262
    %v264 = vsel %vm180, %v158, 0.0
    %v265 = vadd.f32 %v263, %v264
    %v266 = vsel %vm180, %v159, 0.0
    %v267 = vadd.f32 %v265, %v266
    %v268 = vsel %vm180, %v160, 0.0
    %v269 = vadd.f32 %v267, %v268
    %v270 = vsel %vm180, %v161, 0.0
    %v271 = vadd.f32 %v269, %v270
    %v272 = vsel %vm180, %v162, 0.0
    %v273 = vadd.f32 %v271, %v272
    %v274 = vsel %vm180, %v163, 0.0
    %v275 = vadd.f32 %v273, %v274
    %v276 = vsel %vm180, %v164, 0.0
    %v277 = vadd.f32 %v275, %v276
    %v278 = vsel %vm180, %v165, 0.0
    %v279 = vadd.f32 %v277, %v278
    %v280 = vsel %vm180, %v166, 0.0
    %v281 = vadd.f32 %v279, %v280
    %v282 = vsel %vm180, %v167, 0.0
    %v283 = vadd.f32 %v281, %v282
    %v284 = vsel %vm180, %v168, 0.0
    %v285 = vadd.f32 %v283, %v284
    %v286 = vsel %vm180, %v169, 0.0
    %v287 = vadd.f32 %v285, %v286
    %v288 = vsel %vm180, %v170, 0.0
    %v289 = vadd.f32 %v287, %v288
    %v290 = vsel %vm180, %v171, 0.0
    %v291 = vadd.f32 %v289, %v290
    %v292 = vsel %vm180, %v172, 0.0
    %v293 = vadd.f32 %v291, %v292
    %v294 = vsel %vm180, %v173, 0.0
    %v295 = vadd.f32 %v293, %v294
    %v296 = vsel %vm180, %v174, 0.0
    %v297 = vadd.f32 %v295, %v296
    %v298 = vsel %vm180, %v175, 0.0
    %v299 = vadd.f32 %v297, %v298
    %v300 = vsel %vm180, %v176, 0.0
    %v301 = vadd.f32 %v299, %v300
    %v302 = vsel %vm180, %v177, 0.0
    %v303 = vadd.f32 %v301, %v302
    %v304 = vsel %vm180, %v178, 0.0
    %v305 = vadd.f32 %v303, %v304
    %v306 = vsel %vm180, %v179, 0.0
    %v307 = vadd.f32 %v305, %v306
    %v308 = vrot.slane %v307, 4
    %v309 = vadd.f32 %v307, %v308
    %v310 = vrot.slane %v309, 2
    %v311 = vadd.f32 %v309, %v310
    %v312 = vrot.slane %v311, 1
    %v313 = vadd.f32 %v311, %v312
    %v314 = vrcp.pop 512.0
    %v315 = vmul.f32 %v313, %v314
    %v316 = vmul.f32 %v116, %v116
    %v317 = vmul.f32 %v117, %v117
    %v318 = vmul.f32 %v118, %v118
    %v319 = vmul.f32 %v119, %v119
    %v320 = vmul.f32 %v120, %v120
    %v321 = vmul.f32 %v121, %v121
    %v322 = vmul.f32 %v122, %v122
    %v323 = vmul.f32 %v123, %v123
    %v324 = vmul.f32 %v124, %v124
    %v325 = vmul.f32 %v125, %v125
    %v326 = vmul.f32 %v126, %v126
    %v327 = vmul.f32 %v127, %v127
    %v328 = vmul.f32 %v128, %v128
    %v329 = vmul.f32 %v129, %v129
    %v330 = vmul.f32 %v130, %v130
    %v331 = vmul.f32 %v131, %v131
    %v332 = vmul.f32 %v132, %v132
    %v333 = vmul.f32 %v133, %v133
    %v334 = vmul.f32 %v134, %v134
    %v335 = vmul.f32 %v135, %v135
    %v336 = vmul.f32 %v136, %v136
    %v337 = vmul.f32 %v137, %v137
    %v338 = vmul.f32 %v138, %v138
    %v339 = vmul.f32 %v139, %v139
    %v340 = vmul.f32 %v140, %v140
    %v341 = vmul.f32 %v141, %v141
    %v342 = vmul.f32 %v142, %v142
    %v343 = vmul.f32 %v143, %v143
    %v344 = vmul.f32 %v144, %v144
    %v345 = vmul.f32 %v145, %v145
    %v346 = vmul.f32 %v146, %v146
    %v347 = vmul.f32 %v147, %v147
    %v348 = vmul.f32 %v148, %v148
    %v349 = vmul.f32 %v149, %v149
    %v350 = vmul.f32 %v150, %v150
    %v351 = vmul.f32 %v151, %v151
    %v352 = vmul.f32 %v152, %v152
    %v353 = vmul.f32 %v153, %v153
    %v354 = vmul.f32 %v154, %v154
    %v355 = vmul.f32 %v155, %v155
    %v356 = vmul.f32 %v156, %v156
    %v357 = vmul.f32 %v157, %v157
    %v358 = vmul.f32 %v158, %v158
    %v359 = vmul.f32 %v159, %v159
    %v360 = vmul.f32 %v160, %v160
    %v361 = vmul.f32 %v161, %v161
    %v362 = vmul.f32 %v162, %v162
    %v363 = vmul.f32 %v163, %v163
    %v364 = vmul.f32 %v164, %v164
    %v365 = vmul.f32 %v165, %v165
    %v366 = vmul.f32 %v166, %v166
    %v367 = vmul.f32 %v167, %v167
    %v368 = vmul.f32 %v168, %v168
    %v369 = vmul.f32 %v169, %v169
    %v370 = vmul.f32 %v170, %v170
    %v371 = vmul.f32 %v171, %v171
    %v372 = vmul.f32 %v172, %v172
    %v373 = vmul.f32 %v173, %v173
    %v374 = vmul.f32 %v174, %v174
    %v375 = vmul.f32 %v175, %v175
    %v376 = vmul.f32 %v176, %v176
    %v377 = vmul.f32 %v177, %v177
    %v378 = vmul.f32 %v178, %v178
    %v379 = vmul.f32 %v179, %v179
    %v380 = vsel %vm180, %v316, 0.0
    %v381 = vsel %vm180, %v317, 0.0
    %v382 = vadd.f32 %v380, %v381
    %v383 = vsel %vm180, %v318, 0.0
    %v384 = vadd.f32 %v382, %v383
    %v385 = vsel %vm180, %v319, 0.0
    %v386 = vadd.f32 %v384, %v385
    %v387 = vsel %vm180, %v320, 0.0
    %v388 = vadd.f32 %v386, %v387
    %v389 = vsel %vm180, %v321, 0.0
    %v390 = vadd.f32 %v388, %v389
    %v391 = vsel %vm180, %v322, 0.0
    %v392 = vadd.f32 %v390, %v391
    %v393 = vsel %vm180, %v323, 0.0
    %v394 = vadd.f32 %v392, %v393
    %v395 = vsel %vm180, %v324, 0.0
    %v396 = vadd.f32 %v394, %v395
    %v397 = vsel %vm180, %v325, 0.0
    %v398 = vadd.f32 %v396, %v397
    %v399 = vsel %vm180, %v326, 0.0
    %v400 = vadd.f32 %v398, %v399
    %v401 = vsel %vm180, %v327, 0.0
    %v402 = vadd.f32 %v400, %v401
    %v403 = vsel %vm180, %v328, 0.0
    %v404 = vadd.f32 %v402, %v403
    %v405 = vsel %vm180, %v329, 0.0
    %v406 = vadd.f32 %v404, %v405
    %v407 = vsel %vm180, %v330, 0.0
    %v408 = vadd.f32 %v406, %v407
    %v409 = vsel %vm180, %v331, 0.0
    %v410 = vadd.f32 %v408, %v409
    %v411 = vsel %vm180, %v332, 0.0
    %v412 = vadd.f32 %v410, %v411
    %v413 = vsel %vm180, %v333, 0.0
    %v414 = vadd.f32 %v412, %v413
    %v415 = vsel %vm180, %v334, 0.0
    %v416 = vadd.f32 %v414, %v415
    %v417 = vsel %vm180, %v335, 0.0
    %v418 = vadd.f32 %v416, %v417
    %v419 = vsel %vm180, %v336, 0.0
    %v420 = vadd.f32 %v418, %v419
    %v421 = vsel %vm180, %v337, 0.0
    %v422 = vadd.f32 %v420, %v421
    %v423 = vsel %vm180, %v338, 0.0
    %v424 = vadd.f32 %v422, %v423
    %v425 = vsel %vm180, %v339, 0.0
    %v426 = vadd.f32 %v424, %v425
    %v427 = vsel %vm180, %v340, 0.0
    %v428 = vadd.f32 %v426, %v427
    %v429 = vsel %vm180, %v341, 0.0
    %v430 = vadd.f32 %v428, %v429
    %v431 = vsel %vm180, %v342, 0.0
    %v432 = vadd.f32 %v430, %v431
    %v433 = vsel %vm180, %v343, 0.0
    %v434 = vadd.f32 %v432, %v433
    %v435 = vsel %vm180, %v344, 0.0
    %v436 = vadd.f32 %v434, %v435
    %v437 = vsel %vm180, %v345, 0.0
    %v438 = vadd.f32 %v436, %v437
    %v439 = vsel %vm180, %v346, 0.0
    %v440 = vadd.f32 %v438, %v439
    %v441 = vsel %vm180, %v347, 0.0
    %v442 = vadd.f32 %v440, %v441
    %v443 = vsel %vm180, %v348, 0.0
    %v444 = vadd.f32 %v442, %v443
    %v445 = vsel %vm180, %v349, 0.0
    %v446 = vadd.f32 %v444, %v445
    %v447 = vsel %vm180, %v350, 0.0
    %v448 = vadd.f32 %v446, %v447
    %v449 = vsel %vm180, %v351, 0.0
    %v450 = vadd.f32 %v448, %v449
    %v451 = vsel %vm180, %v352, 0.0
    %v452 = vadd.f32 %v450, %v451
    %v453 = vsel %vm180, %v353, 0.0
    %v454 = vadd.f32 %v452, %v453
    %v455 = vsel %vm180, %v354, 0.0
    %v456 = vadd.f32 %v454, %v455
    %v457 = vsel %vm180, %v355, 0.0
    %v458 = vadd.f32 %v456, %v457
    %v459 = vsel %vm180, %v356, 0.0
    %v460 = vadd.f32 %v458, %v459
    %v461 = vsel %vm180, %v357, 0.0
    %v462 = vadd.f32 %v460, %v461
    %v463 = vsel %vm180, %v358, 0.0
    %v464 = vadd.f32 %v462, %v463
    %v465 = vsel %vm180, %v359, 0.0
    %v466 = vadd.f32 %v464, %v465
    %v467 = vsel %vm180, %v360, 0.0
    %v468 = vadd.f32 %v466, %v467
    %v469 = vsel %vm180, %v361, 0.0
    %v470 = vadd.f32 %v468, %v469
    %v471 = vsel %vm180, %v362, 0.0
    %v472 = vadd.f32 %v470, %v471
    %v473 = vsel %vm180, %v363, 0.0
    %v474 = vadd.f32 %v472, %v473
    %v475 = vsel %vm180, %v364, 0.0
    %v476 = vadd.f32 %v474, %v475
    %v477 = vsel %vm180, %v365, 0.0
    %v478 = vadd.f32 %v476, %v477
    %v479 = vsel %vm180, %v366, 0.0
    %v480 = vadd.f32 %v478, %v479
    %v481 = vsel %vm180, %v367, 0.0
    %v482 = vadd.f32 %v480, %v481
    %v483 = vsel %vm180, %v368, 0.0
    %v484 = vadd.f32 %v482, %v483
    %v485 = vsel %vm180, %v369, 0.0
    %v486 = vadd.f32 %v484, %v485
    %v487 = vsel %vm180, %v370, 0.0
    %v488 = vadd.f32 %v486, %v487
    %v489 = vsel %vm180, %v371, 0.0
    %v490 = vadd.f32 %v488, %v489
    %v491 = vsel %vm180, %v372, 0.0
    %v492 = vadd.f32 %v490, %v491
    %v493 = vsel %vm180, %v373, 0.0
    %v494 = vadd.f32 %v492, %v493
    %v495 = vsel %vm180, %v374, 0.0
    %v496 = vadd.f32 %v494, %v495
    %v497 = vsel %vm180, %v375, 0.0
    %v498 = vadd.f32 %v496, %v497
    %v499 = vsel %vm180, %v376, 0.0
    %v500 = vadd.f32 %v498, %v499
    %v501 = vsel %vm180, %v377, 0.0
    %v502 = vadd.f32 %v500, %v501
    %v503 = vsel %vm180, %v378, 0.0
    %v504 = vadd.f32 %v502, %v503
    %v505 = vsel %vm180, %v379, 0.0
    %v506 = vadd.f32 %v504, %v505
    %v507 = vrot.slane %v506, 4
    %v508 = vadd.f32 %v506, %v507
    %v509 = vrot.slane %v508, 2
    %v510 = vadd.f32 %v508, %v509
    %v511 = vrot.slane %v510, 1
    %v512 = vadd.f32 %v510, %v511
    %v513 = vmul.f32 %v512, %v314
    %v514 = vmul.f32 %v315, %v315
    %v515 = vsub.f32 %v513, %v514
    %v516 = vsub.f32 %v116, %v315
    %v517 = vsub.f32 %v117, %v315
    %v518 = vsub.f32 %v118, %v315
    %v519 = vsub.f32 %v119, %v315
    %v520 = vsub.f32 %v120, %v315
    %v521 = vsub.f32 %v121, %v315
    %v522 = vsub.f32 %v122, %v315
    %v523 = vsub.f32 %v123, %v315
    %v524 = vsub.f32 %v124, %v315
    %v525 = vsub.f32 %v125, %v315
    %v526 = vsub.f32 %v126, %v315
    %v527 = vsub.f32 %v127, %v315
    %v528 = vsub.f32 %v128, %v315
    %v529 = vsub.f32 %v129, %v315
    %v530 = vsub.f32 %v130, %v315
    %v531 = vsub.f32 %v131, %v315
    %v532 = vsub.f32 %v132, %v315
    %v533 = vsub.f32 %v133, %v315
    %v534 = vsub.f32 %v134, %v315
    %v535 = vsub.f32 %v135, %v315
    %v536 = vsub.f32 %v136, %v315
    %v537 = vsub.f32 %v137, %v315
    %v538 = vsub.f32 %v138, %v315
    %v539 = vsub.f32 %v139, %v315
    %v540 = vsub.f32 %v140, %v315
    %v541 = vsub.f32 %v141, %v315
    %v542 = vsub.f32 %v142, %v315
    %v543 = vsub.f32 %v143, %v315
    %v544 = vsub.f32 %v144, %v315
    %v545 = vsub.f32 %v145, %v315
    %v546 = vsub.f32 %v146, %v315
    %v547 = vsub.f32 %v147, %v315
    %v548 = vsub.f32 %v148, %v315
    %v549 = vsub.f32 %v149, %v315
    %v550 = vsub.f32 %v150, %v315
    %v551 = vsub.f32 %v151, %v315
    %v552 = vsub.f32 %v152, %v315
    %v553 = vsub.f32 %v153, %v315
    %v554 = vsub.f32 %v154, %v315
    %v555 = vsub.f32 %v155, %v315
    %v556 = vsub.f32 %v156, %v315
    %v557 = vsub.f32 %v157, %v315
    %v558 = vsub.f32 %v158, %v315
    %v559 = vsub.f32 %v159, %v315
    %v560 = vsub.f32 %v160, %v315
    %v561 = vsub.f32 %v161, %v315
    %v562 = vsub.f32 %v162, %v315
    %v563 = vsub.f32 %v163, %v315
    %v564 = vsub.f32 %v164, %v315
    %v565 = vsub.f32 %v165, %v315
    %v566 = vsub.f32 %v166, %v315
    %v567 = vsub.f32 %v167, %v315
    %v568 = vsub.f32 %v168, %v315
    %v569 = vsub.f32 %v169, %v315
    %v570 = vsub.f32 %v170, %v315
    %v571 = vsub.f32 %v171, %v315
    %v572 = vsub.f32 %v172, %v315
    %v573 = vsub.f32 %v173, %v315
    %v574 = vsub.f32 %v174, %v315
    %v575 = vsub.f32 %v175, %v315
    %v576 = vsub.f32 %v176, %v315
    %v577 = vsub.f32 %v177, %v315
    %v578 = vsub.f32 %v178, %v315
    %v579 = vsub.f32 %v179, %v315
    %v580 = vadd.f32 %v515, 1e-05
    %v581 = vrsqrt.pop %v580
    %v582 = vmul.f32 %v516, %v581
    %v583 = vmul.f32 %v517, %v581
    %v584 = vmul.f32 %v518, %v581
    %v585 = vmul.f32 %v519, %v581
    %v586 = vmul.f32 %v520, %v581
    %v587 = vmul.f32 %v521, %v581
    %v588 = vmul.f32 %v522, %v581
    %v589 = vmul.f32 %v523, %v581
    %v590 = vmul.f32 %v524, %v581
    %v591 = vmul.f32 %v525, %v581
    %v592 = vmul.f32 %v526, %v581
    %v593 = vmul.f32 %v527, %v581
    %v594 = vmul.f32 %v528, %v581
    %v595 = vmul.f32 %v529, %v581
    %v596 = vmul.f32 %v530, %v581
    %v597 = vmul.f32 %v531, %v581
    %v598 = vmul.f32 %v532, %v581
    %v599 = vmul.f32 %v533, %v581
    %v600 = vmul.f32 %v534, %v581
    %v601 = vmul.f32 %v535, %v581
    %v602 = vmul.f32 %v536, %v581
    %v603 = vmul.f32 %v537, %v581
    %v604 = vmul.f32 %v538, %v581
    %v605 = vmul.f32 %v539, %v581
    %v606 = vmul.f32 %v540, %v581
    %v607 = vmul.f32 %v541, %v581
    %v608 = vmul.f32 %v542, %v581
    %v609 = vmul.f32 %v543, %v581
    %v610 = vmul.f32 %v544, %v581
    %v611 = vmul.f32 %v545, %v581
    %v612 = vmul.f32 %v546, %v581
    %v613 = vmul.f32 %v547, %v581
    %v614 = vmul.f32 %v548, %v581
    %v615 = vmul.f32 %v549, %v581
    %v616 = vmul.f32 %v550, %v581
    %v617 = vmul.f32 %v551, %v581
    %v618 = vmul.f32 %v552, %v581
    %v619 = vmul.f32 %v553, %v581
    %v620 = vmul.f32 %v554, %v581
    %v621 = vmul.f32 %v555, %v581
    %v622 = vmul.f32 %v556, %v581
    %v623 = vmul.f32 %v557, %v581
    %v624 = vmul.f32 %v558, %v581
    %v625 = vmul.f32 %v559, %v581
    %v626 = vmul.f32 %v560, %v581
    %v627 = vmul.f32 %v561, %v581
    %v628 = vmul.f32 %v562, %v581
    %v629 = vmul.f32 %v563, %v581
    %v630 = vmul.f32 %v564, %v581
    %v631 = vmul.f32 %v565, %v581
    %v632 = vmul.f32 %v566, %v581
    %v633 = vmul.f32 %v567, %v581
    %v634 = vmul.f32 %v568, %v581
    %v635 = vmul.f32 %v569, %v581
    %v636 = vmul.f32 %v570, %v581
    %v637 = vmul.f32 %v571, %v581
    %v638 = vmul.f32 %v572, %v581
    %v639 = vmul.f32 %v573, %v581
    %v640 = vmul.f32 %v574, %v581
    %v641 = vmul.f32 %v575, %v581
    %v642 = vmul.f32 %v576, %v581
    %v643 = vmul.f32 %v577, %v581
    %v644 = vmul.f32 %v578, %v581
    %v645 = vmul.f32 %v579, %v581
    %s646 = scalar_lea.vmem [#allocation2], 24
    %647 = vst.msk [vmem:[%s646 + $0x1] sm:$0xff] %vm180, %v582
    %648 = vst.msk [vmem:[%s646 + $0x9] sm:$0xff] %vm180, %v583
    %649 = vst.msk [vmem:[%s646 + $0x19] sm:$0xff] %vm180, %v584
    %650 = vst.msk [vmem:[%s646 + $0x21] sm:$0xff] %vm180, %v585
    %651 = vst.msk [vmem:[%s646 + $0x31] sm:$0xff] %vm180, %v586
    %652 = vst.msk [vmem:[%s646 + $0x39] sm:$0xff] %vm180, %v587
    %653 = vst.msk [vmem:[%s646 + $0x49] sm:$0xff] %vm180, %v588
    %654 = vst.msk [vmem:[%s646 + $0x51] sm:$0xff] %vm180, %v589
    %655 = vst.msk [vmem:[%s646 + $0x61] sm:$0xff] %vm180, %v590
    %656 = vst.msk [vmem:[%s646 + $0x69] sm:$0xff] %vm180, %v591
    %657 = vst.msk [vmem:[%s646 + $0x79] sm:$0xff] %vm180, %v592
    %658 = vst.msk [vmem:[%s646 + $0x81] sm:$0xff] %vm180, %v593
    %659 = vst.msk [vmem:[%s646 + $0x91] sm:$0xff] %vm180, %v594
    %660 = vst.msk [vmem:[%s646 + $0x99] sm:$0xff] %vm180, %v595
    %661 = vst.msk [vmem:[%s646 + $0xa9] sm:$0xff] %vm180, %v596
    %662 = vst.msk [vmem:[%s646 + $0xb1] sm:$0xff] %vm180, %v597
    %663 = vst.msk [vmem:[%s646 + $0xc1] sm:$0xff] %vm180, %v598
    %664 = vst.msk [vmem:[%s646 + $0xc9] sm:$0xff] %vm180, %v599
    %665 = vst.msk [vmem:[%s646 + $0xd9] sm:$0xff] %vm180, %v600
    %666 = vst.msk [vmem:[%s646 + $0xe1] sm:$0xff] %vm180, %v601
    %667 = vst.msk [vmem:[%s646 + $0xf1] sm:$0xff] %vm180, %v602
    %668 = vst.msk [vmem:[%s646 + $0xf9] sm:$0xff] %vm180, %v603
    %669 = vst.msk [vmem:[%s646 + $0x109] sm:$0xff] %vm180, %v604
    %670 = vst.msk [vmem:[%s646 + $0x111] sm:$0xff] %vm180, %v605
    %671 = vst.msk [vmem:[%s646 + $0x121] sm:$0xff] %vm180, %v606
    %672 = vst.msk [vmem:[%s646 + $0x129] sm:$0xff] %vm180, %v607
    %673 = vst.msk [vmem:[%s646 + $0x139] sm:$0xff] %vm180, %v608
    %674 = vst.msk [vmem:[%s646 + $0x141] sm:$0xff] %vm180, %v609
    %675 = vst.msk [vmem:[%s646 + $0x151] sm:$0xff] %vm180, %v610
    %676 = vst.msk [vmem:[%s646 + $0x159] sm:$0xff] %vm180, %v611
    %677 = vst.msk [vmem:[%s646 + $0x169] sm:$0xff] %vm180, %v612
    %678 = vst.msk [vmem:[%s646 + $0x171] sm:$0xff] %vm180, %v613
    %679 = vst.msk [vmem:[%s646 + $0x1b1] sm:$0xff] %vm180, %v614
    %680 = vst.msk [vmem:[%s646 + $0x1b9] sm:$0xff] %vm180, %v615
    %681 = vst.msk [vmem:[%s646 + $0x1c9] sm:$0xff] %vm180, %v616
    %682 = vst.msk [vmem:[%s646 + $0x1d1] sm:$0xff] %vm180, %v617
    %683 = vst.msk [vmem:[%s646 + $0x1e1] sm:$0xff] %vm180, %v618
    %684 = vst.msk [vmem:[%s646 + $0x1e9] sm:$0xff] %vm180, %v619
    %685 = vst.msk [vmem:[%s646 + $0x1f9] sm:$0xff] %vm180, %v620
    %686 = vst.msk [vmem:[%s646 + $0x201] sm:$0xff] %vm180, %v621
    %687 = vst.msk [vmem:[%s646 + $0x211] sm:$0xff] %vm180, %v622
    %688 = vst.msk [vmem:[%s646 + $0x219] sm:$0xff] %vm180, %v623
    %689 = vst.msk [vmem:[%s646 + $0x229] sm:$0xff] %vm180, %v624
    %690 = vst.msk [vmem:[%s646 + $0x231] sm:$0xff] %vm180, %v625
    %691 = vst.msk [vmem:[%s646 + $0x241] sm:$0xff] %vm180, %v626
    %692 = vst.msk [vmem:[%s646 + $0x249] sm:$0xff] %vm180, %v627
    %693 = vst.msk [vmem:[%s646 + $0x259] sm:$0xff] %vm180, %v628
    %694 = vst.msk [vmem:[%s646 + $0x261] sm:$0xff] %vm180, %v629
    %695 = vst.msk [vmem:[%s646 + $0x271] sm:$0xff] %vm180, %v630
    %696 = vst.msk [vmem:[%s646 + $0x279] sm:$0xff] %vm180, %v631
    %697 = vst.msk [vmem:[%s646 + $0x289] sm:$0xff] %vm180, %v632
    %698 = vst.msk [vmem:[%s646 + $0x291] sm:$0xff] %vm180, %v633
    %699 = vst.msk [vmem:[%s646 + $0x2a1] sm:$0xff] %vm180, %v634
    %700 = vst.msk [vmem:[%s646 + $0x2a9] sm:$0xff] %vm180, %v635
    %701 = vst.msk [vmem:[%s646 + $0x2b9] sm:$0xff] %vm180, %v636
    %702 = vst.msk [vmem:[%s646 + $0x2c1] sm:$0xff] %vm180, %v637
    %703 = vst.msk [vmem:[%s646 + $0x2d1] sm:$0xff] %vm180, %v638
    %704 = vst.msk [vmem:[%s646 + $0x2d9] sm:$0xff] %vm180, %v639
    %705 = vst.msk [vmem:[%s646 + $0x2e9] sm:$0xff] %vm180, %v640
    %706 = vst.msk [vmem:[%s646 + $0x2f1] sm:$0xff] %vm180, %v641
    %707 = vst.msk [vmem:[%s646 + $0x301] sm:$0xff] %vm180, %v642
    %708 = vst.msk [vmem:[%s646 + $0x309] sm:$0xff] %vm180, %v643
    %709 = vst.msk [vmem:[%s646 + $0x319] sm:$0xff] %vm180, %v644
    %710 = vst.msk [vmem:[%s646 + $0x321] sm:$0xff] %vm180, %v645
    %v711 = vld [vmem:[#allocation2] sm:$0xff]
    %v712 = vld [vmem:[#allocation2 + $0x8] sm:$0xff]
    %v713 = vld [vmem:[#allocation2 + $0x18] sm:$0xff]
    %v714 = vld [vmem:[#allocation2 + $0x20] sm:$0xff]
    %v715 = vld [vmem:[#allocation2 + $0x30] sm:$0xff]
    %v716 = vld [vmem:[#allocation2 + $0x38] sm:$0xff]
    %v717 = vld [vmem:[#allocation2 + $0x48] sm:$0xff]
    %v718 = vld [vmem:[#allocation2 + $0x50] sm:$0xff]
    %v719 = vld [vmem:[#allocation2 + $0x60] sm:$0xff]
    %v720 = vld [vmem:[#allocation2 + $0x68] sm:$0xff]
    %v721 = vld [vmem:[#allocation2 + $0x78] sm:$0xff]
    %v722 = vld [vmem:[#allocation2 + $0x80] sm:$0xff]
    %v723 = vld [vmem:[#allocation2 + $0x90] sm:$0xff]
    %v724 = vld [vmem:[#allocation2 + $0x98] sm:$0xff]
    %v725 = vld [vmem:[#allocation2 + $0xa8] sm:$0xff]
    %v726 = vld [vmem:[#allocation2 + $0xb0] sm:$0xff]
    %v727 = vld [vmem:[#allocation2 + $0xc0] sm:$0xff]
    %v728 = vld [vmem:[#allocation2 + $0xc8] sm:$0xff]
    %v729 = vld [vmem:[#allocation2 + $0xd8] sm:$0xff]
    %v730 = vld [vmem:[#allocation2 + $0xe0] sm:$0xff]
    %v731 = vld [vmem:[#allocation2 + $0xf0] sm:$0xff]
    %v732 = vld [vmem:[#allocation2 + $0xf8] sm:$0xff]
    %v733 = vld [vmem:[#allocation2 + $0x108] sm:$0xff]
    %v734 = vld [vmem:[#allocation2 + $0x110] sm:$0xff]
    %v735 = vld [vmem:[#allocation2 + $0x120] sm:$0xff]
    %v736 = vld [vmem:[#allocation2 + $0x128] sm:$0xff]
    %v737 = vld [vmem:[#allocation2 + $0x138] sm:$0xff]
    %v738 = vld [vmem:[#allocation2 + $0x140] sm:$0xff]
    %v739 = vld [vmem:[#allocation2 + $0x150] sm:$0xff]
    %v740 = vld [vmem:[#allocation2 + $0x158] sm:$0xff]
    %v741 = vld [vmem:[#allocation2 + $0x168] sm:$0xff]
    %v742 = vld [vmem:[#allocation2 + $0x170] sm:$0xff]
    %v743 = vld [vmem:[#allocation2 + $0x1b0] sm:$0xff]
    %v744 = vld [vmem:[#allocation2 + $0x1b8] sm:$0xff]
    %v745 = vld [vmem:[#allocation2 + $0x1c8] sm:$0xff]
    %v746 = vld [vmem:[#allocation2 + $0x1d0] sm:$0xff]
    %v747 = vld [vmem:[#allocation2 + $0x1e0] sm:$0xff]
    %v748 = vld [vmem:[#allocation2 + $0x1e8] sm:$0xff]
    %v749 = vld [vmem:[#allocation2 + $0x1f8] sm:$0xff]
    %v750 = vld [vmem:[#allocation2 + $0x200] sm:$0xff]
    %v751 = vld [vmem:[#allocation2 + $0x210] sm:$0xff]
    %v752 = vld [vmem:[#allocation2 + $0x218] sm:$0xff]
    %v753 = vld [vmem:[#allocation2 + $0x228] sm:$0xff]
    %v754 = vld [vmem:[#allocation2 + $0x230] sm:$0xff]
    %v755 = vld [vmem:[#allocation2 + $0x240] sm:$0xff]
    %v756 = vld [vmem:[#allocation2 + $0x248] sm:$0xff]
    %v757 = vld [vmem:[#allocation2 + $0x258] sm:$0xff]
    %v758 = vld [vmem:[#allocation2 + $0x260] sm:$0xff]
    %v759 = vld [vmem:[#allocation2 + $0x270] sm:$0xff]
    %v760 = vld [vmem:[#allocation2 + $0x278] sm:$0xff]
    %v761 = vld [vmem:[#allocation2 + $0x288] sm:$0xff]
    %v762 = vld [vmem:[#allocation2 + $0x290] sm:$0xff]
    %v763 = vld [vmem:[#allocation2 + $0x2a0] sm:$0xff]
    %v764 = vld [vmem:[#allocation2 + $0x2a8] sm:$0xff]
    %v765 = vld [vmem:[#allocation2 + $0x2b8] sm:$0xff]
    %v766 = vld [vmem:[#allocation2 + $0x2c0] sm:$0xff]
    %v767 = vld [vmem:[#allocation2 + $0x2d0] sm:$0xff]
    %v768 = vld [vmem:[#allocation2 + $0x2d8] sm:$0xff]
    %v769 = vld [vmem:[#allocation2 + $0x2e8] sm:$0xff]
    %v770 = vld [vmem:[#allocation2 + $0x2f0] sm:$0xff]
    %v771 = vld [vmem:[#allocation2 + $0x300] sm:$0xff]
    %v772 = vld [vmem:[#allocation2 + $0x308] sm:$0xff]
    %v773 = vld [vmem:[#allocation2 + $0x318] sm:$0xff]
    %v774 = vld [vmem:[#allocation2 + $0x320] sm:$0xff]
    %v775 = vld [vmem:[#allocation2 + $0x1] sm:$0xff]
    %v776 = vld [vmem:[#allocation2 + $0x9] sm:$0xff]
    %v777 = vld [vmem:[#allocation2 + $0x19] sm:$0xff]
    %v778 = vld [vmem:[#allocation2 + $0x21] sm:$0xff]
    %v779 = vld [vmem:[#allocation2 + $0x31] sm:$0xff]
    %v780 = vld [vmem:[#allocation2 + $0x39] sm:$0xff]
    %v781 = vld [vmem:[#allocation2 + $0x49] sm:$0xff]
    %v782 = vld [vmem:[#allocation2 + $0x51] sm:$0xff]
    %v783 = vld [vmem:[#allocation2 + $0x61] sm:$0xff]
    %v784 = vld [vmem:[#allocation2 + $0x69] sm:$0xff]
    %v785 = vld [vmem:[#allocation2 + $0x79] sm:$0xff]
    %v786 = vld [vmem:[#allocation2 + $0x81] sm:$0xff]
    %v787 = vld [vmem:[#allocation2 + $0x91] sm:$0xff]
    %v788 = vld [vmem:[#allocation2 + $0x99] sm:$0xff]
    %v789 = vld [vmem:[#allocation2 + $0xa9] sm:$0xff]
    %v790 = vld [vmem:[#allocation2 + $0xb1] sm:$0xff]
    %v791 = vld [vmem:[#allocation2 + $0xc1] sm:$0xff]
    %v792 = vld [vmem:[#allocation2 + $0xc9] sm:$0xff]
    %v793 = vld [vmem:[#allocation2 + $0xd9] sm:$0xff]
    %v794 = vld [vmem:[#allocation2 + $0xe1] sm:$0xff]
    %v795 = vld [vmem:[#allocation2 + $0xf1] sm:$0xff]
    %v796 = vld [vmem:[#allocation2 + $0xf9] sm:$0xff]
    %v797 = vld [vmem:[#allocation2 + $0x109] sm:$0xff]
    %v798 = vld [vmem:[#allocation2 + $0x111] sm:$0xff]
    %v799 = vld [vmem:[#allocation2 + $0x121] sm:$0xff]
    %v800 = vld [vmem:[#allocation2 + $0x129] sm:$0xff]
    %v801 = vld [vmem:[#allocation2 + $0x139] sm:$0xff]
    %v802 = vld [vmem:[#allocation2 + $0x141] sm:$0xff]
    %v803 = vld [vmem:[#allocation2 + $0x151] sm:$0xff]
    %v804 = vld [vmem:[#allocation2 + $0x159] sm:$0xff]
    %v805 = vld [vmem:[#allocation2 + $0x169] sm:$0xff]
    %v806 = vld [vmem:[#allocation2 + $0x171] sm:$0xff]
    %v807 = vld [vmem:[#allocation2 + $0x1b1] sm:$0xff]
    %v808 = vld [vmem:[#allocation2 + $0x1b9] sm:$0xff]
    %v809 = vld [vmem:[#allocation2 + $0x1c9] sm:$0xff]
    %v810 = vld [vmem:[#allocation2 + $0x1d1] sm:$0xff]
    %v811 = vld [vmem:[#allocation2 + $0x1e1] sm:$0xff]
    %v812 = vld [vmem:[#allocation2 + $0x1e9] sm:$0xff]
    %v813 = vld [vmem:[#allocation2 + $0x1f9] sm:$0xff]
    %v814 = vld [vmem:[#allocation2 + $0x201] sm:$0xff]
    %v815 = vld [vmem:[#allocation2 + $0x211] sm:$0xff]
    %v816 = vld [vmem:[#allocation2 + $0x219] sm:$0xff]
    %v817 = vld [vmem:[#allocation2 + $0x229] sm:$0xff]
    %v818 = vld [vmem:[#allocation2 + $0x231] sm:$0xff]
    %v819 = vld [vmem:[#allocation2 + $0x241] sm:$0xff]
    %v820 = vld [vmem:[#allocation2 + $0x249] sm:$0xff]
    %v821 = vld [vmem:[#allocation2 + $0x259] sm:$0xff]
    %v822 = vld [vmem:[#allocation2 + $0x261] sm:$0xff]
    %v823 = vld [vmem:[#allocation2 + $0x271] sm:$0xff]
    %v824 = vld [vmem:[#allocation2 + $0x279] sm:$0xff]
    %v825 = vld [vmem:[#allocation2 + $0x289] sm:$0xff]
    %v826 = vld [vmem:[#allocation2 + $0x291] sm:$0xff]
    %v827 = vld [vmem:[#allocation2 + $0x2a1] sm:$0xff]
    %v828 = vld [vmem:[#allocation2 + $0x2a9] sm:$0xff]
    %v829 = vld [vmem:[#allocation2 + $0x2b9] sm:$0xff]
    %v830 = vld [vmem:[#allocation2 + $0x2c1] sm:$0xff]
    %v831 = vld [vmem:[#allocation2 + $0x2d1] sm:$0xff]
    %v832 = vld [vmem:[#allocation2 + $0x2d9] sm:$0xff]
    %v833 = vld [vmem:[#allocation2 + $0x2e9] sm:$0xff]
    %v834 = vld [vmem:[#allocation2 + $0x2f1] sm:$0xff]
    %v835 = vld [vmem:[#allocation2 + $0x301] sm:$0xff]
    %v836 = vld [vmem:[#allocation2 + $0x309] sm:$0xff]
    %v837 = vld [vmem:[#allocation2 + $0x319] sm:$0xff]
    %v838 = vld [vmem:[#allocation2 + $0x321] sm:$0xff]
    %v839 = vld [vmem:[#allocation2 + $0x2] sm:$0xff]
    %v840 = vld [vmem:[#allocation2 + $0xa] sm:$0xff]
    %v841 = vld [vmem:[#allocation2 + $0x1a] sm:$0xff]
    %v842 = vld [vmem:[#allocation2 + $0x22] sm:$0xff]
    %v843 = vld [vmem:[#allocation2 + $0x32] sm:$0xff]
    %v844 = vld [vmem:[#allocation2 + $0x3a] sm:$0xff]
    %v845 = vld [vmem:[#allocation2 + $0x4a] sm:$0xff]
    %v846 = vld [vmem:[#allocation2 + $0x52] sm:$0xff]
    %v847 = vld [vmem:[#allocation2 + $0x62] sm:$0xff]
    %v848 = vld [vmem:[#allocation2 + $0x6a] sm:$0xff]
    %v849 = vld [vmem:[#allocation2 + $0x7a] sm:$0xff]
    %v850 = vld [vmem:[#allocation2 + $0x82] sm:$0xff]
    %v851 = vld [vmem:[#allocation2 + $0x92] sm:$0xff]
    %v852 = vld [vmem:[#allocation2 + $0x9a] sm:$0xff]
    %v853 = vld [vmem:[#allocation2 + $0xaa] sm:$0xff]
    %v854 = vld [vmem:[#allocation2 + $0xb2] sm:$0xff]
    %v855 = vld [vmem:[#allocation2 + $0xc2] sm:$0xff]
    %v856 = vld [vmem:[#allocation2 + $0xca] sm:$0xff]
    %v857 = vld [vmem:[#allocation2 + $0xda] sm:$0xff]
    %v858 = vld [vmem:[#allocation2 + $0xe2] sm:$0xff]
    %v859 = vld [vmem:[#allocation2 + $0xf2] sm:$0xff]
    %v860 = vld [vmem:[#allocation2 + $0xfa] sm:$0xff]
    %v861 = vld [vmem:[#allocation2 + $0x10a] sm:$0xff]
    %v862 = vld [vmem:[#allocation2 + $0x112] sm:$0xff]
    %v863 = vld [vmem:[#allocation2 + $0x122] sm:$0xff]
    %v864 = vld [vmem:[#allocation2 + $0x12a] sm:$0xff]
    %v865 = vld [vmem:[#allocation2 + $0x13a] sm:$0xff]
    %v866 = vld [vmem:[#allocation2 + $0x142] sm:$0xff]
    %v867 = vld [vmem:[#allocation2 + $0x152] sm:$0xff]
    %v868 = vld [vmem:[#allocation2 + $0x15a] sm:$0xff]
    %v869 = vld [vmem:[#allocation2 + $0x16a] sm:$0xff]
    %v870 = vld [vmem:[#allocation2 + $0x172] sm:$0xff]
    %v871 = vld [vmem:[#allocation2 + $0x1b2] sm:$0xff]
    %v872 = vld [vmem:[#allocation2 + $0x1ba] sm:$0xff]
    %v873 = vld [vmem:[#allocation2 + $0x1ca] sm:$0xff]
    %v874 = vld [vmem:[#allocation2 + $0x1d2] sm:$0xff]
    %v875 = vld [vmem:[#allocation2 + $0x1e2] sm:$0xff]
    %v876 = vld [vmem:[#allocation2 + $0x1ea] sm:$0xff]
    %v877 = vld [vmem:[#allocation2 + $0x1fa] sm:$0xff]
    %v878 = vld [vmem:[#allocation2 + $0x202] sm:$0xff]
    %v879 = vld [vmem:[#allocation2 + $0x212] sm:$0xff]
    %v880 = vld [vmem:[#allocation2 + $0x21a] sm:$0xff]
    %v881 = vld [vmem:[#allocation2 + $0x22a] sm:$0xff]
    %v882 = vld [vmem:[#allocation2 + $0x232] sm:$0xff]
    %v883 = vld [vmem:[#allocation2 + $0x242] sm:$0xff]
    %v884 = vld [vmem:[#allocation2 + $0x24a] sm:$0xff]
    %v885 = vld [vmem:[#allocation2 + $0x25a] sm:$0xff]
    %v886 = vld [vmem:[#allocation2 + $0x262] sm:$0xff]
    %v887 = vld [vmem:[#allocation2 + $0x272] sm:$0xff]
    %v888 = vld [vmem:[#allocation2 + $0x27a] sm:$0xff]
    %v889 = vld [vmem:[#allocation2 + $0x28a] sm:$0xff]
    %v890 = vld [vmem:[#allocation2 + $0x292] sm:$0xff]
    %v891 = vld [vmem:[#allocation2 + $0x2a2] sm:$0xff]
    %v892 = vld [vmem:[#allocation2 + $0x2aa] sm:$0xff]
    %v893 = vld [vmem:[#allocation2 + $0x2ba] sm:$0xff]
    %v894 = vld [vmem:[#allocation2 + $0x2c2] sm:$0xff]
    %v895 = vld [vmem:[#allocation2 + $0x2d2] sm:$0xff]
    %v896 = vld [vmem:[#allocation2 + $0x2da] sm:$0xff]
    %v897 = vld [vmem:[#allocation2 + $0x2ea] sm:$0xff]
    %v898 = vld [vmem:[#allocation2 + $0x2f2] sm:$0xff]
    %v899 = vld [vmem:[#allocation2 + $0x302] sm:$0xff]
    %v900 = vld [vmem:[#allocation2 + $0x30a] sm:$0xff]
    %v901 = vld [vmem:[#allocation2 + $0x31a] sm:$0xff]
    %v902 = vld [vmem:[#allocation2 + $0x322] sm:$0xff]
    %v903 = vld [vmem:[%s646] sm:$0xff]
    %v904 = vld [vmem:[%s646 + $0x8] sm:$0xff]
    %v905 = vld [vmem:[%s646 + $0x18] sm:$0xff]
    %v906 = vld [vmem:[%s646 + $0x20] sm:$0xff]
    %v907 = vld [vmem:[%s646 + $0x30] sm:$0xff]
    %v908 = vld [vmem:[%s646 + $0x38] sm:$0xff]
    %v909 = vld [vmem:[%s646 + $0x48] sm:$0xff]
    %v910 = vld [vmem:[%s646 + $0x50] sm:$0xff]
    %v911 = vld [vmem:[%s646 + $0x60] sm:$0xff]
    %v912 = vld [vmem:[%s646 + $0x68] sm:$0xff]
    %v913 = vld [vmem:[%s646 + $0x78] sm:$0xff]
    %v914 = vld [vmem:[%s646 + $0x80] sm:$0xff]
    %v915 = vld [vmem:[%s646 + $0x90] sm:$0xff]
    %v916 = vld [vmem:[%s646 + $0x98] sm:$0xff]
    %v917 = vld [vmem:[%s646 + $0xa8] sm:$0xff]
    %v918 = vld [vmem:[%s646 + $0xb0] sm:$0xff]
    %v919 = vld [vmem:[%s646 + $0xc0] sm:$0xff]
    %v920 = vld [vmem:[%s646 + $0xc8] sm:$0xff]
    %v921 = vld [vmem:[%s646 + $0xd8] sm:$0xff]
    %v922 = vld [vmem:[%s646 + $0xe0] sm:$0xff]
    %v923 = vld [vmem:[%s646 + $0xf0] sm:$0xff]
    %v924 = vld [vmem:[%s646 + $0xf8] sm:$0xff]
    %v925 = vld [vmem:[%s646 + $0x108] sm:$0xff]
    %v926 = vld [vmem:[%s646 + $0x110] sm:$0xff]
    %v927 = vld [vmem:[%s646 + $0x120] sm:$0xff]
    %v928 = vld [vmem:[%s646 + $0x128] sm:$0xff]
    %v929 = vld [vmem:[%s646 + $0x138] sm:$0xff]
    %v930 = vld [vmem:[%s646 + $0x140] sm:$0xff]
    %v931 = vld [vmem:[%s646 + $0x150] sm:$0xff]
    %v932 = vld [vmem:[%s646 + $0x158] sm:$0xff]
    %v933 = vld [vmem:[%s646 + $0x168] sm:$0xff]
    %v934 = vld [vmem:[%s646 + $0x170] sm:$0xff]
    %v935 = vld [vmem:[%s646 + $0x1b0] sm:$0xff]
    %v936 = vld [vmem:[%s646 + $0x1b8] sm:$0xff]
    %v937 = vld [vmem:[%s646 + $0x1c8] sm:$0xff]
    %v938 = vld [vmem:[%s646 + $0x1d0] sm:$0xff]
    %v939 = vld [vmem:[%s646 + $0x1e0] sm:$0xff]
    %v940 = vld [vmem:[%s646 + $0x1e8] sm:$0xff]
    %v941 = vld [vmem:[%s646 + $0x1f8] sm:$0xff]
    %v942 = vld [vmem:[%s646 + $0x200] sm:$0xff]
    %v943 = vld [vmem:[%s646 + $0x210] sm:$0xff]
    %v944 = vld [vmem:[%s646 + $0x218] sm:$0xff]
    %v945 = vld [vmem:[%s646 + $0x228] sm:$0xff]
    %v946 = vld [vmem:[%s646 + $0x230] sm:$0xff]
    %v947 = vld [vmem:[%s646 + $0x240] sm:$0xff]
    %v948 = vld [vmem:[%s646 + $0x248] sm:$0xff]
    %v949 = vld [vmem:[%s646 + $0x258] sm:$0xff]
    %v950 = vld [vmem:[%s646 + $0x260] sm:$0xff]
    %v951 = vld [vmem:[%s646 + $0x270] sm:$0xff]
    %v952 = vld [vmem:[%s646 + $0x278] sm:$0xff]
    %v953 = vld [vmem:[%s646 + $0x288] sm:$0xff]
    %v954 = vld [vmem:[%s646 + $0x290] sm:$0xff]
    %v955 = vld [vmem:[%s646 + $0x2a0] sm:$0xff]
    %v956 = vld [vmem:[%s646 + $0x2a8] sm:$0xff]
    %v957 = vld [vmem:[%s646 + $0x2b8] sm:$0xff]
    %v958 = vld [vmem:[%s646 + $0x2c0] sm:$0xff]
    %v959 = vld [vmem:[%s646 + $0x2d0] sm:$0xff]
    %v960 = vld [vmem:[%s646 + $0x2d8] sm:$0xff]
    %v961 = vld [vmem:[%s646 + $0x2e8] sm:$0xff]
    %v962 = vld [vmem:[%s646 + $0x2f0] sm:$0xff]
    %v963 = vld [vmem:[%s646 + $0x300] sm:$0xff]
    %v964 = vld [vmem:[%s646 + $0x308] sm:$0xff]
    %v965 = vld [vmem:[%s646 + $0x318] sm:$0xff]
    %v966 = vld [vmem:[%s646 + $0x320] sm:$0xff]
    %v967 = vld [vmem:[%s646 + $0x1] sm:$0xff]
    %v968 = vld [vmem:[%s646 + $0x9] sm:$0xff]
    %v969 = vld [vmem:[%s646 + $0x19] sm:$0xff]
    %v970 = vld [vmem:[%s646 + $0x21] sm:$0xff]
    %v971 = vld [vmem:[%s646 + $0x31] sm:$0xff]
    %v972 = vld [vmem:[%s646 + $0x39] sm:$0xff]
    %v973 = vld [vmem:[%s646 + $0x49] sm:$0xff]
    %v974 = vld [vmem:[%s646 + $0x51] sm:$0xff]
    %v975 = vld [vmem:[%s646 + $0x61] sm:$0xff]
    %v976 = vld [vmem:[%s646 + $0x69] sm:$0xff]
    %v977 = vld [vmem:[%s646 + $0x79] sm:$0xff]
    %v978 = vld [vmem:[%s646 + $0x81] sm:$0xff]
    %v979 = vld [vmem:[%s646 + $0x91] sm:$0xff]
    %v980 = vld [vmem:[%s646 + $0x99] sm:$0xff]
    %v981 = vld [vmem:[%s646 + $0xa9] sm:$0xff]
    %v982 = vld [vmem:[%s646 + $0xb1] sm:$0xff]
    %v983 = vld [vmem:[%s646 + $0xc1] sm:$0xff]
    %v984 = vld [vmem:[%s646 + $0xc9] sm:$0xff]
    %v985 = vld [vmem:[%s646 + $0xd9] sm:$0xff]
    %v986 = vld [vmem:[%s646 + $0xe1] sm:$0xff]
    %v987 = vld [vmem:[%s646 + $0xf1] sm:$0xff]
    %v988 = vld [vmem:[%s646 + $0xf9] sm:$0xff]
    %v989 = vld [vmem:[%s646 + $0x109] sm:$0xff]
    %v990 = vld [vmem:[%s646 + $0x111] sm:$0xff]
    %v991 = vld [vmem:[%s646 + $0x121] sm:$0xff]
    %v992 = vld [vmem:[%s646 + $0x129] sm:$0xff]
    %v993 = vld [vmem:[%s646 + $0x139] sm:$0xff]
    %v994 = vld [vmem:[%s646 + $0x141] sm:$0xff]
    %v995 = vld [vmem:[%s646 + $0x151] sm:$0xff]
    %v996 = vld [vmem:[%s646 + $0x159] sm:$0xff]
    %v997 = vld [vmem:[%s646 + $0x169] sm:$0xff]
    %v998 = vld [vmem:[%s646 + $0x171] sm:$0xff]
    %v999 = vld [vmem:[%s646 + $0x1b1] sm:$0xff]
    %v1000 = vld [vmem:[%s646 + $0x1b9] sm:$0xff]
    %v1001 = vld [vmem:[%s646 + $0x1c9] sm:$0xff]
    %v1002 = vld [vmem:[%s646 + $0x1d1] sm:$0xff]
    %v1003 = vld [vmem:[%s646 + $0x1e1] sm:$0xff]
    %v1004 = vld [vmem:[%s646 + $0x1e9] sm:$0xff]
    %v1005 = vld [vmem:[%s646 + $0x1f9] sm:$0xff]
    %v1006 = vld [vmem:[%s646 + $0x201] sm:$0xff]
    %v1007 = vld [vmem:[%s646 + $0x211] sm:$0xff]
    %v1008 = vld [vmem:[%s646 + $0x219] sm:$0xff]
    %v1009 = vld [vmem:[%s646 + $0x229] sm:$0xff]
    %v1010 = vld [vmem:[%s646 + $0x231] sm:$0xff]
    %v1011 = vld [vmem:[%s646 + $0x241] sm:$0xff]
    %v1012 = vld [vmem:[%s646 + $0x249] sm:$0xff]
    %v1013 = vld [vmem:[%s646 + $0x259] sm:$0xff]
    %v1014 = vld [vmem:[%s646 + $0x261] sm:$0xff]
    %v1015 = vld [vmem:[%s646 + $0x271] sm:$0xff]
    %v1016 = vld [vmem:[%s646 + $0x279] sm:$0xff]
    %v1017 = vld [vmem:[%s646 + $0x289] sm:$0xff]
    %v1018 = vld [vmem:[%s646 + $0x291] sm:$0xff]
    %v1019 = vld [vmem:[%s646 + $0x2a1] sm:$0xff]
    %v1020 = vld [vmem:[%s646 + $0x2a9] sm:$0xff]
    %v1021 = vld [vmem:[%s646 + $0x2b9] sm:$0xff]
    %v1022 = vld [vmem:[%s646 + $0x2c1] sm:$0xff]
    %v1023 = vld [vmem:[%s646 + $0x2d1] sm:$0xff]
    %v1024 = vld [vmem:[%s646 + $0x2d9] sm:$0xff]
    %v1025 = vld [vmem:[%s646 + $0x2e9] sm:$0xff]
    %v1026 = vld [vmem:[%s646 + $0x2f1] sm:$0xff]
    %v1027 = vld [vmem:[%s646 + $0x301] sm:$0xff]
    %v1028 = vld [vmem:[%s646 + $0x309] sm:$0xff]
    %v1029 = vld [vmem:[%s646 + $0x319] sm:$0xff]
    %v1030 = vld [vmem:[%s646 + $0x321] sm:$0xff]
    %v1031 = vld [vmem:[%s646 + $0x2] sm:$0xff]
    %v1032 = vld [vmem:[%s646 + $0xa] sm:$0xff]
    %v1033 = vld [vmem:[%s646 + $0x1a] sm:$0xff]
    %v1034 = vld [vmem:[%s646 + $0x22] sm:$0xff]
    %v1035 = vld [vmem:[%s646 + $0x32] sm:$0xff]
    %v1036 = vld [vmem:[%s646 + $0x3a] sm:$0xff]
    %v1037 = vld [vmem:[%s646 + $0x4a] sm:$0xff]
    %v1038 = vld [vmem:[%s646 + $0x52] sm:$0xff]
    %v1039 = vld [vmem:[%s646 + $0x62] sm:$0xff]
    %v1040 = vld [vmem:[%s646 + $0x6a] sm:$0xff]
    %v1041 = vld [vmem:[%s646 + $0x7a] sm:$0xff]
    %v1042 = vld [vmem:[%s646 + $0x82] sm:$0xff]
    %v1043 = vld [vmem:[%s646 + $0x92] sm:$0xff]
    %v1044 = vld [vmem:[%s646 + $0x9a] sm:$0xff]
    %v1045 = vld [vmem:[%s646 + $0xaa] sm:$0xff]
    %v1046 = vld [vmem:[%s646 + $0xb2] sm:$0xff]
    %v1047 = vld [vmem:[%s646 + $0xc2] sm:$0xff]
    %v1048 = vld [vmem:[%s646 + $0xca] sm:$0xff]
    %v1049 = vld [vmem:[%s646 + $0xda] sm:$0xff]
    %v1050 = vld [vmem:[%s646 + $0xe2] sm:$0xff]
    %v1051 = vld [vmem:[%s646 + $0xf2] sm:$0xff]
    %v1052 = vld [vmem:[%s646 + $0xfa] sm:$0xff]
    %v1053 = vld [vmem:[%s646 + $0x10a] sm:$0xff]
    %v1054 = vld [vmem:[%s646 + $0x112] sm:$0xff]
    %v1055 = vld [vmem:[%s646 + $0x122] sm:$0xff]
    %v1056 = vld [vmem:[%s646 + $0x12a] sm:$0xff]
    %v1057 = vld [vmem:[%s646 + $0x13a] sm:$0xff]
    %v1058 = vld [vmem:[%s646 + $0x142] sm:$0xff]
    %v1059 = vld [vmem:[%s646 + $0x152] sm:$0xff]
    %v1060 = vld [vmem:[%s646 + $0x15a] sm:$0xff]
    %v1061 = vld [vmem:[%s646 + $0x16a] sm:$0xff]
    %v1062 = vld [vmem:[%s646 + $0x172] sm:$0xff]
    %v1063 = vld [vmem:[%s646 + $0x1b2] sm:$0xff]
    %v1064 = vld [vmem:[%s646 + $0x1ba] sm:$0xff]
    %v1065 = vld [vmem:[%s646 + $0x1ca] sm:$0xff]
    %v1066 = vld [vmem:[%s646 + $0x1d2] sm:$0xff]
    %v1067 = vld [vmem:[%s646 + $0x1e2] sm:$0xff]
    %v1068 = vld [vmem:[%s646 + $0x1ea] sm:$0xff]
    %v1069 = vld [vmem:[%s646 + $0x1fa] sm:$0xff]
    %v1070 = vld [vmem:[%s646 + $0x202] sm:$0xff]
    %v1071 = vld [vmem:[%s646 + $0x212] sm:$0xff]
    %v1072 = vld [vmem:[%s646 + $0x21a] sm:$0xff]
    %v1073 = vld [vmem:[%s646 + $0x22a] sm:$0xff]
    %v1074 = vld [vmem:[%s646 + $0x232] sm:$0xff]
    %v1075 = vld [vmem:[%s646 + $0x242] sm:$0xff]
    %v1076 = vld [vmem:[%s646 + $0x24a] sm:$0xff]
    %v1077 = vld [vmem:[%s646 + $0x25a] sm:$0xff]
    %v1078 = vld [vmem:[%s646 + $0x262] sm:$0xff]
    %v1079 = vld [vmem:[%s646 + $0x272] sm:$0xff]
    %v1080 = vld [vmem:[%s646 + $0x27a] sm:$0xff]
    %v1081 = vld [vmem:[%s646 + $0x28a] sm:$0xff]
    %v1082 = vld [vmem:[%s646 + $0x292] sm:$0xff]
    %v1083 = vld [vmem:[%s646 + $0x2a2] sm:$0xff]
    %v1084 = vld [vmem:[%s646 + $0x2aa] sm:$0xff]
    %v1085 = vld [vmem:[%s646 + $0x2ba] sm:$0xff]
    %v1086 = vld [vmem:[%s646 + $0x2c2] sm:$0xff]
    %v1087 = vld [vmem:[%s646 + $0x2d2] sm:$0xff]
    %v1088 = vld [vmem:[%s646 + $0x2da] sm:$0xff]
    %v1089 = vld [vmem:[%s646 + $0x2ea] sm:$0xff]
    %v1090 = vld [vmem:[%s646 + $0x2f2] sm:$0xff]
    %v1091 = vld [vmem:[%s646 + $0x302] sm:$0xff]
    %v1092 = vld [vmem:[%s646 + $0x30a] sm:$0xff]
    %v1093 = vld [vmem:[%s646 + $0x31a] sm:$0xff]
    %v1094 = vld [vmem:[%s646 + $0x322] sm:$0xff]
    %s1095 = scalar_lea.vmem [#allocation2], 48
    %v1096 = vld [vmem:[%s1095] sm:$0xff]
    %v1097 = vld [vmem:[%s1095 + $0x8] sm:$0xff]
    %v1098 = vld [vmem:[%s1095 + $0x18] sm:$0xff]
    %v1099 = vld [vmem:[%s1095 + $0x20] sm:$0xff]
    %v1100 = vld [vmem:[%s1095 + $0x30] sm:$0xff]
    %v1101 = vld [vmem:[%s1095 + $0x38] sm:$0xff]
    %v1102 = vld [vmem:[%s1095 + $0x48] sm:$0xff]
    %v1103 = vld [vmem:[%s1095 + $0x50] sm:$0xff]
    %v1104 = vld [vmem:[%s1095 + $0x60] sm:$0xff]
    %v1105 = vld [vmem:[%s1095 + $0x68] sm:$0xff]
    %v1106 = vld [vmem:[%s1095 + $0x78] sm:$0xff]
    %v1107 = vld [vmem:[%s1095 + $0x80] sm:$0xff]
    %v1108 = vld [vmem:[%s1095 + $0x90] sm:$0xff]
    %v1109 = vld [vmem:[%s1095 + $0x98] sm:$0xff]
    %v1110 = vld [vmem:[%s1095 + $0xa8] sm:$0xff]
    %v1111 = vld [vmem:[%s1095 + $0xb0] sm:$0xff]
    %v1112 = vld [vmem:[%s1095 + $0xc0] sm:$0xff]
    %v1113 = vld [vmem:[%s1095 + $0xc8] sm:$0xff]
    %v1114 = vld [vmem:[%s1095 + $0xd8] sm:$0xff]
    %v1115 = vld [vmem:[%s1095 + $0xe0] sm:$0xff]
    %v1116 = vld [vmem:[%s1095 + $0xf0] sm:$0xff]
    %v1117 = vld [vmem:[%s1095 + $0xf8] sm:$0xff]
    %v1118 = vld [vmem:[%s1095 + $0x108] sm:$0xff]
    %v1119 = vld [vmem:[%s1095 + $0x110] sm:$0xff]
    %v1120 = vld [vmem:[%s1095 + $0x120] sm:$0xff]
    %v1121 = vld [vmem:[%s1095 + $0x128] sm:$0xff]
    %v1122 = vld [vmem:[%s1095 + $0x138] sm:$0xff]
    %v1123 = vld [vmem:[%s1095 + $0x140] sm:$0xff]
    %v1124 = vld [vmem:[%s1095 + $0x150] sm:$0xff]
    %v1125 = vld [vmem:[%s1095 + $0x158] sm:$0xff]
    %v1126 = vld [vmem:[%s1095 + $0x168] sm:$0xff]
    %v1127 = vld [vmem:[%s1095 + $0x170] sm:$0xff]
    %v1128 = vld [vmem:[%s1095 + $0x1b0] sm:$0xff]
    %v1129 = vld [vmem:[%s1095 + $0x1b8] sm:$0xff]
    %v1130 = vld [vmem:[%s1095 + $0x1c8] sm:$0xff]
    %v1131 = vld [vmem:[%s1095 + $0x1d0] sm:$0xff]
    %v1132 = vld [vmem:[%s1095 + $0x1e0] sm:$0xff]
    %v1133 = vld [vmem:[%s1095 + $0x1e8] sm:$0xff]
    %v1134 = vld [vmem:[%s1095 + $0x1f8] sm:$0xff]
    %v1135 = vld [vmem:[%s1095 + $0x200] sm:$0xff]
    %v1136 = vld [vmem:[%s1095 + $0x210] sm:$0xff]
    %v1137 = vld [vmem:[%s1095 + $0x218] sm:$0xff]
    %v1138 = vld [vmem:[%s1095 + $0x228] sm:$0xff]
    %v1139 = vld [vmem:[%s1095 + $0x230] sm:$0xff]
    %v1140 = vld [vmem:[%s1095 + $0x240] sm:$0xff]
    %v1141 = vld [vmem:[%s1095 + $0x248] sm:$0xff]
    %v1142 = vld [vmem:[%s1095 + $0x258] sm:$0xff]
    %v1143 = vld [vmem:[%s1095 + $0x260] sm:$0xff]
    %v1144 = vld [vmem:[%s1095 + $0x270] sm:$0xff]
    %v1145 = vld [vmem:[%s1095 + $0x278] sm:$0xff]
    %v1146 = vld [vmem:[%s1095 + $0x288] sm:$0xff]
    %v1147 = vld [vmem:[%s1095 + $0x290] sm:$0xff]
    %v1148 = vld [vmem:[%s1095 + $0x2a0] sm:$0xff]
    %v1149 = vld [vmem:[%s1095 + $0x2a8] sm:$0xff]
    %v1150 = vld [vmem:[%s1095 + $0x2b8] sm:$0xff]
    %v1151 = vld [vmem:[%s1095 + $0x2c0] sm:$0xff]
    %v1152 = vld [vmem:[%s1095 + $0x2d0] sm:$0xff]
    %v1153 = vld [vmem:[%s1095 + $0x2d8] sm:$0xff]
    %v1154 = vld [vmem:[%s1095 + $0x2e8] sm:$0xff]
    %v1155 = vld [vmem:[%s1095 + $0x2f0] sm:$0xff]
    %v1156 = vld [vmem:[%s1095 + $0x300] sm:$0xff]
    %v1157 = vld [vmem:[%s1095 + $0x308] sm:$0xff]
    %v1158 = vld [vmem:[%s1095 + $0x318] sm:$0xff]
    %v1159 = vld [vmem:[%s1095 + $0x320] sm:$0xff]
    %v1160 = vld [vmem:[%s1095 + $0x1] sm:$0xff]
    %v1161 = vld [vmem:[%s1095 + $0x9] sm:$0xff]
    %v1162 = vld [vmem:[%s1095 + $0x19] sm:$0xff]
    %v1163 = vld [vmem:[%s1095 + $0x21] sm:$0xff]
    %v1164 = vld [vmem:[%s1095 + $0x31] sm:$0xff]
    %v1165 = vld [vmem:[%s1095 + $0x39] sm:$0xff]
    %v1166 = vld [vmem:[%s1095 + $0x49] sm:$0xff]
    %v1167 = vld [vmem:[%s1095 + $0x51] sm:$0xff]
    %v1168 = vld [vmem:[%s1095 + $0x61] sm:$0xff]
    %v1169 = vld [vmem:[%s1095 + $0x69] sm:$0xff]
    %v1170 = vld [vmem:[%s1095 + $0x79] sm:$0xff]
    %v1171 = vld [vmem:[%s1095 + $0x81] sm:$0xff]
    %v1172 = vld [vmem:[%s1095 + $0x91] sm:$0xff]
    %v1173 = vld [vmem:[%s1095 + $0x99] sm:$0xff]
    %v1174 = vld [vmem:[%s1095 + $0xa9] sm:$0xff]
    %v1175 = vld [vmem:[%s1095 + $0xb1] sm:$0xff]
    %v1176 = vld [vmem:[%s1095 + $0xc1] sm:$0xff]
    %v1177 = vld [vmem:[%s1095 + $0xc9] sm:$0xff]
    %v1178 = vld [vmem:[%s1095 + $0xd9] sm:$0xff]
    %v1179 = vld [vmem:[%s1095 + $0xe1] sm:$0xff]
    %v1180 = vld [vmem:[%s1095 + $0xf1] sm:$0xff]
    %v1181 = vld [vmem:[%s1095 + $0xf9] sm:$0xff]
    %v1182 = vld [vmem:[%s1095 + $0x109] sm:$0xff]
    %v1183 = vld [vmem:[%s1095 + $0x111] sm:$0xff]
    %v1184 = vld [vmem:[%s1095 + $0x121] sm:$0xff]
    %v1185 = vld [vmem:[%s1095 + $0x129] sm:$0xff]
    %v1186 = vld [vmem:[%s1095 + $0x139] sm:$0xff]
    %v1187 = vld [vmem:[%s1095 + $0x141] sm:$0xff]
    %v1188 = vld [vmem:[%s1095 + $0x151] sm:$0xff]
    %v1189 = vld [vmem:[%s1095 + $0x159] sm:$0xff]
    %v1190 = vld [vmem:[%s1095 + $0x169] sm:$0xff]
    %v1191 = vld [vmem:[%s1095 + $0x171] sm:$0xff]
    %v1192 = vld [vmem:[%s1095 + $0x1b1] sm:$0xff]
    %v1193 = vld [vmem:[%s1095 + $0x1b9] sm:$0xff]
    %v1194 = vld [vmem:[%s1095 + $0x1c9] sm:$0xff]
    %v1195 = vld [vmem:[%s1095 + $0x1d1] sm:$0xff]
    %v1196 = vld [vmem:[%s1095 + $0x1e1] sm:$0xff]
    %v1197 = vld [vmem:[%s1095 + $0x1e9] sm:$0xff]
    %v1198 = vld [vmem:[%s1095 + $0x1f9] sm:$0xff]
    %v1199 = vld [vmem:[%s1095 + $0x201] sm:$0xff]
    %v1200 = vld [vmem:[%s1095 + $0x211] sm:$0xff]
    %v1201 = vld [vmem:[%s1095 + $0x219] sm:$0xff]
    %v1202 = vld [vmem:[%s1095 + $0x229] sm:$0xff]
    %v1203 = vld [vmem:[%s1095 + $0x231] sm:$0xff]
    %v1204 = vld [vmem:[%s1095 + $0x241] sm:$0xff]
    %v1205 = vld [vmem:[%s1095 + $0x249] sm:$0xff]
    %v1206 = vld [vmem:[%s1095 + $0x259] sm:$0xff]
    %v1207 = vld [vmem:[%s1095 + $0x261] sm:$0xff]
    %v1208 = vld [vmem:[%s1095 + $0x271] sm:$0xff]
    %v1209 = vld [vmem:[%s1095 + $0x279] sm:$0xff]
    %v1210 = vld [vmem:[%s1095 + $0x289] sm:$0xff]
    %v1211 = vld [vmem:[%s1095 + $0x291] sm:$0xff]
    %v1212 = vld [vmem:[%s1095 + $0x2a1] sm:$0xff]
    %v1213 = vld [vmem:[%s1095 + $0x2a9] sm:$0xff]
    %v1214 = vld [vmem:[%s1095 + $0x2b9] sm:$0xff]
    %v1215 = vld [vmem:[%s1095 + $0x2c1] sm:$0xff]
    %v1216 = vld [vmem:[%s1095 + $0x2d1] sm:$0xff]
    %v1217 = vld [vmem:[%s1095 + $0x2d9] sm:$0xff]
    %v1218 = vld [vmem:[%s1095 + $0x2e9] sm:$0xff]
    %v1219 = vld [vmem:[%s1095 + $0x2f1] sm:$0xff]
    %v1220 = vld [vmem:[%s1095 + $0x301] sm:$0xff]
    %v1221 = vld [vmem:[%s1095 + $0x309] sm:$0xff]
    %v1222 = vld [vmem:[%s1095 + $0x319] sm:$0xff]
    %v1223 = vld [vmem:[%s1095 + $0x321] sm:$0xff]
    %v1224 = vld [vmem:[%s1095 + $0x2] sm:$0xff]
    %v1225 = vld [vmem:[%s1095 + $0xa] sm:$0xff]
    %v1226 = vld [vmem:[%s1095 + $0x1a] sm:$0xff]
    %v1227 = vld [vmem:[%s1095 + $0x22] sm:$0xff]
    %v1228 = vld [vmem:[%s1095 + $0x32] sm:$0xff]
    %v1229 = vld [vmem:[%s1095 + $0x3a] sm:$0xff]
    %v1230 = vld [vmem:[%s1095 + $0x4a] sm:$0xff]
    %v1231 = vld [vmem:[%s1095 + $0x52] sm:$0xff]
    %v1232 = vld [vmem:[%s1095 + $0x62] sm:$0xff]
    %v1233 = vld [vmem:[%s1095 + $0x6a] sm:$0xff]
    %v1234 = vld [vmem:[%s1095 + $0x7a] sm:$0xff]
    %v1235 = vld [vmem:[%s1095 + $0x82] sm:$0xff]
    %v1236 = vld [vmem:[%s1095 + $0x92] sm:$0xff]
    %v1237 = vld [vmem:[%s1095 + $0x9a] sm:$0xff]
    %v1238 = vld [vmem:[%s1095 + $0xaa] sm:$0xff]
    %v1239 = vld [vmem:[%s1095 + $0xb2] sm:$0xff]
    %v1240 = vld [vmem:[%s1095 + $0xc2] sm:$0xff]
    %v1241 = vld [vmem:[%s1095 + $0xca] sm:$0xff]
    %v1242 = vld [vmem:[%s1095 + $0xda] sm:$0xff]
    %v1243 = vld [vmem:[%s1095 + $0xe2] sm:$0xff]
    %v1244 = vld [vmem:[%s1095 + $0xf2] sm:$0xff]
    %v1245 = vld [vmem:[%s1095 + $0xfa] sm:$0xff]
    %v1246 = vld [vmem:[%s1095 + $0x10a] sm:$0xff]
    %v1247 = vld [vmem:[%s1095 + $0x112] sm:$0xff]
    %v1248 = vld [vmem:[%s1095 + $0x122] sm:$0xff]
    %v1249 = vld [vmem:[%s1095 + $0x12a] sm:$0xff]
    %v1250 = vld [vmem:[%s1095 + $0x13a] sm:$0xff]
    %v1251 = vld [vmem:[%s1095 + $0x142] sm:$0xff]
    %v1252 = vld [vmem:[%s1095 + $0x152] sm:$0xff]
    %v1253 = vld [vmem:[%s1095 + $0x15a] sm:$0xff]
    %v1254 = vld [vmem:[%s1095 + $0x16a] sm:$0xff]
    %v1255 = vld [vmem:[%s1095 + $0x172] sm:$0xff]
    %v1256 = vld [vmem:[%s1095 + $0x1b2] sm:$0xff]
    %v1257 = vld [vmem:[%s1095 + $0x1ba] sm:$0xff]
    %v1258 = vld [vmem:[%s1095 + $0x1ca] sm:$0xff]
    %v1259 = vld [vmem:[%s1095 + $0x1d2] sm:$0xff]
    %v1260 = vld [vmem:[%s1095 + $0x1e2] sm:$0xff]
    %v1261 = vld [vmem:[%s1095 + $0x1ea] sm:$0xff]
    %v1262 = vld [vmem:[%s1095 + $0x1fa] sm:$0xff]
    %v1263 = vld [vmem:[%s1095 + $0x202] sm:$0xff]
    %v1264 = vld [vmem:[%s1095 + $0x212] sm:$0xff]
    %v1265 = vld [vmem:[%s1095 + $0x21a] sm:$0xff]
    %v1266 = vld [vmem:[%s1095 + $0x22a] sm:$0xff]
    %v1267 = vld [vmem:[%s1095 + $0x232] sm:$0xff]
    %v1268 = vld [vmem:[%s1095 + $0x242] sm:$0xff]
    %v1269 = vld [vmem:[%s1095 + $0x24a] sm:$0xff]
    %v1270 = vld [vmem:[%s1095 + $0x25a] sm:$0xff]
    %v1271 = vld [vmem:[%s1095 + $0x262] sm:$0xff]
    %v1272 = vld [vmem:[%s1095 + $0x272] sm:$0xff]
    %v1273 = vld [vmem:[%s1095 + $0x27a] sm:$0xff]
    %v1274 = vld [vmem:[%s1095 + $0x28a] sm:$0xff]
    %v1275 = vld [vmem:[%s1095 + $0x292] sm:$0xff]
    %v1276 = vld [vmem:[%s1095 + $0x2a2] sm:$0xff]
    %v1277 = vld [vmem:[%s1095 + $0x2aa] sm:$0xff]
    %v1278 = vld [vmem:[%s1095 + $0x2ba] sm:$0xff]
    %v1279 = vld [vmem:[%s1095 + $0x2c2] sm:$0xff]
    %v1280 = vld [vmem:[%s1095 + $0x2d2] sm:$0xff]
    %v1281 = vld [vmem:[%s1095 + $0x2da] sm:$0xff]
    %v1282 = vld [vmem:[%s1095 + $0x2ea] sm:$0xff]
    %v1283 = vld [vmem:[%s1095 + $0x2f2] sm:$0xff]
    %v1284 = vld [vmem:[%s1095 + $0x302] sm:$0xff]
    %v1285 = vld [vmem:[%s1095 + $0x30a] sm:$0xff]
    %v1286 = vld [vmem:[%s1095 + $0x31a] sm:$0xff]
    %v1287 = vld [vmem:[%s1095 + $0x322] sm:$0xff]
    %1352 = vrot.lane.b32.xlu0 %v775, 4
    %v1353 = vpop.permute.xlu0 %1352
    %1354 = vrot.lane.b32.xlu0 %v776, 4
    %v1355 = vpop.permute.xlu0 %1354
    %1356 = vrot.lane.b32.xlu0 %v777, 4
    %v1357 = vpop.permute.xlu0 %1356
    %1358 = vrot.lane.b32.xlu0 %v778, 4
    %v1359 = vpop.permute.xlu0 %1358
    %1360 = vrot.lane.b32.xlu0 %v779, 4
    %v1361 = vpop.permute.xlu0 %1360
    %1362 = vrot.lane.b32.xlu0 %v780, 4
    %v1363 = vpop.permute.xlu0 %1362
    %1364 = vrot.lane.b32.xlu0 %v781, 4
    %v1365 = vpop.permute.xlu0 %1364
    %1366 = vrot.lane.b32.xlu0 %v782, 4
    %v1367 = vpop.permute.xlu0 %1366
    %1368 = vrot.lane.b32.xlu0 %v783, 4
    %v1369 = vpop.permute.xlu0 %1368
    %1370 = vrot.lane.b32.xlu0 %v784, 4
    %v1371 = vpop.permute.xlu0 %1370
    %1372 = vrot.lane.b32.xlu0 %v785, 4
    %v1373 = vpop.permute.xlu0 %1372
    %1374 = vrot.lane.b32.xlu0 %v786, 4
    %v1375 = vpop.permute.xlu0 %1374
    %1376 = vrot.lane.b32.xlu0 %v787, 4
    %v1377 = vpop.permute.xlu0 %1376
    %1378 = vrot.lane.b32.xlu0 %v788, 4
    %v1379 = vpop.permute.xlu0 %1378
    %1380 = vrot.lane.b32.xlu0 %v789, 4
    %v1381 = vpop.permute.xlu0 %1380
    %1382 = vrot.lane.b32.xlu0 %v790, 4
    %v1383 = vpop.permute.xlu0 %1382
    %1384 = vrot.lane.b32.xlu0 %v791, 4
    %v1385 = vpop.permute.xlu0 %1384
    %1386 = vrot.lane.b32.xlu0 %v792, 4
    %v1387 = vpop.permute.xlu0 %1386
    %1388 = vrot.lane.b32.xlu0 %v793, 4
    %v1389 = vpop.permute.xlu0 %1388
    %1390 = vrot.lane.b32.xlu0 %v794, 4
    %v1391 = vpop.permute.xlu0 %1390
    %1392 = vrot.lane.b32.xlu0 %v795, 4
    %v1393 = vpop.permute.xlu0 %1392
    %1394 = vrot.lane.b32.xlu0 %v796, 4
    %v1395 = vpop.permute.xlu0 %1394
    %1396 = vrot.lane.b32.xlu0 %v797, 4
    %v1397 = vpop.permute.xlu0 %1396
    %1398 = vrot.lane.b32.xlu0 %v798, 4
    %v1399 = vpop.permute.xlu0 %1398
    %1400 = vrot.lane.b32.xlu0 %v799, 4
    %v1401 = vpop.permute.xlu0 %1400
    %1402 = vrot.lane.b32.xlu0 %v800, 4
    %v1403 = vpop.permute.xlu0 %1402
    %1404 = vrot.lane.b32.xlu0 %v801, 4
    %v1405 = vpop.permute.xlu0 %1404
    %1406 = vrot.lane.b32.xlu0 %v802, 4
    %v1407 = vpop.permute.xlu0 %1406
    %1408 = vrot.lane.b32.xlu0 %v803, 4
    %v1409 = vpop.permute.xlu0 %1408
    %1410 = vrot.lane.b32.xlu0 %v804, 4
    %v1411 = vpop.permute.xlu0 %1410
    %1412 = vrot.lane.b32.xlu0 %v805, 4
    %v1413 = vpop.permute.xlu0 %1412
    %1414 = vrot.lane.b32.xlu0 %v806, 4
    %v1415 = vpop.permute.xlu0 %1414
    %1416 = vrot.lane.b32.xlu0 %v807, 4
    %v1417 = vpop.permute.xlu0 %1416
    %1418 = vrot.lane.b32.xlu0 %v808, 4
    %v1419 = vpop.permute.xlu0 %1418
    %1420 = vrot.lane.b32.xlu0 %v809, 4
    %v1421 = vpop.permute.xlu0 %1420
    %1422 = vrot.lane.b32.xlu0 %v810, 4
    %v1423 = vpop.permute.xlu0 %1422
    %1424 = vrot.lane.b32.xlu0 %v811, 4
    %v1425 = vpop.permute.xlu0 %1424
    %1426 = vrot.lane.b32.xlu0 %v812, 4
    %v1427 = vpop.permute.xlu0 %1426
    %1428 = vrot.lane.b32.xlu0 %v813, 4
    %v1429 = vpop.permute.xlu0 %1428
    %1430 = vrot.lane.b32.xlu0 %v814, 4
    %v1431 = vpop.permute.xlu0 %1430
    %1432 = vrot.lane.b32.xlu0 %v815, 4
    %v1433 = vpop.permute.xlu0 %1432
    %1434 = vrot.lane.b32.xlu0 %v816, 4
    %v1435 = vpop.permute.xlu0 %1434
    %1436 = vrot.lane.b32.xlu0 %v817, 4
    %v1437 = vpop.permute.xlu0 %1436
    %1438 = vrot.lane.b32.xlu0 %v818, 4
    %v1439 = vpop.permute.xlu0 %1438
    %1440 = vrot.lane.b32.xlu0 %v819, 4
    %v1441 = vpop.permute.xlu0 %1440
    %1442 = vrot.lane.b32.xlu0 %v820, 4
    %v1443 = vpop.permute.xlu0 %1442
    %1444 = vrot.lane.b32.xlu0 %v821, 4
    %v1445 = vpop.permute.xlu0 %1444
    %1446 = vrot.lane.b32.xlu0 %v822, 4
    %v1447 = vpop.permute.xlu0 %1446
    %1448 = vrot.lane.b32.xlu0 %v823, 4
    %v1449 = vpop.permute.xlu0 %1448
    %1450 = vrot.lane.b32.xlu0 %v824, 4
    %v1451 = vpop.permute.xlu0 %1450
    %1452 = vrot.lane.b32.xlu0 %v825, 4
    %v1453 = vpop.permute.xlu0 %1452
    %1454 = vrot.lane.b32.xlu0 %v826, 4
    %v1455 = vpop.permute.xlu0 %1454
    %1456 = vrot.lane.b32.xlu0 %v827, 4
    %v1457 = vpop.permute.xlu0 %1456
    %1458 = vrot.lane.b32.xlu0 %v828, 4
    %v1459 = vpop.permute.xlu0 %1458
    %1460 = vrot.lane.b32.xlu0 %v829, 4
    %v1461 = vpop.permute.xlu0 %1460
    %1462 = vrot.lane.b32.xlu0 %v830, 4
    %v1463 = vpop.permute.xlu0 %1462
    %1464 = vrot.lane.b32.xlu0 %v831, 4
    %v1465 = vpop.permute.xlu0 %1464
    %1466 = vrot.lane.b32.xlu0 %v832, 4
    %v1467 = vpop.permute.xlu0 %1466
    %1468 = vrot.lane.b32.xlu0 %v833, 4
    %v1469 = vpop.permute.xlu0 %1468
    %1470 = vrot.lane.b32.xlu0 %v834, 4
    %v1471 = vpop.permute.xlu0 %1470
    %1472 = vrot.lane.b32.xlu0 %v835, 4
    %v1473 = vpop.permute.xlu0 %1472
    %1474 = vrot.lane.b32.xlu0 %v836, 4
    %v1475 = vpop.permute.xlu0 %1474
    %1476 = vrot.lane.b32.xlu0 %v837, 4
    %v1477 = vpop.permute.xlu0 %1476
    %1478 = vrot.lane.b32.xlu0 %v838, 4
    %v1479 = vpop.permute.xlu0 %1478
    %1608 = vrot.lane.b32.xlu0 %v839, 8
    %v1609 = vpop.permute.xlu0 %1608
    %1610 = vrot.lane.b32.xlu0 %v840, 8
    %v1611 = vpop.permute.xlu0 %1610
    %1612 = vrot.lane.b32.xlu0 %v841, 8
    %v1613 = vpop.permute.xlu0 %1612
    %1614 = vrot.lane.b32.xlu0 %v842, 8
    %v1615 = vpop.permute.xlu0 %1614
    %1616 = vrot.lane.b32.xlu0 %v843, 8
    %v1617 = vpop.permute.xlu0 %1616
    %1618 = vrot.lane.b32.xlu0 %v844, 8
    %v1619 = vpop.permute.xlu0 %1618
    %1620 = vrot.lane.b32.xlu0 %v845, 8
    %v1621 = vpop.permute.xlu0 %1620
    %1622 = vrot.lane.b32.xlu0 %v846, 8
    %v1623 = vpop.permute.xlu0 %1622
    %1624 = vrot.lane.b32.xlu0 %v847, 8
    %v1625 = vpop.permute.xlu0 %1624
    %1626 = vrot.lane.b32.xlu0 %v848, 8
    %v1627 = vpop.permute.xlu0 %1626
    %1628 = vrot.lane.b32.xlu0 %v849, 8
    %v1629 = vpop.permute.xlu0 %1628
    %1630 = vrot.lane.b32.xlu0 %v850, 8
    %v1631 = vpop.permute.xlu0 %1630
    %1632 = vrot.lane.b32.xlu0 %v851, 8
    %v1633 = vpop.permute.xlu0 %1632
    %1634 = vrot.lane.b32.xlu0 %v852, 8
    %v1635 = vpop.permute.xlu0 %1634
    %1636 = vrot.lane.b32.xlu0 %v853, 8
    %v1637 = vpop.permute.xlu0 %1636
    %1638 = vrot.lane.b32.xlu0 %v854, 8
    %v1639 = vpop.permute.xlu0 %1638
    %1640 = vrot.lane.b32.xlu0 %v855, 8
    %v1641 = vpop.permute.xlu0 %1640
    %1642 = vrot.lane.b32.xlu0 %v856, 8
    %v1643 = vpop.permute.xlu0 %1642
    %1644 = vrot.lane.b32.xlu0 %v857, 8
    %v1645 = vpop.permute.xlu0 %1644
    %1646 = vrot.lane.b32.xlu0 %v858, 8
    %v1647 = vpop.permute.xlu0 %1646
    %1648 = vrot.lane.b32.xlu0 %v859, 8
    %v1649 = vpop.permute.xlu0 %1648
    %1650 = vrot.lane.b32.xlu0 %v860, 8
    %v1651 = vpop.permute.xlu0 %1650
    %1652 = vrot.lane.b32.xlu0 %v861, 8
    %v1653 = vpop.permute.xlu0 %1652
    %1654 = vrot.lane.b32.xlu0 %v862, 8
    %v1655 = vpop.permute.xlu0 %1654
    %1656 = vrot.lane.b32.xlu0 %v863, 8
    %v1657 = vpop.permute.xlu0 %1656
    %1658 = vrot.lane.b32.xlu0 %v864, 8
    %v1659 = vpop.permute.xlu0 %1658
    %1660 = vrot.lane.b32.xlu0 %v865, 8
    %v1661 = vpop.permute.xlu0 %1660
    %1662 = vrot.lane.b32.xlu0 %v866, 8
    %v1663 = vpop.permute.xlu0 %1662
    %1664 = vrot.lane.b32.xlu0 %v867, 8
    %v1665 = vpop.permute.xlu0 %1664
    %1666 = vrot.lane.b32.xlu0 %v868, 8
    %v1667 = vpop.permute.xlu0 %1666
    %1668 = vrot.lane.b32.xlu0 %v869, 8
    %v1669 = vpop.permute.xlu0 %1668
    %1670 = vrot.lane.b32.xlu0 %v870, 8
    %v1671 = vpop.permute.xlu0 %1670
    %1672 = vrot.lane.b32.xlu0 %v871, 8
    %v1673 = vpop.permute.xlu0 %1672
    %1674 = vrot.lane.b32.xlu0 %v872, 8
    %v1675 = vpop.permute.xlu0 %1674
    %1676 = vrot.lane.b32.xlu0 %v873, 8
    %v1677 = vpop.permute.xlu0 %1676
    %1678 = vrot.lane.b32.xlu0 %v874, 8
    %v1679 = vpop.permute.xlu0 %1678
    %1680 = vrot.lane.b32.xlu0 %v875, 8
    %v1681 = vpop.permute.xlu0 %1680
    %1682 = vrot.lane.b32.xlu0 %v876, 8
    %v1683 = vpop.permute.xlu0 %1682
    %1684 = vrot.lane.b32.xlu0 %v877, 8
    %v1685 = vpop.permute.xlu0 %1684
    %1686 = vrot.lane.b32.xlu0 %v878, 8
    %v1687 = vpop.permute.xlu0 %1686
    %1688 = vrot.lane.b32.xlu0 %v879, 8
    %v1689 = vpop.permute.xlu0 %1688
    %1690 = vrot.lane.b32.xlu0 %v880, 8
    %v1691 = vpop.permute.xlu0 %1690
    %1692 = vrot.lane.b32.xlu0 %v881, 8
    %v1693 = vpop.permute.xlu0 %1692
    %1694 = vrot.lane.b32.xlu0 %v882, 8
    %v1695 = vpop.permute.xlu0 %1694
    %1696 = vrot.lane.b32.xlu0 %v883, 8
    %v1697 = vpop.permute.xlu0 %1696
    %1698 = vrot.lane.b32.xlu0 %v884, 8
    %v1699 = vpop.permute.xlu0 %1698
    %1700 = vrot.lane.b32.xlu0 %v885, 8
    %v1701 = vpop.permute.xlu0 %1700
    %1702 = vrot.lane.b32.xlu0 %v886, 8
    %v1703 = vpop.permute.xlu0 %1702
    %1704 = vrot.lane.b32.xlu0 %v887, 8
    %v1705 = vpop.permute.xlu0 %1704
    %1706 = vrot.lane.b32.xlu0 %v888, 8
    %v1707 = vpop.permute.xlu0 %1706
    %1708 = vrot.lane.b32.xlu0 %v889, 8
    %v1709 = vpop.permute.xlu0 %1708
    %1710 = vrot.lane.b32.xlu0 %v890, 8
    %v1711 = vpop.permute.xlu0 %1710
    %1712 = vrot.lane.b32.xlu0 %v891, 8
    %v1713 = vpop.permute.xlu0 %1712
    %1714 = vrot.lane.b32.xlu0 %v892, 8
    %v1715 = vpop.permute.xlu0 %1714
    %1716 = vrot.lane.b32.xlu0 %v893, 8
    %v1717 = vpop.permute.xlu0 %1716
    %1718 = vrot.lane.b32.xlu0 %v894, 8
    %v1719 = vpop.permute.xlu0 %1718
    %1720 = vrot.lane.b32.xlu0 %v895, 8
    %v1721 = vpop.permute.xlu0 %1720
    %1722 = vrot.lane.b32.xlu0 %v896, 8
    %v1723 = vpop.permute.xlu0 %1722
    %1724 = vrot.lane.b32.xlu0 %v897, 8
    %v1725 = vpop.permute.xlu0 %1724
    %1726 = vrot.lane.b32.xlu0 %v898, 8
    %v1727 = vpop.permute.xlu0 %1726
    %1728 = vrot.lane.b32.xlu0 %v899, 8
    %v1729 = vpop.permute.xlu0 %1728
    %1730 = vrot.lane.b32.xlu0 %v900, 8
    %v1731 = vpop.permute.xlu0 %1730
    %1732 = vrot.lane.b32.xlu0 %v901, 8
    %v1733 = vpop.permute.xlu0 %1732
    %1734 = vrot.lane.b32.xlu0 %v902, 8
    %v1735 = vpop.permute.xlu0 %1734
    %1864 = vrot.lane.b32.xlu0 %v903, 12
    %v1865 = vpop.permute.xlu0 %1864
    %1866 = vrot.lane.b32.xlu0 %v904, 12
    %v1867 = vpop.permute.xlu0 %1866
    %1868 = vrot.lane.b32.xlu0 %v905, 12
    %v1869 = vpop.permute.xlu0 %1868
    %1870 = vrot.lane.b32.xlu0 %v906, 12
    %v1871 = vpop.permute.xlu0 %1870
    %1872 = vrot.lane.b32.xlu0 %v907, 12
    %v1873 = vpop.permute.xlu0 %1872
    %1874 = vrot.lane.b32.xlu0 %v908, 12
    %v1875 = vpop.permute.xlu0 %1874
    %1876 = vrot.lane.b32.xlu0 %v909, 12
    %v1877 = vpop.permute.xlu0 %1876
    %1878 = vrot.lane.b32.xlu0 %v910, 12
    %v1879 = vpop.permute.xlu0 %1878
    %1880 = vrot.lane.b32.xlu0 %v911, 12
    %v1881 = vpop.permute.xlu0 %1880
    %1882 = vrot.lane.b32.xlu0 %v912, 12
    %v1883 = vpop.permute.xlu0 %1882
    %1884 = vrot.lane.b32.xlu0 %v913, 12
    %v1885 = vpop.permute.xlu0 %1884
    %1886 = vrot.lane.b32.xlu0 %v914, 12
    %v1887 = vpop.permute.xlu0 %1886
    %1888 = vrot.lane.b32.xlu0 %v915, 12
    %v1889 = vpop.permute.xlu0 %1888
    %1890 = vrot.lane.b32.xlu0 %v916, 12
    %v1891 = vpop.permute.xlu0 %1890
    %1892 = vrot.lane.b32.xlu0 %v917, 12
    %v1893 = vpop.permute.xlu0 %1892
    %1894 = vrot.lane.b32.xlu0 %v918, 12
    %v1895 = vpop.permute.xlu0 %1894
    %1896 = vrot.lane.b32.xlu0 %v919, 12
    %v1897 = vpop.permute.xlu0 %1896
    %1898 = vrot.lane.b32.xlu0 %v920, 12
    %v1899 = vpop.permute.xlu0 %1898
    %1900 = vrot.lane.b32.xlu0 %v921, 12
    %v1901 = vpop.permute.xlu0 %1900
    %1902 = vrot.lane.b32.xlu0 %v922, 12
    %v1903 = vpop.permute.xlu0 %1902
    %1904 = vrot.lane.b32.xlu0 %v923, 12
    %v1905 = vpop.permute.xlu0 %1904
    %1906 = vrot.lane.b32.xlu0 %v924, 12
    %v1907 = vpop.permute.xlu0 %1906
    %1908 = vrot.lane.b32.xlu0 %v925, 12
    %v1909 = vpop.permute.xlu0 %1908
    %1910 = vrot.lane.b32.xlu0 %v926, 12
    %v1911 = vpop.permute.xlu0 %1910
    %1912 = vrot.lane.b32.xlu0 %v927, 12
    %v1913 = vpop.permute.xlu0 %1912
    %1914 = vrot.lane.b32.xlu0 %v928, 12
    %v1915 = vpop.permute.xlu0 %1914
    %1916 = vrot.lane.b32.xlu0 %v929, 12
    %v1917 = vpop.permute.xlu0 %1916
    %1918 = vrot.lane.b32.xlu0 %v930, 12
    %v1919 = vpop.permute.xlu0 %1918
    %1920 = vrot.lane.b32.xlu0 %v931, 12
    %v1921 = vpop.permute.xlu0 %1920
    %1922 = vrot.lane.b32.xlu0 %v932, 12
    %v1923 = vpop.permute.xlu0 %1922
    %1924 = vrot.lane.b32.xlu0 %v933, 12
    %v1925 = vpop.permute.xlu0 %1924
    %1926 = vrot.lane.b32.xlu0 %v934, 12
    %v1927 = vpop.permute.xlu0 %1926
    %1928 = vrot.lane.b32.xlu0 %v935, 12
    %v1929 = vpop.permute.xlu0 %1928
    %1930 = vrot.lane.b32.xlu0 %v936, 12
    %v1931 = vpop.permute.xlu0 %1930
    %1932 = vrot.lane.b32.xlu0 %v937, 12
    %v1933 = vpop.permute.xlu0 %1932
    %1934 = vrot.lane.b32.xlu0 %v938, 12
    %v1935 = vpop.permute.xlu0 %1934
    %1936 = vrot.lane.b32.xlu0 %v939, 12
    %v1937 = vpop.permute.xlu0 %1936
    %1938 = vrot.lane.b32.xlu0 %v940, 12
    %v1939 = vpop.permute.xlu0 %1938
    %1940 = vrot.lane.b32.xlu0 %v941, 12
    %v1941 = vpop.permute.xlu0 %1940
    %1942 = vrot.lane.b32.xlu0 %v942, 12
    %v1943 = vpop.permute.xlu0 %1942
    %1944 = vrot.lane.b32.xlu0 %v943, 12
    %v1945 = vpop.permute.xlu0 %1944
    %1946 = vrot.lane.b32.xlu0 %v944, 12
    %v1947 = vpop.permute.xlu0 %1946
    %1948 = vrot.lane.b32.xlu0 %v945, 12
    %v1949 = vpop.permute.xlu0 %1948
    %1950 = vrot.lane.b32.xlu0 %v946, 12
    %v1951 = vpop.permute.xlu0 %1950
    %1952 = vrot.lane.b32.xlu0 %v947, 12
    %v1953 = vpop.permute.xlu0 %1952
    %1954 = vrot.lane.b32.xlu0 %v948, 12
    %v1955 = vpop.permute.xlu0 %1954
    %1956 = vrot.lane.b32.xlu0 %v949, 12
    %v1957 = vpop.permute.xlu0 %1956
    %1958 = vrot.lane.b32.xlu0 %v950, 12
    %v1959 = vpop.permute.xlu0 %1958
    %1960 = vrot.lane.b32.xlu0 %v951, 12
    %v1961 = vpop.permute.xlu0 %1960
    %1962 = vrot.lane.b32.xlu0 %v952, 12
    %v1963 = vpop.permute.xlu0 %1962
    %1964 = vrot.lane.b32.xlu0 %v953, 12
    %v1965 = vpop.permute.xlu0 %1964
    %1966 = vrot.lane.b32.xlu0 %v954, 12
    %v1967 = vpop.permute.xlu0 %1966
    %1968 = vrot.lane.b32.xlu0 %v955, 12
    %v1969 = vpop.permute.xlu0 %1968
    %1970 = vrot.lane.b32.xlu0 %v956, 12
    %v1971 = vpop.permute.xlu0 %1970
    %1972 = vrot.lane.b32.xlu0 %v957, 12
    %v1973 = vpop.permute.xlu0 %1972
    %1974 = vrot.lane.b32.xlu0 %v958, 12
    %v1975 = vpop.permute.xlu0 %1974
    %1976 = vrot.lane.b32.xlu0 %v959, 12
    %v1977 = vpop.permute.xlu0 %1976
    %1978 = vrot.lane.b32.xlu0 %v960, 12
    %v1979 = vpop.permute.xlu0 %1978
    %1980 = vrot.lane.b32.xlu0 %v961, 12
    %v1981 = vpop.permute.xlu0 %1980
    %1982 = vrot.lane.b32.xlu0 %v962, 12
    %v1983 = vpop.permute.xlu0 %1982
    %1984 = vrot.lane.b32.xlu0 %v963, 12
    %v1985 = vpop.permute.xlu0 %1984
    %1986 = vrot.lane.b32.xlu0 %v964, 12
    %v1987 = vpop.permute.xlu0 %1986
    %1988 = vrot.lane.b32.xlu0 %v965, 12
    %v1989 = vpop.permute.xlu0 %1988
    %1990 = vrot.lane.b32.xlu0 %v966, 12
    %v1991 = vpop.permute.xlu0 %1990
    %2120 = vrot.lane.b32.xlu0 %v967, 16
    %v2121 = vpop.permute.xlu0 %2120
    %2122 = vrot.lane.b32.xlu0 %v968, 16
    %v2123 = vpop.permute.xlu0 %2122
    %2124 = vrot.lane.b32.xlu0 %v969, 16
    %v2125 = vpop.permute.xlu0 %2124
    %2126 = vrot.lane.b32.xlu0 %v970, 16
    %v2127 = vpop.permute.xlu0 %2126
    %2128 = vrot.lane.b32.xlu0 %v971, 16
    %v2129 = vpop.permute.xlu0 %2128
    %2130 = vrot.lane.b32.xlu0 %v972, 16
    %v2131 = vpop.permute.xlu0 %2130
    %2132 = vrot.lane.b32.xlu0 %v973, 16
    %v2133 = vpop.permute.xlu0 %2132
    %2134 = vrot.lane.b32.xlu0 %v974, 16
    %v2135 = vpop.permute.xlu0 %2134
    %2136 = vrot.lane.b32.xlu0 %v975, 16
    %v2137 = vpop.permute.xlu0 %2136
    %2138 = vrot.lane.b32.xlu0 %v976, 16
    %v2139 = vpop.permute.xlu0 %2138
    %2140 = vrot.lane.b32.xlu0 %v977, 16
    %v2141 = vpop.permute.xlu0 %2140
    %2142 = vrot.lane.b32.xlu0 %v978, 16
    %v2143 = vpop.permute.xlu0 %2142
    %2144 = vrot.lane.b32.xlu0 %v979, 16
    %v2145 = vpop.permute.xlu0 %2144
    %2146 = vrot.lane.b32.xlu0 %v980, 16
    %v2147 = vpop.permute.xlu0 %2146
    %2148 = vrot.lane.b32.xlu0 %v981, 16
    %v2149 = vpop.permute.xlu0 %2148
    %2150 = vrot.lane.b32.xlu0 %v982, 16
    %v2151 = vpop.permute.xlu0 %2150
    %2152 = vrot.lane.b32.xlu0 %v983, 16
    %v2153 = vpop.permute.xlu0 %2152
    %2154 = vrot.lane.b32.xlu0 %v984, 16
    %v2155 = vpop.permute.xlu0 %2154
    %2156 = vrot.lane.b32.xlu0 %v985, 16
    %v2157 = vpop.permute.xlu0 %2156
    %2158 = vrot.lane.b32.xlu0 %v986, 16
    %v2159 = vpop.permute.xlu0 %2158
    %2160 = vrot.lane.b32.xlu0 %v987, 16
    %v2161 = vpop.permute.xlu0 %2160
    %2162 = vrot.lane.b32.xlu0 %v988, 16
    %v2163 = vpop.permute.xlu0 %2162
    %2164 = vrot.lane.b32.xlu0 %v989, 16
    %v2165 = vpop.permute.xlu0 %2164
    %2166 = vrot.lane.b32.xlu0 %v990, 16
    %v2167 = vpop.permute.xlu0 %2166
    %2168 = vrot.lane.b32.xlu0 %v991, 16
    %v2169 = vpop.permute.xlu0 %2168
    %2170 = vrot.lane.b32.xlu0 %v992, 16
    %v2171 = vpop.permute.xlu0 %2170
    %2172 = vrot.lane.b32.xlu0 %v993, 16
    %v2173 = vpop.permute.xlu0 %2172
    %2174 = vrot.lane.b32.xlu0 %v994, 16
    %v2175 = vpop.permute.xlu0 %2174
    %2176 = vrot.lane.b32.xlu0 %v995, 16
    %v2177 = vpop.permute.xlu0 %2176
    %2178 = vrot.lane.b32.xlu0 %v996, 16
    %v2179 = vpop.permute.xlu0 %2178
    %2180 = vrot.lane.b32.xlu0 %v997, 16
    %v2181 = vpop.permute.xlu0 %2180
    %2182 = vrot.lane.b32.xlu0 %v998, 16
    %v2183 = vpop.permute.xlu0 %2182
    %2184 = vrot.lane.b32.xlu0 %v999, 16
    %v2185 = vpop.permute.xlu0 %2184
    %2186 = vrot.lane.b32.xlu0 %v1000, 16
    %v2187 = vpop.permute.xlu0 %2186
    %2188 = vrot.lane.b32.xlu0 %v1001, 16
    %v2189 = vpop.permute.xlu0 %2188
    %2190 = vrot.lane.b32.xlu0 %v1002, 16
    %v2191 = vpop.permute.xlu0 %2190
    %2192 = vrot.lane.b32.xlu0 %v1003, 16
    %v2193 = vpop.permute.xlu0 %2192
    %2194 = vrot.lane.b32.xlu0 %v1004, 16
    %v2195 = vpop.permute.xlu0 %2194
    %2196 = vrot.lane.b32.xlu0 %v1005, 16
    %v2197 = vpop.permute.xlu0 %2196
    %2198 = vrot.lane.b32.xlu0 %v1006, 16
    %v2199 = vpop.permute.xlu0 %2198
    %2200 = vrot.lane.b32.xlu0 %v1007, 16
    %v2201 = vpop.permute.xlu0 %2200
    %2202 = vrot.lane.b32.xlu0 %v1008, 16
    %v2203 = vpop.permute.xlu0 %2202
    %2204 = vrot.lane.b32.xlu0 %v1009, 16
    %v2205 = vpop.permute.xlu0 %2204
    %2206 = vrot.lane.b32.xlu0 %v1010, 16
    %v2207 = vpop.permute.xlu0 %2206
    %2208 = vrot.lane.b32.xlu0 %v1011, 16
    %v2209 = vpop.permute.xlu0 %2208
    %2210 = vrot.lane.b32.xlu0 %v1012, 16
    %v2211 = vpop.permute.xlu0 %2210
    %2212 = vrot.lane.b32.xlu0 %v1013, 16
    %v2213 = vpop.permute.xlu0 %2212
    %2214 = vrot.lane.b32.xlu0 %v1014, 16
    %v2215 = vpop.permute.xlu0 %2214
    %2216 = vrot.lane.b32.xlu0 %v1015, 16
    %v2217 = vpop.permute.xlu0 %2216
    %2218 = vrot.lane.b32.xlu0 %v1016, 16
    %v2219 = vpop.permute.xlu0 %2218
    %2220 = vrot.lane.b32.xlu0 %v1017, 16
    %v2221 = vpop.permute.xlu0 %2220
    %2222 = vrot.lane.b32.xlu0 %v1018, 16
    %v2223 = vpop.permute.xlu0 %2222
    %2224 = vrot.lane.b32.xlu0 %v1019, 16
    %v2225 = vpop.permute.xlu0 %2224
    %2226 = vrot.lane.b32.xlu0 %v1020, 16
    %v2227 = vpop.permute.xlu0 %2226
    %2228 = vrot.lane.b32.xlu0 %v1021, 16
    %v2229 = vpop.permute.xlu0 %2228
    %2230 = vrot.lane.b32.xlu0 %v1022, 16
    %v2231 = vpop.permute.xlu0 %2230
    %2232 = vrot.lane.b32.xlu0 %v1023, 16
    %v2233 = vpop.permute.xlu0 %2232
    %2234 = vrot.lane.b32.xlu0 %v1024, 16
    %v2235 = vpop.permute.xlu0 %2234
    %2236 = vrot.lane.b32.xlu0 %v1025, 16
    %v2237 = vpop.permute.xlu0 %2236
    %2238 = vrot.lane.b32.xlu0 %v1026, 16
    %v2239 = vpop.permute.xlu0 %2238
    %2240 = vrot.lane.b32.xlu0 %v1027, 16
    %v2241 = vpop.permute.xlu0 %2240
    %2242 = vrot.lane.b32.xlu0 %v1028, 16
    %v2243 = vpop.permute.xlu0 %2242
    %2244 = vrot.lane.b32.xlu0 %v1029, 16
    %v2245 = vpop.permute.xlu0 %2244
    %2246 = vrot.lane.b32.xlu0 %v1030, 16
    %v2247 = vpop.permute.xlu0 %2246
    %2376 = vrot.lane.b32.xlu0 %v1031, 20
    %v2377 = vpop.permute.xlu0 %2376
    %2378 = vrot.lane.b32.xlu0 %v1032, 20
    %v2379 = vpop.permute.xlu0 %2378
    %2380 = vrot.lane.b32.xlu0 %v1033, 20
    %v2381 = vpop.permute.xlu0 %2380
    %2382 = vrot.lane.b32.xlu0 %v1034, 20
    %v2383 = vpop.permute.xlu0 %2382
    %2384 = vrot.lane.b32.xlu0 %v1035, 20
    %v2385 = vpop.permute.xlu0 %2384
    %2386 = vrot.lane.b32.xlu0 %v1036, 20
    %v2387 = vpop.permute.xlu0 %2386
    %2388 = vrot.lane.b32.xlu0 %v1037, 20
    %v2389 = vpop.permute.xlu0 %2388
    %2390 = vrot.lane.b32.xlu0 %v1038, 20
    %v2391 = vpop.permute.xlu0 %2390
    %2392 = vrot.lane.b32.xlu0 %v1039, 20
    %v2393 = vpop.permute.xlu0 %2392
    %2394 = vrot.lane.b32.xlu0 %v1040, 20
    %v2395 = vpop.permute.xlu0 %2394
    %2396 = vrot.lane.b32.xlu0 %v1041, 20
    %v2397 = vpop.permute.xlu0 %2396
    %2398 = vrot.lane.b32.xlu0 %v1042, 20
    %v2399 = vpop.permute.xlu0 %2398
    %2400 = vrot.lane.b32.xlu0 %v1043, 20
    %v2401 = vpop.permute.xlu0 %2400
    %2402 = vrot.lane.b32.xlu0 %v1044, 20
    %v2403 = vpop.permute.xlu0 %2402
    %2404 = vrot.lane.b32.xlu0 %v1045, 20
    %v2405 = vpop.permute.xlu0 %2404
    %2406 = vrot.lane.b32.xlu0 %v1046, 20
    %v2407 = vpop.permute.xlu0 %2406
    %2408 = vrot.lane.b32.xlu0 %v1047, 20
    %v2409 = vpop.permute.xlu0 %2408
    %2410 = vrot.lane.b32.xlu0 %v1048, 20
    %v2411 = vpop.permute.xlu0 %2410
    %2412 = vrot.lane.b32.xlu0 %v1049, 20
    %v2413 = vpop.permute.xlu0 %2412
    %2414 = vrot.lane.b32.xlu0 %v1050, 20
    %v2415 = vpop.permute.xlu0 %2414
    %2416 = vrot.lane.b32.xlu0 %v1051, 20
    %v2417 = vpop.permute.xlu0 %2416
    %2418 = vrot.lane.b32.xlu0 %v1052, 20
    %v2419 = vpop.permute.xlu0 %2418
    %2420 = vrot.lane.b32.xlu0 %v1053, 20
    %v2421 = vpop.permute.xlu0 %2420
    %2422 = vrot.lane.b32.xlu0 %v1054, 20
    %v2423 = vpop.permute.xlu0 %2422
    %2424 = vrot.lane.b32.xlu0 %v1055, 20
    %v2425 = vpop.permute.xlu0 %2424
    %2426 = vrot.lane.b32.xlu0 %v1056, 20
    %v2427 = vpop.permute.xlu0 %2426
    %2428 = vrot.lane.b32.xlu0 %v1057, 20
    %v2429 = vpop.permute.xlu0 %2428
    %2430 = vrot.lane.b32.xlu0 %v1058, 20
    %v2431 = vpop.permute.xlu0 %2430
    %2432 = vrot.lane.b32.xlu0 %v1059, 20
    %v2433 = vpop.permute.xlu0 %2432
    %2434 = vrot.lane.b32.xlu0 %v1060, 20
    %v2435 = vpop.permute.xlu0 %2434
    %2436 = vrot.lane.b32.xlu0 %v1061, 20
    %v2437 = vpop.permute.xlu0 %2436
    %2438 = vrot.lane.b32.xlu0 %v1062, 20
    %v2439 = vpop.permute.xlu0 %2438
    %2440 = vrot.lane.b32.xlu0 %v1063, 20
    %v2441 = vpop.permute.xlu0 %2440
    %2442 = vrot.lane.b32.xlu0 %v1064, 20
    %v2443 = vpop.permute.xlu0 %2442
    %2444 = vrot.lane.b32.xlu0 %v1065, 20
    %v2445 = vpop.permute.xlu0 %2444
    %2446 = vrot.lane.b32.xlu0 %v1066, 20
    %v2447 = vpop.permute.xlu0 %2446
    %2448 = vrot.lane.b32.xlu0 %v1067, 20
    %v2449 = vpop.permute.xlu0 %2448
    %2450 = vrot.lane.b32.xlu0 %v1068, 20
    %v2451 = vpop.permute.xlu0 %2450
    %2452 = vrot.lane.b32.xlu0 %v1069, 20
    %v2453 = vpop.permute.xlu0 %2452
    %2454 = vrot.lane.b32.xlu0 %v1070, 20
    %v2455 = vpop.permute.xlu0 %2454
    %2456 = vrot.lane.b32.xlu0 %v1071, 20
    %v2457 = vpop.permute.xlu0 %2456
    %2458 = vrot.lane.b32.xlu0 %v1072, 20
    %v2459 = vpop.permute.xlu0 %2458
    %2460 = vrot.lane.b32.xlu0 %v1073, 20
    %v2461 = vpop.permute.xlu0 %2460
    %2462 = vrot.lane.b32.xlu0 %v1074, 20
    %v2463 = vpop.permute.xlu0 %2462
    %2464 = vrot.lane.b32.xlu0 %v1075, 20
    %v2465 = vpop.permute.xlu0 %2464
    %2466 = vrot.lane.b32.xlu0 %v1076, 20
    %v2467 = vpop.permute.xlu0 %2466
    %2468 = vrot.lane.b32.xlu0 %v1077, 20
    %v2469 = vpop.permute.xlu0 %2468
    %2470 = vrot.lane.b32.xlu0 %v1078, 20
    %v2471 = vpop.permute.xlu0 %2470
    %2472 = vrot.lane.b32.xlu0 %v1079, 20
    %v2473 = vpop.permute.xlu0 %2472
    %2474 = vrot.lane.b32.xlu0 %v1080, 20
    %v2475 = vpop.permute.xlu0 %2474
    %2476 = vrot.lane.b32.xlu0 %v1081, 20
    %v2477 = vpop.permute.xlu0 %2476
    %2478 = vrot.lane.b32.xlu0 %v1082, 20
    %v2479 = vpop.permute.xlu0 %2478
    %2480 = vrot.lane.b32.xlu0 %v1083, 20
    %v2481 = vpop.permute.xlu0 %2480
    %2482 = vrot.lane.b32.xlu0 %v1084, 20
    %v2483 = vpop.permute.xlu0 %2482
    %2484 = vrot.lane.b32.xlu0 %v1085, 20
    %v2485 = vpop.permute.xlu0 %2484
    %2486 = vrot.lane.b32.xlu0 %v1086, 20
    %v2487 = vpop.permute.xlu0 %2486
    %2488 = vrot.lane.b32.xlu0 %v1087, 20
    %v2489 = vpop.permute.xlu0 %2488
    %2490 = vrot.lane.b32.xlu0 %v1088, 20
    %v2491 = vpop.permute.xlu0 %2490
    %2492 = vrot.lane.b32.xlu0 %v1089, 20
    %v2493 = vpop.permute.xlu0 %2492
    %2494 = vrot.lane.b32.xlu0 %v1090, 20
    %v2495 = vpop.permute.xlu0 %2494
    %2496 = vrot.lane.b32.xlu0 %v1091, 20
    %v2497 = vpop.permute.xlu0 %2496
    %2498 = vrot.lane.b32.xlu0 %v1092, 20
    %v2499 = vpop.permute.xlu0 %2498
    %2500 = vrot.lane.b32.xlu0 %v1093, 20
    %v2501 = vpop.permute.xlu0 %2500
    %2502 = vrot.lane.b32.xlu0 %v1094, 20
    %v2503 = vpop.permute.xlu0 %2502
    %2632 = vrot.lane.b32.xlu0 %v1096, 24
    %v2633 = vpop.permute.xlu0 %2632
    %2634 = vrot.lane.b32.xlu0 %v1097, 24
    %v2635 = vpop.permute.xlu0 %2634
    %2636 = vrot.lane.b32.xlu0 %v1098, 24
    %v2637 = vpop.permute.xlu0 %2636
    %2638 = vrot.lane.b32.xlu0 %v1099, 24
    %v2639 = vpop.permute.xlu0 %2638
    %2640 = vrot.lane.b32.xlu0 %v1100, 24
    %v2641 = vpop.permute.xlu0 %2640
    %2642 = vrot.lane.b32.xlu0 %v1101, 24
    %v2643 = vpop.permute.xlu0 %2642
    %2644 = vrot.lane.b32.xlu0 %v1102, 24
    %v2645 = vpop.permute.xlu0 %2644
    %2646 = vrot.lane.b32.xlu0 %v1103, 24
    %v2647 = vpop.permute.xlu0 %2646
    %2648 = vrot.lane.b32.xlu0 %v1104, 24
    %v2649 = vpop.permute.xlu0 %2648
    %2650 = vrot.lane.b32.xlu0 %v1105, 24
    %v2651 = vpop.permute.xlu0 %2650
    %2652 = vrot.lane.b32.xlu0 %v1106, 24
    %v2653 = vpop.permute.xlu0 %2652
    %2654 = vrot.lane.b32.xlu0 %v1107, 24
    %v2655 = vpop.permute.xlu0 %2654
    %2656 = vrot.lane.b32.xlu0 %v1108, 24
    %v2657 = vpop.permute.xlu0 %2656
    %2658 = vrot.lane.b32.xlu0 %v1109, 24
    %v2659 = vpop.permute.xlu0 %2658
    %2660 = vrot.lane.b32.xlu0 %v1110, 24
    %v2661 = vpop.permute.xlu0 %2660
    %2662 = vrot.lane.b32.xlu0 %v1111, 24
    %v2663 = vpop.permute.xlu0 %2662
    %2664 = vrot.lane.b32.xlu0 %v1112, 24
    %v2665 = vpop.permute.xlu0 %2664
    %2666 = vrot.lane.b32.xlu0 %v1113, 24
    %v2667 = vpop.permute.xlu0 %2666
    %2668 = vrot.lane.b32.xlu0 %v1114, 24
    %v2669 = vpop.permute.xlu0 %2668
    %2670 = vrot.lane.b32.xlu0 %v1115, 24
    %v2671 = vpop.permute.xlu0 %2670
    %2672 = vrot.lane.b32.xlu0 %v1116, 24
    %v2673 = vpop.permute.xlu0 %2672
    %2674 = vrot.lane.b32.xlu0 %v1117, 24
    %v2675 = vpop.permute.xlu0 %2674
    %2676 = vrot.lane.b32.xlu0 %v1118, 24
    %v2677 = vpop.permute.xlu0 %2676
    %2678 = vrot.lane.b32.xlu0 %v1119, 24
    %v2679 = vpop.permute.xlu0 %2678
    %2680 = vrot.lane.b32.xlu0 %v1120, 24
    %v2681 = vpop.permute.xlu0 %2680
    %2682 = vrot.lane.b32.xlu0 %v1121, 24
    %v2683 = vpop.permute.xlu0 %2682
    %2684 = vrot.lane.b32.xlu0 %v1122, 24
    %v2685 = vpop.permute.xlu0 %2684
    %2686 = vrot.lane.b32.xlu0 %v1123, 24
    %v2687 = vpop.permute.xlu0 %2686
    %2688 = vrot.lane.b32.xlu0 %v1124, 24
    %v2689 = vpop.permute.xlu0 %2688
    %2690 = vrot.lane.b32.xlu0 %v1125, 24
    %v2691 = vpop.permute.xlu0 %2690
    %2692 = vrot.lane.b32.xlu0 %v1126, 24
    %v2693 = vpop.permute.xlu0 %2692
    %2694 = vrot.lane.b32.xlu0 %v1127, 24
    %v2695 = vpop.permute.xlu0 %2694
    %2696 = vrot.lane.b32.xlu0 %v1128, 24
    %v2697 = vpop.permute.xlu0 %2696
    %2698 = vrot.lane.b32.xlu0 %v1129, 24
    %v2699 = vpop.permute.xlu0 %2698
    %2700 = vrot.lane.b32.xlu0 %v1130, 24
    %v2701 = vpop.permute.xlu0 %2700
    %2702 = vrot.lane.b32.xlu0 %v1131, 24
    %v2703 = vpop.permute.xlu0 %2702
    %2704 = vrot.lane.b32.xlu0 %v1132, 24
    %v2705 = vpop.permute.xlu0 %2704
    %2706 = vrot.lane.b32.xlu0 %v1133, 24
    %v2707 = vpop.permute.xlu0 %2706
    %2708 = vrot.lane.b32.xlu0 %v1134, 24
    %v2709 = vpop.permute.xlu0 %2708
    %2710 = vrot.lane.b32.xlu0 %v1135, 24
    %v2711 = vpop.permute.xlu0 %2710
    %2712 = vrot.lane.b32.xlu0 %v1136, 24
    %v2713 = vpop.permute.xlu0 %2712
    %2714 = vrot.lane.b32.xlu0 %v1137, 24
    %v2715 = vpop.permute.xlu0 %2714
    %2716 = vrot.lane.b32.xlu0 %v1138, 24
    %v2717 = vpop.permute.xlu0 %2716
    %2718 = vrot.lane.b32.xlu0 %v1139, 24
    %v2719 = vpop.permute.xlu0 %2718
    %2720 = vrot.lane.b32.xlu0 %v1140, 24
    %v2721 = vpop.permute.xlu0 %2720
    %2722 = vrot.lane.b32.xlu0 %v1141, 24
    %v2723 = vpop.permute.xlu0 %2722
    %2724 = vrot.lane.b32.xlu0 %v1142, 24
    %v2725 = vpop.permute.xlu0 %2724
    %2726 = vrot.lane.b32.xlu0 %v1143, 24
    %v2727 = vpop.permute.xlu0 %2726
    %2728 = vrot.lane.b32.xlu0 %v1144, 24
    %v2729 = vpop.permute.xlu0 %2728
    %2730 = vrot.lane.b32.xlu0 %v1145, 24
    %v2731 = vpop.permute.xlu0 %2730
    %2732 = vrot.lane.b32.xlu0 %v1146, 24
    %v2733 = vpop.permute.xlu0 %2732
    %2734 = vrot.lane.b32.xlu0 %v1147, 24
    %v2735 = vpop.permute.xlu0 %2734
    %2736 = vrot.lane.b32.xlu0 %v1148, 24
    %v2737 = vpop.permute.xlu0 %2736
    %2738 = vrot.lane.b32.xlu0 %v1149, 24
    %v2739 = vpop.permute.xlu0 %2738
    %2740 = vrot.lane.b32.xlu0 %v1150, 24
    %v2741 = vpop.permute.xlu0 %2740
    %2742 = vrot.lane.b32.xlu0 %v1151, 24
    %v2743 = vpop.permute.xlu0 %2742
    %2744 = vrot.lane.b32.xlu0 %v1152, 24
    %v2745 = vpop.permute.xlu0 %2744
    %2746 = vrot.lane.b32.xlu0 %v1153, 24
    %v2747 = vpop.permute.xlu0 %2746
    %2748 = vrot.lane.b32.xlu0 %v1154, 24
    %v2749 = vpop.permute.xlu0 %2748
    %2750 = vrot.lane.b32.xlu0 %v1155, 24
    %v2751 = vpop.permute.xlu0 %2750
    %2752 = vrot.lane.b32.xlu0 %v1156, 24
    %v2753 = vpop.permute.xlu0 %2752
    %2754 = vrot.lane.b32.xlu0 %v1157, 24
    %v2755 = vpop.permute.xlu0 %2754
    %2756 = vrot.lane.b32.xlu0 %v1158, 24
    %v2757 = vpop.permute.xlu0 %2756
    %2758 = vrot.lane.b32.xlu0 %v1159, 24
    %v2759 = vpop.permute.xlu0 %2758
    %2888 = vrot.lane.b32.xlu0 %v1160, 28
    %v2889 = vpop.permute.xlu0 %2888
    %2890 = vrot.lane.b32.xlu0 %v1161, 28
    %v2891 = vpop.permute.xlu0 %2890
    %2892 = vrot.lane.b32.xlu0 %v1162, 28
    %v2893 = vpop.permute.xlu0 %2892
    %2894 = vrot.lane.b32.xlu0 %v1163, 28
    %v2895 = vpop.permute.xlu0 %2894
    %2896 = vrot.lane.b32.xlu0 %v1164, 28
    %v2897 = vpop.permute.xlu0 %2896
    %2898 = vrot.lane.b32.xlu0 %v1165, 28
    %v2899 = vpop.permute.xlu0 %2898
    %2900 = vrot.lane.b32.xlu0 %v1166, 28
    %v2901 = vpop.permute.xlu0 %2900
    %2902 = vrot.lane.b32.xlu0 %v1167, 28
    %v2903 = vpop.permute.xlu0 %2902
    %2904 = vrot.lane.b32.xlu0 %v1168, 28
    %v2905 = vpop.permute.xlu0 %2904
    %2906 = vrot.lane.b32.xlu0 %v1169, 28
    %v2907 = vpop.permute.xlu0 %2906
    %2908 = vrot.lane.b32.xlu0 %v1170, 28
    %v2909 = vpop.permute.xlu0 %2908
    %2910 = vrot.lane.b32.xlu0 %v1171, 28
    %v2911 = vpop.permute.xlu0 %2910
    %2912 = vrot.lane.b32.xlu0 %v1172, 28
    %v2913 = vpop.permute.xlu0 %2912
    %2914 = vrot.lane.b32.xlu0 %v1173, 28
    %v2915 = vpop.permute.xlu0 %2914
    %2916 = vrot.lane.b32.xlu0 %v1174, 28
    %v2917 = vpop.permute.xlu0 %2916
    %2918 = vrot.lane.b32.xlu0 %v1175, 28
    %v2919 = vpop.permute.xlu0 %2918
    %2920 = vrot.lane.b32.xlu0 %v1176, 28
    %v2921 = vpop.permute.xlu0 %2920
    %2922 = vrot.lane.b32.xlu0 %v1177, 28
    %v2923 = vpop.permute.xlu0 %2922
    %2924 = vrot.lane.b32.xlu0 %v1178, 28
    %v2925 = vpop.permute.xlu0 %2924
    %2926 = vrot.lane.b32.xlu0 %v1179, 28
    %v2927 = vpop.permute.xlu0 %2926
    %2928 = vrot.lane.b32.xlu0 %v1180, 28
    %v2929 = vpop.permute.xlu0 %2928
    %2930 = vrot.lane.b32.xlu0 %v1181, 28
    %v2931 = vpop.permute.xlu0 %2930
    %2932 = vrot.lane.b32.xlu0 %v1182, 28
    %v2933 = vpop.permute.xlu0 %2932
    %2934 = vrot.lane.b32.xlu0 %v1183, 28
    %v2935 = vpop.permute.xlu0 %2934
    %2936 = vrot.lane.b32.xlu0 %v1184, 28
    %v2937 = vpop.permute.xlu0 %2936
    %2938 = vrot.lane.b32.xlu0 %v1185, 28
    %v2939 = vpop.permute.xlu0 %2938
    %2940 = vrot.lane.b32.xlu0 %v1186, 28
    %v2941 = vpop.permute.xlu0 %2940
    %2942 = vrot.lane.b32.xlu0 %v1187, 28
    %v2943 = vpop.permute.xlu0 %2942
    %2944 = vrot.lane.b32.xlu0 %v1188, 28
    %v2945 = vpop.permute.xlu0 %2944
    %2946 = vrot.lane.b32.xlu0 %v1189, 28
    %v2947 = vpop.permute.xlu0 %2946
    %2948 = vrot.lane.b32.xlu0 %v1190, 28
    %v2949 = vpop.permute.xlu0 %2948
    %2950 = vrot.lane.b32.xlu0 %v1191, 28
    %v2951 = vpop.permute.xlu0 %2950
    %2952 = vrot.lane.b32.xlu0 %v1192, 28
    %v2953 = vpop.permute.xlu0 %2952
    %2954 = vrot.lane.b32.xlu0 %v1193, 28
    %v2955 = vpop.permute.xlu0 %2954
    %2956 = vrot.lane.b32.xlu0 %v1194, 28
    %v2957 = vpop.permute.xlu0 %2956
    %2958 = vrot.lane.b32.xlu0 %v1195, 28
    %v2959 = vpop.permute.xlu0 %2958
    %2960 = vrot.lane.b32.xlu0 %v1196, 28
    %v2961 = vpop.permute.xlu0 %2960
    %2962 = vrot.lane.b32.xlu0 %v1197, 28
    %v2963 = vpop.permute.xlu0 %2962
    %2964 = vrot.lane.b32.xlu0 %v1198, 28
    %v2965 = vpop.permute.xlu0 %2964
    %2966 = vrot.lane.b32.xlu0 %v1199, 28
    %v2967 = vpop.permute.xlu0 %2966
    %2968 = vrot.lane.b32.xlu0 %v1200, 28
    %v2969 = vpop.permute.xlu0 %2968
    %2970 = vrot.lane.b32.xlu0 %v1201, 28
    %v2971 = vpop.permute.xlu0 %2970
    %2972 = vrot.lane.b32.xlu0 %v1202, 28
    %v2973 = vpop.permute.xlu0 %2972
    %2974 = vrot.lane.b32.xlu0 %v1203, 28
    %v2975 = vpop.permute.xlu0 %2974
    %2976 = vrot.lane.b32.xlu0 %v1204, 28
    %v2977 = vpop.permute.xlu0 %2976
    %2978 = vrot.lane.b32.xlu0 %v1205, 28
    %v2979 = vpop.permute.xlu0 %2978
    %2980 = vrot.lane.b32.xlu0 %v1206, 28
    %v2981 = vpop.permute.xlu0 %2980
    %2982 = vrot.lane.b32.xlu0 %v1207, 28
    %v2983 = vpop.permute.xlu0 %2982
    %2984 = vrot.lane.b32.xlu0 %v1208, 28
    %v2985 = vpop.permute.xlu0 %2984
    %2986 = vrot.lane.b32.xlu0 %v1209, 28
    %v2987 = vpop.permute.xlu0 %2986
    %2988 = vrot.lane.b32.xlu0 %v1210, 28
    %v2989 = vpop.permute.xlu0 %2988
    %2990 = vrot.lane.b32.xlu0 %v1211, 28
    %v2991 = vpop.permute.xlu0 %2990
    %2992 = vrot.lane.b32.xlu0 %v1212, 28
    %v2993 = vpop.permute.xlu0 %2992
    %2994 = vrot.lane.b32.xlu0 %v1213, 28
    %v2995 = vpop.permute.xlu0 %2994
    %2996 = vrot.lane.b32.xlu0 %v1214, 28
    %v2997 = vpop.permute.xlu0 %2996
    %2998 = vrot.lane.b32.xlu0 %v1215, 28
    %v2999 = vpop.permute.xlu0 %2998
    %3000 = vrot.lane.b32.xlu0 %v1216, 28
    %v3001 = vpop.permute.xlu0 %3000
    %3002 = vrot.lane.b32.xlu0 %v1217, 28
    %v3003 = vpop.permute.xlu0 %3002
    %3004 = vrot.lane.b32.xlu0 %v1218, 28
    %v3005 = vpop.permute.xlu0 %3004
    %3006 = vrot.lane.b32.xlu0 %v1219, 28
    %v3007 = vpop.permute.xlu0 %3006
    %3008 = vrot.lane.b32.xlu0 %v1220, 28
    %v3009 = vpop.permute.xlu0 %3008
    %3010 = vrot.lane.b32.xlu0 %v1221, 28
    %v3011 = vpop.permute.xlu0 %3010
    %3012 = vrot.lane.b32.xlu0 %v1222, 28
    %v3013 = vpop.permute.xlu0 %3012
    %3014 = vrot.lane.b32.xlu0 %v1223, 28
    %v3015 = vpop.permute.xlu0 %3014
    %3144 = vrot.lane.b32.xlu0 %v1224, 32
    %v3145 = vpop.permute.xlu0 %3144
    %3146 = vrot.lane.b32.xlu0 %v1225, 32
    %v3147 = vpop.permute.xlu0 %3146
    %3148 = vrot.lane.b32.xlu0 %v1226, 32
    %v3149 = vpop.permute.xlu0 %3148
    %3150 = vrot.lane.b32.xlu0 %v1227, 32
    %v3151 = vpop.permute.xlu0 %3150
    %3152 = vrot.lane.b32.xlu0 %v1228, 32
    %v3153 = vpop.permute.xlu0 %3152
    %3154 = vrot.lane.b32.xlu0 %v1229, 32
    %v3155 = vpop.permute.xlu0 %3154
    %3156 = vrot.lane.b32.xlu0 %v1230, 32
    %v3157 = vpop.permute.xlu0 %3156
    %3158 = vrot.lane.b32.xlu0 %v1231, 32
    %v3159 = vpop.permute.xlu0 %3158
    %3160 = vrot.lane.b32.xlu0 %v1232, 32
    %v3161 = vpop.permute.xlu0 %3160
    %3162 = vrot.lane.b32.xlu0 %v1233, 32
    %v3163 = vpop.permute.xlu0 %3162
    %3164 = vrot.lane.b32.xlu0 %v1234, 32
    %v3165 = vpop.permute.xlu0 %3164
    %3166 = vrot.lane.b32.xlu0 %v1235, 32
    %v3167 = vpop.permute.xlu0 %3166
    %3168 = vrot.lane.b32.xlu0 %v1236, 32
    %v3169 = vpop.permute.xlu0 %3168
    %3170 = vrot.lane.b32.xlu0 %v1237, 32
    %v3171 = vpop.permute.xlu0 %3170
    %3172 = vrot.lane.b32.xlu0 %v1238, 32
    %v3173 = vpop.permute.xlu0 %3172
    %3174 = vrot.lane.b32.xlu0 %v1239, 32
    %v3175 = vpop.permute.xlu0 %3174
    %3176 = vrot.lane.b32.xlu0 %v1240, 32
    %v3177 = vpop.permute.xlu0 %3176
    %3178 = vrot.lane.b32.xlu0 %v1241, 32
    %v3179 = vpop.permute.xlu0 %3178
    %3180 = vrot.lane.b32.xlu0 %v1242, 32
    %v3181 = vpop.permute.xlu0 %3180
    %3182 = vrot.lane.b32.xlu0 %v1243, 32
    %v3183 = vpop.permute.xlu0 %3182
    %3184 = vrot.lane.b32.xlu0 %v1244, 32
    %v3185 = vpop.permute.xlu0 %3184
    %3186 = vrot.lane.b32.xlu0 %v1245, 32
    %v3187 = vpop.permute.xlu0 %3186
    %3188 = vrot.lane.b32.xlu0 %v1246, 32
    %v3189 = vpop.permute.xlu0 %3188
    %3190 = vrot.lane.b32.xlu0 %v1247, 32
    %v3191 = vpop.permute.xlu0 %3190
    %3192 = vrot.lane.b32.xlu0 %v1248, 32
    %v3193 = vpop.permute.xlu0 %3192
    %3194 = vrot.lane.b32.xlu0 %v1249, 32
    %v3195 = vpop.permute.xlu0 %3194
    %3196 = vrot.lane.b32.xlu0 %v1250, 32
    %v3197 = vpop.permute.xlu0 %3196
    %3198 = vrot.lane.b32.xlu0 %v1251, 32
    %v3199 = vpop.permute.xlu0 %3198
    %3200 = vrot.lane.b32.xlu0 %v1252, 32
    %v3201 = vpop.permute.xlu0 %3200
    %3202 = vrot.lane.b32.xlu0 %v1253, 32
    %v3203 = vpop.permute.xlu0 %3202
    %3204 = vrot.lane.b32.xlu0 %v1254, 32
    %v3205 = vpop.permute.xlu0 %3204
    %3206 = vrot.lane.b32.xlu0 %v1255, 32
    %v3207 = vpop.permute.xlu0 %3206
    %3208 = vrot.lane.b32.xlu0 %v1256, 32
    %v3209 = vpop.permute.xlu0 %3208
    %3210 = vrot.lane.b32.xlu0 %v1257, 32
    %v3211 = vpop.permute.xlu0 %3210
    %3212 = vrot.lane.b32.xlu0 %v1258, 32
    %v3213 = vpop.permute.xlu0 %3212
    %3214 = vrot.lane.b32.xlu0 %v1259, 32
    %v3215 = vpop.permute.xlu0 %3214
    %3216 = vrot.lane.b32.xlu0 %v1260, 32
    %v3217 = vpop.permute.xlu0 %3216
    %3218 = vrot.lane.b32.xlu0 %v1261, 32
    %v3219 = vpop.permute.xlu0 %3218
    %3220 = vrot.lane.b32.xlu0 %v1262, 32
    %v3221 = vpop.permute.xlu0 %3220
    %3222 = vrot.lane.b32.xlu0 %v1263, 32
    %v3223 = vpop.permute.xlu0 %3222
    %3224 = vrot.lane.b32.xlu0 %v1264, 32
    %v3225 = vpop.permute.xlu0 %3224
    %3226 = vrot.lane.b32.xlu0 %v1265, 32
    %v3227 = vpop.permute.xlu0 %3226
    %3228 = vrot.lane.b32.xlu0 %v1266, 32
    %v3229 = vpop.permute.xlu0 %3228
    %3230 = vrot.lane.b32.xlu0 %v1267, 32
    %v3231 = vpop.permute.xlu0 %3230
    %3232 = vrot.lane.b32.xlu0 %v1268, 32
    %v3233 = vpop.permute.xlu0 %3232
    %3234 = vrot.lane.b32.xlu0 %v1269, 32
    %v3235 = vpop.permute.xlu0 %3234
    %3236 = vrot.lane.b32.xlu0 %v1270, 32
    %v3237 = vpop.permute.xlu0 %3236
    %3238 = vrot.lane.b32.xlu0 %v1271, 32
    %v3239 = vpop.permute.xlu0 %3238
    %3240 = vrot.lane.b32.xlu0 %v1272, 32
    %v3241 = vpop.permute.xlu0 %3240
    %3242 = vrot.lane.b32.xlu0 %v1273, 32
    %v3243 = vpop.permute.xlu0 %3242
    %3244 = vrot.lane.b32.xlu0 %v1274, 32
    %v3245 = vpop.permute.xlu0 %3244
    %3246 = vrot.lane.b32.xlu0 %v1275, 32
    %v3247 = vpop.permute.xlu0 %3246
    %3248 = vrot.lane.b32.xlu0 %v1276, 32
    %v3249 = vpop.permute.xlu0 %3248
    %3250 = vrot.lane.b32.xlu0 %v1277, 32
    %v3251 = vpop.permute.xlu0 %3250
    %3252 = vrot.lane.b32.xlu0 %v1278, 32
    %v3253 = vpop.permute.xlu0 %3252
    %3254 = vrot.lane.b32.xlu0 %v1279, 32
    %v3255 = vpop.permute.xlu0 %3254
    %3256 = vrot.lane.b32.xlu0 %v1280, 32
    %v3257 = vpop.permute.xlu0 %3256
    %3258 = vrot.lane.b32.xlu0 %v1281, 32
    %v3259 = vpop.permute.xlu0 %3258
    %3260 = vrot.lane.b32.xlu0 %v1282, 32
    %v3261 = vpop.permute.xlu0 %3260
    %3262 = vrot.lane.b32.xlu0 %v1283, 32
    %v3263 = vpop.permute.xlu0 %3262
    %3264 = vrot.lane.b32.xlu0 %v1284, 32
    %v3265 = vpop.permute.xlu0 %3264
    %3266 = vrot.lane.b32.xlu0 %v1285, 32
    %v3267 = vpop.permute.xlu0 %3266
    %3268 = vrot.lane.b32.xlu0 %v1286, 32
    %v3269 = vpop.permute.xlu0 %3268
    %3270 = vrot.lane.b32.xlu0 %v1287, 32
    %v3271 = vpop.permute.xlu0 %3270
    %v3336 = vsel %vm180, %v711, %v1353
    %v3337 = vsel %vm180, %v712, %v1355
    %v3338 = vsel %vm180, %v713, %v1357
    %v3339 = vsel %vm180, %v714, %v1359
    %v3340 = vsel %vm180, %v715, %v1361
    %v3341 = vsel %vm180, %v716, %v1363
    %v3342 = vsel %vm180, %v717, %v1365
    %v3343 = vsel %vm180, %v718, %v1367
    %v3344 = vsel %vm180, %v719, %v1369
    %v3345 = vsel %vm180, %v720, %v1371
    %v3346 = vsel %vm180, %v721, %v1373
    %v3347 = vsel %vm180, %v722, %v1375
    %v3348 = vsel %vm180, %v723, %v1377
    %v3349 = vsel %vm180, %v724, %v1379
    %v3350 = vsel %vm180, %v725, %v1381
    %v3351 = vsel %vm180, %v726, %v1383
    %v3352 = vsel %vm180, %v727, %v1385
    %v3353 = vsel %vm180, %v728, %v1387
    %v3354 = vsel %vm180, %v729, %v1389
    %v3355 = vsel %vm180, %v730, %v1391
    %v3356 = vsel %vm180, %v731, %v1393
    %v3357 = vsel %vm180, %v732, %v1395
    %v3358 = vsel %vm180, %v733, %v1397
    %v3359 = vsel %vm180, %v734, %v1399
    %v3360 = vsel %vm180, %v735, %v1401
    %v3361 = vsel %vm180, %v736, %v1403
    %v3362 = vsel %vm180, %v737, %v1405
    %v3363 = vsel %vm180, %v738, %v1407
    %v3364 = vsel %vm180, %v739, %v1409
    %v3365 = vsel %vm180, %v740, %v1411
    %v3366 = vsel %vm180, %v741, %v1413
    %v3367 = vsel %vm180, %v742, %v1415
    %v3368 = vsel %vm180, %v743, %v1417
    %v3369 = vsel %vm180, %v744, %v1419
    %v3370 = vsel %vm180, %v745, %v1421
    %v3371 = vsel %vm180, %v746, %v1423
    %v3372 = vsel %vm180, %v747, %v1425
    %v3373 = vsel %vm180, %v748, %v1427
    %v3374 = vsel %vm180, %v749, %v1429
    %v3375 = vsel %vm180, %v750, %v1431
    %v3376 = vsel %vm180, %v751, %v1433
    %v3377 = vsel %vm180, %v752, %v1435
    %v3378 = vsel %vm180, %v753, %v1437
    %v3379 = vsel %vm180, %v754, %v1439
    %v3380 = vsel %vm180, %v755, %v1441
    %v3381 = vsel %vm180, %v756, %v1443
    %v3382 = vsel %vm180, %v757, %v1445
    %v3383 = vsel %vm180, %v758, %v1447
    %v3384 = vsel %vm180, %v759, %v1449
    %v3385 = vsel %vm180, %v760, %v1451
    %v3386 = vsel %vm180, %v761, %v1453
    %v3387 = vsel %vm180, %v762, %v1455
    %v3388 = vsel %vm180, %v763, %v1457
    %v3389 = vsel %vm180, %v764, %v1459
    %v3390 = vsel %vm180, %v765, %v1461
    %v3391 = vsel %vm180, %v766, %v1463
    %v3392 = vsel %vm180, %v767, %v1465
    %v3393 = vsel %vm180, %v768, %v1467
    %v3394 = vsel %vm180, %v769, %v1469
    %v3395 = vsel %vm180, %v770, %v1471
    %v3396 = vsel %vm180, %v771, %v1473
    %v3397 = vsel %vm180, %v772, %v1475
    %v3398 = vsel %vm180, %v773, %v1477
    %v3399 = vsel %vm180, %v774, %v1479
    %v3400 = vsel %vm28, %v3336, %v1609
    %v3401 = vsel %vm28, %v3337, %v1611
    %v3402 = vsel %vm28, %v3338, %v1613
    %v3403 = vsel %vm28, %v3339, %v1615
    %v3404 = vsel %vm28, %v3340, %v1617
    %v3405 = vsel %vm28, %v3341, %v1619
    %v3406 = vsel %vm28, %v3342, %v1621
    %v3407 = vsel %vm28, %v3343, %v1623
    %v3408 = vsel %vm28, %v3344, %v1625
    %v3409 = vsel %vm28, %v3345, %v1627
    %v3410 = vsel %vm28, %v3346, %v1629
    %v3411 = vsel %vm28, %v3347, %v1631
    %v3412 = vsel %vm28, %v3348, %v1633
    %v3413 = vsel %vm28, %v3349, %v1635
    %v3414 = vsel %vm28, %v3350, %v1637
    %v3415 = vsel %vm28, %v3351, %v1639
    %v3416 = vsel %vm28, %v3352, %v1641
    %v3417 = vsel %vm28, %v3353, %v1643
    %v3418 = vsel %vm28, %v3354, %v1645
    %v3419 = vsel %vm28, %v3355, %v1647
    %v3420 = vsel %vm28, %v3356, %v1649
    %v3421 = vsel %vm28, %v3357, %v1651
    %v3422 = vsel %vm28, %v3358, %v1653
    %v3423 = vsel %vm28, %v3359, %v1655
    %v3424 = vsel %vm28, %v3360, %v1657
    %v3425 = vsel %vm28, %v3361, %v1659
    %v3426 = vsel %vm28, %v3362, %v1661
    %v3427 = vsel %vm28, %v3363, %v1663
    %v3428 = vsel %vm28, %v3364, %v1665
    %v3429 = vsel %vm28, %v3365, %v1667
    %v3430 = vsel %vm28, %v3366, %v1669
    %v3431 = vsel %vm28, %v3367, %v1671
    %v3432 = vsel %vm28, %v3368, %v1673
    %v3433 = vsel %vm28, %v3369, %v1675
    %v3434 = vsel %vm28, %v3370, %v1677
    %v3435 = vsel %vm28, %v3371, %v1679
    %v3436 = vsel %vm28, %v3372, %v1681
    %v3437 = vsel %vm28, %v3373, %v1683
    %v3438 = vsel %vm28, %v3374, %v1685
    %v3439 = vsel %vm28, %v3375, %v1687
    %v3440 = vsel %vm28, %v3376, %v1689
    %v3441 = vsel %vm28, %v3377, %v1691
    %v3442 = vsel %vm28, %v3378, %v1693
    %v3443 = vsel %vm28, %v3379, %v1695
    %v3444 = vsel %vm28, %v3380, %v1697
    %v3445 = vsel %vm28, %v3381, %v1699
    %v3446 = vsel %vm28, %v3382, %v1701
    %v3447 = vsel %vm28, %v3383, %v1703
    %v3448 = vsel %vm28, %v3384, %v1705
    %v3449 = vsel %vm28, %v3385, %v1707
    %v3450 = vsel %vm28, %v3386, %v1709
    %v3451 = vsel %vm28, %v3387, %v1711
    %v3452 = vsel %vm28, %v3388, %v1713
    %v3453 = vsel %vm28, %v3389, %v1715
    %v3454 = vsel %vm28, %v3390, %v1717
    %v3455 = vsel %vm28, %v3391, %v1719
    %v3456 = vsel %vm28, %v3392, %v1721
    %v3457 = vsel %vm28, %v3393, %v1723
    %v3458 = vsel %vm28, %v3394, %v1725
    %v3459 = vsel %vm28, %v3395, %v1727
    %v3460 = vsel %vm28, %v3396, %v1729
    %v3461 = vsel %vm28, %v3397, %v1731
    %v3462 = vsel %vm28, %v3398, %v1733
    %v3463 = vsel %vm28, %v3399, %v1735
    %vm3464 = vcmask 97280
    %v3465 = vsel %vm3464, %v3400, %v1865
    %v3466 = vsel %vm3464, %v3401, %v1867
    %v3467 = vsel %vm3464, %v3402, %v1869
    %v3468 = vsel %vm3464, %v3403, %v1871
    %v3469 = vsel %vm3464, %v3404, %v1873
    %v3470 = vsel %vm3464, %v3405, %v1875
    %v3471 = vsel %vm3464, %v3406, %v1877
    %v3472 = vsel %vm3464, %v3407, %v1879
    %v3473 = vsel %vm3464, %v3408, %v1881
    %v3474 = vsel %vm3464, %v3409, %v1883
    %v3475 = vsel %vm3464, %v3410, %v1885
    %v3476 = vsel %vm3464, %v3411, %v1887
    %v3477 = vsel %vm3464, %v3412, %v1889
    %v3478 = vsel %vm3464, %v3413, %v1891
    %v3479 = vsel %vm3464, %v3414, %v1893
    %v3480 = vsel %vm3464, %v3415, %v1895
    %v3481 = vsel %vm3464, %v3416, %v1897
    %v3482 = vsel %vm3464, %v3417, %v1899
    %v3483 = vsel %vm3464, %v3418, %v1901
    %v3484 = vsel %vm3464, %v3419, %v1903
    %v3485 = vsel %vm3464, %v3420, %v1905
    %v3486 = vsel %vm3464, %v3421, %v1907
    %v3487 = vsel %vm3464, %v3422, %v1909
    %v3488 = vsel %vm3464, %v3423, %v1911
    %v3489 = vsel %vm3464, %v3424, %v1913
    %v3490 = vsel %vm3464, %v3425, %v1915
    %v3491 = vsel %vm3464, %v3426, %v1917
    %v3492 = vsel %vm3464, %v3427, %v1919
    %v3493 = vsel %vm3464, %v3428, %v1921
    %v3494 = vsel %vm3464, %v3429, %v1923
    %v3495 = vsel %vm3464, %v3430, %v1925
    %v3496 = vsel %vm3464, %v3431, %v1927
    %v3497 = vsel %vm3464, %v3432, %v1929
    %v3498 = vsel %vm3464, %v3433, %v1931
    %v3499 = vsel %vm3464, %v3434, %v1933
    %v3500 = vsel %vm3464, %v3435, %v1935
    %v3501 = vsel %vm3464, %v3436, %v1937
    %v3502 = vsel %vm3464, %v3437, %v1939
    %v3503 = vsel %vm3464, %v3438, %v1941
    %v3504 = vsel %vm3464, %v3439, %v1943
    %v3505 = vsel %vm3464, %v3440, %v1945
    %v3506 = vsel %vm3464, %v3441, %v1947
    %v3507 = vsel %vm3464, %v3442, %v1949
    %v3508 = vsel %vm3464, %v3443, %v1951
    %v3509 = vsel %vm3464, %v3444, %v1953
    %v3510 = vsel %vm3464, %v3445, %v1955
    %v3511 = vsel %vm3464, %v3446, %v1957
    %v3512 = vsel %vm3464, %v3447, %v1959
    %v3513 = vsel %vm3464, %v3448, %v1961
    %v3514 = vsel %vm3464, %v3449, %v1963
    %v3515 = vsel %vm3464, %v3450, %v1965
    %v3516 = vsel %vm3464, %v3451, %v1967
    %v3517 = vsel %vm3464, %v3452, %v1969
    %v3518 = vsel %vm3464, %v3453, %v1971
    %v3519 = vsel %vm3464, %v3454, %v1973
    %v3520 = vsel %vm3464, %v3455, %v1975
    %v3521 = vsel %vm3464, %v3456, %v1977
    %v3522 = vsel %vm3464, %v3457, %v1979
    %v3523 = vsel %vm3464, %v3458, %v1981
    %v3524 = vsel %vm3464, %v3459, %v1983
    %v3525 = vsel %vm3464, %v3460, %v1985
    %v3526 = vsel %vm3464, %v3461, %v1987
    %v3527 = vsel %vm3464, %v3462, %v1989
    %v3528 = vsel %vm3464, %v3463, %v1991
    %vm3529 = vcmask 130048
    %v3530 = vsel %vm3529, %v3465, %v2121
    %v3531 = vsel %vm3529, %v3466, %v2123
    %v3532 = vsel %vm3529, %v3467, %v2125
    %v3533 = vsel %vm3529, %v3468, %v2127
    %v3534 = vsel %vm3529, %v3469, %v2129
    %v3535 = vsel %vm3529, %v3470, %v2131
    %v3536 = vsel %vm3529, %v3471, %v2133
    %v3537 = vsel %vm3529, %v3472, %v2135
    %v3538 = vsel %vm3529, %v3473, %v2137
    %v3539 = vsel %vm3529, %v3474, %v2139
    %v3540 = vsel %vm3529, %v3475, %v2141
    %v3541 = vsel %vm3529, %v3476, %v2143
    %v3542 = vsel %vm3529, %v3477, %v2145
    %v3543 = vsel %vm3529, %v3478, %v2147
    %v3544 = vsel %vm3529, %v3479, %v2149
    %v3545 = vsel %vm3529, %v3480, %v2151
    %v3546 = vsel %vm3529, %v3481, %v2153
    %v3547 = vsel %vm3529, %v3482, %v2155
    %v3548 = vsel %vm3529, %v3483, %v2157
    %v3549 = vsel %vm3529, %v3484, %v2159
    %v3550 = vsel %vm3529, %v3485, %v2161
    %v3551 = vsel %vm3529, %v3486, %v2163
    %v3552 = vsel %vm3529, %v3487, %v2165
    %v3553 = vsel %vm3529, %v3488, %v2167
    %v3554 = vsel %vm3529, %v3489, %v2169
    %v3555 = vsel %vm3529, %v3490, %v2171
    %v3556 = vsel %vm3529, %v3491, %v2173
    %v3557 = vsel %vm3529, %v3492, %v2175
    %v3558 = vsel %vm3529, %v3493, %v2177
    %v3559 = vsel %vm3529, %v3494, %v2179
    %v3560 = vsel %vm3529, %v3495, %v2181
    %v3561 = vsel %vm3529, %v3496, %v2183
    %v3562 = vsel %vm3529, %v3497, %v2185
    %v3563 = vsel %vm3529, %v3498, %v2187
    %v3564 = vsel %vm3529, %v3499, %v2189
    %v3565 = vsel %vm3529, %v3500, %v2191
    %v3566 = vsel %vm3529, %v3501, %v2193
    %v3567 = vsel %vm3529, %v3502, %v2195
    %v3568 = vsel %vm3529, %v3503, %v2197
    %v3569 = vsel %vm3529, %v3504, %v2199
    %v3570 = vsel %vm3529, %v3505, %v2201
    %v3571 = vsel %vm3529, %v3506, %v2203
    %v3572 = vsel %vm3529, %v3507, %v2205
    %v3573 = vsel %vm3529, %v3508, %v2207
    %v3574 = vsel %vm3529, %v3509, %v2209
    %v3575 = vsel %vm3529, %v3510, %v2211
    %v3576 = vsel %vm3529, %v3511, %v2213
    %v3577 = vsel %vm3529, %v3512, %v2215
    %v3578 = vsel %vm3529, %v3513, %v2217
    %v3579 = vsel %vm3529, %v3514, %v2219
    %v3580 = vsel %vm3529, %v3515, %v2221
    %v3581 = vsel %vm3529, %v3516, %v2223
    %v3582 = vsel %vm3529, %v3517, %v2225
    %v3583 = vsel %vm3529, %v3518, %v2227
    %v3584 = vsel %vm3529, %v3519, %v2229
    %v3585 = vsel %vm3529, %v3520, %v2231
    %v3586 = vsel %vm3529, %v3521, %v2233
    %v3587 = vsel %vm3529, %v3522, %v2235
    %v3588 = vsel %vm3529, %v3523, %v2237
    %v3589 = vsel %vm3529, %v3524, %v2239
    %v3590 = vsel %vm3529, %v3525, %v2241
    %v3591 = vsel %vm3529, %v3526, %v2243
    %v3592 = vsel %vm3529, %v3527, %v2245
    %v3593 = vsel %vm3529, %v3528, %v2247
    %vm3594 = vcmask 162816
    %v3595 = vsel %vm3594, %v3530, %v2377
    %v3596 = vsel %vm3594, %v3531, %v2379
    %v3597 = vsel %vm3594, %v3532, %v2381
    %v3598 = vsel %vm3594, %v3533, %v2383
    %v3599 = vsel %vm3594, %v3534, %v2385
    %v3600 = vsel %vm3594, %v3535, %v2387
    %v3601 = vsel %vm3594, %v3536, %v2389
    %v3602 = vsel %vm3594, %v3537, %v2391
    %v3603 = vsel %vm3594, %v3538, %v2393
    %v3604 = vsel %vm3594, %v3539, %v2395
    %v3605 = vsel %vm3594, %v3540, %v2397
    %v3606 = vsel %vm3594, %v3541, %v2399
    %v3607 = vsel %vm3594, %v3542, %v2401
    %v3608 = vsel %vm3594, %v3543, %v2403
    %v3609 = vsel %vm3594, %v3544, %v2405
    %v3610 = vsel %vm3594, %v3545, %v2407
    %v3611 = vsel %vm3594, %v3546, %v2409
    %v3612 = vsel %vm3594, %v3547, %v2411
    %v3613 = vsel %vm3594, %v3548, %v2413
    %v3614 = vsel %vm3594, %v3549, %v2415
    %v3615 = vsel %vm3594, %v3550, %v2417
    %v3616 = vsel %vm3594, %v3551, %v2419
    %v3617 = vsel %vm3594, %v3552, %v2421
    %v3618 = vsel %vm3594, %v3553, %v2423
    %v3619 = vsel %vm3594, %v3554, %v2425
    %v3620 = vsel %vm3594, %v3555, %v2427
    %v3621 = vsel %vm3594, %v3556, %v2429
    %v3622 = vsel %vm3594, %v3557, %v2431
    %v3623 = vsel %vm3594, %v3558, %v2433
    %v3624 = vsel %vm3594, %v3559, %v2435
    %v3625 = vsel %vm3594, %v3560, %v2437
    %v3626 = vsel %vm3594, %v3561, %v2439
    %v3627 = vsel %vm3594, %v3562, %v2441
    %v3628 = vsel %vm3594, %v3563, %v2443
    %v3629 = vsel %vm3594, %v3564, %v2445
    %v3630 = vsel %vm3594, %v3565, %v2447
    %v3631 = vsel %vm3594, %v3566, %v2449
    %v3632 = vsel %vm3594, %v3567, %v2451
    %v3633 = vsel %vm3594, %v3568, %v2453
    %v3634 = vsel %vm3594, %v3569, %v2455
    %v3635 = vsel %vm3594, %v3570, %v2457
    %v3636 = vsel %vm3594, %v3571, %v2459
    %v3637 = vsel %vm3594, %v3572, %v2461
    %v3638 = vsel %vm3594, %v3573, %v2463
    %v3639 = vsel %vm3594, %v3574, %v2465
    %v3640 = vsel %vm3594, %v3575, %v2467
    %v3641 = vsel %vm3594, %v3576, %v2469
    %v3642 = vsel %vm3594, %v3577, %v2471
    %v3643 = vsel %vm3594, %v3578, %v2473
    %v3644 = vsel %vm3594, %v3579, %v2475
    %v3645 = vsel %vm3594, %v3580, %v2477
    %v3646 = vsel %vm3594, %v3581, %v2479
    %v3647 = vsel %vm3594, %v3582, %v2481
    %v3648 = vsel %vm3594, %v3583, %v2483
    %v3649 = vsel %vm3594, %v3584, %v2485
    %v3650 = vsel %vm3594, %v3585, %v2487
    %v3651 = vsel %vm3594, %v3586, %v2489
    %v3652 = vsel %vm3594, %v3587, %v2491
    %v3653 = vsel %vm3594, %v3588, %v2493
    %v3654 = vsel %vm3594, %v3589, %v2495
    %v3655 = vsel %vm3594, %v3590, %v2497
    %v3656 = vsel %vm3594, %v3591, %v2499
    %v3657 = vsel %vm3594, %v3592, %v2501
    %v3658 = vsel %vm3594, %v3593, %v2503
    %vm3659 = vcmask 195584
    %v3660 = vsel %vm3659, %v3595, %v2633
    %v3661 = vsel %vm3659, %v3596, %v2635
    %v3662 = vsel %vm3659, %v3597, %v2637
    %v3663 = vsel %vm3659, %v3598, %v2639
    %v3664 = vsel %vm3659, %v3599, %v2641
    %v3665 = vsel %vm3659, %v3600, %v2643
    %v3666 = vsel %vm3659, %v3601, %v2645
    %v3667 = vsel %vm3659, %v3602, %v2647
    %v3668 = vsel %vm3659, %v3603, %v2649
    %v3669 = vsel %vm3659, %v3604, %v2651
    %v3670 = vsel %vm3659, %v3605, %v2653
    %v3671 = vsel %vm3659, %v3606, %v2655
    %v3672 = vsel %vm3659, %v3607, %v2657
    %v3673 = vsel %vm3659, %v3608, %v2659
    %v3674 = vsel %vm3659, %v3609, %v2661
    %v3675 = vsel %vm3659, %v3610, %v2663
    %v3676 = vsel %vm3659, %v3611, %v2665
    %v3677 = vsel %vm3659, %v3612, %v2667
    %v3678 = vsel %vm3659, %v3613, %v2669
    %v3679 = vsel %vm3659, %v3614, %v2671
    %v3680 = vsel %vm3659, %v3615, %v2673
    %v3681 = vsel %vm3659, %v3616, %v2675
    %v3682 = vsel %vm3659, %v3617, %v2677
    %v3683 = vsel %vm3659, %v3618, %v2679
    %v3684 = vsel %vm3659, %v3619, %v2681
    %v3685 = vsel %vm3659, %v3620, %v2683
    %v3686 = vsel %vm3659, %v3621, %v2685
    %v3687 = vsel %vm3659, %v3622, %v2687
    %v3688 = vsel %vm3659, %v3623, %v2689
    %v3689 = vsel %vm3659, %v3624, %v2691
    %v3690 = vsel %vm3659, %v3625, %v2693
    %v3691 = vsel %vm3659, %v3626, %v2695
    %v3692 = vsel %vm3659, %v3627, %v2697
    %v3693 = vsel %vm3659, %v3628, %v2699
    %v3694 = vsel %vm3659, %v3629, %v2701
    %v3695 = vsel %vm3659, %v3630, %v2703
    %v3696 = vsel %vm3659, %v3631, %v2705
    %v3697 = vsel %vm3659, %v3632, %v2707
    %v3698 = vsel %vm3659, %v3633, %v2709
    %v3699 = vsel %vm3659, %v3634, %v2711
    %v3700 = vsel %vm3659, %v3635, %v2713
    %v3701 = vsel %vm3659, %v3636, %v2715
    %v3702 = vsel %vm3659, %v3637, %v2717
    %v3703 = vsel %vm3659, %v3638, %v2719
    %v3704 = vsel %vm3659, %v3639, %v2721
    %v3705 = vsel %vm3659, %v3640, %v2723
    %v3706 = vsel %vm3659, %v3641, %v2725
    %v3707 = vsel %vm3659, %v3642, %v2727
    %v3708 = vsel %vm3659, %v3643, %v2729
    %v3709 = vsel %vm3659, %v3644, %v2731
    %v3710 = vsel %vm3659, %v3645, %v2733
    %v3711 = vsel %vm3659, %v3646, %v2735
    %v3712 = vsel %vm3659, %v3647, %v2737
    %v3713 = vsel %vm3659, %v3648, %v2739
    %v3714 = vsel %vm3659, %v3649, %v2741
    %v3715 = vsel %vm3659, %v3650, %v2743
    %v3716 = vsel %vm3659, %v3651, %v2745
    %v3717 = vsel %vm3659, %v3652, %v2747
    %v3718 = vsel %vm3659, %v3653, %v2749
    %v3719 = vsel %vm3659, %v3654, %v2751
    %v3720 = vsel %vm3659, %v3655, %v2753
    %v3721 = vsel %vm3659, %v3656, %v2755
    %v3722 = vsel %vm3659, %v3657, %v2757
    %v3723 = vsel %vm3659, %v3658, %v2759
    %vm3724 = vcmask 228352
    %v3725 = vsel %vm3724, %v3660, %v2889
    %v3726 = vsel %vm3724, %v3661, %v2891
    %v3727 = vsel %vm3724, %v3662, %v2893
    %v3728 = vsel %vm3724, %v3663, %v2895
    %v3729 = vsel %vm3724, %v3664, %v2897
    %v3730 = vsel %vm3724, %v3665, %v2899
    %v3731 = vsel %vm3724, %v3666, %v2901
    %v3732 = vsel %vm3724, %v3667, %v2903
    %v3733 = vsel %vm3724, %v3668, %v2905
    %v3734 = vsel %vm3724, %v3669, %v2907
    %v3735 = vsel %vm3724, %v3670, %v2909
    %v3736 = vsel %vm3724, %v3671, %v2911
    %v3737 = vsel %vm3724, %v3672, %v2913
    %v3738 = vsel %vm3724, %v3673, %v2915
    %v3739 = vsel %vm3724, %v3674, %v2917
    %v3740 = vsel %vm3724, %v3675, %v2919
    %v3741 = vsel %vm3724, %v3676, %v2921
    %v3742 = vsel %vm3724, %v3677, %v2923
    %v3743 = vsel %vm3724, %v3678, %v2925
    %v3744 = vsel %vm3724, %v3679, %v2927
    %v3745 = vsel %vm3724, %v3680, %v2929
    %v3746 = vsel %vm3724, %v3681, %v2931
    %v3747 = vsel %vm3724, %v3682, %v2933
    %v3748 = vsel %vm3724, %v3683, %v2935
    %v3749 = vsel %vm3724, %v3684, %v2937
    %v3750 = vsel %vm3724, %v3685, %v2939
    %v3751 = vsel %vm3724, %v3686, %v2941
    %v3752 = vsel %vm3724, %v3687, %v2943
    %v3753 = vsel %vm3724, %v3688, %v2945
    %v3754 = vsel %vm3724, %v3689, %v2947
    %v3755 = vsel %vm3724, %v3690, %v2949
    %v3756 = vsel %vm3724, %v3691, %v2951
    %v3757 = vsel %vm3724, %v3692, %v2953
    %v3758 = vsel %vm3724, %v3693, %v2955
    %v3759 = vsel %vm3724, %v3694, %v2957
    %v3760 = vsel %vm3724, %v3695, %v2959
    %v3761 = vsel %vm3724, %v3696, %v2961
    %v3762 = vsel %vm3724, %v3697, %v2963
    %v3763 = vsel %vm3724, %v3698, %v2965
    %v3764 = vsel %vm3724, %v3699, %v2967
    %v3765 = vsel %vm3724, %v3700, %v2969
    %v3766 = vsel %vm3724, %v3701, %v2971
    %v3767 = vsel %vm3724, %v3702, %v2973
    %v3768 = vsel %vm3724, %v3703, %v2975
    %v3769 = vsel %vm3724, %v3704, %v2977
    %v3770 = vsel %vm3724, %v3705, %v2979
    %v3771 = vsel %vm3724, %v3706, %v2981
    %v3772 = vsel %vm3724, %v3707, %v2983
    %v3773 = vsel %vm3724, %v3708, %v2985
    %v3774 = vsel %vm3724, %v3709, %v2987
    %v3775 = vsel %vm3724, %v3710, %v2989
    %v3776 = vsel %vm3724, %v3711, %v2991
    %v3777 = vsel %vm3724, %v3712, %v2993
    %v3778 = vsel %vm3724, %v3713, %v2995
    %v3779 = vsel %vm3724, %v3714, %v2997
    %v3780 = vsel %vm3724, %v3715, %v2999
    %v3781 = vsel %vm3724, %v3716, %v3001
    %v3782 = vsel %vm3724, %v3717, %v3003
    %v3783 = vsel %vm3724, %v3718, %v3005
    %v3784 = vsel %vm3724, %v3719, %v3007
    %v3785 = vsel %vm3724, %v3720, %v3009
    %v3786 = vsel %vm3724, %v3721, %v3011
    %v3787 = vsel %vm3724, %v3722, %v3013
    %v3788 = vsel %vm3724, %v3723, %v3015
    %vm3789 = vcmask 261120
    %v3790 = vsel %vm3789, %v3725, %v3145
    %v3791 = vsel %vm3789, %v3726, %v3147
    %v3792 = vsel %vm3789, %v3727, %v3149
    %v3793 = vsel %vm3789, %v3728, %v3151
    %v3794 = vsel %vm3789, %v3729, %v3153
    %v3795 = vsel %vm3789, %v3730, %v3155
    %v3796 = vsel %vm3789, %v3731, %v3157
    %v3797 = vsel %vm3789, %v3732, %v3159
    %v3798 = vsel %vm3789, %v3733, %v3161
    %v3799 = vsel %vm3789, %v3734, %v3163
    %v3800 = vsel %vm3789, %v3735, %v3165
    %v3801 = vsel %vm3789, %v3736, %v3167
    %v3802 = vsel %vm3789, %v3737, %v3169
    %v3803 = vsel %vm3789, %v3738, %v3171
    %v3804 = vsel %vm3789, %v3739, %v3173
    %v3805 = vsel %vm3789, %v3740, %v3175
    %v3806 = vsel %vm3789, %v3741, %v3177
    %v3807 = vsel %vm3789, %v3742, %v3179
    %v3808 = vsel %vm3789, %v3743, %v3181
    %v3809 = vsel %vm3789, %v3744, %v3183
    %v3810 = vsel %vm3789, %v3745, %v3185
    %v3811 = vsel %vm3789, %v3746, %v3187
    %v3812 = vsel %vm3789, %v3747, %v3189
    %v3813 = vsel %vm3789, %v3748, %v3191
    %v3814 = vsel %vm3789, %v3749, %v3193
    %v3815 = vsel %vm3789, %v3750, %v3195
    %v3816 = vsel %vm3789, %v3751, %v3197
    %v3817 = vsel %vm3789, %v3752, %v3199
    %v3818 = vsel %vm3789, %v3753, %v3201
    %v3819 = vsel %vm3789, %v3754, %v3203
    %v3820 = vsel %vm3789, %v3755, %v3205
    %v3821 = vsel %vm3789, %v3756, %v3207
    %v3822 = vsel %vm3789, %v3757, %v3209
    %v3823 = vsel %vm3789, %v3758, %v3211
    %v3824 = vsel %vm3789, %v3759, %v3213
    %v3825 = vsel %vm3789, %v3760, %v3215
    %v3826 = vsel %vm3789, %v3761, %v3217
    %v3827 = vsel %vm3789, %v3762, %v3219
    %v3828 = vsel %vm3789, %v3763, %v3221
    %v3829 = vsel %vm3789, %v3764, %v3223
    %v3830 = vsel %vm3789, %v3765, %v3225
    %v3831 = vsel %vm3789, %v3766, %v3227
    %v3832 = vsel %vm3789, %v3767, %v3229
    %v3833 = vsel %vm3789, %v3768, %v3231
    %v3834 = vsel %vm3789, %v3769, %v3233
    %v3835 = vsel %vm3789, %v3770, %v3235
    %v3836 = vsel %vm3789, %v3771, %v3237
    %v3837 = vsel %vm3789, %v3772, %v3239
    %v3838 = vsel %vm3789, %v3773, %v3241
    %v3839 = vsel %vm3789, %v3774, %v3243
    %v3840 = vsel %vm3789, %v3775, %v3245
    %v3841 = vsel %vm3789, %v3776, %v3247
    %v3842 = vsel %vm3789, %v3777, %v3249
    %v3843 = vsel %vm3789, %v3778, %v3251
    %v3844 = vsel %vm3789, %v3779, %v3253
    %v3845 = vsel %vm3789, %v3780, %v3255
    %v3846 = vsel %vm3789, %v3781, %v3257
    %v3847 = vsel %vm3789, %v3782, %v3259
    %v3848 = vsel %vm3789, %v3783, %v3261
    %v3849 = vsel %vm3789, %v3784, %v3263
    %v3850 = vsel %vm3789, %v3785, %v3265
    %v3851 = vsel %vm3789, %v3786, %v3267
    %v3852 = vsel %vm3789, %v3787, %v3269
    %v3853 = vsel %vm3789, %v3788, %v3271
    %v3854 = vpack.c.bf16 %v3791, %v3790
    %v3855 = vpack.c.bf16 %v3793, %v3792
    %v3856 = vpack.c.bf16 %v3795, %v3794
    %v3857 = vpack.c.bf16 %v3797, %v3796
    %v3858 = vpack.c.bf16 %v3799, %v3798
    %v3859 = vpack.c.bf16 %v3801, %v3800
    %v3860 = vpack.c.bf16 %v3803, %v3802
    %v3861 = vpack.c.bf16 %v3805, %v3804
    %v3862 = vpack.c.bf16 %v3807, %v3806
    %v3863 = vpack.c.bf16 %v3809, %v3808
    %v3864 = vpack.c.bf16 %v3811, %v3810
    %v3865 = vpack.c.bf16 %v3813, %v3812
    %v3866 = vpack.c.bf16 %v3815, %v3814
    %v3867 = vpack.c.bf16 %v3817, %v3816
    %v3868 = vpack.c.bf16 %v3819, %v3818
    %v3869 = vpack.c.bf16 %v3821, %v3820
    %v3870 = vpack.c.bf16 %v3823, %v3822
    %v3871 = vpack.c.bf16 %v3825, %v3824
    %v3872 = vpack.c.bf16 %v3827, %v3826
    %v3873 = vpack.c.bf16 %v3829, %v3828
    %v3874 = vpack.c.bf16 %v3831, %v3830
    %v3875 = vpack.c.bf16 %v3833, %v3832
    %v3876 = vpack.c.bf16 %v3835, %v3834
    %v3877 = vpack.c.bf16 %v3837, %v3836
    %v3878 = vpack.c.bf16 %v3839, %v3838
    %v3879 = vpack.c.bf16 %v3841, %v3840
    %v3880 = vpack.c.bf16 %v3843, %v3842
    %v3881 = vpack.c.bf16 %v3845, %v3844
    %v3882 = vpack.c.bf16 %v3847, %v3846
    %v3883 = vpack.c.bf16 %v3849, %v3848
    %v3884 = vpack.c.bf16 %v3851, %v3850
    %v3885 = vpack.c.bf16 %v3853, %v3852
    %v3886 = vld [vmem:[%s1] sm:$0xf]
    %v3887 = vld [vmem:[%s1 + $0x4] sm:$0xf]
    %v3888 = vld [vmem:[%s1 + $0x8] sm:$0xf]
    %v3889 = vld [vmem:[%s1 + $0xc] sm:$0xf]
    %v3890 = vld [vmem:[%s1 + $0x10] sm:$0x3]
    %v3891 = vld [vmem:[%s2] sm:$0x1]
    %v3893 = vlaneseq
    %v3894 = vshrl.u32 %v3893, 7
    %v3895 = vsub.s32 0, %v3894
    %v3896 = vrot.slane %v3891, %v3895
    %v3903 = vunpack.c.l.b16 %v3886
    %v3904 = vunpack.c.l.b16 %v3887
    %v3905 = vunpack.c.l.b16 %v3888
    %v3906 = vunpack.c.l.b16 %v3889
    %v3907 = vunpack.c.l.b16 %v3890
    %v3908 = vpack.c.b16 %v3904, %v3903
    %v3909 = vpack.c.b16 %v3906, %v3905
    %v3910 = vpack.c.b16 %v3907, %v3907
    %vm3913 = vcmask 293888
    %v3915 = vsel %vm3913, %v3854, 0
    %v3918 = vsel %vm3913, %v3855, 0
    %v3921 = vsel %vm3913, %v3856, 0
    %v3924 = vsel %vm3913, %v3857, 0
    %v3927 = vsel %vm3913, %v3858, 0
    %v3930 = vsel %vm3913, %v3859, 0
    %v3933 = vsel %vm3913, %v3860, 0
    %v3936 = vsel %vm3913, %v3861, 0
    %v3939 = vsel %vm3913, %v3862, 0
    %v3942 = vsel %vm3913, %v3863, 0
    %v3945 = vsel %vm3913, %v3864, 0
    %v3948 = vsel %vm3913, %v3865, 0
    %v3951 = vsel %vm3913, %v3866, 0
    %v3954 = vsel %vm3913, %v3867, 0
    %v3957 = vsel %vm3913, %v3868, 0
    %v3960 = vsel %vm3913, %v3869, 0
    %v3963 = vsel %vm3913, %v3870, 0
    %v3966 = vsel %vm3913, %v3871, 0
    %v3969 = vsel %vm3913, %v3872, 0
    %v3972 = vsel %vm3913, %v3873, 0
    %v3975 = vsel %vm3913, %v3874, 0
    %v3978 = vsel %vm3913, %v3875, 0
    %v3981 = vsel %vm3913, %v3876, 0
    %v3984 = vsel %vm3913, %v3877, 0
    %v3987 = vsel %vm3913, %v3878, 0
    %v3990 = vsel %vm3913, %v3879, 0
    %v3993 = vsel %vm3913, %v3880, 0
    %v3996 = vsel %vm3913, %v3881, 0
    %v3999 = vsel %vm3913, %v3882, 0
    %v4002 = vsel %vm3913, %v3883, 0
    %v4005 = vsel %vm3913, %v3884, 0
    %v4008 = vsel %vm3913, %v3885, 0
    %vm4010 = vcmask 1041408
    %v4012 = vsel %vm4010, %v3910, 0
    %4014 = vmatprep.subr.bf16.mxu0 0
    %4015 = vmatpush1.bf16.msra.mxu0 %v3908
    %4016 = vmatprep.subr.bf16.mxu0 0
    %4017 = vmatpush1.bf16.msra.mxu0 %v3909
    %4018 = vmatprep.subr.bf16.mxu0 0
    %4019 = vmatpush1.bf16.msra.mxu0 %v4012
    %4020 = vmatprep.subr.bf16.mxu0 0
    %4021 = vmatpush1.bf16.msra.mxu0 0
    %4022 = vmatprep.subr.bf16.mxu0 0
    %4023 = vmatpush1.bf16.msra.mxu0 0
    %4024 = vmatprep.subr.bf16.mxu0 0
    %4025 = vmatpush1.bf16.msra.mxu0 0
    %4026 = vmatprep.subr.bf16.mxu0 0
    %4027 = vmatpush1.bf16.msra.mxu0 0
    %4028 = vmatprep.subr.bf16.mxu0 0
    %4029 = vmatpush1.bf16.msra.mxu0 0
    %4030 = vmatprep.subr.bf16.mxu0 0
    %4031 = vmatpush1.bf16.msra.mxu0 0
    %4032 = vmatprep.subr.bf16.mxu0 0
    %4033 = vmatpush1.bf16.msra.mxu0 0
    %4034 = vmatprep.subr.bf16.mxu0 0
    %4035 = vmatpush1.bf16.msra.mxu0 0
    %4036 = vmatprep.subr.bf16.mxu0 0
    %4037 = vmatpush1.bf16.msra.mxu0 0
    %4038 = vmatprep.subr.bf16.mxu0 0
    %4039 = vmatpush1.bf16.msra.mxu0 0
    %4040 = vmatprep.subr.bf16.mxu0 0
    %4041 = vmatpush1.bf16.msra.mxu0 0
    %4042 = vmatprep.subr.bf16.mxu0 0
    %4043 = vmatpush1.bf16.msra.mxu0 0
    %4044 = vmatprep.subr.bf16.mxu0 0
    %4045 = vmatpush1.bf16.msra.mxu0 0
    %4046 = vmatprep.mubr.bf16.mxu0 0
    %4047 = vmatmul.mubr.bf16.gmra.mrb[0].mxu0 %v3915
    %v4048 = vpop.f32.mrb[0].mxu0
    %v4049 = vadd.f32 %v3896, %v4048
    %v4050 = vpop.f32.mrb[0].mxu0
    %v4051 = vpop.f32.mrb[0].mxu0
    %v4052 = vadd.f32 %v3896, %v4051
    %v4053 = vpop.f32.mrb[0].mxu0
    %4054 = vmatprep.mubr.bf16.mxu0 0
    %4055 = vmatmul.mubr.bf16.gmra.mrb[0].mxu0 %v3918
    %v4056 = vpop.f32.mrb[0].mxu0
    %v4057 = vadd.f32 %v3896, %v4056
    %v4058 = vpop.f32.mrb[0].mxu0
    %v4059 = vpop.f32.mrb[0].mxu0
    %v4060 = vadd.f32 %v3896, %v4059
    %v4061 = vpop.f32.mrb[0].mxu0
    %4062 = vmatprep.mubr.bf16.mxu0 0
    %4063 = vmatmul.mubr.bf16.gmra.mrb[0].mxu0 %v3921
    %v4064 = vpop.f32.mrb[0].mxu0
    %v4065 = vadd.f32 %v3896, %v4064
    %v4066 = vpop.f32.mrb[0].mxu0
    %v4067 = vpop.f32.mrb[0].mxu0
    %v4068 = vadd.f32 %v3896, %v4067
    %v4069 = vpop.f32.mrb[0].mxu0
    %4070 = vmatprep.mubr.bf16.mxu0 0
    %4071 = vmatmul.mubr.bf16.gmra.mrb[0].mxu0 %v3924
    %v4072 = vpop.f32.mrb[0].mxu0
    %v4073 = vadd.f32 %v3896, %v4072
    %v4074 = vpop.f32.mrb[0].mxu0
    %v4075 = vpop.f32.mrb[0].mxu0
    %v4076 = vadd.f32 %v3896, %v4075
    %v4077 = vpop.f32.mrb[0].mxu0
    %4078 = vmatprep.mubr.bf16.mxu0 0
    %4079 = vmatmul.mubr.bf16.gmra.mrb[0].mxu0 %v3927
    %v4080 = vpop.f32.mrb[0].mxu0
    %v4081 = vadd.f32 %v3896, %v4080
    %v4082 = vpop.f32.mrb[0].mxu0
    %v4083 = vpop.f32.mrb[0].mxu0
    %v4084 = vadd.f32 %v3896, %v4083
    %v4085 = vpop.f32.mrb[0].mxu0
    %4086 = vmatprep.mubr.bf16.mxu0 0
    %4087 = vmatmul.mubr.bf16.gmra.mrb[0].mxu0 %v3930
    %v4088 = vpop.f32.mrb[0].mxu0
    %v4089 = vadd.f32 %v3896, %v4088
    %v4090 = vpop.f32.mrb[0].mxu0
    %v4091 = vpop.f32.mrb[0].mxu0
    %v4092 = vadd.f32 %v3896, %v4091
    %v4093 = vpop.f32.mrb[0].mxu0
    %4094 = vmatprep.mubr.bf16.mxu0 0
    %4095 = vmatmul.mubr.bf16.gmra.mrb[0].mxu0 %v3933
    %v4096 = vpop.f32.mrb[0].mxu0
    %v4097 = vadd.f32 %v3896, %v4096
    %v4098 = vpop.f32.mrb[0].mxu0
    %v4099 = vpop.f32.mrb[0].mxu0
    %v4100 = vadd.f32 %v3896, %v4099
    %v4101 = vpop.f32.mrb[0].mxu0
    %4102 = vmatprep.mubr.bf16.mxu0 0
    %4103 = vmatmul.mubr.bf16.gmra.mrb[0].mxu0 %v3936
    %v4104 = vpop.f32.mrb[0].mxu0
    %v4105 = vadd.f32 %v3896, %v4104
    %v4106 = vpop.f32.mrb[0].mxu0
    %v4107 = vpop.f32.mrb[0].mxu0
    %v4108 = vadd.f32 %v3896, %v4107
    %v4109 = vpop.f32.mrb[0].mxu0
    %4110 = vmatprep.mubr.bf16.mxu0 0
    %4111 = vmatmul.mubr.bf16.gmra.mrb[0].mxu0 %v3939
    %v4112 = vpop.f32.mrb[0].mxu0
    %v4113 = vadd.f32 %v3896, %v4112
    %v4114 = vpop.f32.mrb[0].mxu0
    %v4115 = vpop.f32.mrb[0].mxu0
    %v4116 = vadd.f32 %v3896, %v4115
    %v4117 = vpop.f32.mrb[0].mxu0
    %4118 = vmatprep.mubr.bf16.mxu0 0
    %4119 = vmatmul.mubr.bf16.gmra.mrb[0].mxu0 %v3942
    %v4120 = vpop.f32.mrb[0].mxu0
    %v4121 = vadd.f32 %v3896, %v4120
    %v4122 = vpop.f32.mrb[0].mxu0
    %v4123 = vpop.f32.mrb[0].mxu0
    %v4124 = vadd.f32 %v3896, %v4123
    %v4125 = vpop.f32.mrb[0].mxu0
    %4126 = vmatprep.mubr.bf16.mxu0 0
    %4127 = vmatmul.mubr.bf16.gmra.mrb[0].mxu0 %v3945
    %v4128 = vpop.f32.mrb[0].mxu0
    %v4129 = vadd.f32 %v3896, %v4128
    %v4130 = vpop.f32.mrb[0].mxu0
    %v4131 = vpop.f32.mrb[0].mxu0
    %v4132 = vadd.f32 %v3896, %v4131
    %v4133 = vpop.f32.mrb[0].mxu0
    %4134 = vmatprep.mubr.bf16.mxu0 0
    %4135 = vmatmul.mubr.bf16.gmra.mrb[0].mxu0 %v3948
    %v4136 = vpop.f32.mrb[0].mxu0
    %v4137 = vadd.f32 %v3896, %v4136
    %v4138 = vpop.f32.mrb[0].mxu0
    %v4139 = vpop.f32.mrb[0].mxu0
    %v4140 = vadd.f32 %v3896, %v4139
    %v4141 = vpop.f32.mrb[0].mxu0
    %4142 = vmatprep.mubr.bf16.mxu0 0
    %4143 = vmatmul.mubr.bf16.gmra.mrb[0].mxu0 %v3951
    %v4144 = vpop.f32.mrb[0].mxu0
    %v4145 = vadd.f32 %v3896, %v4144
    %v4146 = vpop.f32.mrb[0].mxu0
    %v4147 = vpop.f32.mrb[0].mxu0
    %v4148 = vadd.f32 %v3896, %v4147
    %v4149 = vpop.f32.mrb[0].mxu0
    %4150 = vmatprep.mubr.bf16.mxu0 0
    %4151 = vmatmul.mubr.bf16.gmra.mrb[0].mxu0 %v3954
    %v4152 = vpop.f32.mrb[0].mxu0
    %v4153 = vadd.f32 %v3896, %v4152
    %v4154 = vpop.f32.mrb[0].mxu0
    %v4155 = vpop.f32.mrb[0].mxu0
    %v4156 = vadd.f32 %v3896, %v4155
    %v4157 = vpop.f32.mrb[0].mxu0
    %4158 = vmatprep.mubr.bf16.mxu0 0
    %4159 = vmatmul.mubr.bf16.gmra.mrb[0].mxu0 %v3957
    %v4160 = vpop.f32.mrb[0].mxu0
    %v4161 = vadd.f32 %v3896, %v4160
    %v4162 = vpop.f32.mrb[0].mxu0
    %v4163 = vpop.f32.mrb[0].mxu0
    %v4164 = vadd.f32 %v3896, %v4163
    %v4165 = vpop.f32.mrb[0].mxu0
    %4166 = vmatprep.mubr.bf16.mxu0 0
    %4167 = vmatmul.mubr.bf16.gmra.mrb[0].mxu0 %v3960
    %v4168 = vpop.f32.mrb[0].mxu0
    %v4169 = vadd.f32 %v3896, %v4168
    %v4170 = vpop.f32.mrb[0].mxu0
    %v4171 = vpop.f32.mrb[0].mxu0
    %v4172 = vadd.f32 %v3896, %v4171
    %v4173 = vpop.f32.mrb[0].mxu0
    %4174 = vmatprep.mubr.bf16.mxu0 0
    %4175 = vmatmul.mubr.bf16.gmra.mrb[0].mxu0 %v3963
    %v4176 = vpop.f32.mrb[0].mxu0
    %v4177 = vadd.f32 %v3896, %v4176
    %v4178 = vpop.f32.mrb[0].mxu0
    %v4179 = vpop.f32.mrb[0].mxu0
    %v4180 = vadd.f32 %v3896, %v4179
    %v4181 = vpop.f32.mrb[0].mxu0
    %4182 = vmatprep.mubr.bf16.mxu0 0
    %4183 = vmatmul.mubr.bf16.gmra.mrb[0].mxu0 %v3966
    %v4184 = vpop.f32.mrb[0].mxu0
    %v4185 = vadd.f32 %v3896, %v4184
    %v4186 = vpop.f32.mrb[0].mxu0
    %v4187 = vpop.f32.mrb[0].mxu0
    %v4188 = vadd.f32 %v3896, %v4187
    %v4189 = vpop.f32.mrb[0].mxu0
    %4190 = vmatprep.mubr.bf16.mxu0 0
    %4191 = vmatmul.mubr.bf16.gmra.mrb[0].mxu0 %v3969
    %v4192 = vpop.f32.mrb[0].mxu0
    %v4193 = vadd.f32 %v3896, %v4192
    %v4194 = vpop.f32.mrb[0].mxu0
    %v4195 = vpop.f32.mrb[0].mxu0
    %v4196 = vadd.f32 %v3896, %v4195
    %v4197 = vpop.f32.mrb[0].mxu0
    %4198 = vmatprep.mubr.bf16.mxu0 0
    %4199 = vmatmul.mubr.bf16.gmra.mrb[0].mxu0 %v3972
    %v4200 = vpop.f32.mrb[0].mxu0
    %v4201 = vadd.f32 %v3896, %v4200
    %v4202 = vpop.f32.mrb[0].mxu0
    %v4203 = vpop.f32.mrb[0].mxu0
    %v4204 = vadd.f32 %v3896, %v4203
    %v4205 = vpop.f32.mrb[0].mxu0
    %4206 = vmatprep.mubr.bf16.mxu0 0
    %4207 = vmatmul.mubr.bf16.gmra.mrb[0].mxu0 %v3975
    %v4208 = vpop.f32.mrb[0].mxu0
    %v4209 = vadd.f32 %v3896, %v4208
    %v4210 = vpop.f32.mrb[0].mxu0
    %v4211 = vpop.f32.mrb[0].mxu0
    %v4212 = vadd.f32 %v3896, %v4211
    %v4213 = vpop.f32.mrb[0].mxu0
    %4214 = vmatprep.mubr.bf16.mxu0 0
    %4215 = vmatmul.mubr.bf16.gmra.mrb[0].mxu0 %v3978
    %v4216 = vpop.f32.mrb[0].mxu0
    %v4217 = vadd.f32 %v3896, %v4216
    %v4218 = vpop.f32.mrb[0].mxu0
    %v4219 = vpop.f32.mrb[0].mxu0
    %v4220 = vadd.f32 %v3896, %v4219
    %v4221 = vpop.f32.mrb[0].mxu0
    %4222 = vmatprep.mubr.bf16.mxu0 0
    %4223 = vmatmul.mubr.bf16.gmra.mrb[0].mxu0 %v3981
    %v4224 = vpop.f32.mrb[0].mxu0
    %v4225 = vadd.f32 %v3896, %v4224
    %v4226 = vpop.f32.mrb[0].mxu0
    %v4227 = vpop.f32.mrb[0].mxu0
    %v4228 = vadd.f32 %v3896, %v4227
    %v4229 = vpop.f32.mrb[0].mxu0
    %4230 = vmatprep.mubr.bf16.mxu0 0
    %4231 = vmatmul.mubr.bf16.gmra.mrb[0].mxu0 %v3984
    %v4232 = vpop.f32.mrb[0].mxu0
    %v4233 = vadd.f32 %v3896, %v4232
    %v4234 = vpop.f32.mrb[0].mxu0
    %v4235 = vpop.f32.mrb[0].mxu0
    %v4236 = vadd.f32 %v3896, %v4235
    %v4237 = vpop.f32.mrb[0].mxu0
    %4238 = vmatprep.mubr.bf16.mxu0 0
    %4239 = vmatmul.mubr.bf16.gmra.mrb[0].mxu0 %v3987
    %v4240 = vpop.f32.mrb[0].mxu0
    %v4241 = vadd.f32 %v3896, %v4240
    %v4242 = vpop.f32.mrb[0].mxu0
    %v4243 = vpop.f32.mrb[0].mxu0
    %v4244 = vadd.f32 %v3896, %v4243
    %v4245 = vpop.f32.mrb[0].mxu0
    %4246 = vmatprep.mubr.bf16.mxu0 0
    %4247 = vmatmul.mubr.bf16.gmra.mrb[0].mxu0 %v3990
    %v4248 = vpop.f32.mrb[0].mxu0
    %v4249 = vadd.f32 %v3896, %v4248
    %v4250 = vpop.f32.mrb[0].mxu0
    %v4251 = vpop.f32.mrb[0].mxu0
    %v4252 = vadd.f32 %v3896, %v4251
    %v4253 = vpop.f32.mrb[0].mxu0
    %4254 = vmatprep.mubr.bf16.mxu0 0
    %4255 = vmatmul.mubr.bf16.gmra.mrb[0].mxu0 %v3993
    %v4256 = vpop.f32.mrb[0].mxu0
    %v4257 = vadd.f32 %v3896, %v4256
    %v4258 = vpop.f32.mrb[0].mxu0
    %v4259 = vpop.f32.mrb[0].mxu0
    %v4260 = vadd.f32 %v3896, %v4259
    %v4261 = vpop.f32.mrb[0].mxu0
    %4262 = vmatprep.mubr.bf16.mxu0 0
    %4263 = vmatmul.mubr.bf16.gmra.mrb[0].mxu0 %v3996
    %v4264 = vpop.f32.mrb[0].mxu0
    %v4265 = vadd.f32 %v3896, %v4264
    %v4266 = vpop.f32.mrb[0].mxu0
    %v4267 = vpop.f32.mrb[0].mxu0
    %v4268 = vadd.f32 %v3896, %v4267
    %v4269 = vpop.f32.mrb[0].mxu0
    %4270 = vmatprep.mubr.bf16.mxu0 0
    %4271 = vmatmul.mubr.bf16.gmra.mrb[0].mxu0 %v3999
    %v4272 = vpop.f32.mrb[0].mxu0
    %v4273 = vadd.f32 %v3896, %v4272
    %v4274 = vpop.f32.mrb[0].mxu0
    %v4275 = vpop.f32.mrb[0].mxu0
    %v4276 = vadd.f32 %v3896, %v4275
    %v4277 = vpop.f32.mrb[0].mxu0
    %4278 = vmatprep.mubr.bf16.mxu0 0
    %4279 = vmatmul.mubr.bf16.gmra.mrb[0].mxu0 %v4002
    %v4280 = vpop.f32.mrb[0].mxu0
    %v4281 = vadd.f32 %v3896, %v4280
    %v4282 = vpop.f32.mrb[0].mxu0
    %v4283 = vpop.f32.mrb[0].mxu0
    %v4284 = vadd.f32 %v3896, %v4283
    %v4285 = vpop.f32.mrb[0].mxu0
    %4286 = vmatprep.mubr.bf16.mxu0 0
    %4287 = vmatmul.mubr.bf16.gmra.mrb[0].mxu0 %v4005
    %v4288 = vpop.f32.mrb[0].mxu0
    %v4289 = vadd.f32 %v3896, %v4288
    %v4290 = vpop.f32.mrb[0].mxu0
    %v4291 = vpop.f32.mrb[0].mxu0
    %v4292 = vadd.f32 %v3896, %v4291
    %v4293 = vpop.f32.mrb[0].mxu0
    %4294 = vmatprep.mubr.bf16.mxu0 0
    %4295 = vmatmul.mubr.bf16.gmra.mrb[0].mxu0 %v4008
    %v4296 = vpop.f32.mrb[0].mxu0
    %v4297 = vadd.f32 %v3896, %v4296
    %v4298 = vpop.f32.mrb[0].mxu0
    %v4299 = vpop.f32.mrb[0].mxu0
    %v4300 = vadd.f32 %v3896, %v4299
    %v4301 = vpop.f32.mrb[0].mxu0
    %4302 = vdwg.mxu0
    %v4303 = vmax.f32 %v4049, 0.0
    %v4304 = vmax.f32 %v4052, 0.0
    %v4305 = vmax.f32 %v4057, 0.0
    %v4306 = vmax.f32 %v4060, 0.0
    %v4307 = vmax.f32 %v4065, 0.0
    %v4308 = vmax.f32 %v4068, 0.0
    %v4309 = vmax.f32 %v4073, 0.0
    %v4310 = vmax.f32 %v4076, 0.0
    %v4311 = vmax.f32 %v4081, 0.0
    %v4312 = vmax.f32 %v4084, 0.0
    %v4313 = vmax.f32 %v4089, 0.0
    %v4314 = vmax.f32 %v4092, 0.0
    %v4315 = vmax.f32 %v4097, 0.0
    %v4316 = vmax.f32 %v4100, 0.0
    %v4317 = vmax.f32 %v4105, 0.0
    %v4318 = vmax.f32 %v4108, 0.0
    %v4319 = vmax.f32 %v4113, 0.0
    %v4320 = vmax.f32 %v4116, 0.0
    %v4321 = vmax.f32 %v4121, 0.0
    %v4322 = vmax.f32 %v4124, 0.0
    %v4323 = vmax.f32 %v4129, 0.0
    %v4324 = vmax.f32 %v4132, 0.0
    %v4325 = vmax.f32 %v4137, 0.0
    %v4326 = vmax.f32 %v4140, 0.0
    %v4327 = vmax.f32 %v4145, 0.0
    %v4328 = vmax.f32 %v4148, 0.0
    %v4329 = vmax.f32 %v4153, 0.0
    %v4330 = vmax.f32 %v4156, 0.0
    %v4331 = vmax.f32 %v4161, 0.0
    %v4332 = vmax.f32 %v4164, 0.0
    %v4333 = vmax.f32 %v4169, 0.0
    %v4334 = vmax.f32 %v4172, 0.0
    %v4335 = vmax.f32 %v4177, 0.0
    %v4336 = vmax.f32 %v4180, 0.0
    %v4337 = vmax.f32 %v4185, 0.0
    %v4338 = vmax.f32 %v4188, 0.0
    %v4339 = vmax.f32 %v4193, 0.0
    %v4340 = vmax.f32 %v4196, 0.0
    %v4341 = vmax.f32 %v4201, 0.0
    %v4342 = vmax.f32 %v4204, 0.0
    %v4343 = vmax.f32 %v4209, 0.0
    %v4344 = vmax.f32 %v4212, 0.0
    %v4345 = vmax.f32 %v4217, 0.0
    %v4346 = vmax.f32 %v4220, 0.0
    %v4347 = vmax.f32 %v4225, 0.0
    %v4348 = vmax.f32 %v4228, 0.0
    %v4349 = vmax.f32 %v4233, 0.0
    %v4350 = vmax.f32 %v4236, 0.0
    %v4351 = vmax.f32 %v4241, 0.0
    %v4352 = vmax.f32 %v4244, 0.0
    %v4353 = vmax.f32 %v4249, 0.0
    %v4354 = vmax.f32 %v4252, 0.0
    %v4355 = vmax.f32 %v4257, 0.0
    %v4356 = vmax.f32 %v4260, 0.0
    %v4357 = vmax.f32 %v4265, 0.0
    %v4358 = vmax.f32 %v4268, 0.0
    %v4359 = vmax.f32 %v4273, 0.0
    %v4360 = vmax.f32 %v4276, 0.0
    %v4361 = vmax.f32 %v4281, 0.0
    %v4362 = vmax.f32 %v4284, 0.0
    %v4363 = vmax.f32 %v4289, 0.0
    %v4364 = vmax.f32 %v4292, 0.0
    %v4365 = vmax.f32 %v4297, 0.0
    %v4366 = vmax.f32 %v4300, 0.0
    %v4367 = vsel %vm28, %v4303, 0.0
    %v4368 = vsel %vm28, %v4304, 0.0
    %v4369 = vadd.f32 %v4367, %v4368
    %v4370 = vsel %vm28, %v4305, 0.0
    %v4371 = vadd.f32 %v4369, %v4370
    %v4372 = vsel %vm28, %v4306, 0.0
    %v4373 = vadd.f32 %v4371, %v4372
    %v4374 = vsel %vm28, %v4307, 0.0
    %v4375 = vadd.f32 %v4373, %v4374
    %v4376 = vsel %vm28, %v4308, 0.0
    %v4377 = vadd.f32 %v4375, %v4376
    %v4378 = vsel %vm28, %v4309, 0.0
    %v4379 = vadd.f32 %v4377, %v4378
    %v4380 = vsel %vm28, %v4310, 0.0
    %v4381 = vadd.f32 %v4379, %v4380
    %v4382 = vsel %vm28, %v4311, 0.0
    %v4383 = vadd.f32 %v4381, %v4382
    %v4384 = vsel %vm28, %v4312, 0.0
    %v4385 = vadd.f32 %v4383, %v4384
    %v4386 = vsel %vm28, %v4313, 0.0
    %v4387 = vadd.f32 %v4385, %v4386
    %v4388 = vsel %vm28, %v4314, 0.0
    %v4389 = vadd.f32 %v4387, %v4388
    %v4390 = vsel %vm28, %v4315, 0.0
    %v4391 = vadd.f32 %v4389, %v4390
    %v4392 = vsel %vm28, %v4316, 0.0
    %v4393 = vadd.f32 %v4391, %v4392
    %v4394 = vsel %vm28, %v4317, 0.0
    %v4395 = vadd.f32 %v4393, %v4394
    %v4396 = vsel %vm28, %v4318, 0.0
    %v4397 = vadd.f32 %v4395, %v4396
    %v4398 = vsel %vm28, %v4319, 0.0
    %v4399 = vadd.f32 %v4397, %v4398
    %v4400 = vsel %vm28, %v4320, 0.0
    %v4401 = vadd.f32 %v4399, %v4400
    %v4402 = vsel %vm28, %v4321, 0.0
    %v4403 = vadd.f32 %v4401, %v4402
    %v4404 = vsel %vm28, %v4322, 0.0
    %v4405 = vadd.f32 %v4403, %v4404
    %v4406 = vsel %vm28, %v4323, 0.0
    %v4407 = vadd.f32 %v4405, %v4406
    %v4408 = vsel %vm28, %v4324, 0.0
    %v4409 = vadd.f32 %v4407, %v4408
    %v4410 = vsel %vm28, %v4325, 0.0
    %v4411 = vadd.f32 %v4409, %v4410
    %v4412 = vsel %vm28, %v4326, 0.0
    %v4413 = vadd.f32 %v4411, %v4412
    %v4414 = vsel %vm28, %v4327, 0.0
    %v4415 = vadd.f32 %v4413, %v4414
    %v4416 = vsel %vm28, %v4328, 0.0
    %v4417 = vadd.f32 %v4415, %v4416
    %v4418 = vsel %vm28, %v4329, 0.0
    %v4419 = vadd.f32 %v4417, %v4418
    %v4420 = vsel %vm28, %v4330, 0.0
    %v4421 = vadd.f32 %v4419, %v4420
    %v4422 = vsel %vm28, %v4331, 0.0
    %v4423 = vadd.f32 %v4421, %v4422
    %v4424 = vsel %vm28, %v4332, 0.0
    %v4425 = vadd.f32 %v4423, %v4424
    %v4426 = vsel %vm28, %v4333, 0.0
    %v4427 = vadd.f32 %v4425, %v4426
    %v4428 = vsel %vm28, %v4334, 0.0
    %v4429 = vadd.f32 %v4427, %v4428
    %v4430 = vsel %vm28, %v4335, 0.0
    %v4431 = vadd.f32 %v4429, %v4430
    %v4432 = vsel %vm28, %v4336, 0.0
    %v4433 = vadd.f32 %v4431, %v4432
    %v4434 = vsel %vm28, %v4337, 0.0
    %v4435 = vadd.f32 %v4433, %v4434
    %v4436 = vsel %vm28, %v4338, 0.0
    %v4437 = vadd.f32 %v4435, %v4436
    %v4438 = vsel %vm28, %v4339, 0.0
    %v4439 = vadd.f32 %v4437, %v4438
    %v4440 = vsel %vm28, %v4340, 0.0
    %v4441 = vadd.f32 %v4439, %v4440
    %v4442 = vsel %vm28, %v4341, 0.0
    %v4443 = vadd.f32 %v4441, %v4442
    %v4444 = vsel %vm28, %v4342, 0.0
    %v4445 = vadd.f32 %v4443, %v4444
    %v4446 = vsel %vm28, %v4343, 0.0
    %v4447 = vadd.f32 %v4445, %v4446
    %v4448 = vsel %vm28, %v4344, 0.0
    %v4449 = vadd.f32 %v4447, %v4448
    %v4450 = vsel %vm28, %v4345, 0.0
    %v4451 = vadd.f32 %v4449, %v4450
    %v4452 = vsel %vm28, %v4346, 0.0
    %v4453 = vadd.f32 %v4451, %v4452
    %v4454 = vsel %vm28, %v4347, 0.0
    %v4455 = vadd.f32 %v4453, %v4454
    %v4456 = vsel %vm28, %v4348, 0.0
    %v4457 = vadd.f32 %v4455, %v4456
    %v4458 = vsel %vm28, %v4349, 0.0
    %v4459 = vadd.f32 %v4457, %v4458
    %v4460 = vsel %vm28, %v4350, 0.0
    %v4461 = vadd.f32 %v4459, %v4460
    %v4462 = vsel %vm28, %v4351, 0.0
    %v4463 = vadd.f32 %v4461, %v4462
    %v4464 = vsel %vm28, %v4352, 0.0
    %v4465 = vadd.f32 %v4463, %v4464
    %v4466 = vsel %vm28, %v4353, 0.0
    %v4467 = vadd.f32 %v4465, %v4466
    %v4468 = vsel %vm28, %v4354, 0.0
    %v4469 = vadd.f32 %v4467, %v4468
    %v4470 = vsel %vm28, %v4355, 0.0
    %v4471 = vadd.f32 %v4469, %v4470
    %v4472 = vsel %vm28, %v4356, 0.0
    %v4473 = vadd.f32 %v4471, %v4472
    %v4474 = vsel %vm28, %v4357, 0.0
    %v4475 = vadd.f32 %v4473, %v4474
    %v4476 = vsel %vm28, %v4358, 0.0
    %v4477 = vadd.f32 %v4475, %v4476
    %v4478 = vsel %vm28, %v4359, 0.0
    %v4479 = vadd.f32 %v4477, %v4478
    %v4480 = vsel %vm28, %v4360, 0.0
    %v4481 = vadd.f32 %v4479, %v4480
    %v4482 = vsel %vm28, %v4361, 0.0
    %v4483 = vadd.f32 %v4481, %v4482
    %v4484 = vsel %vm28, %v4362, 0.0
    %v4485 = vadd.f32 %v4483, %v4484
    %v4486 = vsel %vm28, %v4363, 0.0
    %v4487 = vadd.f32 %v4485, %v4486
    %v4488 = vsel %vm28, %v4364, 0.0
    %v4489 = vadd.f32 %v4487, %v4488
    %v4490 = vsel %vm28, %v4365, 0.0
    %v4491 = vadd.f32 %v4489, %v4490
    %v4492 = vsel %vm28, %v4366, 0.0
    %v4493 = vadd.f32 %v4491, %v4492
    %v4494 = vrot.slane %v4493, 4
    %v4495 = vadd.f32 %v4493, %v4494
    %v4496 = vrot.slane %v4495, 2
    %v4497 = vadd.f32 %v4495, %v4496
    %v4498 = vrot.slane %v4497, 1
    %v4499 = vadd.f32 %v4497, %v4498
    %v4500 = vmul.f32 %v4499, %v314
    %v4501 = vmul.f32 %v4303, %v4303
    %v4502 = vmul.f32 %v4304, %v4304
    %v4503 = vmul.f32 %v4305, %v4305
    %v4504 = vmul.f32 %v4306, %v4306
    %v4505 = vmul.f32 %v4307, %v4307
    %v4506 = vmul.f32 %v4308, %v4308
    %v4507 = vmul.f32 %v4309, %v4309
    %v4508 = vmul.f32 %v4310, %v4310
    %v4509 = vmul.f32 %v4311, %v4311
    %v4510 = vmul.f32 %v4312, %v4312
    %v4511 = vmul.f32 %v4313, %v4313
    %v4512 = vmul.f32 %v4314, %v4314
    %v4513 = vmul.f32 %v4315, %v4315
    %v4514 = vmul.f32 %v4316, %v4316
    %v4515 = vmul.f32 %v4317, %v4317
    %v4516 = vmul.f32 %v4318, %v4318
    %v4517 = vmul.f32 %v4319, %v4319
    %v4518 = vmul.f32 %v4320, %v4320
    %v4519 = vmul.f32 %v4321, %v4321
    %v4520 = vmul.f32 %v4322, %v4322
    %v4521 = vmul.f32 %v4323, %v4323
    %v4522 = vmul.f32 %v4324, %v4324
    %v4523 = vmul.f32 %v4325, %v4325
    %v4524 = vmul.f32 %v4326, %v4326
    %v4525 = vmul.f32 %v4327, %v4327
    %v4526 = vmul.f32 %v4328, %v4328
    %v4527 = vmul.f32 %v4329, %v4329
    %v4528 = vmul.f32 %v4330, %v4330
    %v4529 = vmul.f32 %v4331, %v4331
    %v4530 = vmul.f32 %v4332, %v4332
    %v4531 = vmul.f32 %v4333, %v4333
    %v4532 = vmul.f32 %v4334, %v4334
    %v4533 = vmul.f32 %v4335, %v4335
    %v4534 = vmul.f32 %v4336, %v4336
    %v4535 = vmul.f32 %v4337, %v4337
    %v4536 = vmul.f32 %v4338, %v4338
    %v4537 = vmul.f32 %v4339, %v4339
    %v4538 = vmul.f32 %v4340, %v4340
    %v4539 = vmul.f32 %v4341, %v4341
    %v4540 = vmul.f32 %v4342, %v4342
    %v4541 = vmul.f32 %v4343, %v4343
    %v4542 = vmul.f32 %v4344, %v4344
    %v4543 = vmul.f32 %v4345, %v4345
    %v4544 = vmul.f32 %v4346, %v4346
    %v4545 = vmul.f32 %v4347, %v4347
    %v4546 = vmul.f32 %v4348, %v4348
    %v4547 = vmul.f32 %v4349, %v4349
    %v4548 = vmul.f32 %v4350, %v4350
    %v4549 = vmul.f32 %v4351, %v4351
    %v4550 = vmul.f32 %v4352, %v4352
    %v4551 = vmul.f32 %v4353, %v4353
    %v4552 = vmul.f32 %v4354, %v4354
    %v4553 = vmul.f32 %v4355, %v4355
    %v4554 = vmul.f32 %v4356, %v4356
    %v4555 = vmul.f32 %v4357, %v4357
    %v4556 = vmul.f32 %v4358, %v4358
    %v4557 = vmul.f32 %v4359, %v4359
    %v4558 = vmul.f32 %v4360, %v4360
    %v4559 = vmul.f32 %v4361, %v4361
    %v4560 = vmul.f32 %v4362, %v4362
    %v4561 = vmul.f32 %v4363, %v4363
    %v4562 = vmul.f32 %v4364, %v4364
    %v4563 = vmul.f32 %v4365, %v4365
    %v4564 = vmul.f32 %v4366, %v4366
    %v4565 = vsel %vm28, %v4501, 0.0
    %v4566 = vsel %vm28, %v4502, 0.0
    %v4567 = vadd.f32 %v4565, %v4566
    %v4568 = vsel %vm28, %v4503, 0.0
    %v4569 = vadd.f32 %v4567, %v4568
    %v4570 = vsel %vm28, %v4504, 0.0
    %v4571 = vadd.f32 %v4569, %v4570
    %v4572 = vsel %vm28, %v4505, 0.0
    %v4573 = vadd.f32 %v4571, %v4572
    %v4574 = vsel %vm28, %v4506, 0.0
    %v4575 = vadd.f32 %v4573, %v4574
    %v4576 = vsel %vm28, %v4507, 0.0
    %v4577 = vadd.f32 %v4575, %v4576
    %v4578 = vsel %vm28, %v4508, 0.0
    %v4579 = vadd.f32 %v4577, %v4578
    %v4580 = vsel %vm28, %v4509, 0.0
    %v4581 = vadd.f32 %v4579, %v4580
    %v4582 = vsel %vm28, %v4510, 0.0
    %v4583 = vadd.f32 %v4581, %v4582
    %v4584 = vsel %vm28, %v4511, 0.0
    %v4585 = vadd.f32 %v4583, %v4584
    %v4586 = vsel %vm28, %v4512, 0.0
    %v4587 = vadd.f32 %v4585, %v4586
    %v4588 = vsel %vm28, %v4513, 0.0
    %v4589 = vadd.f32 %v4587, %v4588
    %v4590 = vsel %vm28, %v4514, 0.0
    %v4591 = vadd.f32 %v4589, %v4590
    %v4592 = vsel %vm28, %v4515, 0.0
    %v4593 = vadd.f32 %v4591, %v4592
    %v4594 = vsel %vm28, %v4516, 0.0
    %v4595 = vadd.f32 %v4593, %v4594
    %v4596 = vsel %vm28, %v4517, 0.0
    %v4597 = vadd.f32 %v4595, %v4596
    %v4598 = vsel %vm28, %v4518, 0.0
    %v4599 = vadd.f32 %v4597, %v4598
    %v4600 = vsel %vm28, %v4519, 0.0
    %v4601 = vadd.f32 %v4599, %v4600
    %v4602 = vsel %vm28, %v4520, 0.0
    %v4603 = vadd.f32 %v4601, %v4602
    %v4604 = vsel %vm28, %v4521, 0.0
    %v4605 = vadd.f32 %v4603, %v4604
    %v4606 = vsel %vm28, %v4522, 0.0
    %v4607 = vadd.f32 %v4605, %v4606
    %v4608 = vsel %vm28, %v4523, 0.0
    %v4609 = vadd.f32 %v4607, %v4608
    %v4610 = vsel %vm28, %v4524, 0.0
    %v4611 = vadd.f32 %v4609, %v4610
    %v4612 = vsel %vm28, %v4525, 0.0
    %v4613 = vadd.f32 %v4611, %v4612
    %v4614 = vsel %vm28, %v4526, 0.0
    %v4615 = vadd.f32 %v4613, %v4614
    %v4616 = vsel %vm28, %v4527, 0.0
    %v4617 = vadd.f32 %v4615, %v4616
    %v4618 = vsel %vm28, %v4528, 0.0
    %v4619 = vadd.f32 %v4617, %v4618
    %v4620 = vsel %vm28, %v4529, 0.0
    %v4621 = vadd.f32 %v4619, %v4620
    %v4622 = vsel %vm28, %v4530, 0.0
    %v4623 = vadd.f32 %v4621, %v4622
    %v4624 = vsel %vm28, %v4531, 0.0
    %v4625 = vadd.f32 %v4623, %v4624
    %v4626 = vsel %vm28, %v4532, 0.0
    %v4627 = vadd.f32 %v4625, %v4626
    %v4628 = vsel %vm28, %v4533, 0.0
    %v4629 = vadd.f32 %v4627, %v4628
    %v4630 = vsel %vm28, %v4534, 0.0
    %v4631 = vadd.f32 %v4629, %v4630
    %v4632 = vsel %vm28, %v4535, 0.0
    %v4633 = vadd.f32 %v4631, %v4632
    %v4634 = vsel %vm28, %v4536, 0.0
    %v4635 = vadd.f32 %v4633, %v4634
    %v4636 = vsel %vm28, %v4537, 0.0
    %v4637 = vadd.f32 %v4635, %v4636
    %v4638 = vsel %vm28, %v4538, 0.0
    %v4639 = vadd.f32 %v4637, %v4638
    %v4640 = vsel %vm28, %v4539, 0.0
    %v4641 = vadd.f32 %v4639, %v4640
    %v4642 = vsel %vm28, %v4540, 0.0
    %v4643 = vadd.f32 %v4641, %v4642
    %v4644 = vsel %vm28, %v4541, 0.0
    %v4645 = vadd.f32 %v4643, %v4644
    %v4646 = vsel %vm28, %v4542, 0.0
    %v4647 = vadd.f32 %v4645, %v4646
    %v4648 = vsel %vm28, %v4543, 0.0
    %v4649 = vadd.f32 %v4647, %v4648
    %v4650 = vsel %vm28, %v4544, 0.0
    %v4651 = vadd.f32 %v4649, %v4650
    %v4652 = vsel %vm28, %v4545, 0.0
    %v4653 = vadd.f32 %v4651, %v4652
    %v4654 = vsel %vm28, %v4546, 0.0
    %v4655 = vadd.f32 %v4653, %v4654
    %v4656 = vsel %vm28, %v4547, 0.0
    %v4657 = vadd.f32 %v4655, %v4656
    %v4658 = vsel %vm28, %v4548, 0.0
    %v4659 = vadd.f32 %v4657, %v4658
    %v4660 = vsel %vm28, %v4549, 0.0
    %v4661 = vadd.f32 %v4659, %v4660
    %v4662 = vsel %vm28, %v4550, 0.0
    %v4663 = vadd.f32 %v4661, %v4662
    %v4664 = vsel %vm28, %v4551, 0.0
    %v4665 = vadd.f32 %v4663, %v4664
    %v4666 = vsel %vm28, %v4552, 0.0
    %v4667 = vadd.f32 %v4665, %v4666
    %v4668 = vsel %vm28, %v4553, 0.0
    %v4669 = vadd.f32 %v4667, %v4668
    %v4670 = vsel %vm28, %v4554, 0.0
    %v4671 = vadd.f32 %v4669, %v4670
    %v4672 = vsel %vm28, %v4555, 0.0
    %v4673 = vadd.f32 %v4671, %v4672
    %v4674 = vsel %vm28, %v4556, 0.0
    %v4675 = vadd.f32 %v4673, %v4674
    %v4676 = vsel %vm28, %v4557, 0.0
    %v4677 = vadd.f32 %v4675, %v4676
    %v4678 = vsel %vm28, %v4558, 0.0
    %v4679 = vadd.f32 %v4677, %v4678
    %v4680 = vsel %vm28, %v4559, 0.0
    %v4681 = vadd.f32 %v4679, %v4680
    %v4682 = vsel %vm28, %v4560, 0.0
    %v4683 = vadd.f32 %v4681, %v4682
    %v4684 = vsel %vm28, %v4561, 0.0
    %v4685 = vadd.f32 %v4683, %v4684
    %v4686 = vsel %vm28, %v4562, 0.0
    %v4687 = vadd.f32 %v4685, %v4686
    %v4688 = vsel %vm28, %v4563, 0.0
    %v4689 = vadd.f32 %v4687, %v4688
    %v4690 = vsel %vm28, %v4564, 0.0
    %v4691 = vadd.f32 %v4689, %v4690
    %v4692 = vrot.slane %v4691, 4
    %v4693 = vadd.f32 %v4691, %v4692
    %v4694 = vrot.slane %v4693, 2
    %v4695 = vadd.f32 %v4693, %v4694
    %v4696 = vrot.slane %v4695, 1
    %v4697 = vadd.f32 %v4695, %v4696
    %v4698 = vmul.f32 %v4697, %v314
    %v4699 = vmul.f32 %v4500, %v4500
    %v4700 = vsub.f32 %v4698, %v4699
    %v4701 = vsub.f32 %v4303, %v4500
    %v4702 = vsub.f32 %v4304, %v4500
    %v4703 = vsub.f32 %v4305, %v4500
    %v4704 = vsub.f32 %v4306, %v4500
    %v4705 = vsub.f32 %v4307, %v4500
    %v4706 = vsub.f32 %v4308, %v4500
    %v4707 = vsub.f32 %v4309, %v4500
    %v4708 = vsub.f32 %v4310, %v4500
    %v4709 = vsub.f32 %v4311, %v4500
    %v4710 = vsub.f32 %v4312, %v4500
    %v4711 = vsub.f32 %v4313, %v4500
    %v4712 = vsub.f32 %v4314, %v4500
    %v4713 = vsub.f32 %v4315, %v4500
    %v4714 = vsub.f32 %v4316, %v4500
    %v4715 = vsub.f32 %v4317, %v4500
    %v4716 = vsub.f32 %v4318, %v4500
    %v4717 = vsub.f32 %v4319, %v4500
    %v4718 = vsub.f32 %v4320, %v4500
    %v4719 = vsub.f32 %v4321, %v4500
    %v4720 = vsub.f32 %v4322, %v4500
    %v4721 = vsub.f32 %v4323, %v4500
    %v4722 = vsub.f32 %v4324, %v4500
    %v4723 = vsub.f32 %v4325, %v4500
    %v4724 = vsub.f32 %v4326, %v4500
    %v4725 = vsub.f32 %v4327, %v4500
    %v4726 = vsub.f32 %v4328, %v4500
    %v4727 = vsub.f32 %v4329, %v4500
    %v4728 = vsub.f32 %v4330, %v4500
    %v4729 = vsub.f32 %v4331, %v4500
    %v4730 = vsub.f32 %v4332, %v4500
    %v4731 = vsub.f32 %v4333, %v4500
    %v4732 = vsub.f32 %v4334, %v4500
    %v4733 = vsub.f32 %v4335, %v4500
    %v4734 = vsub.f32 %v4336, %v4500
    %v4735 = vsub.f32 %v4337, %v4500
    %v4736 = vsub.f32 %v4338, %v4500
    %v4737 = vsub.f32 %v4339, %v4500
    %v4738 = vsub.f32 %v4340, %v4500
    %v4739 = vsub.f32 %v4341, %v4500
    %v4740 = vsub.f32 %v4342, %v4500
    %v4741 = vsub.f32 %v4343, %v4500
    %v4742 = vsub.f32 %v4344, %v4500
    %v4743 = vsub.f32 %v4345, %v4500
    %v4744 = vsub.f32 %v4346, %v4500
    %v4745 = vsub.f32 %v4347, %v4500
    %v4746 = vsub.f32 %v4348, %v4500
    %v4747 = vsub.f32 %v4349, %v4500
    %v4748 = vsub.f32 %v4350, %v4500
    %v4749 = vsub.f32 %v4351, %v4500
    %v4750 = vsub.f32 %v4352, %v4500
    %v4751 = vsub.f32 %v4353, %v4500
    %v4752 = vsub.f32 %v4354, %v4500
    %v4753 = vsub.f32 %v4355, %v4500
    %v4754 = vsub.f32 %v4356, %v4500
    %v4755 = vsub.f32 %v4357, %v4500
    %v4756 = vsub.f32 %v4358, %v4500
    %v4757 = vsub.f32 %v4359, %v4500
    %v4758 = vsub.f32 %v4360, %v4500
    %v4759 = vsub.f32 %v4361, %v4500
    %v4760 = vsub.f32 %v4362, %v4500
    %v4761 = vsub.f32 %v4363, %v4500
    %v4762 = vsub.f32 %v4364, %v4500
    %v4763 = vsub.f32 %v4365, %v4500
    %v4764 = vsub.f32 %v4366, %v4500
    %v4765 = vadd.f32 %v4700, 1e-05
    %v4766 = vrsqrt.pop %v4765
    %v4767 = vmul.f32 %v4701, %v4766
    %v4768 = vmul.f32 %v4702, %v4766
    %v4769 = vmul.f32 %v4703, %v4766
    %v4770 = vmul.f32 %v4704, %v4766
    %v4771 = vmul.f32 %v4705, %v4766
    %v4772 = vmul.f32 %v4706, %v4766
    %v4773 = vmul.f32 %v4707, %v4766
    %v4774 = vmul.f32 %v4708, %v4766
    %v4775 = vmul.f32 %v4709, %v4766
    %v4776 = vmul.f32 %v4710, %v4766
    %v4777 = vmul.f32 %v4711, %v4766
    %v4778 = vmul.f32 %v4712, %v4766
    %v4779 = vmul.f32 %v4713, %v4766
    %v4780 = vmul.f32 %v4714, %v4766
    %v4781 = vmul.f32 %v4715, %v4766
    %v4782 = vmul.f32 %v4716, %v4766
    %v4783 = vmul.f32 %v4717, %v4766
    %v4784 = vmul.f32 %v4718, %v4766
    %v4785 = vmul.f32 %v4719, %v4766
    %v4786 = vmul.f32 %v4720, %v4766
    %v4787 = vmul.f32 %v4721, %v4766
    %v4788 = vmul.f32 %v4722, %v4766
    %v4789 = vmul.f32 %v4723, %v4766
    %v4790 = vmul.f32 %v4724, %v4766
    %v4791 = vmul.f32 %v4725, %v4766
    %v4792 = vmul.f32 %v4726, %v4766
    %v4793 = vmul.f32 %v4727, %v4766
    %v4794 = vmul.f32 %v4728, %v4766
    %v4795 = vmul.f32 %v4729, %v4766
    %v4796 = vmul.f32 %v4730, %v4766
    %v4797 = vmul.f32 %v4731, %v4766
    %v4798 = vmul.f32 %v4732, %v4766
    %v4799 = vmul.f32 %v4733, %v4766
    %v4800 = vmul.f32 %v4734, %v4766
    %v4801 = vmul.f32 %v4735, %v4766
    %v4802 = vmul.f32 %v4736, %v4766
    %v4803 = vmul.f32 %v4737, %v4766
    %v4804 = vmul.f32 %v4738, %v4766
    %v4805 = vmul.f32 %v4739, %v4766
    %v4806 = vmul.f32 %v4740, %v4766
    %v4807 = vmul.f32 %v4741, %v4766
    %v4808 = vmul.f32 %v4742, %v4766
    %v4809 = vmul.f32 %v4743, %v4766
    %v4810 = vmul.f32 %v4744, %v4766
    %v4811 = vmul.f32 %v4745, %v4766
    %v4812 = vmul.f32 %v4746, %v4766
    %v4813 = vmul.f32 %v4747, %v4766
    %v4814 = vmul.f32 %v4748, %v4766
    %v4815 = vmul.f32 %v4749, %v4766
    %v4816 = vmul.f32 %v4750, %v4766
    %v4817 = vmul.f32 %v4751, %v4766
    %v4818 = vmul.f32 %v4752, %v4766
    %v4819 = vmul.f32 %v4753, %v4766
    %v4820 = vmul.f32 %v4754, %v4766
    %v4821 = vmul.f32 %v4755, %v4766
    %v4822 = vmul.f32 %v4756, %v4766
    %v4823 = vmul.f32 %v4757, %v4766
    %v4824 = vmul.f32 %v4758, %v4766
    %v4825 = vmul.f32 %v4759, %v4766
    %v4826 = vmul.f32 %v4760, %v4766
    %v4827 = vmul.f32 %v4761, %v4766
    %v4828 = vmul.f32 %v4762, %v4766
    %v4829 = vmul.f32 %v4763, %v4766
    %v4830 = vmul.f32 %v4764, %v4766
    %4831 = vst.msk [vmem:[%s646 + $0x1] sm:$0xff] %vm28, %v4767
    %4832 = vst.msk [vmem:[%s646 + $0x9] sm:$0xff] %vm28, %v4768
    %4833 = vst.msk [vmem:[%s646 + $0x19] sm:$0xff] %vm28, %v4769
    %4834 = vst.msk [vmem:[%s646 + $0x21] sm:$0xff] %vm28, %v4770
    %4835 = vst.msk [vmem:[%s646 + $0x31] sm:$0xff] %vm28, %v4771
    %4836 = vst.msk [vmem:[%s646 + $0x39] sm:$0xff] %vm28, %v4772
    %4837 = vst.msk [vmem:[%s646 + $0x49] sm:$0xff] %vm28, %v4773
    %4838 = vst.msk [vmem:[%s646 + $0x51] sm:$0xff] %vm28, %v4774
    %4839 = vst.msk [vmem:[%s646 + $0x61] sm:$0xff] %vm28, %v4775
    %4840 = vst.msk [vmem:[%s646 + $0x69] sm:$0xff] %vm28, %v4776
    %4841 = vst.msk [vmem:[%s646 + $0x79] sm:$0xff] %vm28, %v4777
    %4842 = vst.msk [vmem:[%s646 + $0x81] sm:$0xff] %vm28, %v4778
    %4843 = vst.msk [vmem:[%s646 + $0x91] sm:$0xff] %vm28, %v4779
    %4844 = vst.msk [vmem:[%s646 + $0x99] sm:$0xff] %vm28, %v4780
    %4845 = vst.msk [vmem:[%s646 + $0xa9] sm:$0xff] %vm28, %v4781
    %4846 = vst.msk [vmem:[%s646 + $0xb1] sm:$0xff] %vm28, %v4782
    %4847 = vst.msk [vmem:[%s646 + $0xc1] sm:$0xff] %vm28, %v4783
    %4848 = vst.msk [vmem:[%s646 + $0xc9] sm:$0xff] %vm28, %v4784
    %4849 = vst.msk [vmem:[%s646 + $0xd9] sm:$0xff] %vm28, %v4785
    %4850 = vst.msk [vmem:[%s646 + $0xe1] sm:$0xff] %vm28, %v4786
    %4851 = vst.msk [vmem:[%s646 + $0xf1] sm:$0xff] %vm28, %v4787
    %4852 = vst.msk [vmem:[%s646 + $0xf9] sm:$0xff] %vm28, %v4788
    %4853 = vst.msk [vmem:[%s646 + $0x109] sm:$0xff] %vm28, %v4789
    %4854 = vst.msk [vmem:[%s646 + $0x111] sm:$0xff] %vm28, %v4790
    %4855 = vst.msk [vmem:[%s646 + $0x121] sm:$0xff] %vm28, %v4791
    %4856 = vst.msk [vmem:[%s646 + $0x129] sm:$0xff] %vm28, %v4792
    %4857 = vst.msk [vmem:[%s646 + $0x139] sm:$0xff] %vm28, %v4793
    %4858 = vst.msk [vmem:[%s646 + $0x141] sm:$0xff] %vm28, %v4794
    %4859 = vst.msk [vmem:[%s646 + $0x151] sm:$0xff] %vm28, %v4795
    %4860 = vst.msk [vmem:[%s646 + $0x159] sm:$0xff] %vm28, %v4796
    %4861 = vst.msk [vmem:[%s646 + $0x169] sm:$0xff] %vm28, %v4797
    %4862 = vst.msk [vmem:[%s646 + $0x171] sm:$0xff] %vm28, %v4798
    %4863 = vst.msk [vmem:[%s646 + $0x1b1] sm:$0xff] %vm28, %v4799
    %4864 = vst.msk [vmem:[%s646 + $0x1b9] sm:$0xff] %vm28, %v4800
    %4865 = vst.msk [vmem:[%s646 + $0x1c9] sm:$0xff] %vm28, %v4801
    %4866 = vst.msk [vmem:[%s646 + $0x1d1] sm:$0xff] %vm28, %v4802
    %4867 = vst.msk [vmem:[%s646 + $0x1e1] sm:$0xff] %vm28, %v4803
    %4868 = vst.msk [vmem:[%s646 + $0x1e9] sm:$0xff] %vm28, %v4804
    %4869 = vst.msk [vmem:[%s646 + $0x1f9] sm:$0xff] %vm28, %v4805
    %4870 = vst.msk [vmem:[%s646 + $0x201] sm:$0xff] %vm28, %v4806
    %4871 = vst.msk [vmem:[%s646 + $0x211] sm:$0xff] %vm28, %v4807
    %4872 = vst.msk [vmem:[%s646 + $0x219] sm:$0xff] %vm28, %v4808
    %4873 = vst.msk [vmem:[%s646 + $0x229] sm:$0xff] %vm28, %v4809
    %4874 = vst.msk [vmem:[%s646 + $0x231] sm:$0xff] %vm28, %v4810
    %4875 = vst.msk [vmem:[%s646 + $0x241] sm:$0xff] %vm28, %v4811
    %4876 = vst.msk [vmem:[%s646 + $0x249] sm:$0xff] %vm28, %v4812
    %4877 = vst.msk [vmem:[%s646 + $0x259] sm:$0xff] %vm28, %v4813
    %4878 = vst.msk [vmem:[%s646 + $0x261] sm:$0xff] %vm28, %v4814
    %4879 = vst.msk [vmem:[%s646 + $0x271] sm:$0xff] %vm28, %v4815
    %4880 = vst.msk [vmem:[%s646 + $0x279] sm:$0xff] %vm28, %v4816
    %4881 = vst.msk [vmem:[%s646 + $0x289] sm:$0xff] %vm28, %v4817
    %4882 = vst.msk [vmem:[%s646 + $0x291] sm:$0xff] %vm28, %v4818
    %4883 = vst.msk [vmem:[%s646 + $0x2a1] sm:$0xff] %vm28, %v4819
    %4884 = vst.msk [vmem:[%s646 + $0x2a9] sm:$0xff] %vm28, %v4820
    %4885 = vst.msk [vmem:[%s646 + $0x2b9] sm:$0xff] %vm28, %v4821
    %4886 = vst.msk [vmem:[%s646 + $0x2c1] sm:$0xff] %vm28, %v4822
    %4887 = vst.msk [vmem:[%s646 + $0x2d1] sm:$0xff] %vm28, %v4823
    %4888 = vst.msk [vmem:[%s646 + $0x2d9] sm:$0xff] %vm28, %v4824
    %4889 = vst.msk [vmem:[%s646 + $0x2e9] sm:$0xff] %vm28, %v4825
    %4890 = vst.msk [vmem:[%s646 + $0x2f1] sm:$0xff] %vm28, %v4826
    %4891 = vst.msk [vmem:[%s646 + $0x301] sm:$0xff] %vm28, %v4827
    %4892 = vst.msk [vmem:[%s646 + $0x309] sm:$0xff] %vm28, %v4828
    %4893 = vst.msk [vmem:[%s646 + $0x319] sm:$0xff] %vm28, %v4829
    %4894 = vst.msk [vmem:[%s646 + $0x321] sm:$0xff] %vm28, %v4830
    %v4895 = vld [vmem:[#allocation2] sm:$0xff]
    %v4896 = vld [vmem:[#allocation2 + $0x8] sm:$0xff]
    %v4897 = vld [vmem:[#allocation2 + $0x18] sm:$0xff]
    %v4898 = vld [vmem:[#allocation2 + $0x20] sm:$0xff]
    %v4899 = vld [vmem:[#allocation2 + $0x30] sm:$0xff]
    %v4900 = vld [vmem:[#allocation2 + $0x38] sm:$0xff]
    %v4901 = vld [vmem:[#allocation2 + $0x48] sm:$0xff]
    %v4902 = vld [vmem:[#allocation2 + $0x50] sm:$0xff]
    %v4903 = vld [vmem:[#allocation2 + $0x60] sm:$0xff]
    %v4904 = vld [vmem:[#allocation2 + $0x68] sm:$0xff]
    %v4905 = vld [vmem:[#allocation2 + $0x78] sm:$0xff]
    %v4906 = vld [vmem:[#allocation2 + $0x80] sm:$0xff]
    %v4907 = vld [vmem:[#allocation2 + $0x90] sm:$0xff]
    %v4908 = vld [vmem:[#allocation2 + $0x98] sm:$0xff]
    %v4909 = vld [vmem:[#allocation2 + $0xa8] sm:$0xff]
    %v4910 = vld [vmem:[#allocation2 + $0xb0] sm:$0xff]
    %v4911 = vld [vmem:[#allocation2 + $0xc0] sm:$0xff]
    %v4912 = vld [vmem:[#allocation2 + $0xc8] sm:$0xff]
    %v4913 = vld [vmem:[#allocation2 + $0xd8] sm:$0xff]
    %v4914 = vld [vmem:[#allocation2 + $0xe0] sm:$0xff]
    %v4915 = vld [vmem:[#allocation2 + $0xf0] sm:$0xff]
    %v4916 = vld [vmem:[#allocation2 + $0xf8] sm:$0xff]
    %v4917 = vld [vmem:[#allocation2 + $0x108] sm:$0xff]
    %v4918 = vld [vmem:[#allocation2 + $0x110] sm:$0xff]
    %v4919 = vld [vmem:[#allocation2 + $0x120] sm:$0xff]
    %v4920 = vld [vmem:[#allocation2 + $0x128] sm:$0xff]
    %v4921 = vld [vmem:[#allocation2 + $0x138] sm:$0xff]
    %v4922 = vld [vmem:[#allocation2 + $0x140] sm:$0xff]
    %v4923 = vld [vmem:[#allocation2 + $0x150] sm:$0xff]
    %v4924 = vld [vmem:[#allocation2 + $0x158] sm:$0xff]
    %v4925 = vld [vmem:[#allocation2 + $0x168] sm:$0xff]
    %v4926 = vld [vmem:[#allocation2 + $0x170] sm:$0xff]
    %v4927 = vld [vmem:[#allocation2 + $0x1b0] sm:$0xff]
    %v4928 = vld [vmem:[#allocation2 + $0x1b8] sm:$0xff]
    %v4929 = vld [vmem:[#allocation2 + $0x1c8] sm:$0xff]
    %v4930 = vld [vmem:[#allocation2 + $0x1d0] sm:$0xff]
    %v4931 = vld [vmem:[#allocation2 + $0x1e0] sm:$0xff]
    %v4932 = vld [vmem:[#allocation2 + $0x1e8] sm:$0xff]
    %v4933 = vld [vmem:[#allocation2 + $0x1f8] sm:$0xff]
    %v4934 = vld [vmem:[#allocation2 + $0x200] sm:$0xff]
    %v4935 = vld [vmem:[#allocation2 + $0x210] sm:$0xff]
    %v4936 = vld [vmem:[#allocation2 + $0x218] sm:$0xff]
    %v4937 = vld [vmem:[#allocation2 + $0x228] sm:$0xff]
    %v4938 = vld [vmem:[#allocation2 + $0x230] sm:$0xff]
    %v4939 = vld [vmem:[#allocation2 + $0x240] sm:$0xff]
    %v4940 = vld [vmem:[#allocation2 + $0x248] sm:$0xff]
    %v4941 = vld [vmem:[#allocation2 + $0x258] sm:$0xff]
    %v4942 = vld [vmem:[#allocation2 + $0x260] sm:$0xff]
    %v4943 = vld [vmem:[#allocation2 + $0x270] sm:$0xff]
    %v4944 = vld [vmem:[#allocation2 + $0x278] sm:$0xff]
    %v4945 = vld [vmem:[#allocation2 + $0x288] sm:$0xff]
    %v4946 = vld [vmem:[#allocation2 + $0x290] sm:$0xff]
    %v4947 = vld [vmem:[#allocation2 + $0x2a0] sm:$0xff]
    %v4948 = vld [vmem:[#allocation2 + $0x2a8] sm:$0xff]
    %v4949 = vld [vmem:[#allocation2 + $0x2b8] sm:$0xff]
    %v4950 = vld [vmem:[#allocation2 + $0x2c0] sm:$0xff]
    %v4951 = vld [vmem:[#allocation2 + $0x2d0] sm:$0xff]
    %v4952 = vld [vmem:[#allocation2 + $0x2d8] sm:$0xff]
    %v4953 = vld [vmem:[#allocation2 + $0x2e8] sm:$0xff]
    %v4954 = vld [vmem:[#allocation2 + $0x2f0] sm:$0xff]
    %v4955 = vld [vmem:[#allocation2 + $0x300] sm:$0xff]
    %v4956 = vld [vmem:[#allocation2 + $0x308] sm:$0xff]
    %v4957 = vld [vmem:[#allocation2 + $0x318] sm:$0xff]
    %v4958 = vld [vmem:[#allocation2 + $0x320] sm:$0xff]
    %v4959 = vld [vmem:[#allocation2 + $0x1] sm:$0xff]
    %v4960 = vld [vmem:[#allocation2 + $0x9] sm:$0xff]
    %v4961 = vld [vmem:[#allocation2 + $0x19] sm:$0xff]
    %v4962 = vld [vmem:[#allocation2 + $0x21] sm:$0xff]
    %v4963 = vld [vmem:[#allocation2 + $0x31] sm:$0xff]
    %v4964 = vld [vmem:[#allocation2 + $0x39] sm:$0xff]
    %v4965 = vld [vmem:[#allocation2 + $0x49] sm:$0xff]
    %v4966 = vld [vmem:[#allocation2 + $0x51] sm:$0xff]
    %v4967 = vld [vmem:[#allocation2 + $0x61] sm:$0xff]
    %v4968 = vld [vmem:[#allocation2 + $0x69] sm:$0xff]
    %v4969 = vld [vmem:[#allocation2 + $0x79] sm:$0xff]
    %v4970 = vld [vmem:[#allocation2 + $0x81] sm:$0xff]
    %v4971 = vld [vmem:[#allocation2 + $0x91] sm:$0xff]
    %v4972 = vld [vmem:[#allocation2 + $0x99] sm:$0xff]
    %v4973 = vld [vmem:[#allocation2 + $0xa9] sm:$0xff]
    %v4974 = vld [vmem:[#allocation2 + $0xb1] sm:$0xff]
    %v4975 = vld [vmem:[#allocation2 + $0xc1] sm:$0xff]
    %v4976 = vld [vmem:[#allocation2 + $0xc9] sm:$0xff]
    %v4977 = vld [vmem:[#allocation2 + $0xd9] sm:$0xff]
    %v4978 = vld [vmem:[#allocation2 + $0xe1] sm:$0xff]
    %v4979 = vld [vmem:[#allocation2 + $0xf1] sm:$0xff]
    %v4980 = vld [vmem:[#allocation2 + $0xf9] sm:$0xff]
    %v4981 = vld [vmem:[#allocation2 + $0x109] sm:$0xff]
    %v4982 = vld [vmem:[#allocation2 + $0x111] sm:$0xff]
    %v4983 = vld [vmem:[#allocation2 + $0x121] sm:$0xff]
    %v4984 = vld [vmem:[#allocation2 + $0x129] sm:$0xff]
    %v4985 = vld [vmem:[#allocation2 + $0x139] sm:$0xff]
    %v4986 = vld [vmem:[#allocation2 + $0x141] sm:$0xff]
    %v4987 = vld [vmem:[#allocation2 + $0x151] sm:$0xff]
    %v4988 = vld [vmem:[#allocation2 + $0x159] sm:$0xff]
    %v4989 = vld [vmem:[#allocation2 + $0x169] sm:$0xff]
    %v4990 = vld [vmem:[#allocation2 + $0x171] sm:$0xff]
    %v4991 = vld [vmem:[#allocation2 + $0x1b1] sm:$0xff]
    %v4992 = vld [vmem:[#allocation2 + $0x1b9] sm:$0xff]
    %v4993 = vld [vmem:[#allocation2 + $0x1c9] sm:$0xff]
    %v4994 = vld [vmem:[#allocation2 + $0x1d1] sm:$0xff]
    %v4995 = vld [vmem:[#allocation2 + $0x1e1] sm:$0xff]
    %v4996 = vld [vmem:[#allocation2 + $0x1e9] sm:$0xff]
    %v4997 = vld [vmem:[#allocation2 + $0x1f9] sm:$0xff]
    %v4998 = vld [vmem:[#allocation2 + $0x201] sm:$0xff]
    %v4999 = vld [vmem:[#allocation2 + $0x211] sm:$0xff]
    %v5000 = vld [vmem:[#allocation2 + $0x219] sm:$0xff]
    %v5001 = vld [vmem:[#allocation2 + $0x229] sm:$0xff]
    %v5002 = vld [vmem:[#allocation2 + $0x231] sm:$0xff]
    %v5003 = vld [vmem:[#allocation2 + $0x241] sm:$0xff]
    %v5004 = vld [vmem:[#allocation2 + $0x249] sm:$0xff]
    %v5005 = vld [vmem:[#allocation2 + $0x259] sm:$0xff]
    %v5006 = vld [vmem:[#allocation2 + $0x261] sm:$0xff]
    %v5007 = vld [vmem:[#allocation2 + $0x271] sm:$0xff]
    %v5008 = vld [vmem:[#allocation2 + $0x279] sm:$0xff]
    %v5009 = vld [vmem:[#allocation2 + $0x289] sm:$0xff]
    %v5010 = vld [vmem:[#allocation2 + $0x291] sm:$0xff]
    %v5011 = vld [vmem:[#allocation2 + $0x2a1] sm:$0xff]
    %v5012 = vld [vmem:[#allocation2 + $0x2a9] sm:$0xff]
    %v5013 = vld [vmem:[#allocation2 + $0x2b9] sm:$0xff]
    %v5014 = vld [vmem:[#allocation2 + $0x2c1] sm:$0xff]
    %v5015 = vld [vmem:[#allocation2 + $0x2d1] sm:$0xff]
    %v5016 = vld [vmem:[#allocation2 + $0x2d9] sm:$0xff]
    %v5017 = vld [vmem:[#allocation2 + $0x2e9] sm:$0xff]
    %v5018 = vld [vmem:[#allocation2 + $0x2f1] sm:$0xff]
    %v5019 = vld [vmem:[#allocation2 + $0x301] sm:$0xff]
    %v5020 = vld [vmem:[#allocation2 + $0x309] sm:$0xff]
    %v5021 = vld [vmem:[#allocation2 + $0x319] sm:$0xff]
    %v5022 = vld [vmem:[#allocation2 + $0x321] sm:$0xff]
    %v5023 = vld [vmem:[#allocation2 + $0x2] sm:$0xff]
    %v5024 = vld [vmem:[#allocation2 + $0xa] sm:$0xff]
    %v5025 = vld [vmem:[#allocation2 + $0x1a] sm:$0xff]
    %v5026 = vld [vmem:[#allocation2 + $0x22] sm:$0xff]
    %v5027 = vld [vmem:[#allocation2 + $0x32] sm:$0xff]
    %v5028 = vld [vmem:[#allocation2 + $0x3a] sm:$0xff]
    %v5029 = vld [vmem:[#allocation2 + $0x4a] sm:$0xff]
    %v5030 = vld [vmem:[#allocation2 + $0x52] sm:$0xff]
    %v5031 = vld [vmem:[#allocation2 + $0x62] sm:$0xff]
    %v5032 = vld [vmem:[#allocation2 + $0x6a] sm:$0xff]
    %v5033 = vld [vmem:[#allocation2 + $0x7a] sm:$0xff]
    %v5034 = vld [vmem:[#allocation2 + $0x82] sm:$0xff]
    %v5035 = vld [vmem:[#allocation2 + $0x92] sm:$0xff]
    %v5036 = vld [vmem:[#allocation2 + $0x9a] sm:$0xff]
    %v5037 = vld [vmem:[#allocation2 + $0xaa] sm:$0xff]
    %v5038 = vld [vmem:[#allocation2 + $0xb2] sm:$0xff]
    %v5039 = vld [vmem:[#allocation2 + $0xc2] sm:$0xff]
    %v5040 = vld [vmem:[#allocation2 + $0xca] sm:$0xff]
    %v5041 = vld [vmem:[#allocation2 + $0xda] sm:$0xff]
    %v5042 = vld [vmem:[#allocation2 + $0xe2] sm:$0xff]
    %v5043 = vld [vmem:[#allocation2 + $0xf2] sm:$0xff]
    %v5044 = vld [vmem:[#allocation2 + $0xfa] sm:$0xff]
    %v5045 = vld [vmem:[#allocation2 + $0x10a] sm:$0xff]
    %v5046 = vld [vmem:[#allocation2 + $0x112] sm:$0xff]
    %v5047 = vld [vmem:[#allocation2 + $0x122] sm:$0xff]
    %v5048 = vld [vmem:[#allocation2 + $0x12a] sm:$0xff]
    %v5049 = vld [vmem:[#allocation2 + $0x13a] sm:$0xff]
    %v5050 = vld [vmem:[#allocation2 + $0x142] sm:$0xff]
    %v5051 = vld [vmem:[#allocation2 + $0x152] sm:$0xff]
    %v5052 = vld [vmem:[#allocation2 + $0x15a] sm:$0xff]
    %v5053 = vld [vmem:[#allocation2 + $0x16a] sm:$0xff]
    %v5054 = vld [vmem:[#allocation2 + $0x172] sm:$0xff]
    %v5055 = vld [vmem:[#allocation2 + $0x1b2] sm:$0xff]
    %v5056 = vld [vmem:[#allocation2 + $0x1ba] sm:$0xff]
    %v5057 = vld [vmem:[#allocation2 + $0x1ca] sm:$0xff]
    %v5058 = vld [vmem:[#allocation2 + $0x1d2] sm:$0xff]
    %v5059 = vld [vmem:[#allocation2 + $0x1e2] sm:$0xff]
    %v5060 = vld [vmem:[#allocation2 + $0x1ea] sm:$0xff]
    %v5061 = vld [vmem:[#allocation2 + $0x1fa] sm:$0xff]
    %v5062 = vld [vmem:[#allocation2 + $0x202] sm:$0xff]
    %v5063 = vld [vmem:[#allocation2 + $0x212] sm:$0xff]
    %v5064 = vld [vmem:[#allocation2 + $0x21a] sm:$0xff]
    %v5065 = vld [vmem:[#allocation2 + $0x22a] sm:$0xff]
    %v5066 = vld [vmem:[#allocation2 + $0x232] sm:$0xff]
    %v5067 = vld [vmem:[#allocation2 + $0x242] sm:$0xff]
    %v5068 = vld [vmem:[#allocation2 + $0x24a] sm:$0xff]
    %v5069 = vld [vmem:[#allocation2 + $0x25a] sm:$0xff]
    %v5070 = vld [vmem:[#allocation2 + $0x262] sm:$0xff]
    %v5071 = vld [vmem:[#allocation2 + $0x272] sm:$0xff]
    %v5072 = vld [vmem:[#allocation2 + $0x27a] sm:$0xff]
    %v5073 = vld [vmem:[#allocation2 + $0x28a] sm:$0xff]
    %v5074 = vld [vmem:[#allocation2 + $0x292] sm:$0xff]
    %v5075 = vld [vmem:[#allocation2 + $0x2a2] sm:$0xff]
    %v5076 = vld [vmem:[#allocation2 + $0x2aa] sm:$0xff]
    %v5077 = vld [vmem:[#allocation2 + $0x2ba] sm:$0xff]
    %v5078 = vld [vmem:[#allocation2 + $0x2c2] sm:$0xff]
    %v5079 = vld [vmem:[#allocation2 + $0x2d2] sm:$0xff]
    %v5080 = vld [vmem:[#allocation2 + $0x2da] sm:$0xff]
    %v5081 = vld [vmem:[#allocation2 + $0x2ea] sm:$0xff]
    %v5082 = vld [vmem:[#allocation2 + $0x2f2] sm:$0xff]
    %v5083 = vld [vmem:[#allocation2 + $0x302] sm:$0xff]
    %v5084 = vld [vmem:[#allocation2 + $0x30a] sm:$0xff]
    %v5085 = vld [vmem:[#allocation2 + $0x31a] sm:$0xff]
    %v5086 = vld [vmem:[#allocation2 + $0x322] sm:$0xff]
    %v5087 = vld [vmem:[%s646] sm:$0xff]
    %v5088 = vld [vmem:[%s646 + $0x8] sm:$0xff]
    %v5089 = vld [vmem:[%s646 + $0x18] sm:$0xff]
    %v5090 = vld [vmem:[%s646 + $0x20] sm:$0xff]
    %v5091 = vld [vmem:[%s646 + $0x30] sm:$0xff]
    %v5092 = vld [vmem:[%s646 + $0x38] sm:$0xff]
    %v5093 = vld [vmem:[%s646 + $0x48] sm:$0xff]
    %v5094 = vld [vmem:[%s646 + $0x50] sm:$0xff]
    %v5095 = vld [vmem:[%s646 + $0x60] sm:$0xff]
    %v5096 = vld [vmem:[%s646 + $0x68] sm:$0xff]
    %v5097 = vld [vmem:[%s646 + $0x78] sm:$0xff]
    %v5098 = vld [vmem:[%s646 + $0x80] sm:$0xff]
    %v5099 = vld [vmem:[%s646 + $0x90] sm:$0xff]
    %v5100 = vld [vmem:[%s646 + $0x98] sm:$0xff]
    %v5101 = vld [vmem:[%s646 + $0xa8] sm:$0xff]
    %v5102 = vld [vmem:[%s646 + $0xb0] sm:$0xff]
    %v5103 = vld [vmem:[%s646 + $0xc0] sm:$0xff]
    %v5104 = vld [vmem:[%s646 + $0xc8] sm:$0xff]
    %v5105 = vld [vmem:[%s646 + $0xd8] sm:$0xff]
    %v5106 = vld [vmem:[%s646 + $0xe0] sm:$0xff]
    %v5107 = vld [vmem:[%s646 + $0xf0] sm:$0xff]
    %v5108 = vld [vmem:[%s646 + $0xf8] sm:$0xff]
    %v5109 = vld [vmem:[%s646 + $0x108] sm:$0xff]
    %v5110 = vld [vmem:[%s646 + $0x110] sm:$0xff]
    %v5111 = vld [vmem:[%s646 + $0x120] sm:$0xff]
    %v5112 = vld [vmem:[%s646 + $0x128] sm:$0xff]
    %v5113 = vld [vmem:[%s646 + $0x138] sm:$0xff]
    %v5114 = vld [vmem:[%s646 + $0x140] sm:$0xff]
    %v5115 = vld [vmem:[%s646 + $0x150] sm:$0xff]
    %v5116 = vld [vmem:[%s646 + $0x158] sm:$0xff]
    %v5117 = vld [vmem:[%s646 + $0x168] sm:$0xff]
    %v5118 = vld [vmem:[%s646 + $0x170] sm:$0xff]
    %v5119 = vld [vmem:[%s646 + $0x1b0] sm:$0xff]
    %v5120 = vld [vmem:[%s646 + $0x1b8] sm:$0xff]
    %v5121 = vld [vmem:[%s646 + $0x1c8] sm:$0xff]
    %v5122 = vld [vmem:[%s646 + $0x1d0] sm:$0xff]
    %v5123 = vld [vmem:[%s646 + $0x1e0] sm:$0xff]
    %v5124 = vld [vmem:[%s646 + $0x1e8] sm:$0xff]
    %v5125 = vld [vmem:[%s646 + $0x1f8] sm:$0xff]
    %v5126 = vld [vmem:[%s646 + $0x200] sm:$0xff]
    %v5127 = vld [vmem:[%s646 + $0x210] sm:$0xff]
    %v5128 = vld [vmem:[%s646 + $0x218] sm:$0xff]
    %v5129 = vld [vmem:[%s646 + $0x228] sm:$0xff]
    %v5130 = vld [vmem:[%s646 + $0x230] sm:$0xff]
    %v5131 = vld [vmem:[%s646 + $0x240] sm:$0xff]
    %v5132 = vld [vmem:[%s646 + $0x248] sm:$0xff]
    %v5133 = vld [vmem:[%s646 + $0x258] sm:$0xff]
    %v5134 = vld [vmem:[%s646 + $0x260] sm:$0xff]
    %v5135 = vld [vmem:[%s646 + $0x270] sm:$0xff]
    %v5136 = vld [vmem:[%s646 + $0x278] sm:$0xff]
    %v5137 = vld [vmem:[%s646 + $0x288] sm:$0xff]
    %v5138 = vld [vmem:[%s646 + $0x290] sm:$0xff]
    %v5139 = vld [vmem:[%s646 + $0x2a0] sm:$0xff]
    %v5140 = vld [vmem:[%s646 + $0x2a8] sm:$0xff]
    %v5141 = vld [vmem:[%s646 + $0x2b8] sm:$0xff]
    %v5142 = vld [vmem:[%s646 + $0x2c0] sm:$0xff]
    %v5143 = vld [vmem:[%s646 + $0x2d0] sm:$0xff]
    %v5144 = vld [vmem:[%s646 + $0x2d8] sm:$0xff]
    %v5145 = vld [vmem:[%s646 + $0x2e8] sm:$0xff]
    %v5146 = vld [vmem:[%s646 + $0x2f0] sm:$0xff]
    %v5147 = vld [vmem:[%s646 + $0x300] sm:$0xff]
    %v5148 = vld [vmem:[%s646 + $0x308] sm:$0xff]
    %v5149 = vld [vmem:[%s646 + $0x318] sm:$0xff]
    %v5150 = vld [vmem:[%s646 + $0x320] sm:$0xff]
    %v5151 = vld [vmem:[%s646 + $0x1] sm:$0xff]
    %v5152 = vld [vmem:[%s646 + $0x9] sm:$0xff]
    %v5153 = vld [vmem:[%s646 + $0x19] sm:$0xff]
    %v5154 = vld [vmem:[%s646 + $0x21] sm:$0xff]
    %v5155 = vld [vmem:[%s646 + $0x31] sm:$0xff]
    %v5156 = vld [vmem:[%s646 + $0x39] sm:$0xff]
    %v5157 = vld [vmem:[%s646 + $0x49] sm:$0xff]
    %v5158 = vld [vmem:[%s646 + $0x51] sm:$0xff]
    %v5159 = vld [vmem:[%s646 + $0x61] sm:$0xff]
    %v5160 = vld [vmem:[%s646 + $0x69] sm:$0xff]
    %v5161 = vld [vmem:[%s646 + $0x79] sm:$0xff]
    %v5162 = vld [vmem:[%s646 + $0x81] sm:$0xff]
    %v5163 = vld [vmem:[%s646 + $0x91] sm:$0xff]
    %v5164 = vld [vmem:[%s646 + $0x99] sm:$0xff]
    %v5165 = vld [vmem:[%s646 + $0xa9] sm:$0xff]
    %v5166 = vld [vmem:[%s646 + $0xb1] sm:$0xff]
    %v5167 = vld [vmem:[%s646 + $0xc1] sm:$0xff]
    %v5168 = vld [vmem:[%s646 + $0xc9] sm:$0xff]
    %v5169 = vld [vmem:[%s646 + $0xd9] sm:$0xff]
    %v5170 = vld [vmem:[%s646 + $0xe1] sm:$0xff]
    %v5171 = vld [vmem:[%s646 + $0xf1] sm:$0xff]
    %v5172 = vld [vmem:[%s646 + $0xf9] sm:$0xff]
    %v5173 = vld [vmem:[%s646 + $0x109] sm:$0xff]
    %v5174 = vld [vmem:[%s646 + $0x111] sm:$0xff]
    %v5175 = vld [vmem:[%s646 + $0x121] sm:$0xff]
    %v5176 = vld [vmem:[%s646 + $0x129] sm:$0xff]
    %v5177 = vld [vmem:[%s646 + $0x139] sm:$0xff]
    %v5178 = vld [vmem:[%s646 + $0x141] sm:$0xff]
    %v5179 = vld [vmem:[%s646 + $0x151] sm:$0xff]
    %v5180 = vld [vmem:[%s646 + $0x159] sm:$0xff]
    %v5181 = vld [vmem:[%s646 + $0x169] sm:$0xff]
    %v5182 = vld [vmem:[%s646 + $0x171] sm:$0xff]
    %v5183 = vld [vmem:[%s646 + $0x1b1] sm:$0xff]
    %v5184 = vld [vmem:[%s646 + $0x1b9] sm:$0xff]
    %v5185 = vld [vmem:[%s646 + $0x1c9] sm:$0xff]
    %v5186 = vld [vmem:[%s646 + $0x1d1] sm:$0xff]
    %v5187 = vld [vmem:[%s646 + $0x1e1] sm:$0xff]
    %v5188 = vld [vmem:[%s646 + $0x1e9] sm:$0xff]
    %v5189 = vld [vmem:[%s646 + $0x1f9] sm:$0xff]
    %v5190 = vld [vmem:[%s646 + $0x201] sm:$0xff]
    %v5191 = vld [vmem:[%s646 + $0x211] sm:$0xff]
    %v5192 = vld [vmem:[%s646 + $0x219] sm:$0xff]
    %v5193 = vld [vmem:[%s646 + $0x229] sm:$0xff]
    %v5194 = vld [vmem:[%s646 + $0x231] sm:$0xff]
    %v5195 = vld [vmem:[%s646 + $0x241] sm:$0xff]
    %v5196 = vld [vmem:[%s646 + $0x249] sm:$0xff]
    %v5197 = vld [vmem:[%s646 + $0x259] sm:$0xff]
    %v5198 = vld [vmem:[%s646 + $0x261] sm:$0xff]
    %v5199 = vld [vmem:[%s646 + $0x271] sm:$0xff]
    %v5200 = vld [vmem:[%s646 + $0x279] sm:$0xff]
    %v5201 = vld [vmem:[%s646 + $0x289] sm:$0xff]
    %v5202 = vld [vmem:[%s646 + $0x291] sm:$0xff]
    %v5203 = vld [vmem:[%s646 + $0x2a1] sm:$0xff]
    %v5204 = vld [vmem:[%s646 + $0x2a9] sm:$0xff]
    %v5205 = vld [vmem:[%s646 + $0x2b9] sm:$0xff]
    %v5206 = vld [vmem:[%s646 + $0x2c1] sm:$0xff]
    %v5207 = vld [vmem:[%s646 + $0x2d1] sm:$0xff]
    %v5208 = vld [vmem:[%s646 + $0x2d9] sm:$0xff]
    %v5209 = vld [vmem:[%s646 + $0x2e9] sm:$0xff]
    %v5210 = vld [vmem:[%s646 + $0x2f1] sm:$0xff]
    %v5211 = vld [vmem:[%s646 + $0x301] sm:$0xff]
    %v5212 = vld [vmem:[%s646 + $0x309] sm:$0xff]
    %v5213 = vld [vmem:[%s646 + $0x319] sm:$0xff]
    %v5214 = vld [vmem:[%s646 + $0x321] sm:$0xff]
    %v5215 = vld [vmem:[%s646 + $0x2] sm:$0xff]
    %v5216 = vld [vmem:[%s646 + $0xa] sm:$0xff]
    %v5217 = vld [vmem:[%s646 + $0x1a] sm:$0xff]
    %v5218 = vld [vmem:[%s646 + $0x22] sm:$0xff]
    %v5219 = vld [vmem:[%s646 + $0x32] sm:$0xff]
    %v5220 = vld [vmem:[%s646 + $0x3a] sm:$0xff]
    %v5221 = vld [vmem:[%s646 + $0x4a] sm:$0xff]
    %v5222 = vld [vmem:[%s646 + $0x52] sm:$0xff]
    %v5223 = vld [vmem:[%s646 + $0x62] sm:$0xff]
    %v5224 = vld [vmem:[%s646 + $0x6a] sm:$0xff]
    %v5225 = vld [vmem:[%s646 + $0x7a] sm:$0xff]
    %v5226 = vld [vmem:[%s646 + $0x82] sm:$0xff]
    %v5227 = vld [vmem:[%s646 + $0x92] sm:$0xff]
    %v5228 = vld [vmem:[%s646 + $0x9a] sm:$0xff]
    %v5229 = vld [vmem:[%s646 + $0xaa] sm:$0xff]
    %v5230 = vld [vmem:[%s646 + $0xb2] sm:$0xff]
    %v5231 = vld [vmem:[%s646 + $0xc2] sm:$0xff]
    %v5232 = vld [vmem:[%s646 + $0xca] sm:$0xff]
    %v5233 = vld [vmem:[%s646 + $0xda] sm:$0xff]
    %v5234 = vld [vmem:[%s646 + $0xe2] sm:$0xff]
    %v5235 = vld [vmem:[%s646 + $0xf2] sm:$0xff]
    %v5236 = vld [vmem:[%s646 + $0xfa] sm:$0xff]
    %v5237 = vld [vmem:[%s646 + $0x10a] sm:$0xff]
    %v5238 = vld [vmem:[%s646 + $0x112] sm:$0xff]
    %v5239 = vld [vmem:[%s646 + $0x122] sm:$0xff]
    %v5240 = vld [vmem:[%s646 + $0x12a] sm:$0xff]
    %v5241 = vld [vmem:[%s646 + $0x13a] sm:$0xff]
    %v5242 = vld [vmem:[%s646 + $0x142] sm:$0xff]
    %v5243 = vld [vmem:[%s646 + $0x152] sm:$0xff]
    %v5244 = vld [vmem:[%s646 + $0x15a] sm:$0xff]
    %v5245 = vld [vmem:[%s646 + $0x16a] sm:$0xff]
    %v5246 = vld [vmem:[%s646 + $0x172] sm:$0xff]
    %v5247 = vld [vmem:[%s646 + $0x1b2] sm:$0xff]
    %v5248 = vld [vmem:[%s646 + $0x1ba] sm:$0xff]
    %v5249 = vld [vmem:[%s646 + $0x1ca] sm:$0xff]
    %v5250 = vld [vmem:[%s646 + $0x1d2] sm:$0xff]
    %v5251 = vld [vmem:[%s646 + $0x1e2] sm:$0xff]
    %v5252 = vld [vmem:[%s646 + $0x1ea] sm:$0xff]
    %v5253 = vld [vmem:[%s646 + $0x1fa] sm:$0xff]
    %v5254 = vld [vmem:[%s646 + $0x202] sm:$0xff]
    %v5255 = vld [vmem:[%s646 + $0x212] sm:$0xff]
    %v5256 = vld [vmem:[%s646 + $0x21a] sm:$0xff]
    %v5257 = vld [vmem:[%s646 + $0x22a] sm:$0xff]
    %v5258 = vld [vmem:[%s646 + $0x232] sm:$0xff]
    %v5259 = vld [vmem:[%s646 + $0x242] sm:$0xff]
    %v5260 = vld [vmem:[%s646 + $0x24a] sm:$0xff]
    %v5261 = vld [vmem:[%s646 + $0x25a] sm:$0xff]
    %v5262 = vld [vmem:[%s646 + $0x262] sm:$0xff]
    %v5263 = vld [vmem:[%s646 + $0x272] sm:$0xff]
    %v5264 = vld [vmem:[%s646 + $0x27a] sm:$0xff]
    %v5265 = vld [vmem:[%s646 + $0x28a] sm:$0xff]
    %v5266 = vld [vmem:[%s646 + $0x292] sm:$0xff]
    %v5267 = vld [vmem:[%s646 + $0x2a2] sm:$0xff]
    %v5268 = vld [vmem:[%s646 + $0x2aa] sm:$0xff]
    %v5269 = vld [vmem:[%s646 + $0x2ba] sm:$0xff]
    %v5270 = vld [vmem:[%s646 + $0x2c2] sm:$0xff]
    %v5271 = vld [vmem:[%s646 + $0x2d2] sm:$0xff]
    %v5272 = vld [vmem:[%s646 + $0x2da] sm:$0xff]
    %v5273 = vld [vmem:[%s646 + $0x2ea] sm:$0xff]
    %v5274 = vld [vmem:[%s646 + $0x2f2] sm:$0xff]
    %v5275 = vld [vmem:[%s646 + $0x302] sm:$0xff]
    %v5276 = vld [vmem:[%s646 + $0x30a] sm:$0xff]
    %v5277 = vld [vmem:[%s646 + $0x31a] sm:$0xff]
    %v5278 = vld [vmem:[%s646 + $0x322] sm:$0xff]
    %v5279 = vld [vmem:[%s1095] sm:$0xff]
    %v5280 = vld [vmem:[%s1095 + $0x8] sm:$0xff]
    %v5281 = vld [vmem:[%s1095 + $0x18] sm:$0xff]
    %v5282 = vld [vmem:[%s1095 + $0x20] sm:$0xff]
    %v5283 = vld [vmem:[%s1095 + $0x30] sm:$0xff]
    %v5284 = vld [vmem:[%s1095 + $0x38] sm:$0xff]
    %v5285 = vld [vmem:[%s1095 + $0x48] sm:$0xff]
    %v5286 = vld [vmem:[%s1095 + $0x50] sm:$0xff]
    %v5287 = vld [vmem:[%s1095 + $0x60] sm:$0xff]
    %v5288 = vld [vmem:[%s1095 + $0x68] sm:$0xff]
    %v5289 = vld [vmem:[%s1095 + $0x78] sm:$0xff]
    %v5290 = vld [vmem:[%s1095 + $0x80] sm:$0xff]
    %v5291 = vld [vmem:[%s1095 + $0x90] sm:$0xff]
    %v5292 = vld [vmem:[%s1095 + $0x98] sm:$0xff]
    %v5293 = vld [vmem:[%s1095 + $0xa8] sm:$0xff]
    %v5294 = vld [vmem:[%s1095 + $0xb0] sm:$0xff]
    %v5295 = vld [vmem:[%s1095 + $0xc0] sm:$0xff]
    %v5296 = vld [vmem:[%s1095 + $0xc8] sm:$0xff]
    %v5297 = vld [vmem:[%s1095 + $0xd8] sm:$0xff]
    %v5298 = vld [vmem:[%s1095 + $0xe0] sm:$0xff]
    %v5299 = vld [vmem:[%s1095 + $0xf0] sm:$0xff]
    %v5300 = vld [vmem:[%s1095 + $0xf8] sm:$0xff]
    %v5301 = vld [vmem:[%s1095 + $0x108] sm:$0xff]
    %v5302 = vld [vmem:[%s1095 + $0x110] sm:$0xff]
    %v5303 = vld [vmem:[%s1095 + $0x120] sm:$0xff]
    %v5304 = vld [vmem:[%s1095 + $0x128] sm:$0xff]
    %v5305 = vld [vmem:[%s1095 + $0x138] sm:$0xff]
    %v5306 = vld [vmem:[%s1095 + $0x140] sm:$0xff]
    %v5307 = vld [vmem:[%s1095 + $0x150] sm:$0xff]
    %v5308 = vld [vmem:[%s1095 + $0x158] sm:$0xff]
    %v5309 = vld [vmem:[%s1095 + $0x168] sm:$0xff]
    %v5310 = vld [vmem:[%s1095 + $0x170] sm:$0xff]
    %v5311 = vld [vmem:[%s1095 + $0x1b0] sm:$0xff]
    %v5312 = vld [vmem:[%s1095 + $0x1b8] sm:$0xff]
    %v5313 = vld [vmem:[%s1095 + $0x1c8] sm:$0xff]
    %v5314 = vld [vmem:[%s1095 + $0x1d0] sm:$0xff]
    %v5315 = vld [vmem:[%s1095 + $0x1e0] sm:$0xff]
    %v5316 = vld [vmem:[%s1095 + $0x1e8] sm:$0xff]
    %v5317 = vld [vmem:[%s1095 + $0x1f8] sm:$0xff]
    %v5318 = vld [vmem:[%s1095 + $0x200] sm:$0xff]
    %v5319 = vld [vmem:[%s1095 + $0x210] sm:$0xff]
    %v5320 = vld [vmem:[%s1095 + $0x218] sm:$0xff]
    %v5321 = vld [vmem:[%s1095 + $0x228] sm:$0xff]
    %v5322 = vld [vmem:[%s1095 + $0x230] sm:$0xff]
    %v5323 = vld [vmem:[%s1095 + $0x240] sm:$0xff]
    %v5324 = vld [vmem:[%s1095 + $0x248] sm:$0xff]
    %v5325 = vld [vmem:[%s1095 + $0x258] sm:$0xff]
    %v5326 = vld [vmem:[%s1095 + $0x260] sm:$0xff]
    %v5327 = vld [vmem:[%s1095 + $0x270] sm:$0xff]
    %v5328 = vld [vmem:[%s1095 + $0x278] sm:$0xff]
    %v5329 = vld [vmem:[%s1095 + $0x288] sm:$0xff]
    %v5330 = vld [vmem:[%s1095 + $0x290] sm:$0xff]
    %v5331 = vld [vmem:[%s1095 + $0x2a0] sm:$0xff]
    %v5332 = vld [vmem:[%s1095 + $0x2a8] sm:$0xff]
    %v5333 = vld [vmem:[%s1095 + $0x2b8] sm:$0xff]
    %v5334 = vld [vmem:[%s1095 + $0x2c0] sm:$0xff]
    %v5335 = vld [vmem:[%s1095 + $0x2d0] sm:$0xff]
    %v5336 = vld [vmem:[%s1095 + $0x2d8] sm:$0xff]
    %v5337 = vld [vmem:[%s1095 + $0x2e8] sm:$0xff]
    %v5338 = vld [vmem:[%s1095 + $0x2f0] sm:$0xff]
    %v5339 = vld [vmem:[%s1095 + $0x300] sm:$0xff]
    %v5340 = vld [vmem:[%s1095 + $0x308] sm:$0xff]
    %v5341 = vld [vmem:[%s1095 + $0x318] sm:$0xff]
    %v5342 = vld [vmem:[%s1095 + $0x320] sm:$0xff]
    %v5343 = vld [vmem:[%s1095 + $0x1] sm:$0xff]
    %v5344 = vld [vmem:[%s1095 + $0x9] sm:$0xff]
    %v5345 = vld [vmem:[%s1095 + $0x19] sm:$0xff]
    %v5346 = vld [vmem:[%s1095 + $0x21] sm:$0xff]
    %v5347 = vld [vmem:[%s1095 + $0x31] sm:$0xff]
    %v5348 = vld [vmem:[%s1095 + $0x39] sm:$0xff]
    %v5349 = vld [vmem:[%s1095 + $0x49] sm:$0xff]
    %v5350 = vld [vmem:[%s1095 + $0x51] sm:$0xff]
    %v5351 = vld [vmem:[%s1095 + $0x61] sm:$0xff]
    %v5352 = vld [vmem:[%s1095 + $0x69] sm:$0xff]
    %v5353 = vld [vmem:[%s1095 + $0x79] sm:$0xff]
    %v5354 = vld [vmem:[%s1095 + $0x81] sm:$0xff]
    %v5355 = vld [vmem:[%s1095 + $0x91] sm:$0xff]
    %v5356 = vld [vmem:[%s1095 + $0x99] sm:$0xff]
    %v5357 = vld [vmem:[%s1095 + $0xa9] sm:$0xff]
    %v5358 = vld [vmem:[%s1095 + $0xb1] sm:$0xff]
    %v5359 = vld [vmem:[%s1095 + $0xc1] sm:$0xff]
    %v5360 = vld [vmem:[%s1095 + $0xc9] sm:$0xff]
    %v5361 = vld [vmem:[%s1095 + $0xd9] sm:$0xff]
    %v5362 = vld [vmem:[%s1095 + $0xe1] sm:$0xff]
    %v5363 = vld [vmem:[%s1095 + $0xf1] sm:$0xff]
    %v5364 = vld [vmem:[%s1095 + $0xf9] sm:$0xff]
    %v5365 = vld [vmem:[%s1095 + $0x109] sm:$0xff]
    %v5366 = vld [vmem:[%s1095 + $0x111] sm:$0xff]
    %v5367 = vld [vmem:[%s1095 + $0x121] sm:$0xff]
    %v5368 = vld [vmem:[%s1095 + $0x129] sm:$0xff]
    %v5369 = vld [vmem:[%s1095 + $0x139] sm:$0xff]
    %v5370 = vld [vmem:[%s1095 + $0x141] sm:$0xff]
    %v5371 = vld [vmem:[%s1095 + $0x151] sm:$0xff]
    %v5372 = vld [vmem:[%s1095 + $0x159] sm:$0xff]
    %v5373 = vld [vmem:[%s1095 + $0x169] sm:$0xff]
    %v5374 = vld [vmem:[%s1095 + $0x171] sm:$0xff]
    %v5375 = vld [vmem:[%s1095 + $0x1b1] sm:$0xff]
    %v5376 = vld [vmem:[%s1095 + $0x1b9] sm:$0xff]
    %v5377 = vld [vmem:[%s1095 + $0x1c9] sm:$0xff]
    %v5378 = vld [vmem:[%s1095 + $0x1d1] sm:$0xff]
    %v5379 = vld [vmem:[%s1095 + $0x1e1] sm:$0xff]
    %v5380 = vld [vmem:[%s1095 + $0x1e9] sm:$0xff]
    %v5381 = vld [vmem:[%s1095 + $0x1f9] sm:$0xff]
    %v5382 = vld [vmem:[%s1095 + $0x201] sm:$0xff]
    %v5383 = vld [vmem:[%s1095 + $0x211] sm:$0xff]
    %v5384 = vld [vmem:[%s1095 + $0x219] sm:$0xff]
    %v5385 = vld [vmem:[%s1095 + $0x229] sm:$0xff]
    %v5386 = vld [vmem:[%s1095 + $0x231] sm:$0xff]
    %v5387 = vld [vmem:[%s1095 + $0x241] sm:$0xff]
    %v5388 = vld [vmem:[%s1095 + $0x249] sm:$0xff]
    %v5389 = vld [vmem:[%s1095 + $0x259] sm:$0xff]
    %v5390 = vld [vmem:[%s1095 + $0x261] sm:$0xff]
    %v5391 = vld [vmem:[%s1095 + $0x271] sm:$0xff]
    %v5392 = vld [vmem:[%s1095 + $0x279] sm:$0xff]
    %v5393 = vld [vmem:[%s1095 + $0x289] sm:$0xff]
    %v5394 = vld [vmem:[%s1095 + $0x291] sm:$0xff]
    %v5395 = vld [vmem:[%s1095 + $0x2a1] sm:$0xff]
    %v5396 = vld [vmem:[%s1095 + $0x2a9] sm:$0xff]
    %v5397 = vld [vmem:[%s1095 + $0x2b9] sm:$0xff]
    %v5398 = vld [vmem:[%s1095 + $0x2c1] sm:$0xff]
    %v5399 = vld [vmem:[%s1095 + $0x2d1] sm:$0xff]
    %v5400 = vld [vmem:[%s1095 + $0x2d9] sm:$0xff]
    %v5401 = vld [vmem:[%s1095 + $0x2e9] sm:$0xff]
    %v5402 = vld [vmem:[%s1095 + $0x2f1] sm:$0xff]
    %v5403 = vld [vmem:[%s1095 + $0x301] sm:$0xff]
    %v5404 = vld [vmem:[%s1095 + $0x309] sm:$0xff]
    %v5405 = vld [vmem:[%s1095 + $0x319] sm:$0xff]
    %v5406 = vld [vmem:[%s1095 + $0x321] sm:$0xff]
    %v5407 = vld [vmem:[%s1095 + $0x2] sm:$0xff]
    %v5408 = vld [vmem:[%s1095 + $0xa] sm:$0xff]
    %v5409 = vld [vmem:[%s1095 + $0x1a] sm:$0xff]
    %v5410 = vld [vmem:[%s1095 + $0x22] sm:$0xff]
    %v5411 = vld [vmem:[%s1095 + $0x32] sm:$0xff]
    %v5412 = vld [vmem:[%s1095 + $0x3a] sm:$0xff]
    %v5413 = vld [vmem:[%s1095 + $0x4a] sm:$0xff]
    %v5414 = vld [vmem:[%s1095 + $0x52] sm:$0xff]
    %v5415 = vld [vmem:[%s1095 + $0x62] sm:$0xff]
    %v5416 = vld [vmem:[%s1095 + $0x6a] sm:$0xff]
    %v5417 = vld [vmem:[%s1095 + $0x7a] sm:$0xff]
    %v5418 = vld [vmem:[%s1095 + $0x82] sm:$0xff]
    %v5419 = vld [vmem:[%s1095 + $0x92] sm:$0xff]
    %v5420 = vld [vmem:[%s1095 + $0x9a] sm:$0xff]
    %v5421 = vld [vmem:[%s1095 + $0xaa] sm:$0xff]
    %v5422 = vld [vmem:[%s1095 + $0xb2] sm:$0xff]
    %v5423 = vld [vmem:[%s1095 + $0xc2] sm:$0xff]
    %v5424 = vld [vmem:[%s1095 + $0xca] sm:$0xff]
    %v5425 = vld [vmem:[%s1095 + $0xda] sm:$0xff]
    %v5426 = vld [vmem:[%s1095 + $0xe2] sm:$0xff]
    %v5427 = vld [vmem:[%s1095 + $0xf2] sm:$0xff]
    %v5428 = vld [vmem:[%s1095 + $0xfa] sm:$0xff]
    %v5429 = vld [vmem:[%s1095 + $0x10a] sm:$0xff]
    %v5430 = vld [vmem:[%s1095 + $0x112] sm:$0xff]
    %v5431 = vld [vmem:[%s1095 + $0x122] sm:$0xff]
    %v5432 = vld [vmem:[%s1095 + $0x12a] sm:$0xff]
    %v5433 = vld [vmem:[%s1095 + $0x13a] sm:$0xff]
    %v5434 = vld [vmem:[%s1095 + $0x142] sm:$0xff]
    %v5435 = vld [vmem:[%s1095 + $0x152] sm:$0xff]
    %v5436 = vld [vmem:[%s1095 + $0x15a] sm:$0xff]
    %v5437 = vld [vmem:[%s1095 + $0x16a] sm:$0xff]
    %v5438 = vld [vmem:[%s1095 + $0x172] sm:$0xff]
    %v5439 = vld [vmem:[%s1095 + $0x1b2] sm:$0xff]
    %v5440 = vld [vmem:[%s1095 + $0x1ba] sm:$0xff]
    %v5441 = vld [vmem:[%s1095 + $0x1ca] sm:$0xff]
    %v5442 = vld [vmem:[%s1095 + $0x1d2] sm:$0xff]
    %v5443 = vld [vmem:[%s1095 + $0x1e2] sm:$0xff]
    %v5444 = vld [vmem:[%s1095 + $0x1ea] sm:$0xff]
    %v5445 = vld [vmem:[%s1095 + $0x1fa] sm:$0xff]
    %v5446 = vld [vmem:[%s1095 + $0x202] sm:$0xff]
    %v5447 = vld [vmem:[%s1095 + $0x212] sm:$0xff]
    %v5448 = vld [vmem:[%s1095 + $0x21a] sm:$0xff]
    %v5449 = vld [vmem:[%s1095 + $0x22a] sm:$0xff]
    %v5450 = vld [vmem:[%s1095 + $0x232] sm:$0xff]
    %v5451 = vld [vmem:[%s1095 + $0x242] sm:$0xff]
    %v5452 = vld [vmem:[%s1095 + $0x24a] sm:$0xff]
    %v5453 = vld [vmem:[%s1095 + $0x25a] sm:$0xff]
    %v5454 = vld [vmem:[%s1095 + $0x262] sm:$0xff]
    %v5455 = vld [vmem:[%s1095 + $0x272] sm:$0xff]
    %v5456 = vld [vmem:[%s1095 + $0x27a] sm:$0xff]
    %v5457 = vld [vmem:[%s1095 + $0x28a] sm:$0xff]
    %v5458 = vld [vmem:[%s1095 + $0x292] sm:$0xff]
    %v5459 = vld [vmem:[%s1095 + $0x2a2] sm:$0xff]
    %v5460 = vld [vmem:[%s1095 + $0x2aa] sm:$0xff]
    %v5461 = vld [vmem:[%s1095 + $0x2ba] sm:$0xff]
    %v5462 = vld [vmem:[%s1095 + $0x2c2] sm:$0xff]
    %v5463 = vld [vmem:[%s1095 + $0x2d2] sm:$0xff]
    %v5464 = vld [vmem:[%s1095 + $0x2da] sm:$0xff]
    %v5465 = vld [vmem:[%s1095 + $0x2ea] sm:$0xff]
    %v5466 = vld [vmem:[%s1095 + $0x2f2] sm:$0xff]
    %v5467 = vld [vmem:[%s1095 + $0x302] sm:$0xff]
    %v5468 = vld [vmem:[%s1095 + $0x30a] sm:$0xff]
    %v5469 = vld [vmem:[%s1095 + $0x31a] sm:$0xff]
    %v5470 = vld [vmem:[%s1095 + $0x322] sm:$0xff]
    %5535 = vrot.lane.b32.xlu0 %v4959, 8
    %v5536 = vpop.permute.xlu0 %5535
    %5537 = vrot.lane.b32.xlu0 %v4960, 8
    %v5538 = vpop.permute.xlu0 %5537
    %5539 = vrot.lane.b32.xlu0 %v4961, 8
    %v5540 = vpop.permute.xlu0 %5539
    %5541 = vrot.lane.b32.xlu0 %v4962, 8
    %v5542 = vpop.permute.xlu0 %5541
    %5543 = vrot.lane.b32.xlu0 %v4963, 8
    %v5544 = vpop.permute.xlu0 %5543
    %5545 = vrot.lane.b32.xlu0 %v4964, 8
    %v5546 = vpop.permute.xlu0 %5545
    %5547 = vrot.lane.b32.xlu0 %v4965, 8
    %v5548 = vpop.permute.xlu0 %5547
    %5549 = vrot.lane.b32.xlu0 %v4966, 8
    %v5550 = vpop.permute.xlu0 %5549
    %5551 = vrot.lane.b32.xlu0 %v4967, 8
    %v5552 = vpop.permute.xlu0 %5551
    %5553 = vrot.lane.b32.xlu0 %v4968, 8
    %v5554 = vpop.permute.xlu0 %5553
    %5555 = vrot.lane.b32.xlu0 %v4969, 8
    %v5556 = vpop.permute.xlu0 %5555
    %5557 = vrot.lane.b32.xlu0 %v4970, 8
    %v5558 = vpop.permute.xlu0 %5557
    %5559 = vrot.lane.b32.xlu0 %v4971, 8
    %v5560 = vpop.permute.xlu0 %5559
    %5561 = vrot.lane.b32.xlu0 %v4972, 8
    %v5562 = vpop.permute.xlu0 %5561
    %5563 = vrot.lane.b32.xlu0 %v4973, 8
    %v5564 = vpop.permute.xlu0 %5563
    %5565 = vrot.lane.b32.xlu0 %v4974, 8
    %v5566 = vpop.permute.xlu0 %5565
    %5567 = vrot.lane.b32.xlu0 %v4975, 8
    %v5568 = vpop.permute.xlu0 %5567
    %5569 = vrot.lane.b32.xlu0 %v4976, 8
    %v5570 = vpop.permute.xlu0 %5569
    %5571 = vrot.lane.b32.xlu0 %v4977, 8
    %v5572 = vpop.permute.xlu0 %5571
    %5573 = vrot.lane.b32.xlu0 %v4978, 8
    %v5574 = vpop.permute.xlu0 %5573
    %5575 = vrot.lane.b32.xlu0 %v4979, 8
    %v5576 = vpop.permute.xlu0 %5575
    %5577 = vrot.lane.b32.xlu0 %v4980, 8
    %v5578 = vpop.permute.xlu0 %5577
    %5579 = vrot.lane.b32.xlu0 %v4981, 8
    %v5580 = vpop.permute.xlu0 %5579
    %5581 = vrot.lane.b32.xlu0 %v4982, 8
    %v5582 = vpop.permute.xlu0 %5581
    %5583 = vrot.lane.b32.xlu0 %v4983, 8
    %v5584 = vpop.permute.xlu0 %5583
    %5585 = vrot.lane.b32.xlu0 %v4984, 8
    %v5586 = vpop.permute.xlu0 %5585
    %5587 = vrot.lane.b32.xlu0 %v4985, 8
    %v5588 = vpop.permute.xlu0 %5587
    %5589 = vrot.lane.b32.xlu0 %v4986, 8
    %v5590 = vpop.permute.xlu0 %5589
    %5591 = vrot.lane.b32.xlu0 %v4987, 8
    %v5592 = vpop.permute.xlu0 %5591
    %5593 = vrot.lane.b32.xlu0 %v4988, 8
    %v5594 = vpop.permute.xlu0 %5593
    %5595 = vrot.lane.b32.xlu0 %v4989, 8
    %v5596 = vpop.permute.xlu0 %5595
    %5597 = vrot.lane.b32.xlu0 %v4990, 8
    %v5598 = vpop.permute.xlu0 %5597
    %5599 = vrot.lane.b32.xlu0 %v4991, 8
    %v5600 = vpop.permute.xlu0 %5599
    %5601 = vrot.lane.b32.xlu0 %v4992, 8
    %v5602 = vpop.permute.xlu0 %5601
    %5603 = vrot.lane.b32.xlu0 %v4993, 8
    %v5604 = vpop.permute.xlu0 %5603
    %5605 = vrot.lane.b32.xlu0 %v4994, 8
    %v5606 = vpop.permute.xlu0 %5605
    %5607 = vrot.lane.b32.xlu0 %v4995, 8
    %v5608 = vpop.permute.xlu0 %5607
    %5609 = vrot.lane.b32.xlu0 %v4996, 8
    %v5610 = vpop.permute.xlu0 %5609
    %5611 = vrot.lane.b32.xlu0 %v4997, 8
    %v5612 = vpop.permute.xlu0 %5611
    %5613 = vrot.lane.b32.xlu0 %v4998, 8
    %v5614 = vpop.permute.xlu0 %5613
    %5615 = vrot.lane.b32.xlu0 %v4999, 8
    %v5616 = vpop.permute.xlu0 %5615
    %5617 = vrot.lane.b32.xlu0 %v5000, 8
    %v5618 = vpop.permute.xlu0 %5617
    %5619 = vrot.lane.b32.xlu0 %v5001, 8
    %v5620 = vpop.permute.xlu0 %5619
    %5621 = vrot.lane.b32.xlu0 %v5002, 8
    %v5622 = vpop.permute.xlu0 %5621
    %5623 = vrot.lane.b32.xlu0 %v5003, 8
    %v5624 = vpop.permute.xlu0 %5623
    %5625 = vrot.lane.b32.xlu0 %v5004, 8
    %v5626 = vpop.permute.xlu0 %5625
    %5627 = vrot.lane.b32.xlu0 %v5005, 8
    %v5628 = vpop.permute.xlu0 %5627
    %5629 = vrot.lane.b32.xlu0 %v5006, 8
    %v5630 = vpop.permute.xlu0 %5629
    %5631 = vrot.lane.b32.xlu0 %v5007, 8
    %v5632 = vpop.permute.xlu0 %5631
    %5633 = vrot.lane.b32.xlu0 %v5008, 8
    %v5634 = vpop.permute.xlu0 %5633
    %5635 = vrot.lane.b32.xlu0 %v5009, 8
    %v5636 = vpop.permute.xlu0 %5635
    %5637 = vrot.lane.b32.xlu0 %v5010, 8
    %v5638 = vpop.permute.xlu0 %5637
    %5639 = vrot.lane.b32.xlu0 %v5011, 8
    %v5640 = vpop.permute.xlu0 %5639
    %5641 = vrot.lane.b32.xlu0 %v5012, 8
    %v5642 = vpop.permute.xlu0 %5641
    %5643 = vrot.lane.b32.xlu0 %v5013, 8
    %v5644 = vpop.permute.xlu0 %5643
    %5645 = vrot.lane.b32.xlu0 %v5014, 8
    %v5646 = vpop.permute.xlu0 %5645
    %5647 = vrot.lane.b32.xlu0 %v5015, 8
    %v5648 = vpop.permute.xlu0 %5647
    %5649 = vrot.lane.b32.xlu0 %v5016, 8
    %v5650 = vpop.permute.xlu0 %5649
    %5651 = vrot.lane.b32.xlu0 %v5017, 8
    %v5652 = vpop.permute.xlu0 %5651
    %5653 = vrot.lane.b32.xlu0 %v5018, 8
    %v5654 = vpop.permute.xlu0 %5653
    %5655 = vrot.lane.b32.xlu0 %v5019, 8
    %v5656 = vpop.permute.xlu0 %5655
    %5657 = vrot.lane.b32.xlu0 %v5020, 8
    %v5658 = vpop.permute.xlu0 %5657
    %5659 = vrot.lane.b32.xlu0 %v5021, 8
    %v5660 = vpop.permute.xlu0 %5659
    %5661 = vrot.lane.b32.xlu0 %v5022, 8
    %v5662 = vpop.permute.xlu0 %5661
    %5791 = vrot.lane.b32.xlu0 %v5023, 16
    %v5792 = vpop.permute.xlu0 %5791
    %5793 = vrot.lane.b32.xlu0 %v5024, 16
    %v5794 = vpop.permute.xlu0 %5793
    %5795 = vrot.lane.b32.xlu0 %v5025, 16
    %v5796 = vpop.permute.xlu0 %5795
    %5797 = vrot.lane.b32.xlu0 %v5026, 16
    %v5798 = vpop.permute.xlu0 %5797
    %5799 = vrot.lane.b32.xlu0 %v5027, 16
    %v5800 = vpop.permute.xlu0 %5799
    %5801 = vrot.lane.b32.xlu0 %v5028, 16
    %v5802 = vpop.permute.xlu0 %5801
    %5803 = vrot.lane.b32.xlu0 %v5029, 16
    %v5804 = vpop.permute.xlu0 %5803
    %5805 = vrot.lane.b32.xlu0 %v5030, 16
    %v5806 = vpop.permute.xlu0 %5805
    %5807 = vrot.lane.b32.xlu0 %v5031, 16
    %v5808 = vpop.permute.xlu0 %5807
    %5809 = vrot.lane.b32.xlu0 %v5032, 16
    %v5810 = vpop.permute.xlu0 %5809
    %5811 = vrot.lane.b32.xlu0 %v5033, 16
    %v5812 = vpop.permute.xlu0 %5811
    %5813 = vrot.lane.b32.xlu0 %v5034, 16
    %v5814 = vpop.permute.xlu0 %5813
    %5815 = vrot.lane.b32.xlu0 %v5035, 16
    %v5816 = vpop.permute.xlu0 %5815
    %5817 = vrot.lane.b32.xlu0 %v5036, 16
    %v5818 = vpop.permute.xlu0 %5817
    %5819 = vrot.lane.b32.xlu0 %v5037, 16
    %v5820 = vpop.permute.xlu0 %5819
    %5821 = vrot.lane.b32.xlu0 %v5038, 16
    %v5822 = vpop.permute.xlu0 %5821
    %5823 = vrot.lane.b32.xlu0 %v5039, 16
    %v5824 = vpop.permute.xlu0 %5823
    %5825 = vrot.lane.b32.xlu0 %v5040, 16
    %v5826 = vpop.permute.xlu0 %5825
    %5827 = vrot.lane.b32.xlu0 %v5041, 16
    %v5828 = vpop.permute.xlu0 %5827
    %5829 = vrot.lane.b32.xlu0 %v5042, 16
    %v5830 = vpop.permute.xlu0 %5829
    %5831 = vrot.lane.b32.xlu0 %v5043, 16
    %v5832 = vpop.permute.xlu0 %5831
    %5833 = vrot.lane.b32.xlu0 %v5044, 16
    %v5834 = vpop.permute.xlu0 %5833
    %5835 = vrot.lane.b32.xlu0 %v5045, 16
    %v5836 = vpop.permute.xlu0 %5835
    %5837 = vrot.lane.b32.xlu0 %v5046, 16
    %v5838 = vpop.permute.xlu0 %5837
    %5839 = vrot.lane.b32.xlu0 %v5047, 16
    %v5840 = vpop.permute.xlu0 %5839
    %5841 = vrot.lane.b32.xlu0 %v5048, 16
    %v5842 = vpop.permute.xlu0 %5841
    %5843 = vrot.lane.b32.xlu0 %v5049, 16
    %v5844 = vpop.permute.xlu0 %5843
    %5845 = vrot.lane.b32.xlu0 %v5050, 16
    %v5846 = vpop.permute.xlu0 %5845
    %5847 = vrot.lane.b32.xlu0 %v5051, 16
    %v5848 = vpop.permute.xlu0 %5847
    %5849 = vrot.lane.b32.xlu0 %v5052, 16
    %v5850 = vpop.permute.xlu0 %5849
    %5851 = vrot.lane.b32.xlu0 %v5053, 16
    %v5852 = vpop.permute.xlu0 %5851
    %5853 = vrot.lane.b32.xlu0 %v5054, 16
    %v5854 = vpop.permute.xlu0 %5853
    %5855 = vrot.lane.b32.xlu0 %v5055, 16
    %v5856 = vpop.permute.xlu0 %5855
    %5857 = vrot.lane.b32.xlu0 %v5056, 16
    %v5858 = vpop.permute.xlu0 %5857
    %5859 = vrot.lane.b32.xlu0 %v5057, 16
    %v5860 = vpop.permute.xlu0 %5859
    %5861 = vrot.lane.b32.xlu0 %v5058, 16
    %v5862 = vpop.permute.xlu0 %5861
    %5863 = vrot.lane.b32.xlu0 %v5059, 16
    %v5864 = vpop.permute.xlu0 %5863
    %5865 = vrot.lane.b32.xlu0 %v5060, 16
    %v5866 = vpop.permute.xlu0 %5865
    %5867 = vrot.lane.b32.xlu0 %v5061, 16
    %v5868 = vpop.permute.xlu0 %5867
    %5869 = vrot.lane.b32.xlu0 %v5062, 16
    %v5870 = vpop.permute.xlu0 %5869
    %5871 = vrot.lane.b32.xlu0 %v5063, 16
    %v5872 = vpop.permute.xlu0 %5871
    %5873 = vrot.lane.b32.xlu0 %v5064, 16
    %v5874 = vpop.permute.xlu0 %5873
    %5875 = vrot.lane.b32.xlu0 %v5065, 16
    %v5876 = vpop.permute.xlu0 %5875
    %5877 = vrot.lane.b32.xlu0 %v5066, 16
    %v5878 = vpop.permute.xlu0 %5877
    %5879 = vrot.lane.b32.xlu0 %v5067, 16
    %v5880 = vpop.permute.xlu0 %5879
    %5881 = vrot.lane.b32.xlu0 %v5068, 16
    %v5882 = vpop.permute.xlu0 %5881
    %5883 = vrot.lane.b32.xlu0 %v5069, 16
    %v5884 = vpop.permute.xlu0 %5883
    %5885 = vrot.lane.b32.xlu0 %v5070, 16
    %v5886 = vpop.permute.xlu0 %5885
    %5887 = vrot.lane.b32.xlu0 %v5071, 16
    %v5888 = vpop.permute.xlu0 %5887
    %5889 = vrot.lane.b32.xlu0 %v5072, 16
    %v5890 = vpop.permute.xlu0 %5889
    %5891 = vrot.lane.b32.xlu0 %v5073, 16
    %v5892 = vpop.permute.xlu0 %5891
    %5893 = vrot.lane.b32.xlu0 %v5074, 16
    %v5894 = vpop.permute.xlu0 %5893
    %5895 = vrot.lane.b32.xlu0 %v5075, 16
    %v5896 = vpop.permute.xlu0 %5895
    %5897 = vrot.lane.b32.xlu0 %v5076, 16
    %v5898 = vpop.permute.xlu0 %5897
    %5899 = vrot.lane.b32.xlu0 %v5077, 16
    %v5900 = vpop.permute.xlu0 %5899
    %5901 = vrot.lane.b32.xlu0 %v5078, 16
    %v5902 = vpop.permute.xlu0 %5901
    %5903 = vrot.lane.b32.xlu0 %v5079, 16
    %v5904 = vpop.permute.xlu0 %5903
    %5905 = vrot.lane.b32.xlu0 %v5080, 16
    %v5906 = vpop.permute.xlu0 %5905
    %5907 = vrot.lane.b32.xlu0 %v5081, 16
    %v5908 = vpop.permute.xlu0 %5907
    %5909 = vrot.lane.b32.xlu0 %v5082, 16
    %v5910 = vpop.permute.xlu0 %5909
    %5911 = vrot.lane.b32.xlu0 %v5083, 16
    %v5912 = vpop.permute.xlu0 %5911
    %5913 = vrot.lane.b32.xlu0 %v5084, 16
    %v5914 = vpop.permute.xlu0 %5913
    %5915 = vrot.lane.b32.xlu0 %v5085, 16
    %v5916 = vpop.permute.xlu0 %5915
    %5917 = vrot.lane.b32.xlu0 %v5086, 16
    %v5918 = vpop.permute.xlu0 %5917
    %6047 = vrot.lane.b32.xlu0 %v5087, 24
    %v6048 = vpop.permute.xlu0 %6047
    %6049 = vrot.lane.b32.xlu0 %v5088, 24
    %v6050 = vpop.permute.xlu0 %6049
    %6051 = vrot.lane.b32.xlu0 %v5089, 24
    %v6052 = vpop.permute.xlu0 %6051
    %6053 = vrot.lane.b32.xlu0 %v5090, 24
    %v6054 = vpop.permute.xlu0 %6053
    %6055 = vrot.lane.b32.xlu0 %v5091, 24
    %v6056 = vpop.permute.xlu0 %6055
    %6057 = vrot.lane.b32.xlu0 %v5092, 24
    %v6058 = vpop.permute.xlu0 %6057
    %6059 = vrot.lane.b32.xlu0 %v5093, 24
    %v6060 = vpop.permute.xlu0 %6059
    %6061 = vrot.lane.b32.xlu0 %v5094, 24
    %v6062 = vpop.permute.xlu0 %6061
    %6063 = vrot.lane.b32.xlu0 %v5095, 24
    %v6064 = vpop.permute.xlu0 %6063
    %6065 = vrot.lane.b32.xlu0 %v5096, 24
    %v6066 = vpop.permute.xlu0 %6065
    %6067 = vrot.lane.b32.xlu0 %v5097, 24
    %v6068 = vpop.permute.xlu0 %6067
    %6069 = vrot.lane.b32.xlu0 %v5098, 24
    %v6070 = vpop.permute.xlu0 %6069
    %6071 = vrot.lane.b32.xlu0 %v5099, 24
    %v6072 = vpop.permute.xlu0 %6071
    %6073 = vrot.lane.b32.xlu0 %v5100, 24
    %v6074 = vpop.permute.xlu0 %6073
    %6075 = vrot.lane.b32.xlu0 %v5101, 24
    %v6076 = vpop.permute.xlu0 %6075
    %6077 = vrot.lane.b32.xlu0 %v5102, 24
    %v6078 = vpop.permute.xlu0 %6077
    %6079 = vrot.lane.b32.xlu0 %v5103, 24
    %v6080 = vpop.permute.xlu0 %6079
    %6081 = vrot.lane.b32.xlu0 %v5104, 24
    %v6082 = vpop.permute.xlu0 %6081
    %6083 = vrot.lane.b32.xlu0 %v5105, 24
    %v6084 = vpop.permute.xlu0 %6083
    %6085 = vrot.lane.b32.xlu0 %v5106, 24
    %v6086 = vpop.permute.xlu0 %6085
    %6087 = vrot.lane.b32.xlu0 %v5107, 24
    %v6088 = vpop.permute.xlu0 %6087
    %6089 = vrot.lane.b32.xlu0 %v5108, 24
    %v6090 = vpop.permute.xlu0 %6089
    %6091 = vrot.lane.b32.xlu0 %v5109, 24
    %v6092 = vpop.permute.xlu0 %6091
    %6093 = vrot.lane.b32.xlu0 %v5110, 24
    %v6094 = vpop.permute.xlu0 %6093
    %6095 = vrot.lane.b32.xlu0 %v5111, 24
    %v6096 = vpop.permute.xlu0 %6095
    %6097 = vrot.lane.b32.xlu0 %v5112, 24
    %v6098 = vpop.permute.xlu0 %6097
    %6099 = vrot.lane.b32.xlu0 %v5113, 24
    %v6100 = vpop.permute.xlu0 %6099
    %6101 = vrot.lane.b32.xlu0 %v5114, 24
    %v6102 = vpop.permute.xlu0 %6101
    %6103 = vrot.lane.b32.xlu0 %v5115, 24
    %v6104 = vpop.permute.xlu0 %6103
    %6105 = vrot.lane.b32.xlu0 %v5116, 24
    %v6106 = vpop.permute.xlu0 %6105
    %6107 = vrot.lane.b32.xlu0 %v5117, 24
    %v6108 = vpop.permute.xlu0 %6107
    %6109 = vrot.lane.b32.xlu0 %v5118, 24
    %v6110 = vpop.permute.xlu0 %6109
    %6111 = vrot.lane.b32.xlu0 %v5119, 24
    %v6112 = vpop.permute.xlu0 %6111
    %6113 = vrot.lane.b32.xlu0 %v5120, 24
    %v6114 = vpop.permute.xlu0 %6113
    %6115 = vrot.lane.b32.xlu0 %v5121, 24
    %v6116 = vpop.permute.xlu0 %6115
    %6117 = vrot.lane.b32.xlu0 %v5122, 24
    %v6118 = vpop.permute.xlu0 %6117
    %6119 = vrot.lane.b32.xlu0 %v5123, 24
    %v6120 = vpop.permute.xlu0 %6119
    %6121 = vrot.lane.b32.xlu0 %v5124, 24
    %v6122 = vpop.permute.xlu0 %6121
    %6123 = vrot.lane.b32.xlu0 %v5125, 24
    %v6124 = vpop.permute.xlu0 %6123
    %6125 = vrot.lane.b32.xlu0 %v5126, 24
    %v6126 = vpop.permute.xlu0 %6125
    %6127 = vrot.lane.b32.xlu0 %v5127, 24
    %v6128 = vpop.permute.xlu0 %6127
    %6129 = vrot.lane.b32.xlu0 %v5128, 24
    %v6130 = vpop.permute.xlu0 %6129
    %6131 = vrot.lane.b32.xlu0 %v5129, 24
    %v6132 = vpop.permute.xlu0 %6131
    %6133 = vrot.lane.b32.xlu0 %v5130, 24
    %v6134 = vpop.permute.xlu0 %6133
    %6135 = vrot.lane.b32.xlu0 %v5131, 24
    %v6136 = vpop.permute.xlu0 %6135
    %6137 = vrot.lane.b32.xlu0 %v5132, 24
    %v6138 = vpop.permute.xlu0 %6137
    %6139 = vrot.lane.b32.xlu0 %v5133, 24
    %v6140 = vpop.permute.xlu0 %6139
    %6141 = vrot.lane.b32.xlu0 %v5134, 24
    %v6142 = vpop.permute.xlu0 %6141
    %6143 = vrot.lane.b32.xlu0 %v5135, 24
    %v6144 = vpop.permute.xlu0 %6143
    %6145 = vrot.lane.b32.xlu0 %v5136, 24
    %v6146 = vpop.permute.xlu0 %6145
    %6147 = vrot.lane.b32.xlu0 %v5137, 24
    %v6148 = vpop.permute.xlu0 %6147
    %6149 = vrot.lane.b32.xlu0 %v5138, 24
    %v6150 = vpop.permute.xlu0 %6149
    %6151 = vrot.lane.b32.xlu0 %v5139, 24
    %v6152 = vpop.permute.xlu0 %6151
    %6153 = vrot.lane.b32.xlu0 %v5140, 24
    %v6154 = vpop.permute.xlu0 %6153
    %6155 = vrot.lane.b32.xlu0 %v5141, 24
    %v6156 = vpop.permute.xlu0 %6155
    %6157 = vrot.lane.b32.xlu0 %v5142, 24
    %v6158 = vpop.permute.xlu0 %6157
    %6159 = vrot.lane.b32.xlu0 %v5143, 24
    %v6160 = vpop.permute.xlu0 %6159
    %6161 = vrot.lane.b32.xlu0 %v5144, 24
    %v6162 = vpop.permute.xlu0 %6161
    %6163 = vrot.lane.b32.xlu0 %v5145, 24
    %v6164 = vpop.permute.xlu0 %6163
    %6165 = vrot.lane.b32.xlu0 %v5146, 24
    %v6166 = vpop.permute.xlu0 %6165
    %6167 = vrot.lane.b32.xlu0 %v5147, 24
    %v6168 = vpop.permute.xlu0 %6167
    %6169 = vrot.lane.b32.xlu0 %v5148, 24
    %v6170 = vpop.permute.xlu0 %6169
    %6171 = vrot.lane.b32.xlu0 %v5149, 24
    %v6172 = vpop.permute.xlu0 %6171
    %6173 = vrot.lane.b32.xlu0 %v5150, 24
    %v6174 = vpop.permute.xlu0 %6173
    %6303 = vrot.lane.b32.xlu0 %v5151, 32
    %v6304 = vpop.permute.xlu0 %6303
    %6305 = vrot.lane.b32.xlu0 %v5152, 32
    %v6306 = vpop.permute.xlu0 %6305
    %6307 = vrot.lane.b32.xlu0 %v5153, 32
    %v6308 = vpop.permute.xlu0 %6307
    %6309 = vrot.lane.b32.xlu0 %v5154, 32
    %v6310 = vpop.permute.xlu0 %6309
    %6311 = vrot.lane.b32.xlu0 %v5155, 32
    %v6312 = vpop.permute.xlu0 %6311
    %6313 = vrot.lane.b32.xlu0 %v5156, 32
    %v6314 = vpop.permute.xlu0 %6313
    %6315 = vrot.lane.b32.xlu0 %v5157, 32
    %v6316 = vpop.permute.xlu0 %6315
    %6317 = vrot.lane.b32.xlu0 %v5158, 32
    %v6318 = vpop.permute.xlu0 %6317
    %6319 = vrot.lane.b32.xlu0 %v5159, 32
    %v6320 = vpop.permute.xlu0 %6319
    %6321 = vrot.lane.b32.xlu0 %v5160, 32
    %v6322 = vpop.permute.xlu0 %6321
    %6323 = vrot.lane.b32.xlu0 %v5161, 32
    %v6324 = vpop.permute.xlu0 %6323
    %6325 = vrot.lane.b32.xlu0 %v5162, 32
    %v6326 = vpop.permute.xlu0 %6325
    %6327 = vrot.lane.b32.xlu0 %v5163, 32
    %v6328 = vpop.permute.xlu0 %6327
    %6329 = vrot.lane.b32.xlu0 %v5164, 32
    %v6330 = vpop.permute.xlu0 %6329
    %6331 = vrot.lane.b32.xlu0 %v5165, 32
    %v6332 = vpop.permute.xlu0 %6331
    %6333 = vrot.lane.b32.xlu0 %v5166, 32
    %v6334 = vpop.permute.xlu0 %6333
    %6335 = vrot.lane.b32.xlu0 %v5167, 32
    %v6336 = vpop.permute.xlu0 %6335
    %6337 = vrot.lane.b32.xlu0 %v5168, 32
    %v6338 = vpop.permute.xlu0 %6337
    %6339 = vrot.lane.b32.xlu0 %v5169, 32
    %v6340 = vpop.permute.xlu0 %6339
    %6341 = vrot.lane.b32.xlu0 %v5170, 32
    %v6342 = vpop.permute.xlu0 %6341
    %6343 = vrot.lane.b32.xlu0 %v5171, 32
    %v6344 = vpop.permute.xlu0 %6343
    %6345 = vrot.lane.b32.xlu0 %v5172, 32
    %v6346 = vpop.permute.xlu0 %6345
    %6347 = vrot.lane.b32.xlu0 %v5173, 32
    %v6348 = vpop.permute.xlu0 %6347
    %6349 = vrot.lane.b32.xlu0 %v5174, 32
    %v6350 = vpop.permute.xlu0 %6349
    %6351 = vrot.lane.b32.xlu0 %v5175, 32
    %v6352 = vpop.permute.xlu0 %6351
    %6353 = vrot.lane.b32.xlu0 %v5176, 32
    %v6354 = vpop.permute.xlu0 %6353
    %6355 = vrot.lane.b32.xlu0 %v5177, 32
    %v6356 = vpop.permute.xlu0 %6355
    %6357 = vrot.lane.b32.xlu0 %v5178, 32
    %v6358 = vpop.permute.xlu0 %6357
    %6359 = vrot.lane.b32.xlu0 %v5179, 32
    %v6360 = vpop.permute.xlu0 %6359
    %6361 = vrot.lane.b32.xlu0 %v5180, 32
    %v6362 = vpop.permute.xlu0 %6361
    %6363 = vrot.lane.b32.xlu0 %v5181, 32
    %v6364 = vpop.permute.xlu0 %6363
    %6365 = vrot.lane.b32.xlu0 %v5182, 32
    %v6366 = vpop.permute.xlu0 %6365
    %6367 = vrot.lane.b32.xlu0 %v5183, 32
    %v6368 = vpop.permute.xlu0 %6367
    %6369 = vrot.lane.b32.xlu0 %v5184, 32
    %v6370 = vpop.permute.xlu0 %6369
    %6371 = vrot.lane.b32.xlu0 %v5185, 32
    %v6372 = vpop.permute.xlu0 %6371
    %6373 = vrot.lane.b32.xlu0 %v5186, 32
    %v6374 = vpop.permute.xlu0 %6373
    %6375 = vrot.lane.b32.xlu0 %v5187, 32
    %v6376 = vpop.permute.xlu0 %6375
    %6377 = vrot.lane.b32.xlu0 %v5188, 32
    %v6378 = vpop.permute.xlu0 %6377
    %6379 = vrot.lane.b32.xlu0 %v5189, 32
    %v6380 = vpop.permute.xlu0 %6379
    %6381 = vrot.lane.b32.xlu0 %v5190, 32
    %v6382 = vpop.permute.xlu0 %6381
    %6383 = vrot.lane.b32.xlu0 %v5191, 32
    %v6384 = vpop.permute.xlu0 %6383
    %6385 = vrot.lane.b32.xlu0 %v5192, 32
    %v6386 = vpop.permute.xlu0 %6385
    %6387 = vrot.lane.b32.xlu0 %v5193, 32
    %v6388 = vpop.permute.xlu0 %6387
    %6389 = vrot.lane.b32.xlu0 %v5194, 32
    %v6390 = vpop.permute.xlu0 %6389
    %6391 = vrot.lane.b32.xlu0 %v5195, 32
    %v6392 = vpop.permute.xlu0 %6391
    %6393 = vrot.lane.b32.xlu0 %v5196, 32
    %v6394 = vpop.permute.xlu0 %6393
    %6395 = vrot.lane.b32.xlu0 %v5197, 32
    %v6396 = vpop.permute.xlu0 %6395
    %6397 = vrot.lane.b32.xlu0 %v5198, 32
    %v6398 = vpop.permute.xlu0 %6397
    %6399 = vrot.lane.b32.xlu0 %v5199, 32
    %v6400 = vpop.permute.xlu0 %6399
    %6401 = vrot.lane.b32.xlu0 %v5200, 32
    %v6402 = vpop.permute.xlu0 %6401
    %6403 = vrot.lane.b32.xlu0 %v5201, 32
    %v6404 = vpop.permute.xlu0 %6403
    %6405 = vrot.lane.b32.xlu0 %v5202, 32
    %v6406 = vpop.permute.xlu0 %6405
    %6407 = vrot.lane.b32.xlu0 %v5203, 32
    %v6408 = vpop.permute.xlu0 %6407
    %6409 = vrot.lane.b32.xlu0 %v5204, 32
    %v6410 = vpop.permute.xlu0 %6409
    %6411 = vrot.lane.b32.xlu0 %v5205, 32
    %v6412 = vpop.permute.xlu0 %6411
    %6413 = vrot.lane.b32.xlu0 %v5206, 32
    %v6414 = vpop.permute.xlu0 %6413
    %6415 = vrot.lane.b32.xlu0 %v5207, 32
    %v6416 = vpop.permute.xlu0 %6415
    %6417 = vrot.lane.b32.xlu0 %v5208, 32
    %v6418 = vpop.permute.xlu0 %6417
    %6419 = vrot.lane.b32.xlu0 %v5209, 32
    %v6420 = vpop.permute.xlu0 %6419
    %6421 = vrot.lane.b32.xlu0 %v5210, 32
    %v6422 = vpop.permute.xlu0 %6421
    %6423 = vrot.lane.b32.xlu0 %v5211, 32
    %v6424 = vpop.permute.xlu0 %6423
    %6425 = vrot.lane.b32.xlu0 %v5212, 32
    %v6426 = vpop.permute.xlu0 %6425
    %6427 = vrot.lane.b32.xlu0 %v5213, 32
    %v6428 = vpop.permute.xlu0 %6427
    %6429 = vrot.lane.b32.xlu0 %v5214, 32
    %v6430 = vpop.permute.xlu0 %6429
    %6559 = vrot.lane.b32.xlu0 %v5215, 40
    %v6560 = vpop.permute.xlu0 %6559
    %6561 = vrot.lane.b32.xlu0 %v5216, 40
    %v6562 = vpop.permute.xlu0 %6561
    %6563 = vrot.lane.b32.xlu0 %v5217, 40
    %v6564 = vpop.permute.xlu0 %6563
    %6565 = vrot.lane.b32.xlu0 %v5218, 40
    %v6566 = vpop.permute.xlu0 %6565
    %6567 = vrot.lane.b32.xlu0 %v5219, 40
    %v6568 = vpop.permute.xlu0 %6567
    %6569 = vrot.lane.b32.xlu0 %v5220, 40
    %v6570 = vpop.permute.xlu0 %6569
    %6571 = vrot.lane.b32.xlu0 %v5221, 40
    %v6572 = vpop.permute.xlu0 %6571
    %6573 = vrot.lane.b32.xlu0 %v5222, 40
    %v6574 = vpop.permute.xlu0 %6573
    %6575 = vrot.lane.b32.xlu0 %v5223, 40
    %v6576 = vpop.permute.xlu0 %6575
    %6577 = vrot.lane.b32.xlu0 %v5224, 40
    %v6578 = vpop.permute.xlu0 %6577
    %6579 = vrot.lane.b32.xlu0 %v5225, 40
    %v6580 = vpop.permute.xlu0 %6579
    %6581 = vrot.lane.b32.xlu0 %v5226, 40
    %v6582 = vpop.permute.xlu0 %6581
    %6583 = vrot.lane.b32.xlu0 %v5227, 40
    %v6584 = vpop.permute.xlu0 %6583
    %6585 = vrot.lane.b32.xlu0 %v5228, 40
    %v6586 = vpop.permute.xlu0 %6585
    %6587 = vrot.lane.b32.xlu0 %v5229, 40
    %v6588 = vpop.permute.xlu0 %6587
    %6589 = vrot.lane.b32.xlu0 %v5230, 40
    %v6590 = vpop.permute.xlu0 %6589
    %6591 = vrot.lane.b32.xlu0 %v5231, 40
    %v6592 = vpop.permute.xlu0 %6591
    %6593 = vrot.lane.b32.xlu0 %v5232, 40
    %v6594 = vpop.permute.xlu0 %6593
    %6595 = vrot.lane.b32.xlu0 %v5233, 40
    %v6596 = vpop.permute.xlu0 %6595
    %6597 = vrot.lane.b32.xlu0 %v5234, 40
    %v6598 = vpop.permute.xlu0 %6597
    %6599 = vrot.lane.b32.xlu0 %v5235, 40
    %v6600 = vpop.permute.xlu0 %6599
    %6601 = vrot.lane.b32.xlu0 %v5236, 40
    %v6602 = vpop.permute.xlu0 %6601
    %6603 = vrot.lane.b32.xlu0 %v5237, 40
    %v6604 = vpop.permute.xlu0 %6603
    %6605 = vrot.lane.b32.xlu0 %v5238, 40
    %v6606 = vpop.permute.xlu0 %6605
    %6607 = vrot.lane.b32.xlu0 %v5239, 40
    %v6608 = vpop.permute.xlu0 %6607
    %6609 = vrot.lane.b32.xlu0 %v5240, 40
    %v6610 = vpop.permute.xlu0 %6609
    %6611 = vrot.lane.b32.xlu0 %v5241, 40
    %v6612 = vpop.permute.xlu0 %6611
    %6613 = vrot.lane.b32.xlu0 %v5242, 40
    %v6614 = vpop.permute.xlu0 %6613
    %6615 = vrot.lane.b32.xlu0 %v5243, 40
    %v6616 = vpop.permute.xlu0 %6615
    %6617 = vrot.lane.b32.xlu0 %v5244, 40
    %v6618 = vpop.permute.xlu0 %6617
    %6619 = vrot.lane.b32.xlu0 %v5245, 40
    %v6620 = vpop.permute.xlu0 %6619
    %6621 = vrot.lane.b32.xlu0 %v5246, 40
    %v6622 = vpop.permute.xlu0 %6621
    %6623 = vrot.lane.b32.xlu0 %v5247, 40
    %v6624 = vpop.permute.xlu0 %6623
    %6625 = vrot.lane.b32.xlu0 %v5248, 40
    %v6626 = vpop.permute.xlu0 %6625
    %6627 = vrot.lane.b32.xlu0 %v5249, 40
    %v6628 = vpop.permute.xlu0 %6627
    %6629 = vrot.lane.b32.xlu0 %v5250, 40
    %v6630 = vpop.permute.xlu0 %6629
    %6631 = vrot.lane.b32.xlu0 %v5251, 40
    %v6632 = vpop.permute.xlu0 %6631
    %6633 = vrot.lane.b32.xlu0 %v5252, 40
    %v6634 = vpop.permute.xlu0 %6633
    %6635 = vrot.lane.b32.xlu0 %v5253, 40
    %v6636 = vpop.permute.xlu0 %6635
    %6637 = vrot.lane.b32.xlu0 %v5254, 40
    %v6638 = vpop.permute.xlu0 %6637
    %6639 = vrot.lane.b32.xlu0 %v5255, 40
    %v6640 = vpop.permute.xlu0 %6639
    %6641 = vrot.lane.b32.xlu0 %v5256, 40
    %v6642 = vpop.permute.xlu0 %6641
    %6643 = vrot.lane.b32.xlu0 %v5257, 40
    %v6644 = vpop.permute.xlu0 %6643
    %6645 = vrot.lane.b32.xlu0 %v5258, 40
    %v6646 = vpop.permute.xlu0 %6645
    %6647 = vrot.lane.b32.xlu0 %v5259, 40
    %v6648 = vpop.permute.xlu0 %6647
    %6649 = vrot.lane.b32.xlu0 %v5260, 40
    %v6650 = vpop.permute.xlu0 %6649
    %6651 = vrot.lane.b32.xlu0 %v5261, 40
    %v6652 = vpop.permute.xlu0 %6651
    %6653 = vrot.lane.b32.xlu0 %v5262, 40
    %v6654 = vpop.permute.xlu0 %6653
    %6655 = vrot.lane.b32.xlu0 %v5263, 40
    %v6656 = vpop.permute.xlu0 %6655
    %6657 = vrot.lane.b32.xlu0 %v5264, 40
    %v6658 = vpop.permute.xlu0 %6657
    %6659 = vrot.lane.b32.xlu0 %v5265, 40
    %v6660 = vpop.permute.xlu0 %6659
    %6661 = vrot.lane.b32.xlu0 %v5266, 40
    %v6662 = vpop.permute.xlu0 %6661
    %6663 = vrot.lane.b32.xlu0 %v5267, 40
    %v6664 = vpop.permute.xlu0 %6663
    %6665 = vrot.lane.b32.xlu0 %v5268, 40
    %v6666 = vpop.permute.xlu0 %6665
    %6667 = vrot.lane.b32.xlu0 %v5269, 40
    %v6668 = vpop.permute.xlu0 %6667
    %6669 = vrot.lane.b32.xlu0 %v5270, 40
    %v6670 = vpop.permute.xlu0 %6669
    %6671 = vrot.lane.b32.xlu0 %v5271, 40
    %v6672 = vpop.permute.xlu0 %6671
    %6673 = vrot.lane.b32.xlu0 %v5272, 40
    %v6674 = vpop.permute.xlu0 %6673
    %6675 = vrot.lane.b32.xlu0 %v5273, 40
    %v6676 = vpop.permute.xlu0 %6675
    %6677 = vrot.lane.b32.xlu0 %v5274, 40
    %v6678 = vpop.permute.xlu0 %6677
    %6679 = vrot.lane.b32.xlu0 %v5275, 40
    %v6680 = vpop.permute.xlu0 %6679
    %6681 = vrot.lane.b32.xlu0 %v5276, 40
    %v6682 = vpop.permute.xlu0 %6681
    %6683 = vrot.lane.b32.xlu0 %v5277, 40
    %v6684 = vpop.permute.xlu0 %6683
    %6685 = vrot.lane.b32.xlu0 %v5278, 40
    %v6686 = vpop.permute.xlu0 %6685
    %6815 = vrot.lane.b32.xlu0 %v5279, 48
    %v6816 = vpop.permute.xlu0 %6815
    %6817 = vrot.lane.b32.xlu0 %v5280, 48
    %v6818 = vpop.permute.xlu0 %6817
    %6819 = vrot.lane.b32.xlu0 %v5281, 48
    %v6820 = vpop.permute.xlu0 %6819
    %6821 = vrot.lane.b32.xlu0 %v5282, 48
    %v6822 = vpop.permute.xlu0 %6821
    %6823 = vrot.lane.b32.xlu0 %v5283, 48
    %v6824 = vpop.permute.xlu0 %6823
    %6825 = vrot.lane.b32.xlu0 %v5284, 48
    %v6826 = vpop.permute.xlu0 %6825
    %6827 = vrot.lane.b32.xlu0 %v5285, 48
    %v6828 = vpop.permute.xlu0 %6827
    %6829 = vrot.lane.b32.xlu0 %v5286, 48
    %v6830 = vpop.permute.xlu0 %6829
    %6831 = vrot.lane.b32.xlu0 %v5287, 48
    %v6832 = vpop.permute.xlu0 %6831
    %6833 = vrot.lane.b32.xlu0 %v5288, 48
    %v6834 = vpop.permute.xlu0 %6833
    %6835 = vrot.lane.b32.xlu0 %v5289, 48
    %v6836 = vpop.permute.xlu0 %6835
    %6837 = vrot.lane.b32.xlu0 %v5290, 48
    %v6838 = vpop.permute.xlu0 %6837
    %6839 = vrot.lane.b32.xlu0 %v5291, 48
    %v6840 = vpop.permute.xlu0 %6839
    %6841 = vrot.lane.b32.xlu0 %v5292, 48
    %v6842 = vpop.permute.xlu0 %6841
    %6843 = vrot.lane.b32.xlu0 %v5293, 48
    %v6844 = vpop.permute.xlu0 %6843
    %6845 = vrot.lane.b32.xlu0 %v5294, 48
    %v6846 = vpop.permute.xlu0 %6845
    %6847 = vrot.lane.b32.xlu0 %v5295, 48
    %v6848 = vpop.permute.xlu0 %6847
    %6849 = vrot.lane.b32.xlu0 %v5296, 48
    %v6850 = vpop.permute.xlu0 %6849
    %6851 = vrot.lane.b32.xlu0 %v5297, 48
    %v6852 = vpop.permute.xlu0 %6851
    %6853 = vrot.lane.b32.xlu0 %v5298, 48
    %v6854 = vpop.permute.xlu0 %6853
    %6855 = vrot.lane.b32.xlu0 %v5299, 48
    %v6856 = vpop.permute.xlu0 %6855
    %6857 = vrot.lane.b32.xlu0 %v5300, 48
    %v6858 = vpop.permute.xlu0 %6857
    %6859 = vrot.lane.b32.xlu0 %v5301, 48
    %v6860 = vpop.permute.xlu0 %6859
    %6861 = vrot.lane.b32.xlu0 %v5302, 48
    %v6862 = vpop.permute.xlu0 %6861
    %6863 = vrot.lane.b32.xlu0 %v5303, 48
    %v6864 = vpop.permute.xlu0 %6863
    %6865 = vrot.lane.b32.xlu0 %v5304, 48
    %v6866 = vpop.permute.xlu0 %6865
    %6867 = vrot.lane.b32.xlu0 %v5305, 48
    %v6868 = vpop.permute.xlu0 %6867
    %6869 = vrot.lane.b32.xlu0 %v5306, 48
    %v6870 = vpop.permute.xlu0 %6869
    %6871 = vrot.lane.b32.xlu0 %v5307, 48
    %v6872 = vpop.permute.xlu0 %6871
    %6873 = vrot.lane.b32.xlu0 %v5308, 48
    %v6874 = vpop.permute.xlu0 %6873
    %6875 = vrot.lane.b32.xlu0 %v5309, 48
    %v6876 = vpop.permute.xlu0 %6875
    %6877 = vrot.lane.b32.xlu0 %v5310, 48
    %v6878 = vpop.permute.xlu0 %6877
    %6879 = vrot.lane.b32.xlu0 %v5311, 48
    %v6880 = vpop.permute.xlu0 %6879
    %6881 = vrot.lane.b32.xlu0 %v5312, 48
    %v6882 = vpop.permute.xlu0 %6881
    %6883 = vrot.lane.b32.xlu0 %v5313, 48
    %v6884 = vpop.permute.xlu0 %6883
    %6885 = vrot.lane.b32.xlu0 %v5314, 48
    %v6886 = vpop.permute.xlu0 %6885
    %6887 = vrot.lane.b32.xlu0 %v5315, 48
    %v6888 = vpop.permute.xlu0 %6887
    %6889 = vrot.lane.b32.xlu0 %v5316, 48
    %v6890 = vpop.permute.xlu0 %6889
    %6891 = vrot.lane.b32.xlu0 %v5317, 48
    %v6892 = vpop.permute.xlu0 %6891
    %6893 = vrot.lane.b32.xlu0 %v5318, 48
    %v6894 = vpop.permute.xlu0 %6893
    %6895 = vrot.lane.b32.xlu0 %v5319, 48
    %v6896 = vpop.permute.xlu0 %6895
    %6897 = vrot.lane.b32.xlu0 %v5320, 48
    %v6898 = vpop.permute.xlu0 %6897
    %6899 = vrot.lane.b32.xlu0 %v5321, 48
    %v6900 = vpop.permute.xlu0 %6899
    %6901 = vrot.lane.b32.xlu0 %v5322, 48
    %v6902 = vpop.permute.xlu0 %6901
    %6903 = vrot.lane.b32.xlu0 %v5323, 48
    %v6904 = vpop.permute.xlu0 %6903
    %6905 = vrot.lane.b32.xlu0 %v5324, 48
    %v6906 = vpop.permute.xlu0 %6905
    %6907 = vrot.lane.b32.xlu0 %v5325, 48
    %v6908 = vpop.permute.xlu0 %6907
    %6909 = vrot.lane.b32.xlu0 %v5326, 48
    %v6910 = vpop.permute.xlu0 %6909
    %6911 = vrot.lane.b32.xlu0 %v5327, 48
    %v6912 = vpop.permute.xlu0 %6911
    %6913 = vrot.lane.b32.xlu0 %v5328, 48
    %v6914 = vpop.permute.xlu0 %6913
    %6915 = vrot.lane.b32.xlu0 %v5329, 48
    %v6916 = vpop.permute.xlu0 %6915
    %6917 = vrot.lane.b32.xlu0 %v5330, 48
    %v6918 = vpop.permute.xlu0 %6917
    %6919 = vrot.lane.b32.xlu0 %v5331, 48
    %v6920 = vpop.permute.xlu0 %6919
    %6921 = vrot.lane.b32.xlu0 %v5332, 48
    %v6922 = vpop.permute.xlu0 %6921
    %6923 = vrot.lane.b32.xlu0 %v5333, 48
    %v6924 = vpop.permute.xlu0 %6923
    %6925 = vrot.lane.b32.xlu0 %v5334, 48
    %v6926 = vpop.permute.xlu0 %6925
    %6927 = vrot.lane.b32.xlu0 %v5335, 48
    %v6928 = vpop.permute.xlu0 %6927
    %6929 = vrot.lane.b32.xlu0 %v5336, 48
    %v6930 = vpop.permute.xlu0 %6929
    %6931 = vrot.lane.b32.xlu0 %v5337, 48
    %v6932 = vpop.permute.xlu0 %6931
    %6933 = vrot.lane.b32.xlu0 %v5338, 48
    %v6934 = vpop.permute.xlu0 %6933
    %6935 = vrot.lane.b32.xlu0 %v5339, 48
    %v6936 = vpop.permute.xlu0 %6935
    %6937 = vrot.lane.b32.xlu0 %v5340, 48
    %v6938 = vpop.permute.xlu0 %6937
    %6939 = vrot.lane.b32.xlu0 %v5341, 48
    %v6940 = vpop.permute.xlu0 %6939
    %6941 = vrot.lane.b32.xlu0 %v5342, 48
    %v6942 = vpop.permute.xlu0 %6941
    %7071 = vrot.lane.b32.xlu0 %v5343, 56
    %v7072 = vpop.permute.xlu0 %7071
    %7073 = vrot.lane.b32.xlu0 %v5344, 56
    %v7074 = vpop.permute.xlu0 %7073
    %7075 = vrot.lane.b32.xlu0 %v5345, 56
    %v7076 = vpop.permute.xlu0 %7075
    %7077 = vrot.lane.b32.xlu0 %v5346, 56
    %v7078 = vpop.permute.xlu0 %7077
    %7079 = vrot.lane.b32.xlu0 %v5347, 56
    %v7080 = vpop.permute.xlu0 %7079
    %7081 = vrot.lane.b32.xlu0 %v5348, 56
    %v7082 = vpop.permute.xlu0 %7081
    %7083 = vrot.lane.b32.xlu0 %v5349, 56
    %v7084 = vpop.permute.xlu0 %7083
    %7085 = vrot.lane.b32.xlu0 %v5350, 56
    %v7086 = vpop.permute.xlu0 %7085
    %7087 = vrot.lane.b32.xlu0 %v5351, 56
    %v7088 = vpop.permute.xlu0 %7087
    %7089 = vrot.lane.b32.xlu0 %v5352, 56
    %v7090 = vpop.permute.xlu0 %7089
    %7091 = vrot.lane.b32.xlu0 %v5353, 56
    %v7092 = vpop.permute.xlu0 %7091
    %7093 = vrot.lane.b32.xlu0 %v5354, 56
    %v7094 = vpop.permute.xlu0 %7093
    %7095 = vrot.lane.b32.xlu0 %v5355, 56
    %v7096 = vpop.permute.xlu0 %7095
    %7097 = vrot.lane.b32.xlu0 %v5356, 56
    %v7098 = vpop.permute.xlu0 %7097
    %7099 = vrot.lane.b32.xlu0 %v5357, 56
    %v7100 = vpop.permute.xlu0 %7099
    %7101 = vrot.lane.b32.xlu0 %v5358, 56
    %v7102 = vpop.permute.xlu0 %7101
    %7103 = vrot.lane.b32.xlu0 %v5359, 56
    %v7104 = vpop.permute.xlu0 %7103
    %7105 = vrot.lane.b32.xlu0 %v5360, 56
    %v7106 = vpop.permute.xlu0 %7105
    %7107 = vrot.lane.b32.xlu0 %v5361, 56
    %v7108 = vpop.permute.xlu0 %7107
    %7109 = vrot.lane.b32.xlu0 %v5362, 56
    %v7110 = vpop.permute.xlu0 %7109
    %7111 = vrot.lane.b32.xlu0 %v5363, 56
    %v7112 = vpop.permute.xlu0 %7111
    %7113 = vrot.lane.b32.xlu0 %v5364, 56
    %v7114 = vpop.permute.xlu0 %7113
    %7115 = vrot.lane.b32.xlu0 %v5365, 56
    %v7116 = vpop.permute.xlu0 %7115
    %7117 = vrot.lane.b32.xlu0 %v5366, 56
    %v7118 = vpop.permute.xlu0 %7117
    %7119 = vrot.lane.b32.xlu0 %v5367, 56
    %v7120 = vpop.permute.xlu0 %7119
    %7121 = vrot.lane.b32.xlu0 %v5368, 56
    %v7122 = vpop.permute.xlu0 %7121
    %7123 = vrot.lane.b32.xlu0 %v5369, 56
    %v7124 = vpop.permute.xlu0 %7123
    %7125 = vrot.lane.b32.xlu0 %v5370, 56
    %v7126 = vpop.permute.xlu0 %7125
    %7127 = vrot.lane.b32.xlu0 %v5371, 56
    %v7128 = vpop.permute.xlu0 %7127
    %7129 = vrot.lane.b32.xlu0 %v5372, 56
    %v7130 = vpop.permute.xlu0 %7129
    %7131 = vrot.lane.b32.xlu0 %v5373, 56
    %v7132 = vpop.permute.xlu0 %7131
    %7133 = vrot.lane.b32.xlu0 %v5374, 56
    %v7134 = vpop.permute.xlu0 %7133
    %7135 = vrot.lane.b32.xlu0 %v5375, 56
    %v7136 = vpop.permute.xlu0 %7135
    %7137 = vrot.lane.b32.xlu0 %v5376, 56
    %v7138 = vpop.permute.xlu0 %7137
    %7139 = vrot.lane.b32.xlu0 %v5377, 56
    %v7140 = vpop.permute.xlu0 %7139
    %7141 = vrot.lane.b32.xlu0 %v5378, 56
    %v7142 = vpop.permute.xlu0 %7141
    %7143 = vrot.lane.b32.xlu0 %v5379, 56
    %v7144 = vpop.permute.xlu0 %7143
    %7145 = vrot.lane.b32.xlu0 %v5380, 56
    %v7146 = vpop.permute.xlu0 %7145
    %7147 = vrot.lane.b32.xlu0 %v5381, 56
    %v7148 = vpop.permute.xlu0 %7147
    %7149 = vrot.lane.b32.xlu0 %v5382, 56
    %v7150 = vpop.permute.xlu0 %7149
    %7151 = vrot.lane.b32.xlu0 %v5383, 56
    %v7152 = vpop.permute.xlu0 %7151
    %7153 = vrot.lane.b32.xlu0 %v5384, 56
    %v7154 = vpop.permute.xlu0 %7153
    %7155 = vrot.lane.b32.xlu0 %v5385, 56
    %v7156 = vpop.permute.xlu0 %7155
    %7157 = vrot.lane.b32.xlu0 %v5386, 56
    %v7158 = vpop.permute.xlu0 %7157
    %7159 = vrot.lane.b32.xlu0 %v5387, 56
    %v7160 = vpop.permute.xlu0 %7159
    %7161 = vrot.lane.b32.xlu0 %v5388, 56
    %v7162 = vpop.permute.xlu0 %7161
    %7163 = vrot.lane.b32.xlu0 %v5389, 56
    %v7164 = vpop.permute.xlu0 %7163
    %7165 = vrot.lane.b32.xlu0 %v5390, 56
    %v7166 = vpop.permute.xlu0 %7165
    %7167 = vrot.lane.b32.xlu0 %v5391, 56
    %v7168 = vpop.permute.xlu0 %7167
    %7169 = vrot.lane.b32.xlu0 %v5392, 56
    %v7170 = vpop.permute.xlu0 %7169
    %7171 = vrot.lane.b32.xlu0 %v5393, 56
    %v7172 = vpop.permute.xlu0 %7171
    %7173 = vrot.lane.b32.xlu0 %v5394, 56
    %v7174 = vpop.permute.xlu0 %7173
    %7175 = vrot.lane.b32.xlu0 %v5395, 56
    %v7176 = vpop.permute.xlu0 %7175
    %7177 = vrot.lane.b32.xlu0 %v5396, 56
    %v7178 = vpop.permute.xlu0 %7177
    %7179 = vrot.lane.b32.xlu0 %v5397, 56
    %v7180 = vpop.permute.xlu0 %7179
    %7181 = vrot.lane.b32.xlu0 %v5398, 56
    %v7182 = vpop.permute.xlu0 %7181
    %7183 = vrot.lane.b32.xlu0 %v5399, 56
    %v7184 = vpop.permute.xlu0 %7183
    %7185 = vrot.lane.b32.xlu0 %v5400, 56
    %v7186 = vpop.permute.xlu0 %7185
    %7187 = vrot.lane.b32.xlu0 %v5401, 56
    %v7188 = vpop.permute.xlu0 %7187
    %7189 = vrot.lane.b32.xlu0 %v5402, 56
    %v7190 = vpop.permute.xlu0 %7189
    %7191 = vrot.lane.b32.xlu0 %v5403, 56
    %v7192 = vpop.permute.xlu0 %7191
    %7193 = vrot.lane.b32.xlu0 %v5404, 56
    %v7194 = vpop.permute.xlu0 %7193
    %7195 = vrot.lane.b32.xlu0 %v5405, 56
    %v7196 = vpop.permute.xlu0 %7195
    %7197 = vrot.lane.b32.xlu0 %v5406, 56
    %v7198 = vpop.permute.xlu0 %7197
    %7327 = vrot.lane.b32.xlu0 %v5407, 64
    %v7328 = vpop.permute.xlu0 %7327
    %7329 = vrot.lane.b32.xlu0 %v5408, 64
    %v7330 = vpop.permute.xlu0 %7329
    %7331 = vrot.lane.b32.xlu0 %v5409, 64
    %v7332 = vpop.permute.xlu0 %7331
    %7333 = vrot.lane.b32.xlu0 %v5410, 64
    %v7334 = vpop.permute.xlu0 %7333
    %7335 = vrot.lane.b32.xlu0 %v5411, 64
    %v7336 = vpop.permute.xlu0 %7335
    %7337 = vrot.lane.b32.xlu0 %v5412, 64
    %v7338 = vpop.permute.xlu0 %7337
    %7339 = vrot.lane.b32.xlu0 %v5413, 64
    %v7340 = vpop.permute.xlu0 %7339
    %7341 = vrot.lane.b32.xlu0 %v5414, 64
    %v7342 = vpop.permute.xlu0 %7341
    %7343 = vrot.lane.b32.xlu0 %v5415, 64
    %v7344 = vpop.permute.xlu0 %7343
    %7345 = vrot.lane.b32.xlu0 %v5416, 64
    %v7346 = vpop.permute.xlu0 %7345
    %7347 = vrot.lane.b32.xlu0 %v5417, 64
    %v7348 = vpop.permute.xlu0 %7347
    %7349 = vrot.lane.b32.xlu0 %v5418, 64
    %v7350 = vpop.permute.xlu0 %7349
    %7351 = vrot.lane.b32.xlu0 %v5419, 64
    %v7352 = vpop.permute.xlu0 %7351
    %7353 = vrot.lane.b32.xlu0 %v5420, 64
    %v7354 = vpop.permute.xlu0 %7353
    %7355 = vrot.lane.b32.xlu0 %v5421, 64
    %v7356 = vpop.permute.xlu0 %7355
    %7357 = vrot.lane.b32.xlu0 %v5422, 64
    %v7358 = vpop.permute.xlu0 %7357
    %7359 = vrot.lane.b32.xlu0 %v5423, 64
    %v7360 = vpop.permute.xlu0 %7359
    %7361 = vrot.lane.b32.xlu0 %v5424, 64
    %v7362 = vpop.permute.xlu0 %7361
    %7363 = vrot.lane.b32.xlu0 %v5425, 64
    %v7364 = vpop.permute.xlu0 %7363
    %7365 = vrot.lane.b32.xlu0 %v5426, 64
    %v7366 = vpop.permute.xlu0 %7365
    %7367 = vrot.lane.b32.xlu0 %v5427, 64
    %v7368 = vpop.permute.xlu0 %7367
    %7369 = vrot.lane.b32.xlu0 %v5428, 64
    %v7370 = vpop.permute.xlu0 %7369
    %7371 = vrot.lane.b32.xlu0 %v5429, 64
    %v7372 = vpop.permute.xlu0 %7371
    %7373 = vrot.lane.b32.xlu0 %v5430, 64
    %v7374 = vpop.permute.xlu0 %7373
    %7375 = vrot.lane.b32.xlu0 %v5431, 64
    %v7376 = vpop.permute.xlu0 %7375
    %7377 = vrot.lane.b32.xlu0 %v5432, 64
    %v7378 = vpop.permute.xlu0 %7377
    %7379 = vrot.lane.b32.xlu0 %v5433, 64
    %v7380 = vpop.permute.xlu0 %7379
    %7381 = vrot.lane.b32.xlu0 %v5434, 64
    %v7382 = vpop.permute.xlu0 %7381
    %7383 = vrot.lane.b32.xlu0 %v5435, 64
    %v7384 = vpop.permute.xlu0 %7383
    %7385 = vrot.lane.b32.xlu0 %v5436, 64
    %v7386 = vpop.permute.xlu0 %7385
    %7387 = vrot.lane.b32.xlu0 %v5437, 64
    %v7388 = vpop.permute.xlu0 %7387
    %7389 = vrot.lane.b32.xlu0 %v5438, 64
    %v7390 = vpop.permute.xlu0 %7389
    %7391 = vrot.lane.b32.xlu0 %v5439, 64
    %v7392 = vpop.permute.xlu0 %7391
    %7393 = vrot.lane.b32.xlu0 %v5440, 64
    %v7394 = vpop.permute.xlu0 %7393
    %7395 = vrot.lane.b32.xlu0 %v5441, 64
    %v7396 = vpop.permute.xlu0 %7395
    %7397 = vrot.lane.b32.xlu0 %v5442, 64
    %v7398 = vpop.permute.xlu0 %7397
    %7399 = vrot.lane.b32.xlu0 %v5443, 64
    %v7400 = vpop.permute.xlu0 %7399
    %7401 = vrot.lane.b32.xlu0 %v5444, 64
    %v7402 = vpop.permute.xlu0 %7401
    %7403 = vrot.lane.b32.xlu0 %v5445, 64
    %v7404 = vpop.permute.xlu0 %7403
    %7405 = vrot.lane.b32.xlu0 %v5446, 64
    %v7406 = vpop.permute.xlu0 %7405
    %7407 = vrot.lane.b32.xlu0 %v5447, 64
    %v7408 = vpop.permute.xlu0 %7407
    %7409 = vrot.lane.b32.xlu0 %v5448, 64
    %v7410 = vpop.permute.xlu0 %7409
    %7411 = vrot.lane.b32.xlu0 %v5449, 64
    %v7412 = vpop.permute.xlu0 %7411
    %7413 = vrot.lane.b32.xlu0 %v5450, 64
    %v7414 = vpop.permute.xlu0 %7413
    %7415 = vrot.lane.b32.xlu0 %v5451, 64
    %v7416 = vpop.permute.xlu0 %7415
    %7417 = vrot.lane.b32.xlu0 %v5452, 64
    %v7418 = vpop.permute.xlu0 %7417
    %7419 = vrot.lane.b32.xlu0 %v5453, 64
    %v7420 = vpop.permute.xlu0 %7419
    %7421 = vrot.lane.b32.xlu0 %v5454, 64
    %v7422 = vpop.permute.xlu0 %7421
    %7423 = vrot.lane.b32.xlu0 %v5455, 64
    %v7424 = vpop.permute.xlu0 %7423
    %7425 = vrot.lane.b32.xlu0 %v5456, 64
    %v7426 = vpop.permute.xlu0 %7425
    %7427 = vrot.lane.b32.xlu0 %v5457, 64
    %v7428 = vpop.permute.xlu0 %7427
    %7429 = vrot.lane.b32.xlu0 %v5458, 64
    %v7430 = vpop.permute.xlu0 %7429
    %7431 = vrot.lane.b32.xlu0 %v5459, 64
    %v7432 = vpop.permute.xlu0 %7431
    %7433 = vrot.lane.b32.xlu0 %v5460, 64
    %v7434 = vpop.permute.xlu0 %7433
    %7435 = vrot.lane.b32.xlu0 %v5461, 64
    %v7436 = vpop.permute.xlu0 %7435
    %7437 = vrot.lane.b32.xlu0 %v5462, 64
    %v7438 = vpop.permute.xlu0 %7437
    %7439 = vrot.lane.b32.xlu0 %v5463, 64
    %v7440 = vpop.permute.xlu0 %7439
    %7441 = vrot.lane.b32.xlu0 %v5464, 64
    %v7442 = vpop.permute.xlu0 %7441
    %7443 = vrot.lane.b32.xlu0 %v5465, 64
    %v7444 = vpop.permute.xlu0 %7443
    %7445 = vrot.lane.b32.xlu0 %v5466, 64
    %v7446 = vpop.permute.xlu0 %7445
    %7447 = vrot.lane.b32.xlu0 %v5467, 64
    %v7448 = vpop.permute.xlu0 %7447
    %7449 = vrot.lane.b32.xlu0 %v5468, 64
    %v7450 = vpop.permute.xlu0 %7449
    %7451 = vrot.lane.b32.xlu0 %v5469, 64
    %v7452 = vpop.permute.xlu0 %7451
    %7453 = vrot.lane.b32.xlu0 %v5470, 64
    %v7454 = vpop.permute.xlu0 %7453
    %v7519 = vsel %vm28, %v4895, %v5536
    %v7520 = vsel %vm28, %v4896, %v5538
    %v7521 = vsel %vm28, %v4897, %v5540
    %v7522 = vsel %vm28, %v4898, %v5542
    %v7523 = vsel %vm28, %v4899, %v5544
    %v7524 = vsel %vm28, %v4900, %v5546
    %v7525 = vsel %vm28, %v4901, %v5548
    %v7526 = vsel %vm28, %v4902, %v5550
    %v7527 = vsel %vm28, %v4903, %v5552
    %v7528 = vsel %vm28, %v4904, %v5554
    %v7529 = vsel %vm28, %v4905, %v5556
    %v7530 = vsel %vm28, %v4906, %v5558
    %v7531 = vsel %vm28, %v4907, %v5560
    %v7532 = vsel %vm28, %v4908, %v5562
    %v7533 = vsel %vm28, %v4909, %v5564
    %v7534 = vsel %vm28, %v4910, %v5566
    %v7535 = vsel %vm28, %v4911, %v5568
    %v7536 = vsel %vm28, %v4912, %v5570
    %v7537 = vsel %vm28, %v4913, %v5572
    %v7538 = vsel %vm28, %v4914, %v5574
    %v7539 = vsel %vm28, %v4915, %v5576
    %v7540 = vsel %vm28, %v4916, %v5578
    %v7541 = vsel %vm28, %v4917, %v5580
    %v7542 = vsel %vm28, %v4918, %v5582
    %v7543 = vsel %vm28, %v4919, %v5584
    %v7544 = vsel %vm28, %v4920, %v5586
    %v7545 = vsel %vm28, %v4921, %v5588
    %v7546 = vsel %vm28, %v4922, %v5590
    %v7547 = vsel %vm28, %v4923, %v5592
    %v7548 = vsel %vm28, %v4924, %v5594
    %v7549 = vsel %vm28, %v4925, %v5596
    %v7550 = vsel %vm28, %v4926, %v5598
    %v7551 = vsel %vm28, %v4927, %v5600
    %v7552 = vsel %vm28, %v4928, %v5602
    %v7553 = vsel %vm28, %v4929, %v5604
    %v7554 = vsel %vm28, %v4930, %v5606
    %v7555 = vsel %vm28, %v4931, %v5608
    %v7556 = vsel %vm28, %v4932, %v5610
    %v7557 = vsel %vm28, %v4933, %v5612
    %v7558 = vsel %vm28, %v4934, %v5614
    %v7559 = vsel %vm28, %v4935, %v5616
    %v7560 = vsel %vm28, %v4936, %v5618
    %v7561 = vsel %vm28, %v4937, %v5620
    %v7562 = vsel %vm28, %v4938, %v5622
    %v7563 = vsel %vm28, %v4939, %v5624
    %v7564 = vsel %vm28, %v4940, %v5626
    %v7565 = vsel %vm28, %v4941, %v5628
    %v7566 = vsel %vm28, %v4942, %v5630
    %v7567 = vsel %vm28, %v4943, %v5632
    %v7568 = vsel %vm28, %v4944, %v5634
    %v7569 = vsel %vm28, %v4945, %v5636
    %v7570 = vsel %vm28, %v4946, %v5638
    %v7571 = vsel %vm28, %v4947, %v5640
    %v7572 = vsel %vm28, %v4948, %v5642
    %v7573 = vsel %vm28, %v4949, %v5644
    %v7574 = vsel %vm28, %v4950, %v5646
    %v7575 = vsel %vm28, %v4951, %v5648
    %v7576 = vsel %vm28, %v4952, %v5650
    %v7577 = vsel %vm28, %v4953, %v5652
    %v7578 = vsel %vm28, %v4954, %v5654
    %v7579 = vsel %vm28, %v4955, %v5656
    %v7580 = vsel %vm28, %v4956, %v5658
    %v7581 = vsel %vm28, %v4957, %v5660
    %v7582 = vsel %vm28, %v4958, %v5662
    %v7583 = vsel %vm3529, %v7519, %v5792
    %v7584 = vsel %vm3529, %v7520, %v5794
    %v7585 = vsel %vm3529, %v7521, %v5796
    %v7586 = vsel %vm3529, %v7522, %v5798
    %v7587 = vsel %vm3529, %v7523, %v5800
    %v7588 = vsel %vm3529, %v7524, %v5802
    %v7589 = vsel %vm3529, %v7525, %v5804
    %v7590 = vsel %vm3529, %v7526, %v5806
    %v7591 = vsel %vm3529, %v7527, %v5808
    %v7592 = vsel %vm3529, %v7528, %v5810
    %v7593 = vsel %vm3529, %v7529, %v5812
    %v7594 = vsel %vm3529, %v7530, %v5814
    %v7595 = vsel %vm3529, %v7531, %v5816
    %v7596 = vsel %vm3529, %v7532, %v5818
    %v7597 = vsel %vm3529, %v7533, %v5820
    %v7598 = vsel %vm3529, %v7534, %v5822
    %v7599 = vsel %vm3529, %v7535, %v5824
    %v7600 = vsel %vm3529, %v7536, %v5826
    %v7601 = vsel %vm3529, %v7537, %v5828
    %v7602 = vsel %vm3529, %v7538, %v5830
    %v7603 = vsel %vm3529, %v7539, %v5832
    %v7604 = vsel %vm3529, %v7540, %v5834
    %v7605 = vsel %vm3529, %v7541, %v5836
    %v7606 = vsel %vm3529, %v7542, %v5838
    %v7607 = vsel %vm3529, %v7543, %v5840
    %v7608 = vsel %vm3529, %v7544, %v5842
    %v7609 = vsel %vm3529, %v7545, %v5844
    %v7610 = vsel %vm3529, %v7546, %v5846
    %v7611 = vsel %vm3529, %v7547, %v5848
    %v7612 = vsel %vm3529, %v7548, %v5850
    %v7613 = vsel %vm3529, %v7549, %v5852
    %v7614 = vsel %vm3529, %v7550, %v5854
    %v7615 = vsel %vm3529, %v7551, %v5856
    %v7616 = vsel %vm3529, %v7552, %v5858
    %v7617 = vsel %vm3529, %v7553, %v5860
    %v7618 = vsel %vm3529, %v7554, %v5862
    %v7619 = vsel %vm3529, %v7555, %v5864
    %v7620 = vsel %vm3529, %v7556, %v5866
    %v7621 = vsel %vm3529, %v7557, %v5868
    %v7622 = vsel %vm3529, %v7558, %v5870
    %v7623 = vsel %vm3529, %v7559, %v5872
    %v7624 = vsel %vm3529, %v7560, %v5874
    %v7625 = vsel %vm3529, %v7561, %v5876
    %v7626 = vsel %vm3529, %v7562, %v5878
    %v7627 = vsel %vm3529, %v7563, %v5880
    %v7628 = vsel %vm3529, %v7564, %v5882
    %v7629 = vsel %vm3529, %v7565, %v5884
    %v7630 = vsel %vm3529, %v7566, %v5886
    %v7631 = vsel %vm3529, %v7567, %v5888
    %v7632 = vsel %vm3529, %v7568, %v5890
    %v7633 = vsel %vm3529, %v7569, %v5892
    %v7634 = vsel %vm3529, %v7570, %v5894
    %v7635 = vsel %vm3529, %v7571, %v5896
    %v7636 = vsel %vm3529, %v7572, %v5898
    %v7637 = vsel %vm3529, %v7573, %v5900
    %v7638 = vsel %vm3529, %v7574, %v5902
    %v7639 = vsel %vm3529, %v7575, %v5904
    %v7640 = vsel %vm3529, %v7576, %v5906
    %v7641 = vsel %vm3529, %v7577, %v5908
    %v7642 = vsel %vm3529, %v7578, %v5910
    %v7643 = vsel %vm3529, %v7579, %v5912
    %v7644 = vsel %vm3529, %v7580, %v5914
    %v7645 = vsel %vm3529, %v7581, %v5916
    %v7646 = vsel %vm3529, %v7582, %v5918
    %v7647 = vsel %vm3659, %v7583, %v6048
    %v7648 = vsel %vm3659, %v7584, %v6050
    %v7649 = vsel %vm3659, %v7585, %v6052
    %v7650 = vsel %vm3659, %v7586, %v6054
    %v7651 = vsel %vm3659, %v7587, %v6056
    %v7652 = vsel %vm3659, %v7588, %v6058
    %v7653 = vsel %vm3659, %v7589, %v6060
    %v7654 = vsel %vm3659, %v7590, %v6062
    %v7655 = vsel %vm3659, %v7591, %v6064
    %v7656 = vsel %vm3659, %v7592, %v6066
    %v7657 = vsel %vm3659, %v7593, %v6068
    %v7658 = vsel %vm3659, %v7594, %v6070
    %v7659 = vsel %vm3659, %v7595, %v6072
    %v7660 = vsel %vm3659, %v7596, %v6074
    %v7661 = vsel %vm3659, %v7597, %v6076
    %v7662 = vsel %vm3659, %v7598, %v6078
    %v7663 = vsel %vm3659, %v7599, %v6080
    %v7664 = vsel %vm3659, %v7600, %v6082
    %v7665 = vsel %vm3659, %v7601, %v6084
    %v7666 = vsel %vm3659, %v7602, %v6086
    %v7667 = vsel %vm3659, %v7603, %v6088
    %v7668 = vsel %vm3659, %v7604, %v6090
    %v7669 = vsel %vm3659, %v7605, %v6092
    %v7670 = vsel %vm3659, %v7606, %v6094
    %v7671 = vsel %vm3659, %v7607, %v6096
    %v7672 = vsel %vm3659, %v7608, %v6098
    %v7673 = vsel %vm3659, %v7609, %v6100
    %v7674 = vsel %vm3659, %v7610, %v6102
    %v7675 = vsel %vm3659, %v7611, %v6104
    %v7676 = vsel %vm3659, %v7612, %v6106
    %v7677 = vsel %vm3659, %v7613, %v6108
    %v7678 = vsel %vm3659, %v7614, %v6110
    %v7679 = vsel %vm3659, %v7615, %v6112
    %v7680 = vsel %vm3659, %v7616, %v6114
    %v7681 = vsel %vm3659, %v7617, %v6116
    %v7682 = vsel %vm3659, %v7618, %v6118
    %v7683 = vsel %vm3659, %v7619, %v6120
    %v7684 = vsel %vm3659, %v7620, %v6122
    %v7685 = vsel %vm3659, %v7621, %v6124
    %v7686 = vsel %vm3659, %v7622, %v6126
    %v7687 = vsel %vm3659, %v7623, %v6128
    %v7688 = vsel %vm3659, %v7624, %v6130
    %v7689 = vsel %vm3659, %v7625, %v6132
    %v7690 = vsel %vm3659, %v7626, %v6134
    %v7691 = vsel %vm3659, %v7627, %v6136
    %v7692 = vsel %vm3659, %v7628, %v6138
    %v7693 = vsel %vm3659, %v7629, %v6140
    %v7694 = vsel %vm3659, %v7630, %v6142
    %v7695 = vsel %vm3659, %v7631, %v6144
    %v7696 = vsel %vm3659, %v7632, %v6146
    %v7697 = vsel %vm3659, %v7633, %v6148
    %v7698 = vsel %vm3659, %v7634, %v6150
    %v7699 = vsel %vm3659, %v7635, %v6152
    %v7700 = vsel %vm3659, %v7636, %v6154
    %v7701 = vsel %vm3659, %v7637, %v6156
    %v7702 = vsel %vm3659, %v7638, %v6158
    %v7703 = vsel %vm3659, %v7639, %v6160
    %v7704 = vsel %vm3659, %v7640, %v6162
    %v7705 = vsel %vm3659, %v7641, %v6164
    %v7706 = vsel %vm3659, %v7642, %v6166
    %v7707 = vsel %vm3659, %v7643, %v6168
    %v7708 = vsel %vm3659, %v7644, %v6170
    %v7709 = vsel %vm3659, %v7645, %v6172
    %v7710 = vsel %vm3659, %v7646, %v6174
    %v7711 = vsel %vm3789, %v7647, %v6304
    %v7712 = vsel %vm3789, %v7648, %v6306
    %v7713 = vsel %vm3789, %v7649, %v6308
    %v7714 = vsel %vm3789, %v7650, %v6310
    %v7715 = vsel %vm3789, %v7651, %v6312
    %v7716 = vsel %vm3789, %v7652, %v6314
    %v7717 = vsel %vm3789, %v7653, %v6316
    %v7718 = vsel %vm3789, %v7654, %v6318
    %v7719 = vsel %vm3789, %v7655, %v6320
    %v7720 = vsel %vm3789, %v7656, %v6322
    %v7721 = vsel %vm3789, %v7657, %v6324
    %v7722 = vsel %vm3789, %v7658, %v6326
    %v7723 = vsel %vm3789, %v7659, %v6328
    %v7724 = vsel %vm3789, %v7660, %v6330
    %v7725 = vsel %vm3789, %v7661, %v6332
    %v7726 = vsel %vm3789, %v7662, %v6334
    %v7727 = vsel %vm3789, %v7663, %v6336
    %v7728 = vsel %vm3789, %v7664, %v6338
    %v7729 = vsel %vm3789, %v7665, %v6340
    %v7730 = vsel %vm3789, %v7666, %v6342
    %v7731 = vsel %vm3789, %v7667, %v6344
    %v7732 = vsel %vm3789, %v7668, %v6346
    %v7733 = vsel %vm3789, %v7669, %v6348
    %v7734 = vsel %vm3789, %v7670, %v6350
    %v7735 = vsel %vm3789, %v7671, %v6352
    %v7736 = vsel %vm3789, %v7672, %v6354
    %v7737 = vsel %vm3789, %v7673, %v6356
    %v7738 = vsel %vm3789, %v7674, %v6358
    %v7739 = vsel %vm3789, %v7675, %v6360
    %v7740 = vsel %vm3789, %v7676, %v6362
    %v7741 = vsel %vm3789, %v7677, %v6364
    %v7742 = vsel %vm3789, %v7678, %v6366
    %v7743 = vsel %vm3789, %v7679, %v6368
    %v7744 = vsel %vm3789, %v7680, %v6370
    %v7745 = vsel %vm3789, %v7681, %v6372
    %v7746 = vsel %vm3789, %v7682, %v6374
    %v7747 = vsel %vm3789, %v7683, %v6376
    %v7748 = vsel %vm3789, %v7684, %v6378
    %v7749 = vsel %vm3789, %v7685, %v6380
    %v7750 = vsel %vm3789, %v7686, %v6382
    %v7751 = vsel %vm3789, %v7687, %v6384
    %v7752 = vsel %vm3789, %v7688, %v6386
    %v7753 = vsel %vm3789, %v7689, %v6388
    %v7754 = vsel %vm3789, %v7690, %v6390
    %v7755 = vsel %vm3789, %v7691, %v6392
    %v7756 = vsel %vm3789, %v7692, %v6394
    %v7757 = vsel %vm3789, %v7693, %v6396
    %v7758 = vsel %vm3789, %v7694, %v6398
    %v7759 = vsel %vm3789, %v7695, %v6400
    %v7760 = vsel %vm3789, %v7696, %v6402
    %v7761 = vsel %vm3789, %v7697, %v6404
    %v7762 = vsel %vm3789, %v7698, %v6406
    %v7763 = vsel %vm3789, %v7699, %v6408
    %v7764 = vsel %vm3789, %v7700, %v6410
    %v7765 = vsel %vm3789, %v7701, %v6412
    %v7766 = vsel %vm3789, %v7702, %v6414
    %v7767 = vsel %vm3789, %v7703, %v6416
    %v7768 = vsel %vm3789, %v7704, %v6418
    %v7769 = vsel %vm3789, %v7705, %v6420
    %v7770 = vsel %vm3789, %v7706, %v6422
    %v7771 = vsel %vm3789, %v7707, %v6424
    %v7772 = vsel %vm3789, %v7708, %v6426
    %v7773 = vsel %vm3789, %v7709, %v6428
    %v7774 = vsel %vm3789, %v7710, %v6430
    %vm7775 = vcmask 326656
    %v7776 = vsel %vm7775, %v7711, %v6560
    %v7777 = vsel %vm7775, %v7712, %v6562
    %v7778 = vsel %vm7775, %v7713, %v6564
    %v7779 = vsel %vm7775, %v7714, %v6566
    %v7780 = vsel %vm7775, %v7715, %v6568
    %v7781 = vsel %vm7775, %v7716, %v6570
    %v7782 = vsel %vm7775, %v7717, %v6572
    %v7783 = vsel %vm7775, %v7718, %v6574
    %v7784 = vsel %vm7775, %v7719, %v6576
    %v7785 = vsel %vm7775, %v7720, %v6578
    %v7786 = vsel %vm7775, %v7721, %v6580
    %v7787 = vsel %vm7775, %v7722, %v6582
    %v7788 = vsel %vm7775, %v7723, %v6584
    %v7789 = vsel %vm7775, %v7724, %v6586
    %v7790 = vsel %vm7775, %v7725, %v6588
    %v7791 = vsel %vm7775, %v7726, %v6590
    %v7792 = vsel %vm7775, %v7727, %v6592
    %v7793 = vsel %vm7775, %v7728, %v6594
    %v7794 = vsel %vm7775, %v7729, %v6596
    %v7795 = vsel %vm7775, %v7730, %v6598
    %v7796 = vsel %vm7775, %v7731, %v6600
    %v7797 = vsel %vm7775, %v7732, %v6602
    %v7798 = vsel %vm7775, %v7733, %v6604
    %v7799 = vsel %vm7775, %v7734, %v6606
    %v7800 = vsel %vm7775, %v7735, %v6608
    %v7801 = vsel %vm7775, %v7736, %v6610
    %v7802 = vsel %vm7775, %v7737, %v6612
    %v7803 = vsel %vm7775, %v7738, %v6614
    %v7804 = vsel %vm7775, %v7739, %v6616
    %v7805 = vsel %vm7775, %v7740, %v6618
    %v7806 = vsel %vm7775, %v7741, %v6620
    %v7807 = vsel %vm7775, %v7742, %v6622
    %v7808 = vsel %vm7775, %v7743, %v6624
    %v7809 = vsel %vm7775, %v7744, %v6626
    %v7810 = vsel %vm7775, %v7745, %v6628
    %v7811 = vsel %vm7775, %v7746, %v6630
    %v7812 = vsel %vm7775, %v7747, %v6632
    %v7813 = vsel %vm7775, %v7748, %v6634
    %v7814 = vsel %vm7775, %v7749, %v6636
    %v7815 = vsel %vm7775, %v7750, %v6638
    %v7816 = vsel %vm7775, %v7751, %v6640
    %v7817 = vsel %vm7775, %v7752, %v6642
    %v7818 = vsel %vm7775, %v7753, %v6644
    %v7819 = vsel %vm7775, %v7754, %v6646
    %v7820 = vsel %vm7775, %v7755, %v6648
    %v7821 = vsel %vm7775, %v7756, %v6650
    %v7822 = vsel %vm7775, %v7757, %v6652
    %v7823 = vsel %vm7775, %v7758, %v6654
    %v7824 = vsel %vm7775, %v7759, %v6656
    %v7825 = vsel %vm7775, %v7760, %v6658
    %v7826 = vsel %vm7775, %v7761, %v6660
    %v7827 = vsel %vm7775, %v7762, %v6662
    %v7828 = vsel %vm7775, %v7763, %v6664
    %v7829 = vsel %vm7775, %v7764, %v6666
    %v7830 = vsel %vm7775, %v7765, %v6668
    %v7831 = vsel %vm7775, %v7766, %v6670
    %v7832 = vsel %vm7775, %v7767, %v6672
    %v7833 = vsel %vm7775, %v7768, %v6674
    %v7834 = vsel %vm7775, %v7769, %v6676
    %v7835 = vsel %vm7775, %v7770, %v6678
    %v7836 = vsel %vm7775, %v7771, %v6680
    %v7837 = vsel %vm7775, %v7772, %v6682
    %v7838 = vsel %vm7775, %v7773, %v6684
    %v7839 = vsel %vm7775, %v7774, %v6686
    %vm7840 = vcmask 392192
    %v7841 = vsel %vm7840, %v7776, %v6816
    %v7842 = vsel %vm7840, %v7777, %v6818
    %v7843 = vsel %vm7840, %v7778, %v6820
    %v7844 = vsel %vm7840, %v7779, %v6822
    %v7845 = vsel %vm7840, %v7780, %v6824
    %v7846 = vsel %vm7840, %v7781, %v6826
    %v7847 = vsel %vm7840, %v7782, %v6828
    %v7848 = vsel %vm7840, %v7783, %v6830
    %v7849 = vsel %vm7840, %v7784, %v6832
    %v7850 = vsel %vm7840, %v7785, %v6834
    %v7851 = vsel %vm7840, %v7786, %v6836
    %v7852 = vsel %vm7840, %v7787, %v6838
    %v7853 = vsel %vm7840, %v7788, %v6840
    %v7854 = vsel %vm7840, %v7789, %v6842
    %v7855 = vsel %vm7840, %v7790, %v6844
    %v7856 = vsel %vm7840, %v7791, %v6846
    %v7857 = vsel %vm7840, %v7792, %v6848
    %v7858 = vsel %vm7840, %v7793, %v6850
    %v7859 = vsel %vm7840, %v7794, %v6852
    %v7860 = vsel %vm7840, %v7795, %v6854
    %v7861 = vsel %vm7840, %v7796, %v6856
    %v7862 = vsel %vm7840, %v7797, %v6858
    %v7863 = vsel %vm7840, %v7798, %v6860
    %v7864 = vsel %vm7840, %v7799, %v6862
    %v7865 = vsel %vm7840, %v7800, %v6864
    %v7866 = vsel %vm7840, %v7801, %v6866
    %v7867 = vsel %vm7840, %v7802, %v6868
    %v7868 = vsel %vm7840, %v7803, %v6870
    %v7869 = vsel %vm7840, %v7804, %v6872
    %v7870 = vsel %vm7840, %v7805, %v6874
    %v7871 = vsel %vm7840, %v7806, %v6876
    %v7872 = vsel %vm7840, %v7807, %v6878
    %v7873 = vsel %vm7840, %v7808, %v6880
    %v7874 = vsel %vm7840, %v7809, %v6882
    %v7875 = vsel %vm7840, %v7810, %v6884
    %v7876 = vsel %vm7840, %v7811, %v6886
    %v7877 = vsel %vm7840, %v7812, %v6888
    %v7878 = vsel %vm7840, %v7813, %v6890
    %v7879 = vsel %vm7840, %v7814, %v6892
    %v7880 = vsel %vm7840, %v7815, %v6894
    %v7881 = vsel %vm7840, %v7816, %v6896
    %v7882 = vsel %vm7840, %v7817, %v6898
    %v7883 = vsel %vm7840, %v7818, %v6900
    %v7884 = vsel %vm7840, %v7819, %v6902
    %v7885 = vsel %vm7840, %v7820, %v6904
    %v7886 = vsel %vm7840, %v7821, %v6906
    %v7887 = vsel %vm7840, %v7822, %v6908
    %v7888 = vsel %vm7840, %v7823, %v6910
    %v7889 = vsel %vm7840, %v7824, %v6912
    %v7890 = vsel %vm7840, %v7825, %v6914
    %v7891 = vsel %vm7840, %v7826, %v6916
    %v7892 = vsel %vm7840, %v7827, %v6918
    %v7893 = vsel %vm7840, %v7828, %v6920
    %v7894 = vsel %vm7840, %v7829, %v6922
    %v7895 = vsel %vm7840, %v7830, %v6924
    %v7896 = vsel %vm7840, %v7831, %v6926
    %v7897 = vsel %vm7840, %v7832, %v6928
    %v7898 = vsel %vm7840, %v7833, %v6930
    %v7899 = vsel %vm7840, %v7834, %v6932
    %v7900 = vsel %vm7840, %v7835, %v6934
    %v7901 = vsel %vm7840, %v7836, %v6936
    %v7902 = vsel %vm7840, %v7837, %v6938
    %v7903 = vsel %vm7840, %v7838, %v6940
    %v7904 = vsel %vm7840, %v7839, %v6942
    %vm7905 = vcmask 457728
    %v7906 = vsel %vm7905, %v7841, %v7072
    %v7907 = vsel %vm7905, %v7842, %v7074
    %v7908 = vsel %vm7905, %v7843, %v7076
    %v7909 = vsel %vm7905, %v7844, %v7078
    %v7910 = vsel %vm7905, %v7845, %v7080
    %v7911 = vsel %vm7905, %v7846, %v7082
    %v7912 = vsel %vm7905, %v7847, %v7084
    %v7913 = vsel %vm7905, %v7848, %v7086
    %v7914 = vsel %vm7905, %v7849, %v7088
    %v7915 = vsel %vm7905, %v7850, %v7090
    %v7916 = vsel %vm7905, %v7851, %v7092
    %v7917 = vsel %vm7905, %v7852, %v7094
    %v7918 = vsel %vm7905, %v7853, %v7096
    %v7919 = vsel %vm7905, %v7854, %v7098
    %v7920 = vsel %vm7905, %v7855, %v7100
    %v7921 = vsel %vm7905, %v7856, %v7102
    %v7922 = vsel %vm7905, %v7857, %v7104
    %v7923 = vsel %vm7905, %v7858, %v7106
    %v7924 = vsel %vm7905, %v7859, %v7108
    %v7925 = vsel %vm7905, %v7860, %v7110
    %v7926 = vsel %vm7905, %v7861, %v7112
    %v7927 = vsel %vm7905, %v7862, %v7114
    %v7928 = vsel %vm7905, %v7863, %v7116
    %v7929 = vsel %vm7905, %v7864, %v7118
    %v7930 = vsel %vm7905, %v7865, %v7120
    %v7931 = vsel %vm7905, %v7866, %v7122
    %v7932 = vsel %vm7905, %v7867, %v7124
    %v7933 = vsel %vm7905, %v7868, %v7126
    %v7934 = vsel %vm7905, %v7869, %v7128
    %v7935 = vsel %vm7905, %v7870, %v7130
    %v7936 = vsel %vm7905, %v7871, %v7132
    %v7937 = vsel %vm7905, %v7872, %v7134
    %v7938 = vsel %vm7905, %v7873, %v7136
    %v7939 = vsel %vm7905, %v7874, %v7138
    %v7940 = vsel %vm7905, %v7875, %v7140
    %v7941 = vsel %vm7905, %v7876, %v7142
    %v7942 = vsel %vm7905, %v7877, %v7144
    %v7943 = vsel %vm7905, %v7878, %v7146
    %v7944 = vsel %vm7905, %v7879, %v7148
    %v7945 = vsel %vm7905, %v7880, %v7150
    %v7946 = vsel %vm7905, %v7881, %v7152
    %v7947 = vsel %vm7905, %v7882, %v7154
    %v7948 = vsel %vm7905, %v7883, %v7156
    %v7949 = vsel %vm7905, %v7884, %v7158
    %v7950 = vsel %vm7905, %v7885, %v7160
    %v7951 = vsel %vm7905, %v7886, %v7162
    %v7952 = vsel %vm7905, %v7887, %v7164
    %v7953 = vsel %vm7905, %v7888, %v7166
    %v7954 = vsel %vm7905, %v7889, %v7168
    %v7955 = vsel %vm7905, %v7890, %v7170
    %v7956 = vsel %vm7905, %v7891, %v7172
    %v7957 = vsel %vm7905, %v7892, %v7174
    %v7958 = vsel %vm7905, %v7893, %v7176
    %v7959 = vsel %vm7905, %v7894, %v7178
    %v7960 = vsel %vm7905, %v7895, %v7180
    %v7961 = vsel %vm7905, %v7896, %v7182
    %v7962 = vsel %vm7905, %v7897, %v7184
    %v7963 = vsel %vm7905, %v7898, %v7186
    %v7964 = vsel %vm7905, %v7899, %v7188
    %v7965 = vsel %vm7905, %v7900, %v7190
    %v7966 = vsel %vm7905, %v7901, %v7192
    %v7967 = vsel %vm7905, %v7902, %v7194
    %v7968 = vsel %vm7905, %v7903, %v7196
    %v7969 = vsel %vm7905, %v7904, %v7198
    %vm7970 = vcmask 523264
    %v7971 = vsel %vm7970, %v7906, %v7328
    %v7972 = vsel %vm7970, %v7907, %v7330
    %v7973 = vsel %vm7970, %v7908, %v7332
    %v7974 = vsel %vm7970, %v7909, %v7334
    %v7975 = vsel %vm7970, %v7910, %v7336
    %v7976 = vsel %vm7970, %v7911, %v7338
    %v7977 = vsel %vm7970, %v7912, %v7340
    %v7978 = vsel %vm7970, %v7913, %v7342
    %v7979 = vsel %vm7970, %v7914, %v7344
    %v7980 = vsel %vm7970, %v7915, %v7346
    %v7981 = vsel %vm7970, %v7916, %v7348
    %v7982 = vsel %vm7970, %v7917, %v7350
    %v7983 = vsel %vm7970, %v7918, %v7352
    %v7984 = vsel %vm7970, %v7919, %v7354
    %v7985 = vsel %vm7970, %v7920, %v7356
    %v7986 = vsel %vm7970, %v7921, %v7358
    %v7987 = vsel %vm7970, %v7922, %v7360
    %v7988 = vsel %vm7970, %v7923, %v7362
    %v7989 = vsel %vm7970, %v7924, %v7364
    %v7990 = vsel %vm7970, %v7925, %v7366
    %v7991 = vsel %vm7970, %v7926, %v7368
    %v7992 = vsel %vm7970, %v7927, %v7370
    %v7993 = vsel %vm7970, %v7928, %v7372
    %v7994 = vsel %vm7970, %v7929, %v7374
    %v7995 = vsel %vm7970, %v7930, %v7376
    %v7996 = vsel %vm7970, %v7931, %v7378
    %v7997 = vsel %vm7970, %v7932, %v7380
    %v7998 = vsel %vm7970, %v7933, %v7382
    %v7999 = vsel %vm7970, %v7934, %v7384
    %v8000 = vsel %vm7970, %v7935, %v7386
    %v8001 = vsel %vm7970, %v7936, %v7388
    %v8002 = vsel %vm7970, %v7937, %v7390
    %v8003 = vsel %vm7970, %v7938, %v7392
    %v8004 = vsel %vm7970, %v7939, %v7394
    %v8005 = vsel %vm7970, %v7940, %v7396
    %v8006 = vsel %vm7970, %v7941, %v7398
    %v8007 = vsel %vm7970, %v7942, %v7400
    %v8008 = vsel %vm7970, %v7943, %v7402
    %v8009 = vsel %vm7970, %v7944, %v7404
    %v8010 = vsel %vm7970, %v7945, %v7406
    %v8011 = vsel %vm7970, %v7946, %v7408
    %v8012 = vsel %vm7970, %v7947, %v7410
    %v8013 = vsel %vm7970, %v7948, %v7412
    %v8014 = vsel %vm7970, %v7949, %v7414
    %v8015 = vsel %vm7970, %v7950, %v7416
    %v8016 = vsel %vm7970, %v7951, %v7418
    %v8017 = vsel %vm7970, %v7952, %v7420
    %v8018 = vsel %vm7970, %v7953, %v7422
    %v8019 = vsel %vm7970, %v7954, %v7424
    %v8020 = vsel %vm7970, %v7955, %v7426
    %v8021 = vsel %vm7970, %v7956, %v7428
    %v8022 = vsel %vm7970, %v7957, %v7430
    %v8023 = vsel %vm7970, %v7958, %v7432
    %v8024 = vsel %vm7970, %v7959, %v7434
    %v8025 = vsel %vm7970, %v7960, %v7436
    %v8026 = vsel %vm7970, %v7961, %v7438
    %v8027 = vsel %vm7970, %v7962, %v7440
    %v8028 = vsel %vm7970, %v7963, %v7442
    %v8029 = vsel %vm7970, %v7964, %v7444
    %v8030 = vsel %vm7970, %v7965, %v7446
    %v8031 = vsel %vm7970, %v7966, %v7448
    %v8032 = vsel %vm7970, %v7967, %v7450
    %v8033 = vsel %vm7970, %v7968, %v7452
    %v8034 = vsel %vm7970, %v7969, %v7454
    %v8035 = vpack.c.bf16 %v7972, %v7971
    %v8036 = vpack.c.bf16 %v7974, %v7973
    %v8037 = vpack.c.bf16 %v7976, %v7975
    %v8038 = vpack.c.bf16 %v7978, %v7977
    %v8039 = vpack.c.bf16 %v7980, %v7979
    %v8040 = vpack.c.bf16 %v7982, %v7981
    %v8041 = vpack.c.bf16 %v7984, %v7983
    %v8042 = vpack.c.bf16 %v7986, %v7985
    %v8043 = vpack.c.bf16 %v7988, %v7987
    %v8044 = vpack.c.bf16 %v7990, %v7989
    %v8045 = vpack.c.bf16 %v7992, %v7991
    %v8046 = vpack.c.bf16 %v7994, %v7993
    %v8047 = vpack.c.bf16 %v7996, %v7995
    %v8048 = vpack.c.bf16 %v7998, %v7997
    %v8049 = vpack.c.bf16 %v8000, %v7999
    %v8050 = vpack.c.bf16 %v8002, %v8001
    %v8051 = vpack.c.bf16 %v8004, %v8003
    %v8052 = vpack.c.bf16 %v8006, %v8005
    %v8053 = vpack.c.bf16 %v8008, %v8007
    %v8054 = vpack.c.bf16 %v8010, %v8009
    %v8055 = vpack.c.bf16 %v8012, %v8011
    %v8056 = vpack.c.bf16 %v8014, %v8013
    %v8057 = vpack.c.bf16 %v8016, %v8015
    %v8058 = vpack.c.bf16 %v8018, %v8017
    %v8059 = vpack.c.bf16 %v8020, %v8019
    %v8060 = vpack.c.bf16 %v8022, %v8021
    %v8061 = vpack.c.bf16 %v8024, %v8023
    %v8062 = vpack.c.bf16 %v8026, %v8025
    %v8063 = vpack.c.bf16 %v8028, %v8027
    %v8064 = vpack.c.bf16 %v8030, %v8029
    %v8065 = vpack.c.bf16 %v8032, %v8031
    %v8066 = vpack.c.bf16 %v8034, %v8033
    %v8067 = vld [vmem:[%s3] sm:$0xf]
    %v8068 = vld [vmem:[%s3 + $0x4] sm:$0xf]
    %v8069 = vld [vmem:[%s3 + $0x8] sm:$0xf]
    %v8070 = vld [vmem:[%s3 + $0xc] sm:$0xf]
    %v8071 = vld [vmem:[%s3 + $0x10] sm:$0xf]
    %v8072 = vld [vmem:[%s3 + $0x14] sm:$0xf]
    %v8073 = vld [vmem:[%s3 + $0x18] sm:$0xf]
    %v8074 = vld [vmem:[%s3 + $0x1c] sm:$0xf]
    %v8075 = vld [vmem:[%s3 + $0x20] sm:$0xf]
    %v8076 = vld [vmem:[%s4] sm:$0x1]
    %v8078 = vlaneseq
    %v8079 = vshrl.u32 %v8078, 7
    %v8080 = vsub.s32 0, %v8079
    %v8081 = vrot.slane %v8076, %v8080
    %v8092 = vunpack.c.l.b16 %v8067
    %v8093 = vunpack.c.l.b16 %v8068
    %v8094 = vunpack.c.l.b16 %v8069
    %v8095 = vunpack.c.l.b16 %v8070
    %v8096 = vunpack.c.l.b16 %v8071
    %v8097 = vunpack.c.l.b16 %v8072
    %v8098 = vunpack.c.l.b16 %v8073
    %v8099 = vunpack.c.l.b16 %v8074
    %v8100 = vunpack.c.l.b16 %v8075
    %v8101 = vpack.c.b16 %v8093, %v8092
    %v8102 = vpack.c.b16 %v8095, %v8094
    %v8103 = vpack.c.b16 %v8097, %v8096
    %v8104 = vpack.c.b16 %v8099, %v8098
    %v8105 = vpack.c.b16 %v8100, %v8100
    %vm8110 = vcmask 588800
    %v8112 = vsel %vm8110, %v8035, 0
    %v8115 = vsel %vm8110, %v8036, 0
    %v8118 = vsel %vm8110, %v8037, 0
    %v8121 = vsel %vm8110, %v8038, 0
    %v8124 = vsel %vm8110, %v8039, 0
    %v8127 = vsel %vm8110, %v8040, 0
    %v8130 = vsel %vm8110, %v8041, 0
    %v8133 = vsel %vm8110, %v8042, 0
    %v8136 = vsel %vm8110, %v8043, 0
    %v8139 = vsel %vm8110, %v8044, 0
    %v8142 = vsel %vm8110, %v8045, 0
    %v8145 = vsel %vm8110, %v8046, 0
    %v8148 = vsel %vm8110, %v8047, 0
    %v8151 = vsel %vm8110, %v8048, 0
    %v8154 = vsel %vm8110, %v8049, 0
    %v8157 = vsel %vm8110, %v8050, 0
    %v8160 = vsel %vm8110, %v8051, 0
    %v8163 = vsel %vm8110, %v8052, 0
    %v8166 = vsel %vm8110, %v8053, 0
    %v8169 = vsel %vm8110, %v8054, 0
    %v8172 = vsel %vm8110, %v8055, 0
    %v8175 = vsel %vm8110, %v8056, 0
    %v8178 = vsel %vm8110, %v8057, 0
    %v8181 = vsel %vm8110, %v8058, 0
    %v8184 = vsel %vm8110, %v8059, 0
    %v8187 = vsel %vm8110, %v8060, 0
    %v8190 = vsel %vm8110, %v8061, 0
    %v8193 = vsel %vm8110, %v8062, 0
    %v8196 = vsel %vm8110, %v8063, 0
    %v8199 = vsel %vm8110, %v8064, 0
    %v8202 = vsel %vm8110, %v8065, 0
    %v8205 = vsel %vm8110, %v8066, 0
    %vm8207 = vcmask 1043456
    %v8209 = vsel %vm8207, %v8105, 0
    %8211 = vmatprep.subr.bf16.mxu0 0
    %8212 = vmatpush1.bf16.msra.mxu0 %v8101
    %8213 = vmatprep.subr.bf16.mxu0 0
    %8214 = vmatpush1.bf16.msra.mxu0 %v8102
    %8215 = vmatprep.subr.bf16.mxu0 0
    %8216 = vmatpush1.bf16.msra.mxu0 %v8103
    %8217 = vmatprep.subr.bf16.mxu0 0
    %8218 = vmatpush1.bf16.msra.mxu0 %v8104
    %8219 = vmatprep.subr.bf16.mxu0 0
    %8220 = vmatpush1.bf16.msra.mxu0 %v8209
    %8221 = vmatprep.subr.bf16.mxu0 0
    %8222 = vmatpush1.bf16.msra.mxu0 0
    %8223 = vmatprep.subr.bf16.mxu0 0
    %8224 = vmatpush1.bf16.msra.mxu0 0
    %8225 = vmatprep.subr.bf16.mxu0 0
    %8226 = vmatpush1.bf16.msra.mxu0 0
    %8227 = vmatprep.subr.bf16.mxu0 0
    %8228 = vmatpush1.bf16.msra.mxu0 0
    %8229 = vmatprep.subr.bf16.mxu0 0
    %8230 = vmatpush1.bf16.msra.mxu0 0
    %8231 = vmatprep.subr.bf16.mxu0 0
    %8232 = vmatpush1.bf16.msra.mxu0 0
    %8233 = vmatprep.subr.bf16.mxu0 0
    %8234 = vmatpush1.bf16.msra.mxu0 0
    %8235 = vmatprep.subr.bf16.mxu0 0
    %8236 = vmatpush1.bf16.msra.mxu0 0
    %8237 = vmatprep.subr.bf16.mxu0 0
    %8238 = vmatpush1.bf16.msra.mxu0 0
    %8239 = vmatprep.subr.bf16.mxu0 0
    %8240 = vmatpush1.bf16.msra.mxu0 0
    %8241 = vmatprep.subr.bf16.mxu0 0
    %8242 = vmatpush1.bf16.msra.mxu0 0
    %8243 = vmatprep.mubr.bf16.mxu0 0
    %8244 = vmatmul.mubr.bf16.gmra.mrb[0].mxu0 %v8112
    %v8245 = vpop.f32.mrb[0].mxu0
    %v8246 = vadd.f32 %v8081, %v8245
    %v8247 = vpop.f32.mrb[0].mxu0
    %v8248 = vpop.f32.mrb[0].mxu0
    %v8249 = vadd.f32 %v8081, %v8248
    %v8250 = vpop.f32.mrb[0].mxu0
    %8251 = vmatprep.mubr.bf16.mxu0 0
    %8252 = vmatmul.mubr.bf16.gmra.mrb[0].mxu0 %v8115
    %v8253 = vpop.f32.mrb[0].mxu0
    %v8254 = vadd.f32 %v8081, %v8253
    %v8255 = vpop.f32.mrb[0].mxu0
    %v8256 = vpop.f32.mrb[0].mxu0
    %v8257 = vadd.f32 %v8081, %v8256
    %v8258 = vpop.f32.mrb[0].mxu0
    %8259 = vmatprep.mubr.bf16.mxu0 0
    %8260 = vmatmul.mubr.bf16.gmra.mrb[0].mxu0 %v8118
    %v8261 = vpop.f32.mrb[0].mxu0
    %v8262 = vadd.f32 %v8081, %v8261
    %v8263 = vpop.f32.mrb[0].mxu0
    %v8264 = vpop.f32.mrb[0].mxu0
    %v8265 = vadd.f32 %v8081, %v8264
    %v8266 = vpop.f32.mrb[0].mxu0
    %8267 = vmatprep.mubr.bf16.mxu0 0
    %8268 = vmatmul.mubr.bf16.gmra.mrb[0].mxu0 %v8121
    %v8269 = vpop.f32.mrb[0].mxu0
    %v8270 = vadd.f32 %v8081, %v8269
    %v8271 = vpop.f32.mrb[0].mxu0
    %v8272 = vpop.f32.mrb[0].mxu0
    %v8273 = vadd.f32 %v8081, %v8272
    %v8274 = vpop.f32.mrb[0].mxu0
    %8275 = vmatprep.mubr.bf16.mxu0 0
    %8276 = vmatmul.mubr.bf16.gmra.mrb[0].mxu0 %v8124
    %v8277 = vpop.f32.mrb[0].mxu0
    %v8278 = vadd.f32 %v8081, %v8277
    %v8279 = vpop.f32.mrb[0].mxu0
    %v8280 = vpop.f32.mrb[0].mxu0
    %v8281 = vadd.f32 %v8081, %v8280
    %v8282 = vpop.f32.mrb[0].mxu0
    %8283 = vmatprep.mubr.bf16.mxu0 0
    %8284 = vmatmul.mubr.bf16.gmra.mrb[0].mxu0 %v8127
    %v8285 = vpop.f32.mrb[0].mxu0
    %v8286 = vadd.f32 %v8081, %v8285
    %v8287 = vpop.f32.mrb[0].mxu0
    %v8288 = vpop.f32.mrb[0].mxu0
    %v8289 = vadd.f32 %v8081, %v8288
    %v8290 = vpop.f32.mrb[0].mxu0
    %8291 = vmatprep.mubr.bf16.mxu0 0
    %8292 = vmatmul.mubr.bf16.gmra.mrb[0].mxu0 %v8130
    %v8293 = vpop.f32.mrb[0].mxu0
    %v8294 = vadd.f32 %v8081, %v8293
    %v8295 = vpop.f32.mrb[0].mxu0
    %v8296 = vpop.f32.mrb[0].mxu0
    %v8297 = vadd.f32 %v8081, %v8296
    %v8298 = vpop.f32.mrb[0].mxu0
    %8299 = vmatprep.mubr.bf16.mxu0 0
    %8300 = vmatmul.mubr.bf16.gmra.mrb[0].mxu0 %v8133
    %v8301 = vpop.f32.mrb[0].mxu0
    %v8302 = vadd.f32 %v8081, %v8301
    %v8303 = vpop.f32.mrb[0].mxu0
    %v8304 = vpop.f32.mrb[0].mxu0
    %v8305 = vadd.f32 %v8081, %v8304
    %v8306 = vpop.f32.mrb[0].mxu0
    %8307 = vmatprep.mubr.bf16.mxu0 0
    %8308 = vmatmul.mubr.bf16.gmra.mrb[0].mxu0 %v8136
    %v8309 = vpop.f32.mrb[0].mxu0
    %v8310 = vadd.f32 %v8081, %v8309
    %v8311 = vpop.f32.mrb[0].mxu0
    %v8312 = vpop.f32.mrb[0].mxu0
    %v8313 = vadd.f32 %v8081, %v8312
    %v8314 = vpop.f32.mrb[0].mxu0
    %8315 = vmatprep.mubr.bf16.mxu0 0
    %8316 = vmatmul.mubr.bf16.gmra.mrb[0].mxu0 %v8139
    %v8317 = vpop.f32.mrb[0].mxu0
    %v8318 = vadd.f32 %v8081, %v8317
    %v8319 = vpop.f32.mrb[0].mxu0
    %v8320 = vpop.f32.mrb[0].mxu0
    %v8321 = vadd.f32 %v8081, %v8320
    %v8322 = vpop.f32.mrb[0].mxu0
    %8323 = vmatprep.mubr.bf16.mxu0 0
    %8324 = vmatmul.mubr.bf16.gmra.mrb[0].mxu0 %v8142
    %v8325 = vpop.f32.mrb[0].mxu0
    %v8326 = vadd.f32 %v8081, %v8325
    %v8327 = vpop.f32.mrb[0].mxu0
    %v8328 = vpop.f32.mrb[0].mxu0
    %v8329 = vadd.f32 %v8081, %v8328
    %v8330 = vpop.f32.mrb[0].mxu0
    %8331 = vmatprep.mubr.bf16.mxu0 0
    %8332 = vmatmul.mubr.bf16.gmra.mrb[0].mxu0 %v8145
    %v8333 = vpop.f32.mrb[0].mxu0
    %v8334 = vadd.f32 %v8081, %v8333
    %v8335 = vpop.f32.mrb[0].mxu0
    %v8336 = vpop.f32.mrb[0].mxu0
    %v8337 = vadd.f32 %v8081, %v8336
    %v8338 = vpop.f32.mrb[0].mxu0
    %8339 = vmatprep.mubr.bf16.mxu0 0
    %8340 = vmatmul.mubr.bf16.gmra.mrb[0].mxu0 %v8148
    %v8341 = vpop.f32.mrb[0].mxu0
    %v8342 = vadd.f32 %v8081, %v8341
    %v8343 = vpop.f32.mrb[0].mxu0
    %v8344 = vpop.f32.mrb[0].mxu0
    %v8345 = vadd.f32 %v8081, %v8344
    %v8346 = vpop.f32.mrb[0].mxu0
    %8347 = vmatprep.mubr.bf16.mxu0 0
    %8348 = vmatmul.mubr.bf16.gmra.mrb[0].mxu0 %v8151
    %v8349 = vpop.f32.mrb[0].mxu0
    %v8350 = vadd.f32 %v8081, %v8349
    %v8351 = vpop.f32.mrb[0].mxu0
    %v8352 = vpop.f32.mrb[0].mxu0
    %v8353 = vadd.f32 %v8081, %v8352
    %v8354 = vpop.f32.mrb[0].mxu0
    %8355 = vmatprep.mubr.bf16.mxu0 0
    %8356 = vmatmul.mubr.bf16.gmra.mrb[0].mxu0 %v8154
    %v8357 = vpop.f32.mrb[0].mxu0
    %v8358 = vadd.f32 %v8081, %v8357
    %v8359 = vpop.f32.mrb[0].mxu0
    %v8360 = vpop.f32.mrb[0].mxu0
    %v8361 = vadd.f32 %v8081, %v8360
    %v8362 = vpop.f32.mrb[0].mxu0
    %8363 = vmatprep.mubr.bf16.mxu0 0
    %8364 = vmatmul.mubr.bf16.gmra.mrb[0].mxu0 %v8157
    %v8365 = vpop.f32.mrb[0].mxu0
    %v8366 = vadd.f32 %v8081, %v8365
    %v8367 = vpop.f32.mrb[0].mxu0
    %v8368 = vpop.f32.mrb[0].mxu0
    %v8369 = vadd.f32 %v8081, %v8368
    %v8370 = vpop.f32.mrb[0].mxu0
    %8371 = vmatprep.mubr.bf16.mxu0 0
    %8372 = vmatmul.mubr.bf16.gmra.mrb[0].mxu0 %v8160
    %v8373 = vpop.f32.mrb[0].mxu0
    %v8374 = vadd.f32 %v8081, %v8373
    %v8375 = vpop.f32.mrb[0].mxu0
    %v8376 = vpop.f32.mrb[0].mxu0
    %v8377 = vadd.f32 %v8081, %v8376
    %v8378 = vpop.f32.mrb[0].mxu0
    %8379 = vmatprep.mubr.bf16.mxu0 0
    %8380 = vmatmul.mubr.bf16.gmra.mrb[0].mxu0 %v8163
    %v8381 = vpop.f32.mrb[0].mxu0
    %v8382 = vadd.f32 %v8081, %v8381
    %v8383 = vpop.f32.mrb[0].mxu0
    %v8384 = vpop.f32.mrb[0].mxu0
    %v8385 = vadd.f32 %v8081, %v8384
    %v8386 = vpop.f32.mrb[0].mxu0
    %8387 = vmatprep.mubr.bf16.mxu0 0
    %8388 = vmatmul.mubr.bf16.gmra.mrb[0].mxu0 %v8166
    %v8389 = vpop.f32.mrb[0].mxu0
    %v8390 = vadd.f32 %v8081, %v8389
    %v8391 = vpop.f32.mrb[0].mxu0
    %v8392 = vpop.f32.mrb[0].mxu0
    %v8393 = vadd.f32 %v8081, %v8392
    %v8394 = vpop.f32.mrb[0].mxu0
    %8395 = vmatprep.mubr.bf16.mxu0 0
    %8396 = vmatmul.mubr.bf16.gmra.mrb[0].mxu0 %v8169
    %v8397 = vpop.f32.mrb[0].mxu0
    %v8398 = vadd.f32 %v8081, %v8397
    %v8399 = vpop.f32.mrb[0].mxu0
    %v8400 = vpop.f32.mrb[0].mxu0
    %v8401 = vadd.f32 %v8081, %v8400
    %v8402 = vpop.f32.mrb[0].mxu0
    %8403 = vmatprep.mubr.bf16.mxu0 0
    %8404 = vmatmul.mubr.bf16.gmra.mrb[0].mxu0 %v8172
    %v8405 = vpop.f32.mrb[0].mxu0
    %v8406 = vadd.f32 %v8081, %v8405
    %v8407 = vpop.f32.mrb[0].mxu0
    %v8408 = vpop.f32.mrb[0].mxu0
    %v8409 = vadd.f32 %v8081, %v8408
    %v8410 = vpop.f32.mrb[0].mxu0
    %8411 = vmatprep.mubr.bf16.mxu0 0
    %8412 = vmatmul.mubr.bf16.gmra.mrb[0].mxu0 %v8175
    %v8413 = vpop.f32.mrb[0].mxu0
    %v8414 = vadd.f32 %v8081, %v8413
    %v8415 = vpop.f32.mrb[0].mxu0
    %v8416 = vpop.f32.mrb[0].mxu0
    %v8417 = vadd.f32 %v8081, %v8416
    %v8418 = vpop.f32.mrb[0].mxu0
    %8419 = vmatprep.mubr.bf16.mxu0 0
    %8420 = vmatmul.mubr.bf16.gmra.mrb[0].mxu0 %v8178
    %v8421 = vpop.f32.mrb[0].mxu0
    %v8422 = vadd.f32 %v8081, %v8421
    %v8423 = vpop.f32.mrb[0].mxu0
    %v8424 = vpop.f32.mrb[0].mxu0
    %v8425 = vadd.f32 %v8081, %v8424
    %v8426 = vpop.f32.mrb[0].mxu0
    %8427 = vmatprep.mubr.bf16.mxu0 0
    %8428 = vmatmul.mubr.bf16.gmra.mrb[0].mxu0 %v8181
    %v8429 = vpop.f32.mrb[0].mxu0
    %v8430 = vadd.f32 %v8081, %v8429
    %v8431 = vpop.f32.mrb[0].mxu0
    %v8432 = vpop.f32.mrb[0].mxu0
    %v8433 = vadd.f32 %v8081, %v8432
    %v8434 = vpop.f32.mrb[0].mxu0
    %8435 = vmatprep.mubr.bf16.mxu0 0
    %8436 = vmatmul.mubr.bf16.gmra.mrb[0].mxu0 %v8184
    %v8437 = vpop.f32.mrb[0].mxu0
    %v8438 = vadd.f32 %v8081, %v8437
    %v8439 = vpop.f32.mrb[0].mxu0
    %v8440 = vpop.f32.mrb[0].mxu0
    %v8441 = vadd.f32 %v8081, %v8440
    %v8442 = vpop.f32.mrb[0].mxu0
    %8443 = vmatprep.mubr.bf16.mxu0 0
    %8444 = vmatmul.mubr.bf16.gmra.mrb[0].mxu0 %v8187
    %v8445 = vpop.f32.mrb[0].mxu0
    %v8446 = vadd.f32 %v8081, %v8445
    %v8447 = vpop.f32.mrb[0].mxu0
    %v8448 = vpop.f32.mrb[0].mxu0
    %v8449 = vadd.f32 %v8081, %v8448
    %v8450 = vpop.f32.mrb[0].mxu0
    %8451 = vmatprep.mubr.bf16.mxu0 0
    %8452 = vmatmul.mubr.bf16.gmra.mrb[0].mxu0 %v8190
    %v8453 = vpop.f32.mrb[0].mxu0
    %v8454 = vadd.f32 %v8081, %v8453
    %v8455 = vpop.f32.mrb[0].mxu0
    %v8456 = vpop.f32.mrb[0].mxu0
    %v8457 = vadd.f32 %v8081, %v8456
    %v8458 = vpop.f32.mrb[0].mxu0
    %8459 = vmatprep.mubr.bf16.mxu0 0
    %8460 = vmatmul.mubr.bf16.gmra.mrb[0].mxu0 %v8193
    %v8461 = vpop.f32.mrb[0].mxu0
    %v8462 = vadd.f32 %v8081, %v8461
    %v8463 = vpop.f32.mrb[0].mxu0
    %v8464 = vpop.f32.mrb[0].mxu0
    %v8465 = vadd.f32 %v8081, %v8464
    %v8466 = vpop.f32.mrb[0].mxu0
    %8467 = vmatprep.mubr.bf16.mxu0 0
    %8468 = vmatmul.mubr.bf16.gmra.mrb[0].mxu0 %v8196
    %v8469 = vpop.f32.mrb[0].mxu0
    %v8470 = vadd.f32 %v8081, %v8469
    %v8471 = vpop.f32.mrb[0].mxu0
    %v8472 = vpop.f32.mrb[0].mxu0
    %v8473 = vadd.f32 %v8081, %v8472
    %v8474 = vpop.f32.mrb[0].mxu0
    %8475 = vmatprep.mubr.bf16.mxu0 0
    %8476 = vmatmul.mubr.bf16.gmra.mrb[0].mxu0 %v8199
    %v8477 = vpop.f32.mrb[0].mxu0
    %v8478 = vadd.f32 %v8081, %v8477
    %v8479 = vpop.f32.mrb[0].mxu0
    %v8480 = vpop.f32.mrb[0].mxu0
    %v8481 = vadd.f32 %v8081, %v8480
    %v8482 = vpop.f32.mrb[0].mxu0
    %8483 = vmatprep.mubr.bf16.mxu0 0
    %8484 = vmatmul.mubr.bf16.gmra.mrb[0].mxu0 %v8202
    %v8485 = vpop.f32.mrb[0].mxu0
    %v8486 = vadd.f32 %v8081, %v8485
    %v8487 = vpop.f32.mrb[0].mxu0
    %v8488 = vpop.f32.mrb[0].mxu0
    %v8489 = vadd.f32 %v8081, %v8488
    %v8490 = vpop.f32.mrb[0].mxu0
    %8491 = vmatprep.mubr.bf16.mxu0 0
    %8492 = vmatmul.mubr.bf16.gmra.mrb[0].mxu0 %v8205
    %v8493 = vpop.f32.mrb[0].mxu0
    %v8494 = vadd.f32 %v8081, %v8493
    %v8495 = vpop.f32.mrb[0].mxu0
    %v8496 = vpop.f32.mrb[0].mxu0
    %v8497 = vadd.f32 %v8081, %v8496
    %v8498 = vpop.f32.mrb[0].mxu0
    %8499 = vdwg.mxu0
    %8500 = vst.msk [vmem:[#allocation3] sm:$0xff] %vm28, %v8246
    %8501 = vst.msk [vmem:[#allocation3 + $0x8] sm:$0xff] %vm28, %v8249
    %8502 = vst.msk [vmem:[#allocation3 + $0x10] sm:$0xff] %vm28, %v8254
    %8503 = vst.msk [vmem:[#allocation3 + $0x18] sm:$0xff] %vm28, %v8257
    %8504 = vst.msk [vmem:[#allocation3 + $0x20] sm:$0xff] %vm28, %v8262
    %8505 = vst.msk [vmem:[#allocation3 + $0x28] sm:$0xff] %vm28, %v8265
    %8506 = vst.msk [vmem:[#allocation3 + $0x30] sm:$0xff] %vm28, %v8270
    %8507 = vst.msk [vmem:[#allocation3 + $0x38] sm:$0xff] %vm28, %v8273
    %8508 = vst.msk [vmem:[#allocation3 + $0x40] sm:$0xff] %vm28, %v8278
    %8509 = vst.msk [vmem:[#allocation3 + $0x48] sm:$0xff] %vm28, %v8281
    %8510 = vst.msk [vmem:[#allocation3 + $0x50] sm:$0xff] %vm28, %v8286
    %8511 = vst.msk [vmem:[#allocation3 + $0x58] sm:$0xff] %vm28, %v8289
    %8512 = vst.msk [vmem:[#allocation3 + $0x60] sm:$0xff] %vm28, %v8294
    %8513 = vst.msk [vmem:[#allocation3 + $0x68] sm:$0xff] %vm28, %v8297
    %8514 = vst.msk [vmem:[#allocation3 + $0x70] sm:$0xff] %vm28, %v8302
    %8515 = vst.msk [vmem:[#allocation3 + $0x78] sm:$0xff] %vm28, %v8305
    %8516 = vst.msk [vmem:[#allocation3 + $0x80] sm:$0xff] %vm28, %v8310
    %8517 = vst.msk [vmem:[#allocation3 + $0x88] sm:$0xff] %vm28, %v8313
    %8518 = vst.msk [vmem:[#allocation3 + $0x90] sm:$0xff] %vm28, %v8318
    %8519 = vst.msk [vmem:[#allocation3 + $0x98] sm:$0xff] %vm28, %v8321
    %8520 = vst.msk [vmem:[#allocation3 + $0xa0] sm:$0xff] %vm28, %v8326
    %8521 = vst.msk [vmem:[#allocation3 + $0xa8] sm:$0xff] %vm28, %v8329
    %8522 = vst.msk [vmem:[#allocation3 + $0xb0] sm:$0xff] %vm28, %v8334
    %8523 = vst.msk [vmem:[#allocation3 + $0xb8] sm:$0xff] %vm28, %v8337
    %8524 = vst.msk [vmem:[#allocation3 + $0xc0] sm:$0xff] %vm28, %v8342
    %8525 = vst.msk [vmem:[#allocation3 + $0xc8] sm:$0xff] %vm28, %v8345
    %8526 = vst.msk [vmem:[#allocation3 + $0xd0] sm:$0xff] %vm28, %v8350
    %8527 = vst.msk [vmem:[#allocation3 + $0xd8] sm:$0xff] %vm28, %v8353
    %8528 = vst.msk [vmem:[#allocation3 + $0xe0] sm:$0xff] %vm28, %v8358
    %8529 = vst.msk [vmem:[#allocation3 + $0xe8] sm:$0xff] %vm28, %v8361
    %8530 = vst.msk [vmem:[#allocation3 + $0xf0] sm:$0xff] %vm28, %v8366
    %8531 = vst.msk [vmem:[#allocation3 + $0xf8] sm:$0xff] %vm28, %v8369
    %8532 = vst.msk [vmem:[#allocation3 + $0x100] sm:$0xff] %vm28, %v8374
    %8533 = vst.msk [vmem:[#allocation3 + $0x108] sm:$0xff] %vm28, %v8377
    %8534 = vst.msk [vmem:[#allocation3 + $0x110] sm:$0xff] %vm28, %v8382
    %8535 = vst.msk [vmem:[#allocation3 + $0x118] sm:$0xff] %vm28, %v8385
    %8536 = vst.msk [vmem:[#allocation3 + $0x120] sm:$0xff] %vm28, %v8390
    %8537 = vst.msk [vmem:[#allocation3 + $0x128] sm:$0xff] %vm28, %v8393
    %8538 = vst.msk [vmem:[#allocation3 + $0x130] sm:$0xff] %vm28, %v8398
    %8539 = vst.msk [vmem:[#allocation3 + $0x138] sm:$0xff] %vm28, %v8401
    %8540 = vst.msk [vmem:[#allocation3 + $0x140] sm:$0xff] %vm28, %v8406
    %8541 = vst.msk [vmem:[#allocation3 + $0x148] sm:$0xff] %vm28, %v8409
    %8542 = vst.msk [vmem:[#allocation3 + $0x150] sm:$0xff] %vm28, %v8414
    %8543 = vst.msk [vmem:[#allocation3 + $0x158] sm:$0xff] %vm28, %v8417
    %8544 = vst.msk [vmem:[#allocation3 + $0x160] sm:$0xff] %vm28, %v8422
    %8545 = vst.msk [vmem:[#allocation3 + $0x168] sm:$0xff] %vm28, %v8425
    %8546 = vst.msk [vmem:[#allocation3 + $0x170] sm:$0xff] %vm28, %v8430
    %8547 = vst.msk [vmem:[#allocation3 + $0x178] sm:$0xff] %vm28, %v8433
    %8548 = vst.msk [vmem:[#allocation3 + $0x180] sm:$0xff] %vm28, %v8438
    %8549 = vst.msk [vmem:[#allocation3 + $0x188] sm:$0xff] %vm28, %v8441
    %8550 = vst.msk [vmem:[#allocation3 + $0x190] sm:$0xff] %vm28, %v8446
    %8551 = vst.msk [vmem:[#allocation3 + $0x198] sm:$0xff] %vm28, %v8449
    %8552 = vst.msk [vmem:[#allocation3 + $0x1a0] sm:$0xff] %vm28, %v8454
    %8553 = vst.msk [vmem:[#allocation3 + $0x1a8] sm:$0xff] %vm28, %v8457
    %8554 = vst.msk [vmem:[#allocation3 + $0x1b0] sm:$0xff] %vm28, %v8462
    %8555 = vst.msk [vmem:[#allocation3 + $0x1b8] sm:$0xff] %vm28, %v8465
    %8556 = vst.msk [vmem:[#allocation3 + $0x1c0] sm:$0xff] %vm28, %v8470
    %8557 = vst.msk [vmem:[#allocation3 + $0x1c8] sm:$0xff] %vm28, %v8473
    %8558 = vst.msk [vmem:[#allocation3 + $0x1d0] sm:$0xff] %vm28, %v8478
    %8559 = vst.msk [vmem:[#allocation3 + $0x1d8] sm:$0xff] %vm28, %v8481
    %8560 = vst.msk [vmem:[#allocation3 + $0x1e0] sm:$0xff] %vm28, %v8486
    %8561 = vst.msk [vmem:[#allocation3 + $0x1e8] sm:$0xff] %vm28, %v8489
    %8562 = vst.msk [vmem:[#allocation3 + $0x1f0] sm:$0xff] %vm28, %v8494
    %8563 = vst.msk [vmem:[#allocation3 + $0x1f8] sm:$0xff] %vm28, %v8497
    %v8564 = vld [vmem:[#allocation3] ss:$2 sm:$0xff]
    %s8565 = scalar_lea.vmem [#allocation3], 16
    %v8566 = vld [vmem:[%s8565] ss:$2 sm:$0xff]
    %s8567 = scalar_lea.vmem [#allocation3], 32
    %v8568 = vld [vmem:[%s8567] ss:$2 sm:$0xff]
    %s8569 = scalar_lea.vmem [#allocation3], 48
    %v8570 = vld [vmem:[%s8569] ss:$2 sm:$0xff]
    %s8571 = scalar_lea.vmem [#allocation3], 64
    %v8572 = vld [vmem:[%s8571] ss:$2 sm:$0xff]
    %s8573 = scalar_lea.vmem [#allocation3], 80
    %v8574 = vld [vmem:[%s8573] ss:$2 sm:$0xff]
    %s8575 = scalar_lea.vmem [#allocation3], 96
    %v8576 = vld [vmem:[%s8575] ss:$2 sm:$0xff]
    %s8577 = scalar_lea.vmem [#allocation3], 112
    %v8578 = vld [vmem:[%s8577] ss:$2 sm:$0xff]
    %s8579 = scalar_lea.vmem [#allocation3], 128
    %v8580 = vld [vmem:[%s8579] ss:$2 sm:$0xff]
    %s8581 = scalar_lea.vmem [#allocation3], 144
    %v8582 = vld [vmem:[%s8581] ss:$2 sm:$0xff]
    %s8583 = scalar_lea.vmem [#allocation3], 160
    %v8584 = vld [vmem:[%s8583] ss:$2 sm:$0xff]
    %s8585 = scalar_lea.vmem [#allocation3], 176
    %v8586 = vld [vmem:[%s8585] ss:$2 sm:$0xff]
    %s8587 = scalar_lea.vmem [#allocation3], 192
    %v8588 = vld [vmem:[%s8587] ss:$2 sm:$0xff]
    %s8589 = scalar_lea.vmem [#allocation3], 208
    %v8590 = vld [vmem:[%s8589] ss:$2 sm:$0xff]
    %s8591 = scalar_lea.vmem [#allocation3], 224
    %v8592 = vld [vmem:[%s8591] ss:$2 sm:$0xff]
    %s8593 = scalar_lea.vmem [#allocation3], 240
    %v8594 = vld [vmem:[%s8593] ss:$2 sm:$0xff]
    %s8595 = scalar_lea.vmem [#allocation3], 256
    %v8596 = vld [vmem:[%s8595] ss:$2 sm:$0xff]
    %s8597 = scalar_lea.vmem [#allocation3], 272
    %v8598 = vld [vmem:[%s8597] ss:$2 sm:$0xff]
    %s8599 = scalar_lea.vmem [#allocation3], 288
    %v8600 = vld [vmem:[%s8599] ss:$2 sm:$0xff]
    %s8601 = scalar_lea.vmem [#allocation3], 304
    %v8602 = vld [vmem:[%s8601] ss:$2 sm:$0xff]
    %s8603 = scalar_lea.vmem [#allocation3], 320
    %v8604 = vld [vmem:[%s8603] ss:$2 sm:$0xff]
    %s8605 = scalar_lea.vmem [#allocation3], 336
    %v8606 = vld [vmem:[%s8605] ss:$2 sm:$0xff]
    %s8607 = scalar_lea.vmem [#allocation3], 352
    %v8608 = vld [vmem:[%s8607] ss:$2 sm:$0xff]
    %s8609 = scalar_lea.vmem [#allocation3], 368
    %v8610 = vld [vmem:[%s8609] ss:$2 sm:$0xff]
    %s8611 = scalar_lea.vmem [#allocation3], 384
    %v8612 = vld [vmem:[%s8611] ss:$2 sm:$0xff]
    %s8613 = scalar_lea.vmem [#allocation3], 400
    %v8614 = vld [vmem:[%s8613] ss:$2 sm:$0xff]
    %s8615 = scalar_lea.vmem [#allocation3], 416
    %v8616 = vld [vmem:[%s8615] ss:$2 sm:$0xff]
    %s8617 = scalar_lea.vmem [#allocation3], 432
    %v8618 = vld [vmem:[%s8617] ss:$2 sm:$0xff]
    %s8619 = scalar_lea.vmem [#allocation3], 448
    %v8620 = vld [vmem:[%s8619] ss:$2 sm:$0xff]
    %s8621 = scalar_lea.vmem [#allocation3], 464
    %v8622 = vld [vmem:[%s8621] ss:$2 sm:$0xff]
    %s8623 = scalar_lea.vmem [#allocation3], 480
    %v8624 = vld [vmem:[%s8623] ss:$2 sm:$0xff]
    %s8625 = scalar_lea.vmem [#allocation3], 496
    %v8626 = vld [vmem:[%s8625] ss:$2 sm:$0xff]
    %s8627 = scalar_lea.vmem [#allocation3], 1
    %v8628 = vld [vmem:[%s8627] ss:$2 sm:$0xff]
    %s8629 = scalar_lea.vmem [#allocation3], 17
    %v8630 = vld [vmem:[%s8629] ss:$2 sm:$0xff]
    %s8631 = scalar_lea.vmem [#allocation3], 33
    %v8632 = vld [vmem:[%s8631] ss:$2 sm:$0xff]
    %s8633 = scalar_lea.vmem [#allocation3], 49
    %v8634 = vld [vmem:[%s8633] ss:$2 sm:$0xff]
    %s8635 = scalar_lea.vmem [#allocation3], 65
    %v8636 = vld [vmem:[%s8635] ss:$2 sm:$0xff]
    %s8637 = scalar_lea.vmem [#allocation3], 81
    %v8638 = vld [vmem:[%s8637] ss:$2 sm:$0xff]
    %s8639 = scalar_lea.vmem [#allocation3], 97
    %v8640 = vld [vmem:[%s8639] ss:$2 sm:$0xff]
    %s8641 = scalar_lea.vmem [#allocation3], 113
    %v8642 = vld [vmem:[%s8641] ss:$2 sm:$0xff]
    %s8643 = scalar_lea.vmem [#allocation3], 129
    %v8644 = vld [vmem:[%s8643] ss:$2 sm:$0xff]
    %s8645 = scalar_lea.vmem [#allocation3], 145
    %v8646 = vld [vmem:[%s8645] ss:$2 sm:$0xff]
    %s8647 = scalar_lea.vmem [#allocation3], 161
    %v8648 = vld [vmem:[%s8647] ss:$2 sm:$0xff]
    %s8649 = scalar_lea.vmem [#allocation3], 177
    %v8650 = vld [vmem:[%s8649] ss:$2 sm:$0xff]
    %s8651 = scalar_lea.vmem [#allocation3], 193
    %v8652 = vld [vmem:[%s8651] ss:$2 sm:$0xff]
    %s8653 = scalar_lea.vmem [#allocation3], 209
    %v8654 = vld [vmem:[%s8653] ss:$2 sm:$0xff]
    %s8655 = scalar_lea.vmem [#allocation3], 225
    %v8656 = vld [vmem:[%s8655] ss:$2 sm:$0xff]
    %s8657 = scalar_lea.vmem [#allocation3], 241
    %v8658 = vld [vmem:[%s8657] ss:$2 sm:$0xff]
    %s8659 = scalar_lea.vmem [#allocation3], 257
    %v8660 = vld [vmem:[%s8659] ss:$2 sm:$0xff]
    %s8661 = scalar_lea.vmem [#allocation3], 273
    %v8662 = vld [vmem:[%s8661] ss:$2 sm:$0xff]
    %s8663 = scalar_lea.vmem [#allocation3], 289
    %v8664 = vld [vmem:[%s8663] ss:$2 sm:$0xff]
    %s8665 = scalar_lea.vmem [#allocation3], 305
    %v8666 = vld [vmem:[%s8665] ss:$2 sm:$0xff]
    %s8667 = scalar_lea.vmem [#allocation3], 321
    %v8668 = vld [vmem:[%s8667] ss:$2 sm:$0xff]
    %s8669 = scalar_lea.vmem [#allocation3], 337
    %v8670 = vld [vmem:[%s8669] ss:$2 sm:$0xff]
    %s8671 = scalar_lea.vmem [#allocation3], 353
    %v8672 = vld [vmem:[%s8671] ss:$2 sm:$0xff]
    %s8673 = scalar_lea.vmem [#allocation3], 369
    %v8674 = vld [vmem:[%s8673] ss:$2 sm:$0xff]
    %s8675 = scalar_lea.vmem [#allocation3], 385
    %v8676 = vld [vmem:[%s8675] ss:$2 sm:$0xff]
    %s8677 = scalar_lea.vmem [#allocation3], 401
    %v8678 = vld [vmem:[%s8677] ss:$2 sm:$0xff]
    %s8679 = scalar_lea.vmem [#allocation3], 417
    %v8680 = vld [vmem:[%s8679] ss:$2 sm:$0xff]
    %s8681 = scalar_lea.vmem [#allocation3], 433
    %v8682 = vld [vmem:[%s8681] ss:$2 sm:$0xff]
    %s8683 = scalar_lea.vmem [#allocation3], 449
    %v8684 = vld [vmem:[%s8683] ss:$2 sm:$0xff]
    %s8685 = scalar_lea.vmem [#allocation3], 465
    %v8686 = vld [vmem:[%s8685] ss:$2 sm:$0xff]
    %s8687 = scalar_lea.vmem [#allocation3], 481
    %v8688 = vld [vmem:[%s8687] ss:$2 sm:$0xff]
    %s8689 = scalar_lea.vmem [#allocation3], 497
    %v8690 = vld [vmem:[%s8689] ss:$2 sm:$0xff]
    %v8691 = vadd.f32 %v8564, %v8628
    %v8692 = vadd.f32 %v8566, %v8630
    %v8693 = vadd.f32 %v8568, %v8632
    %v8694 = vadd.f32 %v8570, %v8634
    %v8695 = vadd.f32 %v8572, %v8636
    %v8696 = vadd.f32 %v8574, %v8638
    %v8697 = vadd.f32 %v8576, %v8640
    %v8698 = vadd.f32 %v8578, %v8642
    %v8699 = vadd.f32 %v8580, %v8644
    %v8700 = vadd.f32 %v8582, %v8646
    %v8701 = vadd.f32 %v8584, %v8648
    %v8702 = vadd.f32 %v8586, %v8650
    %v8703 = vadd.f32 %v8588, %v8652
    %v8704 = vadd.f32 %v8590, %v8654
    %v8705 = vadd.f32 %v8592, %v8656
    %v8706 = vadd.f32 %v8594, %v8658
    %v8707 = vadd.f32 %v8596, %v8660
    %v8708 = vadd.f32 %v8598, %v8662
    %v8709 = vadd.f32 %v8600, %v8664
    %v8710 = vadd.f32 %v8602, %v8666
    %v8711 = vadd.f32 %v8604, %v8668
    %v8712 = vadd.f32 %v8606, %v8670
    %v8713 = vadd.f32 %v8608, %v8672
    %v8714 = vadd.f32 %v8610, %v8674
    %v8715 = vadd.f32 %v8612, %v8676
    %v8716 = vadd.f32 %v8614, %v8678
    %v8717 = vadd.f32 %v8616, %v8680
    %v8718 = vadd.f32 %v8618, %v8682
    %v8719 = vadd.f32 %v8620, %v8684
    %v8720 = vadd.f32 %v8622, %v8686
    %v8721 = vadd.f32 %v8624, %v8688
    %v8722 = vadd.f32 %v8626, %v8690
    %v8723 = vadd.f32 %v8691, %v8692
    %v8724 = vadd.f32 %v8693, %v8694
    %v8725 = vadd.f32 %v8695, %v8696
    %v8726 = vadd.f32 %v8697, %v8698
    %v8727 = vadd.f32 %v8699, %v8700
    %v8728 = vadd.f32 %v8701, %v8702
    %v8729 = vadd.f32 %v8703, %v8704
    %v8730 = vadd.f32 %v8705, %v8706
    %v8731 = vadd.f32 %v8707, %v8708
    %v8732 = vadd.f32 %v8709, %v8710
    %v8733 = vadd.f32 %v8711, %v8712
    %v8734 = vadd.f32 %v8713, %v8714
    %v8735 = vadd.f32 %v8715, %v8716
    %v8736 = vadd.f32 %v8717, %v8718
    %v8737 = vadd.f32 %v8719, %v8720
    %v8738 = vadd.f32 %v8721, %v8722
    %v8739 = vmul.f32 %v8723, 0.25
    %v8740 = vmul.f32 %v8724, 0.25
    %v8741 = vmul.f32 %v8725, 0.25
    %v8742 = vmul.f32 %v8726, 0.25
    %v8743 = vmul.f32 %v8727, 0.25
    %v8744 = vmul.f32 %v8728, 0.25
    %v8745 = vmul.f32 %v8729, 0.25
    %v8746 = vmul.f32 %v8730, 0.25
    %v8747 = vmul.f32 %v8731, 0.25
    %v8748 = vmul.f32 %v8732, 0.25
    %v8749 = vmul.f32 %v8733, 0.25
    %v8750 = vmul.f32 %v8734, 0.25
    %v8751 = vmul.f32 %v8735, 0.25
    %v8752 = vmul.f32 %v8736, 0.25
    %v8753 = vmul.f32 %v8737, 0.25
    %v8754 = vmul.f32 %v8738, 0.25
    %8755 = vst.msk [vmem:[#allocation3] sm:$0xff] %vm180, %v116
    %8756 = vst.msk [vmem:[#allocation3 + $0x8] sm:$0xff] %vm180, %v117
    %8757 = vst.msk [vmem:[#allocation3 + $0x10] sm:$0xff] %vm180, %v118
    %8758 = vst.msk [vmem:[#allocation3 + $0x18] sm:$0xff] %vm180, %v119
    %8759 = vst.msk [vmem:[#allocation3 + $0x20] sm:$0xff] %vm180, %v120
    %8760 = vst.msk [vmem:[#allocation3 + $0x28] sm:$0xff] %vm180, %v121
    %8761 = vst.msk [vmem:[#allocation3 + $0x30] sm:$0xff] %vm180, %v122
    %8762 = vst.msk [vmem:[#allocation3 + $0x38] sm:$0xff] %vm180, %v123
    %8763 = vst.msk [vmem:[#allocation3 + $0x40] sm:$0xff] %vm180, %v124
    %8764 = vst.msk [vmem:[#allocation3 + $0x48] sm:$0xff] %vm180, %v125
    %8765 = vst.msk [vmem:[#allocation3 + $0x50] sm:$0xff] %vm180, %v126
    %8766 = vst.msk [vmem:[#allocation3 + $0x58] sm:$0xff] %vm180, %v127
    %8767 = vst.msk [vmem:[#allocation3 + $0x60] sm:$0xff] %vm180, %v128
    %8768 = vst.msk [vmem:[#allocation3 + $0x68] sm:$0xff] %vm180, %v129
    %8769 = vst.msk [vmem:[#allocation3 + $0x70] sm:$0xff] %vm180, %v130
    %8770 = vst.msk [vmem:[#allocation3 + $0x78] sm:$0xff] %vm180, %v131
    %8771 = vst.msk [vmem:[#allocation3 + $0x80] sm:$0xff] %vm180, %v132
    %8772 = vst.msk [vmem:[#allocation3 + $0x88] sm:$0xff] %vm180, %v133
    %8773 = vst.msk [vmem:[#allocation3 + $0x90] sm:$0xff] %vm180, %v134
    %8774 = vst.msk [vmem:[#allocation3 + $0x98] sm:$0xff] %vm180, %v135
    %8775 = vst.msk [vmem:[#allocation3 + $0xa0] sm:$0xff] %vm180, %v136
    %8776 = vst.msk [vmem:[#allocation3 + $0xa8] sm:$0xff] %vm180, %v137
    %8777 = vst.msk [vmem:[#allocation3 + $0xb0] sm:$0xff] %vm180, %v138
    %8778 = vst.msk [vmem:[#allocation3 + $0xb8] sm:$0xff] %vm180, %v139
    %8779 = vst.msk [vmem:[#allocation3 + $0xc0] sm:$0xff] %vm180, %v140
    %8780 = vst.msk [vmem:[#allocation3 + $0xc8] sm:$0xff] %vm180, %v141
    %8781 = vst.msk [vmem:[#allocation3 + $0xd0] sm:$0xff] %vm180, %v142
    %8782 = vst.msk [vmem:[#allocation3 + $0xd8] sm:$0xff] %vm180, %v143
    %8783 = vst.msk [vmem:[#allocation3 + $0xe0] sm:$0xff] %vm180, %v144
    %8784 = vst.msk [vmem:[#allocation3 + $0xe8] sm:$0xff] %vm180, %v145
    %8785 = vst.msk [vmem:[#allocation3 + $0xf0] sm:$0xff] %vm180, %v146
    %8786 = vst.msk [vmem:[#allocation3 + $0xf8] sm:$0xff] %vm180, %v147
    %8787 = vst.msk [vmem:[#allocation3 + $0x100] sm:$0xff] %vm180, %v148
    %8788 = vst.msk [vmem:[#allocation3 + $0x108] sm:$0xff] %vm180, %v149
    %8789 = vst.msk [vmem:[#allocation3 + $0x110] sm:$0xff] %vm180, %v150
    %8790 = vst.msk [vmem:[#allocation3 + $0x118] sm:$0xff] %vm180, %v151
    %8791 = vst.msk [vmem:[#allocation3 + $0x120] sm:$0xff] %vm180, %v152
    %8792 = vst.msk [vmem:[#allocation3 + $0x128] sm:$0xff] %vm180, %v153
    %8793 = vst.msk [vmem:[#allocation3 + $0x130] sm:$0xff] %vm180, %v154
    %8794 = vst.msk [vmem:[#allocation3 + $0x138] sm:$0xff] %vm180, %v155
    %8795 = vst.msk [vmem:[#allocation3 + $0x140] sm:$0xff] %vm180, %v156
    %8796 = vst.msk [vmem:[#allocation3 + $0x148] sm:$0xff] %vm180, %v157
    %8797 = vst.msk [vmem:[#allocation3 + $0x150] sm:$0xff] %vm180, %v158
    %8798 = vst.msk [vmem:[#allocation3 + $0x158] sm:$0xff] %vm180, %v159
    %8799 = vst.msk [vmem:[#allocation3 + $0x160] sm:$0xff] %vm180, %v160
    %8800 = vst.msk [vmem:[#allocation3 + $0x168] sm:$0xff] %vm180, %v161
    %8801 = vst.msk [vmem:[#allocation3 + $0x170] sm:$0xff] %vm180, %v162
    %8802 = vst.msk [vmem:[#allocation3 + $0x178] sm:$0xff] %vm180, %v163
    %8803 = vst.msk [vmem:[#allocation3 + $0x180] sm:$0xff] %vm180, %v164
    %8804 = vst.msk [vmem:[#allocation3 + $0x188] sm:$0xff] %vm180, %v165
    %8805 = vst.msk [vmem:[#allocation3 + $0x190] sm:$0xff] %vm180, %v166
    %8806 = vst.msk [vmem:[#allocation3 + $0x198] sm:$0xff] %vm180, %v167
    %8807 = vst.msk [vmem:[#allocation3 + $0x1a0] sm:$0xff] %vm180, %v168
    %8808 = vst.msk [vmem:[#allocation3 + $0x1a8] sm:$0xff] %vm180, %v169
    %8809 = vst.msk [vmem:[#allocation3 + $0x1b0] sm:$0xff] %vm180, %v170
    %8810 = vst.msk [vmem:[#allocation3 + $0x1b8] sm:$0xff] %vm180, %v171
    %8811 = vst.msk [vmem:[#allocation3 + $0x1c0] sm:$0xff] %vm180, %v172
    %8812 = vst.msk [vmem:[#allocation3 + $0x1c8] sm:$0xff] %vm180, %v173
    %8813 = vst.msk [vmem:[#allocation3 + $0x1d0] sm:$0xff] %vm180, %v174
    %8814 = vst.msk [vmem:[#allocation3 + $0x1d8] sm:$0xff] %vm180, %v175
    %8815 = vst.msk [vmem:[#allocation3 + $0x1e0] sm:$0xff] %vm180, %v176
    %8816 = vst.msk [vmem:[#allocation3 + $0x1e8] sm:$0xff] %vm180, %v177
    %8817 = vst.msk [vmem:[#allocation3 + $0x1f0] sm:$0xff] %vm180, %v178
    %8818 = vst.msk [vmem:[#allocation3 + $0x1f8] sm:$0xff] %vm180, %v179
    %v8819 = vld [vmem:[#allocation3] ss:$2 sm:$0xff]
    %v8820 = vld [vmem:[%s8565] ss:$2 sm:$0xff]
    %v8821 = vld [vmem:[%s8567] ss:$2 sm:$0xff]
    %v8822 = vld [vmem:[%s8569] ss:$2 sm:$0xff]
    %v8823 = vld [vmem:[%s8571] ss:$2 sm:$0xff]
    %v8824 = vld [vmem:[%s8573] ss:$2 sm:$0xff]
    %v8825 = vld [vmem:[%s8575] ss:$2 sm:$0xff]
    %v8826 = vld [vmem:[%s8577] ss:$2 sm:$0xff]
    %v8827 = vld [vmem:[%s8579] ss:$2 sm:$0xff]
    %v8828 = vld [vmem:[%s8581] ss:$2 sm:$0xff]
    %v8829 = vld [vmem:[%s8583] ss:$2 sm:$0xff]
    %v8830 = vld [vmem:[%s8585] ss:$2 sm:$0xff]
    %v8831 = vld [vmem:[%s8587] ss:$2 sm:$0xff]
    %v8832 = vld [vmem:[%s8589] ss:$2 sm:$0xff]
    %v8833 = vld [vmem:[%s8591] ss:$2 sm:$0xff]
    %v8834 = vld [vmem:[%s8593] ss:$2 sm:$0xff]
    %v8835 = vld [vmem:[%s8595] ss:$2 sm:$0xff]
    %v8836 = vld [vmem:[%s8597] ss:$2 sm:$0xff]
    %v8837 = vld [vmem:[%s8599] ss:$2 sm:$0xff]
    %v8838 = vld [vmem:[%s8601] ss:$2 sm:$0xff]
    %v8839 = vld [vmem:[%s8603] ss:$2 sm:$0xff]
    %v8840 = vld [vmem:[%s8605] ss:$2 sm:$0xff]
    %v8841 = vld [vmem:[%s8607] ss:$2 sm:$0xff]
    %v8842 = vld [vmem:[%s8609] ss:$2 sm:$0xff]
    %v8843 = vld [vmem:[%s8611] ss:$2 sm:$0xff]
    %v8844 = vld [vmem:[%s8613] ss:$2 sm:$0xff]
    %v8845 = vld [vmem:[%s8615] ss:$2 sm:$0xff]
    %v8846 = vld [vmem:[%s8617] ss:$2 sm:$0xff]
    %v8847 = vld [vmem:[%s8619] ss:$2 sm:$0xff]
    %v8848 = vld [vmem:[%s8621] ss:$2 sm:$0xff]
    %v8849 = vld [vmem:[%s8623] ss:$2 sm:$0xff]
    %v8850 = vld [vmem:[%s8625] ss:$2 sm:$0xff]
    %v8851 = vld [vmem:[%s8627] ss:$2 sm:$0xff]
    %v8852 = vld [vmem:[%s8629] ss:$2 sm:$0xff]
    %v8853 = vld [vmem:[%s8631] ss:$2 sm:$0xff]
    %v8854 = vld [vmem:[%s8633] ss:$2 sm:$0xff]
    %v8855 = vld [vmem:[%s8635] ss:$2 sm:$0xff]
    %v8856 = vld [vmem:[%s8637] ss:$2 sm:$0xff]
    %v8857 = vld [vmem:[%s8639] ss:$2 sm:$0xff]
    %v8858 = vld [vmem:[%s8641] ss:$2 sm:$0xff]
    %v8859 = vld [vmem:[%s8643] ss:$2 sm:$0xff]
    %v8860 = vld [vmem:[%s8645] ss:$2 sm:$0xff]
    %v8861 = vld [vmem:[%s8647] ss:$2 sm:$0xff]
    %v8862 = vld [vmem:[%s8649] ss:$2 sm:$0xff]
    %v8863 = vld [vmem:[%s8651] ss:$2 sm:$0xff]
    %v8864 = vld [vmem:[%s8653] ss:$2 sm:$0xff]
    %v8865 = vld [vmem:[%s8655] ss:$2 sm:$0xff]
    %v8866 = vld [vmem:[%s8657] ss:$2 sm:$0xff]
    %v8867 = vld [vmem:[%s8659] ss:$2 sm:$0xff]
    %v8868 = vld [vmem:[%s8661] ss:$2 sm:$0xff]
    %v8869 = vld [vmem:[%s8663] ss:$2 sm:$0xff]
    %v8870 = vld [vmem:[%s8665] ss:$2 sm:$0xff]
    %v8871 = vld [vmem:[%s8667] ss:$2 sm:$0xff]
    %v8872 = vld [vmem:[%s8669] ss:$2 sm:$0xff]
    %v8873 = vld [vmem:[%s8671] ss:$2 sm:$0xff]
    %v8874 = vld [vmem:[%s8673] ss:$2 sm:$0xff]
    %v8875 = vld [vmem:[%s8675] ss:$2 sm:$0xff]
    %v8876 = vld [vmem:[%s8677] ss:$2 sm:$0xff]
    %v8877 = vld [vmem:[%s8679] ss:$2 sm:$0xff]
    %v8878 = vld [vmem:[%s8681] ss:$2 sm:$0xff]
    %v8879 = vld [vmem:[%s8683] ss:$2 sm:$0xff]
    %v8880 = vld [vmem:[%s8685] ss:$2 sm:$0xff]
    %v8881 = vld [vmem:[%s8687] ss:$2 sm:$0xff]
    %v8882 = vld [vmem:[%s8689] ss:$2 sm:$0xff]
    %v8883 = vadd.f32 %v8819, %v8851
    %v8884 = vadd.f32 %v8820, %v8852
    %v8885 = vadd.f32 %v8821, %v8853
    %v8886 = vadd.f32 %v8822, %v8854
    %v8887 = vadd.f32 %v8823, %v8855
    %v8888 = vadd.f32 %v8824, %v8856
    %v8889 = vadd.f32 %v8825, %v8857
    %v8890 = vadd.f32 %v8826, %v8858
    %v8891 = vadd.f32 %v8827, %v8859
    %v8892 = vadd.f32 %v8828, %v8860
    %v8893 = vadd.f32 %v8829, %v8861
    %v8894 = vadd.f32 %v8830, %v8862
    %v8895 = vadd.f32 %v8831, %v8863
    %v8896 = vadd.f32 %v8832, %v8864
    %v8897 = vadd.f32 %v8833, %v8865
    %v8898 = vadd.f32 %v8834, %v8866
    %v8899 = vadd.f32 %v8835, %v8867
    %v8900 = vadd.f32 %v8836, %v8868
    %v8901 = vadd.f32 %v8837, %v8869
    %v8902 = vadd.f32 %v8838, %v8870
    %v8903 = vadd.f32 %v8839, %v8871
    %v8904 = vadd.f32 %v8840, %v8872
    %v8905 = vadd.f32 %v8841, %v8873
    %v8906 = vadd.f32 %v8842, %v8874
    %v8907 = vadd.f32 %v8843, %v8875
    %v8908 = vadd.f32 %v8844, %v8876
    %v8909 = vadd.f32 %v8845, %v8877
    %v8910 = vadd.f32 %v8846, %v8878
    %v8911 = vadd.f32 %v8847, %v8879
    %v8912 = vadd.f32 %v8848, %v8880
    %v8913 = vadd.f32 %v8849, %v8881
    %v8914 = vadd.f32 %v8850, %v8882
    %v8915 = vadd.f32 %v8883, %v8884
    %v8916 = vadd.f32 %v8885, %v8886
    %v8917 = vadd.f32 %v8887, %v8888
    %v8918 = vadd.f32 %v8889, %v8890
    %v8919 = vadd.f32 %v8891, %v8892
    %v8920 = vadd.f32 %v8893, %v8894
    %v8921 = vadd.f32 %v8895, %v8896
    %v8922 = vadd.f32 %v8897, %v8898
    %v8923 = vadd.f32 %v8899, %v8900
    %v8924 = vadd.f32 %v8901, %v8902
    %v8925 = vadd.f32 %v8903, %v8904
    %v8926 = vadd.f32 %v8905, %v8906
    %v8927 = vadd.f32 %v8907, %v8908
    %v8928 = vadd.f32 %v8909, %v8910
    %v8929 = vadd.f32 %v8911, %v8912
    %v8930 = vadd.f32 %v8913, %v8914
    %v8931 = vmul.f32 %v8915, 0.25
    %v8932 = vmul.f32 %v8916, 0.25
    %v8933 = vmul.f32 %v8917, 0.25
    %v8934 = vmul.f32 %v8918, 0.25
    %v8935 = vmul.f32 %v8919, 0.25
    %v8936 = vmul.f32 %v8920, 0.25
    %v8937 = vmul.f32 %v8921, 0.25
    %v8938 = vmul.f32 %v8922, 0.25
    %v8939 = vmul.f32 %v8923, 0.25
    %v8940 = vmul.f32 %v8924, 0.25
    %v8941 = vmul.f32 %v8925, 0.25
    %v8942 = vmul.f32 %v8926, 0.25
    %v8943 = vmul.f32 %v8927, 0.25
    %v8944 = vmul.f32 %v8928, 0.25
    %v8945 = vmul.f32 %v8929, 0.25
    %v8946 = vmul.f32 %v8930, 0.25
    %v8947 = vsel %vm180, %v8931, 0.0
    %v8948 = vsel %vm180, %v8932, 0.0
    %v8949 = vadd.f32 %v8947, %v8948
    %v8950 = vsel %vm180, %v8933, 0.0
    %v8951 = vadd.f32 %v8949, %v8950
    %v8952 = vsel %vm180, %v8934, 0.0
    %v8953 = vadd.f32 %v8951, %v8952
    %v8954 = vsel %vm180, %v8935, 0.0
    %v8955 = vadd.f32 %v8953, %v8954
    %v8956 = vsel %vm180, %v8936, 0.0
    %v8957 = vadd.f32 %v8955, %v8956
    %v8958 = vsel %vm180, %v8937, 0.0
    %v8959 = vadd.f32 %v8957, %v8958
    %v8960 = vsel %vm180, %v8938, 0.0
    %v8961 = vadd.f32 %v8959, %v8960
    %v8962 = vsel %vm180, %v8939, 0.0
    %v8963 = vadd.f32 %v8961, %v8962
    %v8964 = vsel %vm180, %v8940, 0.0
    %v8965 = vadd.f32 %v8963, %v8964
    %v8966 = vsel %vm180, %v8941, 0.0
    %v8967 = vadd.f32 %v8965, %v8966
    %v8968 = vsel %vm180, %v8942, 0.0
    %v8969 = vadd.f32 %v8967, %v8968
    %v8970 = vsel %vm180, %v8943, 0.0
    %v8971 = vadd.f32 %v8969, %v8970
    %v8972 = vsel %vm180, %v8944, 0.0
    %v8973 = vadd.f32 %v8971, %v8972
    %v8974 = vsel %vm180, %v8945, 0.0
    %v8975 = vadd.f32 %v8973, %v8974
    %v8976 = vsel %vm180, %v8946, 0.0
    %v8977 = vadd.f32 %v8975, %v8976
    %v8978 = vrot.slane %v8977, 4
    %v8979 = vadd.f32 %v8977, %v8978
    %v8980 = vrot.slane %v8979, 2
    %v8981 = vadd.f32 %v8979, %v8980
    %v8982 = vrot.slane %v8981, 1
    %v8983 = vadd.f32 %v8981, %v8982
    %v8984 = vrcp.pop 128.0
    %v8985 = vmul.f32 %v8983, %v8984
    %v8986 = vmul.f32 %v8931, %v8931
    %v8987 = vmul.f32 %v8932, %v8932
    %v8988 = vmul.f32 %v8933, %v8933
    %v8989 = vmul.f32 %v8934, %v8934
    %v8990 = vmul.f32 %v8935, %v8935
    %v8991 = vmul.f32 %v8936, %v8936
    %v8992 = vmul.f32 %v8937, %v8937
    %v8993 = vmul.f32 %v8938, %v8938
    %v8994 = vmul.f32 %v8939, %v8939
    %v8995 = vmul.f32 %v8940, %v8940
    %v8996 = vmul.f32 %v8941, %v8941
    %v8997 = vmul.f32 %v8942, %v8942
    %v8998 = vmul.f32 %v8943, %v8943
    %v8999 = vmul.f32 %v8944, %v8944
    %v9000 = vmul.f32 %v8945, %v8945
    %v9001 = vmul.f32 %v8946, %v8946
    %v9002 = vsel %vm180, %v8986, 0.0
    %v9003 = vsel %vm180, %v8987, 0.0
    %v9004 = vadd.f32 %v9002, %v9003
    %v9005 = vsel %vm180, %v8988, 0.0
    %v9006 = vadd.f32 %v9004, %v9005
    %v9007 = vsel %vm180, %v8989, 0.0
    %v9008 = vadd.f32 %v9006, %v9007
    %v9009 = vsel %vm180, %v8990, 0.0
    %v9010 = vadd.f32 %v9008, %v9009
    %v9011 = vsel %vm180, %v8991, 0.0
    %v9012 = vadd.f32 %v9010, %v9011
    %v9013 = vsel %vm180, %v8992, 0.0
    %v9014 = vadd.f32 %v9012, %v9013
    %v9015 = vsel %vm180, %v8993, 0.0
    %v9016 = vadd.f32 %v9014, %v9015
    %v9017 = vsel %vm180, %v8994, 0.0
    %v9018 = vadd.f32 %v9016, %v9017
    %v9019 = vsel %vm180, %v8995, 0.0
    %v9020 = vadd.f32 %v9018, %v9019
    %v9021 = vsel %vm180, %v8996, 0.0
    %v9022 = vadd.f32 %v9020, %v9021
    %v9023 = vsel %vm180, %v8997, 0.0
    %v9024 = vadd.f32 %v9022, %v9023
    %v9025 = vsel %vm180, %v8998, 0.0
    %v9026 = vadd.f32 %v9024, %v9025
    %v9027 = vsel %vm180, %v8999, 0.0
    %v9028 = vadd.f32 %v9026, %v9027
    %v9029 = vsel %vm180, %v9000, 0.0
    %v9030 = vadd.f32 %v9028, %v9029
    %v9031 = vsel %vm180, %v9001, 0.0
    %v9032 = vadd.f32 %v9030, %v9031
    %v9033 = vrot.slane %v9032, 4
    %v9034 = vadd.f32 %v9032, %v9033
    %v9035 = vrot.slane %v9034, 2
    %v9036 = vadd.f32 %v9034, %v9035
    %v9037 = vrot.slane %v9036, 1
    %v9038 = vadd.f32 %v9036, %v9037
    %v9039 = vmul.f32 %v9038, %v8984
    %v9040 = vmul.f32 %v8985, %v8985
    %v9041 = vsub.f32 %v9039, %v9040
    %v9042 = vsub.f32 %v8931, %v8985
    %v9043 = vsub.f32 %v8932, %v8985
    %v9044 = vsub.f32 %v8933, %v8985
    %v9045 = vsub.f32 %v8934, %v8985
    %v9046 = vsub.f32 %v8935, %v8985
    %v9047 = vsub.f32 %v8936, %v8985
    %v9048 = vsub.f32 %v8937, %v8985
    %v9049 = vsub.f32 %v8938, %v8985
    %v9050 = vsub.f32 %v8939, %v8985
    %v9051 = vsub.f32 %v8940, %v8985
    %v9052 = vsub.f32 %v8941, %v8985
    %v9053 = vsub.f32 %v8942, %v8985
    %v9054 = vsub.f32 %v8943, %v8985
    %v9055 = vsub.f32 %v8944, %v8985
    %v9056 = vsub.f32 %v8945, %v8985
    %v9057 = vsub.f32 %v8946, %v8985
    %v9058 = vadd.f32 %v9041, 1e-05
    %v9059 = vrsqrt.pop %v9058
    %v9060 = vmul.f32 %v9042, %v9059
    %v9061 = vmul.f32 %v9043, %v9059
    %v9062 = vmul.f32 %v9044, %v9059
    %v9063 = vmul.f32 %v9045, %v9059
    %v9064 = vmul.f32 %v9046, %v9059
    %v9065 = vmul.f32 %v9047, %v9059
    %v9066 = vmul.f32 %v9048, %v9059
    %v9067 = vmul.f32 %v9049, %v9059
    %v9068 = vmul.f32 %v9050, %v9059
    %v9069 = vmul.f32 %v9051, %v9059
    %v9070 = vmul.f32 %v9052, %v9059
    %v9071 = vmul.f32 %v9053, %v9059
    %v9072 = vmul.f32 %v9054, %v9059
    %v9073 = vmul.f32 %v9055, %v9059
    %v9074 = vmul.f32 %v9056, %v9059
    %v9075 = vmul.f32 %v9057, %v9059
    %v9076 = vpack.c.bf16 %v9061, %v9060
    %v9077 = vpack.c.bf16 %v9063, %v9062
    %v9078 = vpack.c.bf16 %v9065, %v9064
    %v9079 = vpack.c.bf16 %v9067, %v9066
    %v9080 = vpack.c.bf16 %v9069, %v9068
    %v9081 = vpack.c.bf16 %v9071, %v9070
    %v9082 = vpack.c.bf16 %v9073, %v9072
    %v9083 = vpack.c.bf16 %v9075, %v9074
    %v9084 = vld [vmem:[%s5] sm:$0x3]
    %v9085 = vld [vmem:[%s6] sm:$0x1]
    %v9087 = vlaneseq
    %v9088 = vshrl.u32 %v9087, 7
    %v9089 = vsub.s32 0, %v9088
    %v9090 = vrot.slane %v9085, %v9089
    %v9093 = vsel %vm180, %v9076, 0
    %v9096 = vsel %vm180, %v9077, 0
    %v9099 = vsel %vm180, %v9078, 0
    %v9102 = vsel %vm180, %v9079, 0
    %v9105 = vsel %vm180, %v9080, 0
    %v9108 = vsel %vm180, %v9081, 0
    %v9111 = vsel %vm180, %v9082, 0
    %v9114 = vsel %vm180, %v9083, 0
    %v9117 = vsel %vm4010, %v9084, 0
    %9119 = vmatprep.subr.bf16.mxu0 0
    %9120 = vmatpush1.bf16.msra.mxu0 %v9117
    %9121 = vmatprep.subr.bf16.mxu0 0
    %9122 = vmatpush1.bf16.msra.mxu0 0
    %9123 = vmatprep.subr.bf16.mxu0 0
    %9124 = vmatpush1.bf16.msra.mxu0 0
    %9125 = vmatprep.subr.bf16.mxu0 0
    %9126 = vmatpush1.bf16.msra.mxu0 0
    %9127 = vmatprep.subr.bf16.mxu0 0
    %9128 = vmatpush1.bf16.msra.mxu0 0
    %9129 = vmatprep.subr.bf16.mxu0 0
    %9130 = vmatpush1.bf16.msra.mxu0 0
    %9131 = vmatprep.subr.bf16.mxu0 0
    %9132 = vmatpush1.bf16.msra.mxu0 0
    %9133 = vmatprep.subr.bf16.mxu0 0
    %9134 = vmatpush1.bf16.msra.mxu0 0
    %9135 = vmatprep.subr.bf16.mxu0 0
    %9136 = vmatpush1.bf16.msra.mxu0 0
    %9137 = vmatprep.subr.bf16.mxu0 0
    %9138 = vmatpush1.bf16.msra.mxu0 0
    %9139 = vmatprep.subr.bf16.mxu0 0
    %9140 = vmatpush1.bf16.msra.mxu0 0
    %9141 = vmatprep.subr.bf16.mxu0 0
    %9142 = vmatpush1.bf16.msra.mxu0 0
    %9143 = vmatprep.subr.bf16.mxu0 0
    %9144 = vmatpush1.bf16.msra.mxu0 0
    %9145 = vmatprep.subr.bf16.mxu0 0
    %9146 = vmatpush1.bf16.msra.mxu0 0
    %9147 = vmatprep.subr.bf16.mxu0 0
    %9148 = vmatpush1.bf16.msra.mxu0 0
    %9149 = vmatprep.subr.bf16.mxu0 0
    %9150 = vmatpush1.bf16.msra.mxu0 0
    %9151 = vmatprep.mubr.bf16.mxu0 0
    %9152 = vmatmul.mubr.bf16.gmra.mrb[0].mxu0 %v9093
    %v9153 = vpop.f32.mrb[0].mxu0
    %v9154 = vadd.f32 %v9090, %v9153
    %v9155 = vpop.f32.mrb[0].mxu0
    %v9156 = vpop.f32.mrb[0].mxu0
    %v9157 = vadd.f32 %v9090, %v9156
    %v9158 = vpop.f32.mrb[0].mxu0
    %9159 = vmatprep.mubr.bf16.mxu0 0
    %9160 = vmatmul.mubr.bf16.gmra.mrb[0].mxu0 %v9096
    %v9161 = vpop.f32.mrb[0].mxu0
    %v9162 = vadd.f32 %v9090, %v9161
    %v9163 = vpop.f32.mrb[0].mxu0
    %v9164 = vpop.f32.mrb[0].mxu0
    %v9165 = vadd.f32 %v9090, %v9164
    %v9166 = vpop.f32.mrb[0].mxu0
    %9167 = vmatprep.mubr.bf16.mxu0 0
    %9168 = vmatmul.mubr.bf16.gmra.mrb[0].mxu0 %v9099
    %v9169 = vpop.f32.mrb[0].mxu0
    %v9170 = vadd.f32 %v9090, %v9169
    %v9171 = vpop.f32.mrb[0].mxu0
    %v9172 = vpop.f32.mrb[0].mxu0
    %v9173 = vadd.f32 %v9090, %v9172
    %v9174 = vpop.f32.mrb[0].mxu0
    %9175 = vmatprep.mubr.bf16.mxu0 0
    %9176 = vmatmul.mubr.bf16.gmra.mrb[0].mxu0 %v9102
    %v9177 = vpop.f32.mrb[0].mxu0
    %v9178 = vadd.f32 %v9090, %v9177
    %v9179 = vpop.f32.mrb[0].mxu0
    %v9180 = vpop.f32.mrb[0].mxu0
    %v9181 = vadd.f32 %v9090, %v9180
    %v9182 = vpop.f32.mrb[0].mxu0
    %9183 = vmatprep.mubr.bf16.mxu0 0
    %9184 = vmatmul.mubr.bf16.gmra.mrb[0].mxu0 %v9105
    %v9185 = vpop.f32.mrb[0].mxu0
    %v9186 = vadd.f32 %v9090, %v9185
    %v9187 = vpop.f32.mrb[0].mxu0
    %v9188 = vpop.f32.mrb[0].mxu0
    %v9189 = vadd.f32 %v9090, %v9188
    %v9190 = vpop.f32.mrb[0].mxu0
    %9191 = vmatprep.mubr.bf16.mxu0 0
    %9192 = vmatmul.mubr.bf16.gmra.mrb[0].mxu0 %v9108
    %v9193 = vpop.f32.mrb[0].mxu0
    %v9194 = vadd.f32 %v9090, %v9193
    %v9195 = vpop.f32.mrb[0].mxu0
    %v9196 = vpop.f32.mrb[0].mxu0
    %v9197 = vadd.f32 %v9090, %v9196
    %v9198 = vpop.f32.mrb[0].mxu0
    %9199 = vmatprep.mubr.bf16.mxu0 0
    %9200 = vmatmul.mubr.bf16.gmra.mrb[0].mxu0 %v9111
    %v9201 = vpop.f32.mrb[0].mxu0
    %v9202 = vadd.f32 %v9090, %v9201
    %v9203 = vpop.f32.mrb[0].mxu0
    %v9204 = vpop.f32.mrb[0].mxu0
    %v9205 = vadd.f32 %v9090, %v9204
    %v9206 = vpop.f32.mrb[0].mxu0
    %9207 = vmatprep.mubr.bf16.mxu0 0
    %9208 = vmatmul.mubr.bf16.gmra.mrb[0].mxu0 %v9114
    %v9209 = vpop.f32.mrb[0].mxu0
    %v9210 = vadd.f32 %v9090, %v9209
    %v9211 = vpop.f32.mrb[0].mxu0
    %v9212 = vpop.f32.mrb[0].mxu0
    %v9213 = vadd.f32 %v9090, %v9212
    %v9214 = vpop.f32.mrb[0].mxu0
    %9215 = vdwg.mxu0
    %v9216 = vadd.f32 %v8739, %v9154
    %v9217 = vadd.f32 %v8740, %v9157
    %v9218 = vadd.f32 %v8741, %v9162
    %v9219 = vadd.f32 %v8742, %v9165
    %v9220 = vadd.f32 %v8743, %v9170
    %v9221 = vadd.f32 %v8744, %v9173
    %v9222 = vadd.f32 %v8745, %v9178
    %v9223 = vadd.f32 %v8746, %v9181
    %v9224 = vadd.f32 %v8747, %v9186
    %v9225 = vadd.f32 %v8748, %v9189
    %v9226 = vadd.f32 %v8749, %v9194
    %v9227 = vadd.f32 %v8750, %v9197
    %v9228 = vadd.f32 %v8751, %v9202
    %v9229 = vadd.f32 %v8752, %v9205
    %v9230 = vadd.f32 %v8753, %v9210
    %v9231 = vadd.f32 %v8754, %v9213
    %v9232 = vlaneseq
    %v9233 = vshrl.u32 %v9232, 7
    %v9234 = vlaneseq
    %v9235 = vand.u32 %v9234, 127
    %vm9236 = vcmp.eq.s32.totalorder %v9233, %v9235
    %v9237 = vsel %vm9236, 1, 0
    %v9238 = vcvt.s32.f32 %v9237
    %v9240 = vsel %vm28, %v9238, 0
    %v9243 = vsel %vm28, %v9216, 0
    %v9246 = vsel %vm28, %v9217, 0
    %v9249 = vsel %vm28, %v9218, 0
    %v9252 = vsel %vm28, %v9219, 0
    %v9255 = vsel %vm28, %v9220, 0
    %v9258 = vsel %vm28, %v9221, 0
    %v9261 = vsel %vm28, %v9222, 0
    %v9264 = vsel %vm28, %v9223, 0
    %v9267 = vsel %vm28, %v9224, 0
    %v9270 = vsel %vm28, %v9225, 0
    %v9273 = vsel %vm28, %v9226, 0
    %v9276 = vsel %vm28, %v9227, 0
    %v9279 = vsel %vm28, %v9228, 0
    %v9282 = vsel %vm28, %v9229, 0
    %v9285 = vsel %vm28, %v9230, 0
    %v9288 = vsel %vm28, %v9231, 0
    %9290 = vmatprep.subr.mxu0 0.0
    %9291 = vmatpush1.xpose.msra.mxu0 %v9243
    %9292 = vmatprep.subr.mxu0 0.0
    %9293 = vmatpush1.xpose.msra.mxu0 %v9246
    %9294 = vmatprep.subr.mxu0 0.0
    %9295 = vmatpush1.xpose.msra.mxu0 %v9249
    %9296 = vmatprep.subr.mxu0 0.0
    %9297 = vmatpush1.xpose.msra.mxu0 %v9252
    %9298 = vmatprep.subr.mxu0 0.0
    %9299 = vmatpush1.xpose.msra.mxu0 %v9255
    %9300 = vmatprep.subr.mxu0 0.0
    %9301 = vmatpush1.xpose.msra.mxu0 %v9258
    %9302 = vmatprep.subr.mxu0 0.0
    %9303 = vmatpush1.xpose.msra.mxu0 %v9261
    %9304 = vmatprep.subr.mxu0 0.0
    %9305 = vmatpush1.xpose.msra.mxu0 %v9264
    %9306 = vmatprep.subr.mxu0 0.0
    %9307 = vmatpush1.xpose.msra.mxu0 %v9267
    %9308 = vmatprep.subr.mxu0 0.0
    %9309 = vmatpush1.xpose.msra.mxu0 %v9270
    %9310 = vmatprep.subr.mxu0 0.0
    %9311 = vmatpush1.xpose.msra.mxu0 %v9273
    %9312 = vmatprep.subr.mxu0 0.0
    %9313 = vmatpush1.xpose.msra.mxu0 %v9276
    %9314 = vmatprep.subr.mxu0 0.0
    %9315 = vmatpush1.xpose.msra.mxu0 %v9279
    %9316 = vmatprep.subr.mxu0 0.0
    %9317 = vmatpush1.xpose.msra.mxu0 %v9282
    %9318 = vmatprep.subr.mxu0 0.0
    %9319 = vmatpush1.xpose.msra.mxu0 %v9285
    %9320 = vmatprep.subr.mxu0 0.0
    %9321 = vmatpush1.xpose.msra.mxu0 %v9288
    %9322 = vmatprep.subr.mxu0 0.0
    %9323 = vmatpush1.xpose.msra.mxu0 0.0
    %9324 = vmatprep.subr.mxu0 0.0
    %9325 = vmatpush1.xpose.msra.mxu0 0.0
    %9326 = vmatprep.subr.mxu0 0.0
    %9327 = vmatpush1.xpose.msra.mxu0 0.0
    %9328 = vmatprep.subr.mxu0 0.0
    %9329 = vmatpush1.xpose.msra.mxu0 0.0
    %9330 = vmatprep.subr.mxu0 0.0
    %9331 = vmatpush1.xpose.msra.mxu0 0.0
    %9332 = vmatprep.subr.mxu0 0.0
    %9333 = vmatpush1.xpose.msra.mxu0 0.0
    %9334 = vmatprep.subr.mxu0 0.0
    %9335 = vmatpush1.xpose.msra.mxu0 0.0
    %9336 = vmatprep.subr.mxu0 0.0
    %9337 = vmatpush1.xpose.msra.mxu0 0.0
    %9338 = vmatprep.subr.mxu0 0.0
    %9339 = vmatpush1.xpose.msra.mxu0 0.0
    %9340 = vmatprep.subr.mxu0 0.0
    %9341 = vmatpush1.xpose.msra.mxu0 0.0
    %9342 = vmatprep.subr.mxu0 0.0
    %9343 = vmatpush1.xpose.msra.mxu0 0.0
    %9344 = vmatprep.subr.mxu0 0.0
    %9345 = vmatpush1.xpose.msra.mxu0 0.0
    %9346 = vmatprep.subr.mxu0 0.0
    %9347 = vmatpush1.xpose.msra.mxu0 0.0
    %9348 = vmatprep.subr.mxu0 0.0
    %9349 = vmatpush1.xpose.msra.mxu0 0.0
    %9350 = vmatprep.subr.mxu0 0.0
    %9351 = vmatpush1.xpose.msra.mxu0 0.0
    %9352 = vmatprep.subr.mxu0 0.0
    %9353 = vmatpush1.xpose.msra.mxu0 0.0
    %9354 = vmatprep.mubr.f32.mxu0 0.0
    %9355 = vmatmul.mubr.f32.gmra.mrb[0].mxu0 %v9240
    %v9356 = vpop.f32.mrb[0].mxu0
    %v9357 = vadd.f32 0.0, %v9356
    %v9358 = vpop.f32.mrb[0].mxu0
    %9359 = vdwg.mxu0
    %9360 = vst [vmem:[#allocation4] sm:$0xff] %v9357
    // Predicated region
    $region30: #{tpu_custom_call.1} parent=1 // pred_check
      _
    $region31: #{tpu_custom_call.1} parent=1 // pred_check_branch
      %9362 = sbr.rel (0) target = $region33
    $region32: #{tpu_custom_call.1} parent=1 // pred_region
      %s9364 = ssub.s32 128, 128
      %9365 = vsyncadd [#allocation5], %s9364
      %s9367 = sshll.u32 [#allocation4], 4
      %s9368 = int_to_ptr.vmem [resolvable:$true] %s9367
      %9370 = dma.vmem_to_hbm [thread:$0]  %s9368, 128, %s7, [#allocation5]
    $region33: #{tpu_custom_call.1} parent=1 // pred_fallthru
      _
    // Predicated region
    $region34: #{tpu_custom_call.1} parent=1 // pred_check
      _
    $region35: #{tpu_custom_call.1} parent=1 // pred_check_branch
      %9372 = sbr.rel (0) target = $region37
    $region36: #{tpu_custom_call.1} parent=1 // pred_region
      %9373 = dma.done [#allocation5], 128
    $region37: #{tpu_custom_call.1} parent=1 // pred_fallthru
      _
    %9374 = vsyncpa [#allocation5], 1

</llo_original>
